<compile_context>
chip_gen: v7x
topology: tpu7x:2x2x1
jax: 0.10.0
libtpu: 0.0.40
codegen_flags: <defaults>
</compile_context>

<pallas_src>
import math

import numpy as np
import jax
import jax.numpy as jnp
from jax.experimental import pallas as pl
from jax.experimental.pallas import tpu as pltpu


# Fully unroll the time loop up to this many steps; longer sequences fall back
# to a rolled lax.fori_loop to keep compile time / code size bounded.
_TIME_UNROLL_MAX = 32


# ----------------------------------------------------------------------------
# Pallas kernel: the full recurrent forward in a single invocation.
# ----------------------------------------------------------------------------
def _recurrent_kernel(
    use_gt_ref,                       # SMEM (T-1,) int32  teacher-forcing flags
    x_ref,                            # VMEM (T, B, A*n_in)
    w1_ref, b1_ref,                   # (A*n_in, A*n_hid), (1, A*n_hid)   block-diag fc1_1
    w2_ref, b2_ref,                   # (A*n_hid, A*n_hid), (1, A*n_hid)  block-diag fc1_2
    wlstm_ref, bl_ref,                # (L, 2H, 4H) fused [Wih^T; Whh^T], (L, 1, 4H)
    w3_ref, b3_ref,                   # (H, H), (1, H)                    fc2_1
    w4_ref, b4_ref,                   # (H, A*n_out), (1, A*n_out)        fc2_2
    out_ref,                          # VMEM (T-1, F, B, A*n_out)
):
    Tm1, F, B, n_feat_out = out_ref.shape
    L = wlstm_ref.shape[0]
    H = wlstm_ref.shape[1] // 2

    # Hoist weight loads + bias broadcasts out of the time loop.
    w1 = w1_ref[...]
    w2 = w2_ref[...]
    w3 = w3_ref[...]
    w4 = w4_ref[...]
    wlstm = wlstm_ref[...]
    b1 = jnp.broadcast_to(b1_ref[...], (B, b1_ref.shape[1]))
    b2 = jnp.broadcast_to(b2_ref[...], (B, b2_ref.shape[1]))
    b3 = jnp.broadcast_to(b3_ref[...], (B, b3_ref.shape[1]))
    b4 = jnp.broadcast_to(b4_ref[...], (B, b4_ref.shape[1]))
    bl = jnp.broadcast_to(bl_ref[...], (L, B, bl_ref.shape[2]))

    def step_fn(inp, hs, cs):
        # fc1_1 + relu (dropout with do_prob=0 / eval mode is the identity)
        x = jnp.maximum(
            jnp.dot(inp, w1, preferred_element_type=jnp.float32) + b1, 0.0)
        # fc1_2 + relu    -> [B, H]  (== .view(B, -1))
        x = jnp.maximum(
            jnp.dot(x, w2, preferred_element_type=jnp.float32) + b2, 0.0)
        nh, nc = [], []
        for l in range(L):                             # stacked LSTM cells, seq_len=1
            # fused input/hidden matmul: [x | h] @ [[Wih^T],[Whh^T]]
            xh = jnp.concatenate([x, hs[l]], axis=1)   # [B, 2H] lane concat
            gates = (jnp.dot(xh, wlstm[l], preferred_element_type=jnp.float32)
                     + bl[l])                          # [B, 4H], gate order i,f,g,o
            i = jax.nn.sigmoid(gates[:, 0 * H:1 * H])
            f = jax.nn.sigmoid(gates[:, 1 * H:2 * H])
            g = jnp.tanh(gates[:, 2 * H:3 * H])
            o = jax.nn.sigmoid(gates[:, 3 * H:4 * H])
            c_new = f * cs[l] + i * g
            h_new = o * jnp.tanh(c_new)
            nh.append(h_new)
            nc.append(c_new)
            x = h_new
        # fc2_1 + relu, fc2_2, residual
        y = jnp.maximum(
            jnp.dot(x, w3, preferred_element_type=jnp.float32) + b3, 0.0)
        y = jnp.dot(y, w4, preferred_element_type=jnp.float32) + b4
        return y + inp, nh, nc

    def time_body(t, carry):
        hs, cs, prev = carry
        # teacher forcing vs. feedback of previous main-step prediction
        ins = jnp.where(use_gt_ref[t] > 0, x_ref[t], prev)     # [B, A*n_in]
        out, nh, nc = step_fn(ins, hs, cs)
        out_ref[pl.ds(t, 1), pl.ds(0, 1), :, :] = out[None, None]
        # extra forecast steps use a forked hidden state (not carried forward)
        # TODO(synk): for very large forecast_step switch this static unroll to
        # a rolled fori_loop.
        fh, fc, cur = nh, nc, out
        for fi in range(1, F):
            cur, fh, fc = step_fn(cur, fh, fc)
            out_ref[pl.ds(t, 1), pl.ds(fi, 1), :, :] = cur[None, None]
        return tuple(nh), tuple(nc), out

    zeros_h = tuple(jnp.zeros((B, H), jnp.float32) for _ in range(L))
    zeros_c = tuple(jnp.zeros((B, H), jnp.float32) for _ in range(L))
    carry = (zeros_h, zeros_c, jnp.zeros((B, n_feat_out), jnp.float32))

    if Tm1 <= _TIME_UNROLL_MAX:
        # Static unroll: trace-time loop, LLO sees across step boundaries.
        for t in range(Tm1):
            carry = time_body(t, carry)
    else:
        jax.lax.fori_loop(0, Tm1, time_body, carry)


# ----------------------------------------------------------------------------
# Wrapper: parameter packing, specs, output layout.
# ----------------------------------------------------------------------------
def recurrent_baseline_forward(inputs, params, prediction_steps,
                               burn_in=False, burn_in_steps=1, forecast_step=1):
    """inputs: [B, n_atoms, T, n_in]  ->  [B, n_atoms, forecast_step, T-1, n_out]"""
    B, A, T, n_in = inputs.shape
    n_hid = params["W1"].shape[0]
    n_out = params["W4"].shape[0] // A
    # residual 'y + ins' and the feedback path require matching feature dims
    assert n_out == n_in, "RecurrentBaseline requires n_out == n_in"
    H = A * n_hid
    L = params["Wih"].shape[0]
    F = forecast_step
    f32 = jnp.float32

    # --- glue: pack weights for the kernel (plain JAX, runs once) ---
    # Block-diagonal fc1 weights: acceptable while A*n_hid stays small; avoids
    # any in-kernel [B*A, n_hid] <-> [B, A*n_hid] relayouts.
    assert H <= 1024, "block-diag fc1 packing only intended for small A*n_hid"
    w1_k = jax.scipy.linalg.block_diag(*([params["W1"].T] * A)).astype(f32)  # [A*n_in, H]
    b1_k = jnp.tile(params["b1"], A)[None, :].astype(f32)
    w2_k = jax.scipy.linalg.block_diag(*([params["W2"].T] * A)).astype(f32)  # [H, H]
    b2_k = jnp.tile(params["b2"], A)[None, :].astype(f32)
    # Fused LSTM weight: gates = [x | h] @ [[Wih^T],[Whh^T]]   -> [L, 2H, 4H]
    wlstm_k = jnp.concatenate(
        [jnp.transpose(params["Wih"], (0, 2, 1)),
         jnp.transpose(params["Whh"], (0, 2, 1))], axis=1).astype(f32)
    bl_k = (params["bih"] + params["bhh"])[:, None, :].astype(f32)           # [L, 1, 4H]
    w3_k = params["W3"].T.astype(f32)                                        # [H, H]
    b3_k = params["b3"][None, :].astype(f32)
    w4_k = params["W4"].T.astype(f32)                                        # [H, A*n_out]
    b4_k = params["b4"][None, :].astype(f32)

    # time-major flattened input, batch padded to a full sublane group (>=8)
    B_pad = max(8, ((B + 7) // 8) * 8)
    x_seq = jnp.transpose(inputs, (2, 0, 1, 3)).reshape(T, B, A * n_in).astype(f32)
    x_seq = jnp.pad(x_seq, ((0, 0), (0, B_pad - B), (0, 0)))

    # teacher-forcing schedule (same control flow as the PyTorch forward)
    # TODO(synk): for forecast_step>1 the PyTorch code feeds the 4-D stacked
    # forecast back in (shape-broken); here feedback uses the main-step output.
    flags = []
    for step in range(T - 1):
        if burn_in:
            flags.append(1 if step <= burn_in_steps else 0)
        else:
            flags.append(1 if (step % prediction_steps) == 0 else 0)
    assert flags[0] == 1   # feedback buffer is never consumed before first write
    use_gt = jnp.asarray(flags, dtype=jnp.int32)

    vmem = pltpu.MemorySpace.VMEM
    smem = pltpu.MemorySpace.SMEM
    out = pl.pallas_call(
        _recurrent_kernel,
        out_shape=jax.ShapeDtypeStruct((T - 1, F, B_pad, A * n_out), f32),
        in_specs=[pl.BlockSpec(memory_space=smem)]            # use_gt flags
                 + [pl.BlockSpec(memory_space=vmem)] * 11,    # x_seq + weights
        out_specs=pl.BlockSpec(memory_space=vmem),
        compiler_params=pltpu.CompilerParams(
            vmem_limit_bytes=32 * 1024 * 1024),               # fits v5e/v6e/v7x budgets
    )(use_gt, x_seq, w1_k, b1_k, w2_k, b2_k, wlstm_k, bl_k,
      w3_k, b3_k, w4_k, b4_k)

    # drop batch padding; [T-1, F, B, A*n_out] -> [B, A, F, T-1, n_out]
    out = out[:, :, :B].reshape(T - 1, F, B, A, n_out)
    return jnp.transpose(out, (2, 3, 1, 0, 4)), use_gt


# ----------------------------------------------------------------------------
# Pure-JAX reference (mirrors the PyTorch module, eval mode).
# ----------------------------------------------------------------------------
def reference_forward(inputs, params, use_gt, forecast_step):
    B, A, T, n_in = inputs.shape
    n_hid = params["W1"].shape[0]
    n_out = params["W4"].shape[0] // A
    H = A * n_hid
    L = params["Wih"].shape[0]
    relu = lambda v: jnp.maximum(v, 0.0)
    sig = jax.nn.sigmoid

    def step(ins, h, c):                       # ins: [B, A, n_in]
        x = relu(ins @ params["W1"].T + params["b1"])
        x = relu(x @ params["W2"].T + params["b2"])
        x = x.reshape(B, -1)
        nh, nc = [], []
        for l in range(L):
            gates = (x @ params["Wih"][l].T + params["bih"][l]
                     + h[l] @ params["Whh"][l].T + params["bhh"][l])
            i, f = sig(gates[:, :H]), sig(gates[:, H:2 * H])
            g, o = jnp.tanh(gates[:, 2 * H:3 * H]), sig(gates[:, 3 * H:4 * H])
            cn = f * c[l] + i * g
            hn = o * jnp.tanh(cn)
            nh.append(hn); nc.append(cn)
            x = hn
        y = relu(x @ params["W3"].T + params["b3"])
        y = y @ params["W4"].T + params["b4"]
        return y.reshape(B, A, n_out) + ins, nh, nc

    h = [jnp.zeros((B, H), jnp.float32) for _ in range(L)]
    c = [jnp.zeros((B, H), jnp.float32) for _ in range(L)]
    prev, outs = None, []
    for t in range(T - 1):
        ins = inputs[:, :, t, :] if int(use_gt[t]) else prev
        out, h, c = step(ins, h, c)
        prev = out
        forecast, fh, fc = [out], h, c
        for _ in range(forecast_step - 1):
            o2, fh, fc = step(forecast[-1], fh, fc)
            forecast.append(o2)
        outs.append(jnp.stack(forecast, axis=2))     # [B, A, F, n_out]
    return jnp.stack(outs, axis=3)                    # [B, A, F, T-1, n_out]


# ----------------------------------------------------------------------------
# Deterministic parameter init (matches module __init__ shapes / init_weights).
# ----------------------------------------------------------------------------
def init_params(key, n_in, n_hid, n_out, n_atoms, n_layers):
    H = n_atoms * n_hid
    ks = jax.random.split(key, 8)

    def xavier(k, fo, fi):
        std = math.sqrt(2.0 / (fi + fo))
        return (std * jax.random.normal(k, (fo, fi))).astype(jnp.float32)

    u = 1.0 / math.sqrt(H)
    params = {
        "W1": xavier(ks[0], n_hid, n_in), "b1": jnp.full((n_hid,), 0.1, jnp.float32),
        "W2": xavier(ks[1], n_hid, n_hid), "b2": jnp.full((n_hid,), 0.1, jnp.float32),
        "W3": xavier(ks[2], H, H), "b3": jnp.full((H,), 0.1, jnp.float32),
        "W4": xavier(ks[3], n_atoms * n_out, H),
        "b4": jnp.full((n_atoms * n_out,), 0.1, jnp.float32),
        # nn.LSTM default init: U(-1/sqrt(H), 1/sqrt(H)); untouched by init_weights()
        "Wih": jax.random.uniform(ks[4], (n_layers, 4 * H, H), jnp.float32, -u, u),
        "Whh": jax.random.uniform(ks[5], (n_layers, 4 * H, H), jnp.float32, -u, u),
        "bih": jax.random.uniform(ks[6], (n_layers, 4 * H), jnp.float32, -u, u),
        "bhh": jax.random.uniform(ks[7], (n_layers, 4 * H), jnp.float32, -u, u),
    }
    # TODO(synk): self.bn (BatchNorm1d) is never used in forward(); not implemented.
    return params


if __name__ == "__main__":
    B, n_atoms, T = 2, 4, 8
    n_in = n_out = 4
    n_hid, n_layers = 32, 2
    prediction_steps, forecast_step = 2, 2   # exercises feedback + forecast paths

    root = jax.random.PRNGKey(0)
    k_param, k_data = jax.random.split(root)
    params = init_params(k_param, n_in, n_hid, n_out, n_atoms, n_layers)
    inputs = jax.random.normal(k_data, (B, n_atoms, T, n_in), jnp.float32)

    out, use_gt = recurrent_baseline_forward(
        inputs, params, prediction_steps, burn_in=False, forecast_step=forecast_step)
    out = jax.block_until_ready(out)

    ref = reference_forward(inputs, params, np.asarray(use_gt), forecast_step)
    np.testing.assert_allclose(np.asarray(out), np.asarray(ref), rtol=1e-3, atol=1e-3)
    assert out.shape == (B, n_atoms, forecast_step, T - 1, n_out)

    print("KERNEL_OK")
</pallas_src>

<mosaic_0001>
module attributes {stable_mosaic.version = 11 : i64} {
  func.func @_recurrent_kernel(%arg0: memref<7xi32, #tpu.memory_space<smem>>, %arg1: memref<8x8x16xf32, #tpu.memory_space<vmem>>, %arg2: memref<16x128xf32, #tpu.memory_space<vmem>>, %arg3: memref<1x128xf32, #tpu.memory_space<vmem>>, %arg4: memref<128x128xf32, #tpu.memory_space<vmem>>, %arg5: memref<1x128xf32, #tpu.memory_space<vmem>>, %arg6: memref<2x256x512xf32, #tpu.memory_space<vmem>>, %arg7: memref<2x1x512xf32, #tpu.memory_space<vmem>>, %arg8: memref<128x128xf32, #tpu.memory_space<vmem>>, %arg9: memref<1x128xf32, #tpu.memory_space<vmem>>, %arg10: memref<128x16xf32, #tpu.memory_space<vmem>>, %arg11: memref<1x16xf32, #tpu.memory_space<vmem>>, %arg12: memref<7x2x8x16xf32, #tpu.memory_space<vmem>>) attributes {dimension_semantics = [], scalar_prefetch = 0 : i64, scratch_operands = 0 : i64, tpu.core_type = #tpu.core_type<tc>} {
    %c0 = arith.constant 0 : index
    %c0_0 = arith.constant 0 : index
    %0 = vector.load %arg2[%c0, %c0_0] : memref<16x128xf32, #tpu.memory_space<vmem>>, vector<16x128xf32>
    %c0_1 = arith.constant 0 : index
    %c0_2 = arith.constant 0 : index
    %1 = vector.load %arg4[%c0_1, %c0_2] : memref<128x128xf32, #tpu.memory_space<vmem>>, vector<128x128xf32>
    %c0_3 = arith.constant 0 : index
    %c0_4 = arith.constant 0 : index
    %2 = vector.load %arg8[%c0_3, %c0_4] : memref<128x128xf32, #tpu.memory_space<vmem>>, vector<128x128xf32>
    %c0_5 = arith.constant 0 : index
    %c0_6 = arith.constant 0 : index
    %3 = vector.load %arg10[%c0_5, %c0_6] : memref<128x16xf32, #tpu.memory_space<vmem>>, vector<128x16xf32>
    %c0_7 = arith.constant 0 : index
    %c0_8 = arith.constant 0 : index
    %c0_9 = arith.constant 0 : index
    %4 = vector.load %arg6[%c0_7, %c0_8, %c0_9] : memref<2x256x512xf32, #tpu.memory_space<vmem>>, vector<2x256x512xf32>
    %c0_10 = arith.constant 0 : index
    %c0_11 = arith.constant 0 : index
    %5 = vector.load %arg3[%c0_10, %c0_11] : memref<1x128xf32, #tpu.memory_space<vmem>>, vector<1x128xf32>
    %6 = vector.shape_cast %5 : vector<1x128xf32> to vector<1x128xf32>
    %7 = vector.broadcast %6 : vector<1x128xf32> to vector<8x128xf32>
    %c0_12 = arith.constant 0 : index
    %c0_13 = arith.constant 0 : index
    %8 = vector.load %arg5[%c0_12, %c0_13] : memref<1x128xf32, #tpu.memory_space<vmem>>, vector<1x128xf32>
    %9 = vector.shape_cast %8 : vector<1x128xf32> to vector<1x128xf32>
    %10 = vector.broadcast %9 : vector<1x128xf32> to vector<8x128xf32>
    %c0_14 = arith.constant 0 : index
    %c0_15 = arith.constant 0 : index
    %11 = vector.load %arg9[%c0_14, %c0_15] : memref<1x128xf32, #tpu.memory_space<vmem>>, vector<1x128xf32>
    %12 = vector.shape_cast %11 : vector<1x128xf32> to vector<1x128xf32>
    %13 = vector.broadcast %12 : vector<1x128xf32> to vector<8x128xf32>
    %c0_16 = arith.constant 0 : index
    %c0_17 = arith.constant 0 : index
    %14 = vector.load %arg11[%c0_16, %c0_17] : memref<1x16xf32, #tpu.memory_space<vmem>>, vector<1x16xf32>
    %15 = vector.shape_cast %14 : vector<1x16xf32> to vector<1x16xf32>
    %16 = vector.broadcast %15 : vector<1x16xf32> to vector<8x16xf32>
    %c0_18 = arith.constant 0 : index
    %c0_19 = arith.constant 0 : index
    %c0_20 = arith.constant 0 : index
    %17 = vector.load %arg7[%c0_18, %c0_19, %c0_20] : memref<2x1x512xf32, #tpu.memory_space<vmem>>, vector<2x1x512xf32>
    %18 = vector.shape_cast %17 : vector<2x1x512xf32> to vector<2x1x512xf32>
    %19 = vector.broadcast %18 : vector<2x1x512xf32> to vector<2x8x512xf32>
    %cst = arith.constant 0.000000e+00 : f32
    %20 = vector.broadcast %cst : f32 to vector<8x128xf32>
    %cst_21 = arith.constant 0.000000e+00 : f32
    %21 = vector.broadcast %cst_21 : f32 to vector<8x128xf32>
    %cst_22 = arith.constant 0.000000e+00 : f32
    %22 = vector.broadcast %cst_22 : f32 to vector<8x128xf32>
    %cst_23 = arith.constant 0.000000e+00 : f32
    %23 = vector.broadcast %cst_23 : f32 to vector<8x128xf32>
    %cst_24 = arith.constant 0.000000e+00 : f32
    %24 = vector.broadcast %cst_24 : f32 to vector<8x16xf32>
    %c0_25 = arith.constant 0 : index
    %25 = memref.load %arg0[%c0_25] : memref<7xi32, #tpu.memory_space<smem>>
    %c0_i32 = arith.constant 0 : i32
    %26 = arith.cmpi sgt, %25, %c0_i32 : i32
    %c0_26 = arith.constant 0 : index
    %c0_27 = arith.constant 0 : index
    %c0_28 = arith.constant 0 : index
    %27 = vector.load %arg1[%c0_26, %c0_27, %c0_28] : memref<8x8x16xf32, #tpu.memory_space<vmem>>, vector<1x8x16xf32>
    %28 = vector.shape_cast %27 : vector<1x8x16xf32> to vector<8x16xf32>
    %29 = arith.select %26, %28, %24 : vector<8x16xf32>
    %cst_29 = arith.constant dense<0.000000e+00> : vector<8x128xf32>
    %30 = tpu.matmul %29, %0, %cst_29 {dimension_numbers = #tpu.dot_dimension_numbers<[1], [0], [0], [1], [0, 0, 1, 1], [], []>} : vector<8x16xf32>, vector<16x128xf32>, vector<8x128xf32> -> vector<8x128xf32>
    %31 = arith.addf %30, %7 : vector<8x128xf32>
    %cst_30 = arith.constant 0.000000e+00 : f32
    %32 = vector.broadcast %cst_30 : f32 to vector<8x128xf32>
    %33 = arith.maximumf %31, %32 : vector<8x128xf32>
    %cst_31 = arith.constant dense<0.000000e+00> : vector<8x128xf32>
    %34 = tpu.matmul %33, %1, %cst_31 {dimension_numbers = #tpu.dot_dimension_numbers<[1], [0], [0], [1], [0, 0, 1, 1], [], []>} : vector<8x128xf32>, vector<128x128xf32>, vector<8x128xf32> -> vector<8x128xf32>
    %35 = arith.addf %34, %10 : vector<8x128xf32>
    %cst_32 = arith.constant 0.000000e+00 : f32
    %36 = vector.broadcast %cst_32 : f32 to vector<8x128xf32>
    %37 = arith.maximumf %35, %36 : vector<8x128xf32>
    %38 = tpu.concatenate %37, %20 in 1 : vector<8x128xf32>, vector<8x128xf32> -> vector<8x256xf32>
    %39 = vector.extract_strided_slice %4 {offsets = [0, 0, 0], sizes = [1, 256, 512], strides = [1, 1, 1]} : vector<2x256x512xf32> to vector<1x256x512xf32>
    %40 = vector.shape_cast %39 : vector<1x256x512xf32> to vector<256x512xf32>
    %cst_33 = arith.constant dense<0.000000e+00> : vector<8x512xf32>
    %41 = tpu.matmul %38, %40, %cst_33 {dimension_numbers = #tpu.dot_dimension_numbers<[1], [0], [0], [1], [0, 0, 1, 1], [], []>} : vector<8x256xf32>, vector<256x512xf32>, vector<8x512xf32> -> vector<8x512xf32>
    %42 = vector.extract_strided_slice %19 {offsets = [0, 0, 0], sizes = [1, 8, 512], strides = [1, 1, 1]} : vector<2x8x512xf32> to vector<1x8x512xf32>
    %43 = vector.shape_cast %42 : vector<1x8x512xf32> to vector<8x512xf32>
    %44 = arith.addf %41, %43 : vector<8x512xf32>
    %45 = vector.extract_strided_slice %44 {offsets = [0, 0], sizes = [8, 128], strides = [1, 1]} : vector<8x512xf32> to vector<8x128xf32>
    %46 = arith.negf %45 : vector<8x128xf32>
    %47 = math.exp %46 : vector<8x128xf32>
    %cst_34 = arith.constant 1.000000e+00 : f32
    %48 = vector.broadcast %cst_34 : f32 to vector<8x128xf32>
    %49 = arith.addf %48, %47 : vector<8x128xf32>
    %50 = arith.divf %48, %49 : vector<8x128xf32>
    %51 = vector.extract_strided_slice %44 {offsets = [0, 128], sizes = [8, 128], strides = [1, 1]} : vector<8x512xf32> to vector<8x128xf32>
    %52 = arith.negf %51 : vector<8x128xf32>
    %53 = math.exp %52 : vector<8x128xf32>
    %cst_35 = arith.constant 1.000000e+00 : f32
    %54 = vector.broadcast %cst_35 : f32 to vector<8x128xf32>
    %55 = arith.addf %54, %53 : vector<8x128xf32>
    %56 = arith.divf %54, %55 : vector<8x128xf32>
    %57 = vector.extract_strided_slice %44 {offsets = [0, 256], sizes = [8, 128], strides = [1, 1]} : vector<8x512xf32> to vector<8x128xf32>
    %58 = math.tanh %57 : vector<8x128xf32>
    %59 = vector.extract_strided_slice %44 {offsets = [0, 384], sizes = [8, 128], strides = [1, 1]} : vector<8x512xf32> to vector<8x128xf32>
    %60 = arith.negf %59 : vector<8x128xf32>
    %61 = math.exp %60 : vector<8x128xf32>
    %cst_36 = arith.constant 1.000000e+00 : f32
    %62 = vector.broadcast %cst_36 : f32 to vector<8x128xf32>
    %63 = arith.addf %62, %61 : vector<8x128xf32>
    %64 = arith.divf %62, %63 : vector<8x128xf32>
    %65 = arith.mulf %56, %22 : vector<8x128xf32>
    %66 = arith.mulf %50, %58 : vector<8x128xf32>
    %67 = arith.addf %65, %66 : vector<8x128xf32>
    %68 = math.tanh %67 : vector<8x128xf32>
    %69 = arith.mulf %64, %68 : vector<8x128xf32>
    %70 = tpu.concatenate %69, %21 in 1 : vector<8x128xf32>, vector<8x128xf32> -> vector<8x256xf32>
    %71 = vector.extract_strided_slice %4 {offsets = [1, 0, 0], sizes = [1, 256, 512], strides = [1, 1, 1]} : vector<2x256x512xf32> to vector<1x256x512xf32>
    %72 = vector.shape_cast %71 : vector<1x256x512xf32> to vector<256x512xf32>
    %cst_37 = arith.constant dense<0.000000e+00> : vector<8x512xf32>
    %73 = tpu.matmul %70, %72, %cst_37 {dimension_numbers = #tpu.dot_dimension_numbers<[1], [0], [0], [1], [0, 0, 1, 1], [], []>} : vector<8x256xf32>, vector<256x512xf32>, vector<8x512xf32> -> vector<8x512xf32>
    %74 = vector.extract_strided_slice %19 {offsets = [1, 0, 0], sizes = [1, 8, 512], strides = [1, 1, 1]} : vector<2x8x512xf32> to vector<1x8x512xf32>
    %75 = vector.shape_cast %74 : vector<1x8x512xf32> to vector<8x512xf32>
    %76 = arith.addf %73, %75 : vector<8x512xf32>
    %77 = vector.extract_strided_slice %76 {offsets = [0, 0], sizes = [8, 128], strides = [1, 1]} : vector<8x512xf32> to vector<8x128xf32>
    %78 = arith.negf %77 : vector<8x128xf32>
    %79 = math.exp %78 : vector<8x128xf32>
    %cst_38 = arith.constant 1.000000e+00 : f32
    %80 = vector.broadcast %cst_38 : f32 to vector<8x128xf32>
    %81 = arith.addf %80, %79 : vector<8x128xf32>
    %82 = arith.divf %80, %81 : vector<8x128xf32>
    %83 = vector.extract_strided_slice %76 {offsets = [0, 128], sizes = [8, 128], strides = [1, 1]} : vector<8x512xf32> to vector<8x128xf32>
    %84 = arith.negf %83 : vector<8x128xf32>
    %85 = math.exp %84 : vector<8x128xf32>
    %cst_39 = arith.constant 1.000000e+00 : f32
    %86 = vector.broadcast %cst_39 : f32 to vector<8x128xf32>
    %87 = arith.addf %86, %85 : vector<8x128xf32>
    %88 = arith.divf %86, %87 : vector<8x128xf32>
    %89 = vector.extract_strided_slice %76 {offsets = [0, 256], sizes = [8, 128], strides = [1, 1]} : vector<8x512xf32> to vector<8x128xf32>
    %90 = math.tanh %89 : vector<8x128xf32>
    %91 = vector.extract_strided_slice %76 {offsets = [0, 384], sizes = [8, 128], strides = [1, 1]} : vector<8x512xf32> to vector<8x128xf32>
    %92 = arith.negf %91 : vector<8x128xf32>
    %93 = math.exp %92 : vector<8x128xf32>
    %cst_40 = arith.constant 1.000000e+00 : f32
    %94 = vector.broadcast %cst_40 : f32 to vector<8x128xf32>
    %95 = arith.addf %94, %93 : vector<8x128xf32>
    %96 = arith.divf %94, %95 : vector<8x128xf32>
    %97 = arith.mulf %88, %23 : vector<8x128xf32>
    %98 = arith.mulf %82, %90 : vector<8x128xf32>
    %99 = arith.addf %97, %98 : vector<8x128xf32>
    %100 = math.tanh %99 : vector<8x128xf32>
    %101 = arith.mulf %96, %100 : vector<8x128xf32>
    %cst_41 = arith.constant dense<0.000000e+00> : vector<8x128xf32>
    %102 = tpu.matmul %101, %2, %cst_41 {dimension_numbers = #tpu.dot_dimension_numbers<[1], [0], [0], [1], [0, 0, 1, 1], [], []>} : vector<8x128xf32>, vector<128x128xf32>, vector<8x128xf32> -> vector<8x128xf32>
    %103 = arith.addf %102, %13 : vector<8x128xf32>
    %cst_42 = arith.constant 0.000000e+00 : f32
    %104 = vector.broadcast %cst_42 : f32 to vector<8x128xf32>
    %105 = arith.maximumf %103, %104 : vector<8x128xf32>
    %cst_43 = arith.constant dense<0.000000e+00> : vector<8x16xf32>
    %106 = tpu.matmul %105, %3, %cst_43 {dimension_numbers = #tpu.dot_dimension_numbers<[1], [0], [0], [1], [0, 0, 1, 1], [], []>} : vector<8x128xf32>, vector<128x16xf32>, vector<8x16xf32> -> vector<8x16xf32>
    %107 = arith.addf %106, %16 : vector<8x16xf32>
    %108 = arith.addf %107, %29 : vector<8x16xf32>
    %109 = vector.shape_cast %108 : vector<8x16xf32> to vector<1x1x8x16xf32>
    %c0_44 = arith.constant 0 : index
    %c0_45 = arith.constant 0 : index
    %c0_46 = arith.constant 0 : index
    %c0_47 = arith.constant 0 : index
    %110 = vector.load %arg12[%c0_44, %c0_45, %c0_46, %c0_47] : memref<7x2x8x16xf32, #tpu.memory_space<vmem>>, vector<1x1x8x16xf32>
    tpu.vector_store %arg12[%c0_44, %c0_45, %c0_46, %c0_47], %109 {strides = array<i32>} : memref<7x2x8x16xf32, #tpu.memory_space<vmem>>, vector<1x1x8x16xf32>,
    %cst_48 = arith.constant dense<0.000000e+00> : vector<8x128xf32>
    %111 = tpu.matmul %108, %0, %cst_48 {dimension_numbers = #tpu.dot_dimension_numbers<[1], [0], [0], [1], [0, 0, 1, 1], [], []>} : vector<8x16xf32>, vector<16x128xf32>, vector<8x128xf32> -> vector<8x128xf32>
    %112 = arith.addf %111, %7 : vector<8x128xf32>
    %cst_49 = arith.constant 0.000000e+00 : f32
    %113 = vector.broadcast %cst_49 : f32 to vector<8x128xf32>
    %114 = arith.maximumf %112, %113 : vector<8x128xf32>
    %cst_50 = arith.constant dense<0.000000e+00> : vector<8x128xf32>
    %115 = tpu.matmul %114, %1, %cst_50 {dimension_numbers = #tpu.dot_dimension_numbers<[1], [0], [0], [1], [0, 0, 1, 1], [], []>} : vector<8x128xf32>, vector<128x128xf32>, vector<8x128xf32> -> vector<8x128xf32>
    %116 = arith.addf %115, %10 : vector<8x128xf32>
    %cst_51 = arith.constant 0.000000e+00 : f32
    %117 = vector.broadcast %cst_51 : f32 to vector<8x128xf32>
    %118 = arith.maximumf %116, %117 : vector<8x128xf32>
    %119 = tpu.concatenate %118, %69 in 1 : vector<8x128xf32>, vector<8x128xf32> -> vector<8x256xf32>
    %120 = vector.extract_strided_slice %4 {offsets = [0, 0, 0], sizes = [1, 256, 512], strides = [1, 1, 1]} : vector<2x256x512xf32> to vector<1x256x512xf32>
    %121 = vector.shape_cast %120 : vector<1x256x512xf32> to vector<256x512xf32>
    %cst_52 = arith.constant dense<0.000000e+00> : vector<8x512xf32>
    %122 = tpu.matmul %119, %121, %cst_52 {dimension_numbers = #tpu.dot_dimension_numbers<[1], [0], [0], [1], [0, 0, 1, 1], [], []>} : vector<8x256xf32>, vector<256x512xf32>, vector<8x512xf32> -> vector<8x512xf32>
    %123 = vector.extract_strided_slice %19 {offsets = [0, 0, 0], sizes = [1, 8, 512], strides = [1, 1, 1]} : vector<2x8x512xf32> to vector<1x8x512xf32>
    %124 = vector.shape_cast %123 : vector<1x8x512xf32> to vector<8x512xf32>
    %125 = arith.addf %122, %124 : vector<8x512xf32>
    %126 = vector.extract_strided_slice %125 {offsets = [0, 0], sizes = [8, 128], strides = [1, 1]} : vector<8x512xf32> to vector<8x128xf32>
    %127 = arith.negf %126 : vector<8x128xf32>
    %128 = math.exp %127 : vector<8x128xf32>
    %cst_53 = arith.constant 1.000000e+00 : f32
    %129 = vector.broadcast %cst_53 : f32 to vector<8x128xf32>
    %130 = arith.addf %129, %128 : vector<8x128xf32>
    %131 = arith.divf %129, %130 : vector<8x128xf32>
    %132 = vector.extract_strided_slice %125 {offsets = [0, 128], sizes = [8, 128], strides = [1, 1]} : vector<8x512xf32> to vector<8x128xf32>
    %133 = arith.negf %132 : vector<8x128xf32>
    %134 = math.exp %133 : vector<8x128xf32>
    %cst_54 = arith.constant 1.000000e+00 : f32
    %135 = vector.broadcast %cst_54 : f32 to vector<8x128xf32>
    %136 = arith.addf %135, %134 : vector<8x128xf32>
    %137 = arith.divf %135, %136 : vector<8x128xf32>
    %138 = vector.extract_strided_slice %125 {offsets = [0, 256], sizes = [8, 128], strides = [1, 1]} : vector<8x512xf32> to vector<8x128xf32>
    %139 = math.tanh %138 : vector<8x128xf32>
    %140 = vector.extract_strided_slice %125 {offsets = [0, 384], sizes = [8, 128], strides = [1, 1]} : vector<8x512xf32> to vector<8x128xf32>
    %141 = arith.negf %140 : vector<8x128xf32>
    %142 = math.exp %141 : vector<8x128xf32>
    %cst_55 = arith.constant 1.000000e+00 : f32
    %143 = vector.broadcast %cst_55 : f32 to vector<8x128xf32>
    %144 = arith.addf %143, %142 : vector<8x128xf32>
    %145 = arith.divf %143, %144 : vector<8x128xf32>
    %146 = arith.mulf %137, %67 : vector<8x128xf32>
    %147 = arith.mulf %131, %139 : vector<8x128xf32>
    %148 = arith.addf %146, %147 : vector<8x128xf32>
    %149 = math.tanh %148 : vector<8x128xf32>
    %150 = arith.mulf %145, %149 : vector<8x128xf32>
    %151 = tpu.concatenate %150, %101 in 1 : vector<8x128xf32>, vector<8x128xf32> -> vector<8x256xf32>
    %152 = vector.extract_strided_slice %4 {offsets = [1, 0, 0], sizes = [1, 256, 512], strides = [1, 1, 1]} : vector<2x256x512xf32> to vector<1x256x512xf32>
    %153 = vector.shape_cast %152 : vector<1x256x512xf32> to vector<256x512xf32>
    %cst_56 = arith.constant dense<0.000000e+00> : vector<8x512xf32>
    %154 = tpu.matmul %151, %153, %cst_56 {dimension_numbers = #tpu.dot_dimension_numbers<[1], [0], [0], [1], [0, 0, 1, 1], [], []>} : vector<8x256xf32>, vector<256x512xf32>, vector<8x512xf32> -> vector<8x512xf32>
    %155 = vector.extract_strided_slice %19 {offsets = [1, 0, 0], sizes = [1, 8, 512], strides = [1, 1, 1]} : vector<2x8x512xf32> to vector<1x8x512xf32>
    %156 = vector.shape_cast %155 : vector<1x8x512xf32> to vector<8x512xf32>
    %157 = arith.addf %154, %156 : vector<8x512xf32>
    %158 = vector.extract_strided_slice %157 {offsets = [0, 0], sizes = [8, 128], strides = [1, 1]} : vector<8x512xf32> to vector<8x128xf32>
    %159 = arith.negf %158 : vector<8x128xf32>
    %160 = math.exp %159 : vector<8x128xf32>
    %cst_57 = arith.constant 1.000000e+00 : f32
    %161 = vector.broadcast %cst_57 : f32 to vector<8x128xf32>
    %162 = arith.addf %161, %160 : vector<8x128xf32>
    %163 = arith.divf %161, %162 : vector<8x128xf32>
    %164 = vector.extract_strided_slice %157 {offsets = [0, 128], sizes = [8, 128], strides = [1, 1]} : vector<8x512xf32> to vector<8x128xf32>
    %165 = arith.negf %164 : vector<8x128xf32>
    %166 = math.exp %165 : vector<8x128xf32>
    %cst_58 = arith.constant 1.000000e+00 : f32
    %167 = vector.broadcast %cst_58 : f32 to vector<8x128xf32>
    %168 = arith.addf %167, %166 : vector<8x128xf32>
    %169 = arith.divf %167, %168 : vector<8x128xf32>
    %170 = vector.extract_strided_slice %157 {offsets = [0, 256], sizes = [8, 128], strides = [1, 1]} : vector<8x512xf32> to vector<8x128xf32>
    %171 = math.tanh %170 : vector<8x128xf32>
    %172 = vector.extract_strided_slice %157 {offsets = [0, 384], sizes = [8, 128], strides = [1, 1]} : vector<8x512xf32> to vector<8x128xf32>
    %173 = arith.negf %172 : vector<8x128xf32>
    %174 = math.exp %173 : vector<8x128xf32>
    %cst_59 = arith.constant 1.000000e+00 : f32
    %175 = vector.broadcast %cst_59 : f32 to vector<8x128xf32>
    %176 = arith.addf %175, %174 : vector<8x128xf32>
    %177 = arith.divf %175, %176 : vector<8x128xf32>
    %178 = arith.mulf %169, %99 : vector<8x128xf32>
    %179 = arith.mulf %163, %171 : vector<8x128xf32>
    %180 = arith.addf %178, %179 : vector<8x128xf32>
    %181 = math.tanh %180 : vector<8x128xf32>
    %182 = arith.mulf %177, %181 : vector<8x128xf32>
    %cst_60 = arith.constant dense<0.000000e+00> : vector<8x128xf32>
    %183 = tpu.matmul %182, %2, %cst_60 {dimension_numbers = #tpu.dot_dimension_numbers<[1], [0], [0], [1], [0, 0, 1, 1], [], []>} : vector<8x128xf32>, vector<128x128xf32>, vector<8x128xf32> -> vector<8x128xf32>
    %184 = arith.addf %183, %13 : vector<8x128xf32>
    %cst_61 = arith.constant 0.000000e+00 : f32
    %185 = vector.broadcast %cst_61 : f32 to vector<8x128xf32>
    %186 = arith.maximumf %184, %185 : vector<8x128xf32>
    %cst_62 = arith.constant dense<0.000000e+00> : vector<8x16xf32>
    %187 = tpu.matmul %186, %3, %cst_62 {dimension_numbers = #tpu.dot_dimension_numbers<[1], [0], [0], [1], [0, 0, 1, 1], [], []>} : vector<8x128xf32>, vector<128x16xf32>, vector<8x16xf32> -> vector<8x16xf32>
    %188 = arith.addf %187, %16 : vector<8x16xf32>
    %189 = arith.addf %188, %108 : vector<8x16xf32>
    %190 = vector.shape_cast %189 : vector<8x16xf32> to vector<1x1x8x16xf32>
    %c0_63 = arith.constant 0 : index
    %c1 = arith.constant 1 : index
    %c0_64 = arith.constant 0 : index
    %c0_65 = arith.constant 0 : index
    %191 = vector.load %arg12[%c0_63, %c1, %c0_64, %c0_65] : memref<7x2x8x16xf32, #tpu.memory_space<vmem>>, vector<1x1x8x16xf32>
    tpu.vector_store %arg12[%c0_63, %c1, %c0_64, %c0_65], %190 {strides = array<i32>} : memref<7x2x8x16xf32, #tpu.memory_space<vmem>>, vector<1x1x8x16xf32>,
    %c1_66 = arith.constant 1 : index
    %192 = memref.load %arg0[%c1_66] : memref<7xi32, #tpu.memory_space<smem>>
    %c0_i32_67 = arith.constant 0 : i32
    %193 = arith.cmpi sgt, %192, %c0_i32_67 : i32
    %c1_68 = arith.constant 1 : index
    %c0_69 = arith.constant 0 : index
    %c0_70 = arith.constant 0 : index
    %194 = vector.load %arg1[%c1_68, %c0_69, %c0_70] : memref<8x8x16xf32, #tpu.memory_space<vmem>>, vector<1x8x16xf32>
    %195 = vector.shape_cast %194 : vector<1x8x16xf32> to vector<8x16xf32>
    %196 = arith.select %193, %195, %108 : vector<8x16xf32>
    %cst_71 = arith.constant dense<0.000000e+00> : vector<8x128xf32>
    %197 = tpu.matmul %196, %0, %cst_71 {dimension_numbers = #tpu.dot_dimension_numbers<[1], [0], [0], [1], [0, 0, 1, 1], [], []>} : vector<8x16xf32>, vector<16x128xf32>, vector<8x128xf32> -> vector<8x128xf32>
    %198 = arith.addf %197, %7 : vector<8x128xf32>
    %cst_72 = arith.constant 0.000000e+00 : f32
    %199 = vector.broadcast %cst_72 : f32 to vector<8x128xf32>
    %200 = arith.maximumf %198, %199 : vector<8x128xf32>
    %cst_73 = arith.constant dense<0.000000e+00> : vector<8x128xf32>
    %201 = tpu.matmul %200, %1, %cst_73 {dimension_numbers = #tpu.dot_dimension_numbers<[1], [0], [0], [1], [0, 0, 1, 1], [], []>} : vector<8x128xf32>, vector<128x128xf32>, vector<8x128xf32> -> vector<8x128xf32>
    %202 = arith.addf %201, %10 : vector<8x128xf32>
    %cst_74 = arith.constant 0.000000e+00 : f32
    %203 = vector.broadcast %cst_74 : f32 to vector<8x128xf32>
    %204 = arith.maximumf %202, %203 : vector<8x128xf32>
    %205 = tpu.concatenate %204, %69 in 1 : vector<8x128xf32>, vector<8x128xf32> -> vector<8x256xf32>
    %206 = vector.extract_strided_slice %4 {offsets = [0, 0, 0], sizes = [1, 256, 512], strides = [1, 1, 1]} : vector<2x256x512xf32> to vector<1x256x512xf32>
    %207 = vector.shape_cast %206 : vector<1x256x512xf32> to vector<256x512xf32>
    %cst_75 = arith.constant dense<0.000000e+00> : vector<8x512xf32>
    %208 = tpu.matmul %205, %207, %cst_75 {dimension_numbers = #tpu.dot_dimension_numbers<[1], [0], [0], [1], [0, 0, 1, 1], [], []>} : vector<8x256xf32>, vector<256x512xf32>, vector<8x512xf32> -> vector<8x512xf32>
    %209 = vector.extract_strided_slice %19 {offsets = [0, 0, 0], sizes = [1, 8, 512], strides = [1, 1, 1]} : vector<2x8x512xf32> to vector<1x8x512xf32>
    %210 = vector.shape_cast %209 : vector<1x8x512xf32> to vector<8x512xf32>
    %211 = arith.addf %208, %210 : vector<8x512xf32>
    %212 = vector.extract_strided_slice %211 {offsets = [0, 0], sizes = [8, 128], strides = [1, 1]} : vector<8x512xf32> to vector<8x128xf32>
    %213 = arith.negf %212 : vector<8x128xf32>
    %214 = math.exp %213 : vector<8x128xf32>
    %cst_76 = arith.constant 1.000000e+00 : f32
    %215 = vector.broadcast %cst_76 : f32 to vector<8x128xf32>
    %216 = arith.addf %215, %214 : vector<8x128xf32>
    %217 = arith.divf %215, %216 : vector<8x128xf32>
    %218 = vector.extract_strided_slice %211 {offsets = [0, 128], sizes = [8, 128], strides = [1, 1]} : vector<8x512xf32> to vector<8x128xf32>
    %219 = arith.negf %218 : vector<8x128xf32>
    %220 = math.exp %219 : vector<8x128xf32>
    %cst_77 = arith.constant 1.000000e+00 : f32
    %221 = vector.broadcast %cst_77 : f32 to vector<8x128xf32>
    %222 = arith.addf %221, %220 : vector<8x128xf32>
    %223 = arith.divf %221, %222 : vector<8x128xf32>
    %224 = vector.extract_strided_slice %211 {offsets = [0, 256], sizes = [8, 128], strides = [1, 1]} : vector<8x512xf32> to vector<8x128xf32>
    %225 = math.tanh %224 : vector<8x128xf32>
    %226 = vector.extract_strided_slice %211 {offsets = [0, 384], sizes = [8, 128], strides = [1, 1]} : vector<8x512xf32> to vector<8x128xf32>
    %227 = arith.negf %226 : vector<8x128xf32>
    %228 = math.exp %227 : vector<8x128xf32>
    %cst_78 = arith.constant 1.000000e+00 : f32
    %229 = vector.broadcast %cst_78 : f32 to vector<8x128xf32>
    %230 = arith.addf %229, %228 : vector<8x128xf32>
    %231 = arith.divf %229, %230 : vector<8x128xf32>
    %232 = arith.mulf %223, %67 : vector<8x128xf32>
    %233 = arith.mulf %217, %225 : vector<8x128xf32>
    %234 = arith.addf %232, %233 : vector<8x128xf32>
    %235 = math.tanh %234 : vector<8x128xf32>
    %236 = arith.mulf %231, %235 : vector<8x128xf32>
    %237 = tpu.concatenate %236, %101 in 1 : vector<8x128xf32>, vector<8x128xf32> -> vector<8x256xf32>
    %238 = vector.extract_strided_slice %4 {offsets = [1, 0, 0], sizes = [1, 256, 512], strides = [1, 1, 1]} : vector<2x256x512xf32> to vector<1x256x512xf32>
    %239 = vector.shape_cast %238 : vector<1x256x512xf32> to vector<256x512xf32>
    %cst_79 = arith.constant dense<0.000000e+00> : vector<8x512xf32>
    %240 = tpu.matmul %237, %239, %cst_79 {dimension_numbers = #tpu.dot_dimension_numbers<[1], [0], [0], [1], [0, 0, 1, 1], [], []>} : vector<8x256xf32>, vector<256x512xf32>, vector<8x512xf32> -> vector<8x512xf32>
    %241 = vector.extract_strided_slice %19 {offsets = [1, 0, 0], sizes = [1, 8, 512], strides = [1, 1, 1]} : vector<2x8x512xf32> to vector<1x8x512xf32>
    %242 = vector.shape_cast %241 : vector<1x8x512xf32> to vector<8x512xf32>
    %243 = arith.addf %240, %242 : vector<8x512xf32>
    %244 = vector.extract_strided_slice %243 {offsets = [0, 0], sizes = [8, 128], strides = [1, 1]} : vector<8x512xf32> to vector<8x128xf32>
    %245 = arith.negf %244 : vector<8x128xf32>
    %246 = math.exp %245 : vector<8x128xf32>
    %cst_80 = arith.constant 1.000000e+00 : f32
    %247 = vector.broadcast %cst_80 : f32 to vector<8x128xf32>
    %248 = arith.addf %247, %246 : vector<8x128xf32>
    %249 = arith.divf %247, %248 : vector<8x128xf32>
    %250 = vector.extract_strided_slice %243 {offsets = [0, 128], sizes = [8, 128], strides = [1, 1]} : vector<8x512xf32> to vector<8x128xf32>
    %251 = arith.negf %250 : vector<8x128xf32>
    %252 = math.exp %251 : vector<8x128xf32>
    %cst_81 = arith.constant 1.000000e+00 : f32
    %253 = vector.broadcast %cst_81 : f32 to vector<8x128xf32>
    %254 = arith.addf %253, %252 : vector<8x128xf32>
    %255 = arith.divf %253, %254 : vector<8x128xf32>
    %256 = vector.extract_strided_slice %243 {offsets = [0, 256], sizes = [8, 128], strides = [1, 1]} : vector<8x512xf32> to vector<8x128xf32>
    %257 = math.tanh %256 : vector<8x128xf32>
    %258 = vector.extract_strided_slice %243 {offsets = [0, 384], sizes = [8, 128], strides = [1, 1]} : vector<8x512xf32> to vector<8x128xf32>
    %259 = arith.negf %258 : vector<8x128xf32>
    %260 = math.exp %259 : vector<8x128xf32>
    %cst_82 = arith.constant 1.000000e+00 : f32
    %261 = vector.broadcast %cst_82 : f32 to vector<8x128xf32>
    %262 = arith.addf %261, %260 : vector<8x128xf32>
    %263 = arith.divf %261, %262 : vector<8x128xf32>
    %264 = arith.mulf %255, %99 : vector<8x128xf32>
    %265 = arith.mulf %249, %257 : vector<8x128xf32>
    %266 = arith.addf %264, %265 : vector<8x128xf32>
    %267 = math.tanh %266 : vector<8x128xf32>
    %268 = arith.mulf %263, %267 : vector<8x128xf32>
    %cst_83 = arith.constant dense<0.000000e+00> : vector<8x128xf32>
    %269 = tpu.matmul %268, %2, %cst_83 {dimension_numbers = #tpu.dot_dimension_numbers<[1], [0], [0], [1], [0, 0, 1, 1], [], []>} : vector<8x128xf32>, vector<128x128xf32>, vector<8x128xf32> -> vector<8x128xf32>
    %270 = arith.addf %269, %13 : vector<8x128xf32>
    %cst_84 = arith.constant 0.000000e+00 : f32
    %271 = vector.broadcast %cst_84 : f32 to vector<8x128xf32>
    %272 = arith.maximumf %270, %271 : vector<8x128xf32>
    %cst_85 = arith.constant dense<0.000000e+00> : vector<8x16xf32>
    %273 = tpu.matmul %272, %3, %cst_85 {dimension_numbers = #tpu.dot_dimension_numbers<[1], [0], [0], [1], [0, 0, 1, 1], [], []>} : vector<8x128xf32>, vector<128x16xf32>, vector<8x16xf32> -> vector<8x16xf32>
    %274 = arith.addf %273, %16 : vector<8x16xf32>
    %275 = arith.addf %274, %196 : vector<8x16xf32>
    %276 = vector.shape_cast %275 : vector<8x16xf32> to vector<1x1x8x16xf32>
    %c1_86 = arith.constant 1 : index
    %c0_87 = arith.constant 0 : index
    %c0_88 = arith.constant 0 : index
    %c0_89 = arith.constant 0 : index
    %277 = vector.load %arg12[%c1_86, %c0_87, %c0_88, %c0_89] : memref<7x2x8x16xf32, #tpu.memory_space<vmem>>, vector<1x1x8x16xf32>
    tpu.vector_store %arg12[%c1_86, %c0_87, %c0_88, %c0_89], %276 {strides = array<i32>} : memref<7x2x8x16xf32, #tpu.memory_space<vmem>>, vector<1x1x8x16xf32>,
    %cst_90 = arith.constant dense<0.000000e+00> : vector<8x128xf32>
    %278 = tpu.matmul %275, %0, %cst_90 {dimension_numbers = #tpu.dot_dimension_numbers<[1], [0], [0], [1], [0, 0, 1, 1], [], []>} : vector<8x16xf32>, vector<16x128xf32>, vector<8x128xf32> -> vector<8x128xf32>
    %279 = arith.addf %278, %7 : vector<8x128xf32>
    %cst_91 = arith.constant 0.000000e+00 : f32
    %280 = vector.broadcast %cst_91 : f32 to vector<8x128xf32>
    %281 = arith.maximumf %279, %280 : vector<8x128xf32>
    %cst_92 = arith.constant dense<0.000000e+00> : vector<8x128xf32>
    %282 = tpu.matmul %281, %1, %cst_92 {dimension_numbers = #tpu.dot_dimension_numbers<[1], [0], [0], [1], [0, 0, 1, 1], [], []>} : vector<8x128xf32>, vector<128x128xf32>, vector<8x128xf32> -> vector<8x128xf32>
    %283 = arith.addf %282, %10 : vector<8x128xf32>
    %cst_93 = arith.constant 0.000000e+00 : f32
    %284 = vector.broadcast %cst_93 : f32 to vector<8x128xf32>
    %285 = arith.maximumf %283, %284 : vector<8x128xf32>
    %286 = tpu.concatenate %285, %236 in 1 : vector<8x128xf32>, vector<8x128xf32> -> vector<8x256xf32>
    %287 = vector.extract_strided_slice %4 {offsets = [0, 0, 0], sizes = [1, 256, 512], strides = [1, 1, 1]} : vector<2x256x512xf32> to vector<1x256x512xf32>
    %288 = vector.shape_cast %287 : vector<1x256x512xf32> to vector<256x512xf32>
    %cst_94 = arith.constant dense<0.000000e+00> : vector<8x512xf32>
    %289 = tpu.matmul %286, %288, %cst_94 {dimension_numbers = #tpu.dot_dimension_numbers<[1], [0], [0], [1], [0, 0, 1, 1], [], []>} : vector<8x256xf32>, vector<256x512xf32>, vector<8x512xf32> -> vector<8x512xf32>
    %290 = vector.extract_strided_slice %19 {offsets = [0, 0, 0], sizes = [1, 8, 512], strides = [1, 1, 1]} : vector<2x8x512xf32> to vector<1x8x512xf32>
    %291 = vector.shape_cast %290 : vector<1x8x512xf32> to vector<8x512xf32>
    %292 = arith.addf %289, %291 : vector<8x512xf32>
    %293 = vector.extract_strided_slice %292 {offsets = [0, 0], sizes = [8, 128], strides = [1, 1]} : vector<8x512xf32> to vector<8x128xf32>
    %294 = arith.negf %293 : vector<8x128xf32>
    %295 = math.exp %294 : vector<8x128xf32>
    %cst_95 = arith.constant 1.000000e+00 : f32
    %296 = vector.broadcast %cst_95 : f32 to vector<8x128xf32>
    %297 = arith.addf %296, %295 : vector<8x128xf32>
    %298 = arith.divf %296, %297 : vector<8x128xf32>
    %299 = vector.extract_strided_slice %292 {offsets = [0, 128], sizes = [8, 128], strides = [1, 1]} : vector<8x512xf32> to vector<8x128xf32>
    %300 = arith.negf %299 : vector<8x128xf32>
    %301 = math.exp %300 : vector<8x128xf32>
    %cst_96 = arith.constant 1.000000e+00 : f32
    %302 = vector.broadcast %cst_96 : f32 to vector<8x128xf32>
    %303 = arith.addf %302, %301 : vector<8x128xf32>
    %304 = arith.divf %302, %303 : vector<8x128xf32>
    %305 = vector.extract_strided_slice %292 {offsets = [0, 256], sizes = [8, 128], strides = [1, 1]} : vector<8x512xf32> to vector<8x128xf32>
    %306 = math.tanh %305 : vector<8x128xf32>
    %307 = vector.extract_strided_slice %292 {offsets = [0, 384], sizes = [8, 128], strides = [1, 1]} : vector<8x512xf32> to vector<8x128xf32>
    %308 = arith.negf %307 : vector<8x128xf32>
    %309 = math.exp %308 : vector<8x128xf32>
    %cst_97 = arith.constant 1.000000e+00 : f32
    %310 = vector.broadcast %cst_97 : f32 to vector<8x128xf32>
    %311 = arith.addf %310, %309 : vector<8x128xf32>
    %312 = arith.divf %310, %311 : vector<8x128xf32>
    %313 = arith.mulf %304, %234 : vector<8x128xf32>
    %314 = arith.mulf %298, %306 : vector<8x128xf32>
    %315 = arith.addf %313, %314 : vector<8x128xf32>
    %316 = math.tanh %315 : vector<8x128xf32>
    %317 = arith.mulf %312, %316 : vector<8x128xf32>
    %318 = tpu.concatenate %317, %268 in 1 : vector<8x128xf32>, vector<8x128xf32> -> vector<8x256xf32>
    %319 = vector.extract_strided_slice %4 {offsets = [1, 0, 0], sizes = [1, 256, 512], strides = [1, 1, 1]} : vector<2x256x512xf32> to vector<1x256x512xf32>
    %320 = vector.shape_cast %319 : vector<1x256x512xf32> to vector<256x512xf32>
    %cst_98 = arith.constant dense<0.000000e+00> : vector<8x512xf32>
    %321 = tpu.matmul %318, %320, %cst_98 {dimension_numbers = #tpu.dot_dimension_numbers<[1], [0], [0], [1], [0, 0, 1, 1], [], []>} : vector<8x256xf32>, vector<256x512xf32>, vector<8x512xf32> -> vector<8x512xf32>
    %322 = vector.extract_strided_slice %19 {offsets = [1, 0, 0], sizes = [1, 8, 512], strides = [1, 1, 1]} : vector<2x8x512xf32> to vector<1x8x512xf32>
    %323 = vector.shape_cast %322 : vector<1x8x512xf32> to vector<8x512xf32>
    %324 = arith.addf %321, %323 : vector<8x512xf32>
    %325 = vector.extract_strided_slice %324 {offsets = [0, 0], sizes = [8, 128], strides = [1, 1]} : vector<8x512xf32> to vector<8x128xf32>
    %326 = arith.negf %325 : vector<8x128xf32>
    %327 = math.exp %326 : vector<8x128xf32>
    %cst_99 = arith.constant 1.000000e+00 : f32
    %328 = vector.broadcast %cst_99 : f32 to vector<8x128xf32>
    %329 = arith.addf %328, %327 : vector<8x128xf32>
    %330 = arith.divf %328, %329 : vector<8x128xf32>
    %331 = vector.extract_strided_slice %324 {offsets = [0, 128], sizes = [8, 128], strides = [1, 1]} : vector<8x512xf32> to vector<8x128xf32>
    %332 = arith.negf %331 : vector<8x128xf32>
    %333 = math.exp %332 : vector<8x128xf32>
    %cst_100 = arith.constant 1.000000e+00 : f32
    %334 = vector.broadcast %cst_100 : f32 to vector<8x128xf32>
    %335 = arith.addf %334, %333 : vector<8x128xf32>
    %336 = arith.divf %334, %335 : vector<8x128xf32>
    %337 = vector.extract_strided_slice %324 {offsets = [0, 256], sizes = [8, 128], strides = [1, 1]} : vector<8x512xf32> to vector<8x128xf32>
    %338 = math.tanh %337 : vector<8x128xf32>
    %339 = vector.extract_strided_slice %324 {offsets = [0, 384], sizes = [8, 128], strides = [1, 1]} : vector<8x512xf32> to vector<8x128xf32>
    %340 = arith.negf %339 : vector<8x128xf32>
    %341 = math.exp %340 : vector<8x128xf32>
    %cst_101 = arith.constant 1.000000e+00 : f32
    %342 = vector.broadcast %cst_101 : f32 to vector<8x128xf32>
    %343 = arith.addf %342, %341 : vector<8x128xf32>
    %344 = arith.divf %342, %343 : vector<8x128xf32>
    %345 = arith.mulf %336, %266 : vector<8x128xf32>
    %346 = arith.mulf %330, %338 : vector<8x128xf32>
    %347 = arith.addf %345, %346 : vector<8x128xf32>
    %348 = math.tanh %347 : vector<8x128xf32>
    %349 = arith.mulf %344, %348 : vector<8x128xf32>
    %cst_102 = arith.constant dense<0.000000e+00> : vector<8x128xf32>
    %350 = tpu.matmul %349, %2, %cst_102 {dimension_numbers = #tpu.dot_dimension_numbers<[1], [0], [0], [1], [0, 0, 1, 1], [], []>} : vector<8x128xf32>, vector<128x128xf32>, vector<8x128xf32> -> vector<8x128xf32>
    %351 = arith.addf %350, %13 : vector<8x128xf32>
    %cst_103 = arith.constant 0.000000e+00 : f32
    %352 = vector.broadcast %cst_103 : f32 to vector<8x128xf32>
    %353 = arith.maximumf %351, %352 : vector<8x128xf32>
    %cst_104 = arith.constant dense<0.000000e+00> : vector<8x16xf32>
    %354 = tpu.matmul %353, %3, %cst_104 {dimension_numbers = #tpu.dot_dimension_numbers<[1], [0], [0], [1], [0, 0, 1, 1], [], []>} : vector<8x128xf32>, vector<128x16xf32>, vector<8x16xf32> -> vector<8x16xf32>
    %355 = arith.addf %354, %16 : vector<8x16xf32>
    %356 = arith.addf %355, %275 : vector<8x16xf32>
    %357 = vector.shape_cast %356 : vector<8x16xf32> to vector<1x1x8x16xf32>
    %c1_105 = arith.constant 1 : index
    %c1_106 = arith.constant 1 : index
    %c0_107 = arith.constant 0 : index
    %c0_108 = arith.constant 0 : index
    %358 = vector.load %arg12[%c1_105, %c1_106, %c0_107, %c0_108] : memref<7x2x8x16xf32, #tpu.memory_space<vmem>>, vector<1x1x8x16xf32>
    tpu.vector_store %arg12[%c1_105, %c1_106, %c0_107, %c0_108], %357 {strides = array<i32>} : memref<7x2x8x16xf32, #tpu.memory_space<vmem>>, vector<1x1x8x16xf32>,
    %c2 = arith.constant 2 : index
    %359 = memref.load %arg0[%c2] : memref<7xi32, #tpu.memory_space<smem>>
    %c0_i32_109 = arith.constant 0 : i32
    %360 = arith.cmpi sgt, %359, %c0_i32_109 : i32
    %c2_110 = arith.constant 2 : index
    %c0_111 = arith.constant 0 : index
    %c0_112 = arith.constant 0 : index
    %361 = vector.load %arg1[%c2_110, %c0_111, %c0_112] : memref<8x8x16xf32, #tpu.memory_space<vmem>>, vector<1x8x16xf32>
    %362 = vector.shape_cast %361 : vector<1x8x16xf32> to vector<8x16xf32>
    %363 = arith.select %360, %362, %275 : vector<8x16xf32>
    %cst_113 = arith.constant dense<0.000000e+00> : vector<8x128xf32>
    %364 = tpu.matmul %363, %0, %cst_113 {dimension_numbers = #tpu.dot_dimension_numbers<[1], [0], [0], [1], [0, 0, 1, 1], [], []>} : vector<8x16xf32>, vector<16x128xf32>, vector<8x128xf32> -> vector<8x128xf32>
    %365 = arith.addf %364, %7 : vector<8x128xf32>
    %cst_114 = arith.constant 0.000000e+00 : f32
    %366 = vector.broadcast %cst_114 : f32 to vector<8x128xf32>
    %367 = arith.maximumf %365, %366 : vector<8x128xf32>
    %cst_115 = arith.constant dense<0.000000e+00> : vector<8x128xf32>
    %368 = tpu.matmul %367, %1, %cst_115 {dimension_numbers = #tpu.dot_dimension_numbers<[1], [0], [0], [1], [0, 0, 1, 1], [], []>} : vector<8x128xf32>, vector<128x128xf32>, vector<8x128xf32> -> vector<8x128xf32>
    %369 = arith.addf %368, %10 : vector<8x128xf32>
    %cst_116 = arith.constant 0.000000e+00 : f32
    %370 = vector.broadcast %cst_116 : f32 to vector<8x128xf32>
    %371 = arith.maximumf %369, %370 : vector<8x128xf32>
    %372 = tpu.concatenate %371, %236 in 1 : vector<8x128xf32>, vector<8x128xf32> -> vector<8x256xf32>
    %373 = vector.extract_strided_slice %4 {offsets = [0, 0, 0], sizes = [1, 256, 512], strides = [1, 1, 1]} : vector<2x256x512xf32> to vector<1x256x512xf32>
    %374 = vector.shape_cast %373 : vector<1x256x512xf32> to vector<256x512xf32>
    %cst_117 = arith.constant dense<0.000000e+00> : vector<8x512xf32>
    %375 = tpu.matmul %372, %374, %cst_117 {dimension_numbers = #tpu.dot_dimension_numbers<[1], [0], [0], [1], [0, 0, 1, 1], [], []>} : vector<8x256xf32>, vector<256x512xf32>, vector<8x512xf32> -> vector<8x512xf32>
    %376 = vector.extract_strided_slice %19 {offsets = [0, 0, 0], sizes = [1, 8, 512], strides = [1, 1, 1]} : vector<2x8x512xf32> to vector<1x8x512xf32>
    %377 = vector.shape_cast %376 : vector<1x8x512xf32> to vector<8x512xf32>
    %378 = arith.addf %375, %377 : vector<8x512xf32>
    %379 = vector.extract_strided_slice %378 {offsets = [0, 0], sizes = [8, 128], strides = [1, 1]} : vector<8x512xf32> to vector<8x128xf32>
    %380 = arith.negf %379 : vector<8x128xf32>
    %381 = math.exp %380 : vector<8x128xf32>
    %cst_118 = arith.constant 1.000000e+00 : f32
    %382 = vector.broadcast %cst_118 : f32 to vector<8x128xf32>
    %383 = arith.addf %382, %381 : vector<8x128xf32>
    %384 = arith.divf %382, %383 : vector<8x128xf32>
    %385 = vector.extract_strided_slice %378 {offsets = [0, 128], sizes = [8, 128], strides = [1, 1]} : vector<8x512xf32> to vector<8x128xf32>
    %386 = arith.negf %385 : vector<8x128xf32>
    %387 = math.exp %386 : vector<8x128xf32>
    %cst_119 = arith.constant 1.000000e+00 : f32
    %388 = vector.broadcast %cst_119 : f32 to vector<8x128xf32>
    %389 = arith.addf %388, %387 : vector<8x128xf32>
    %390 = arith.divf %388, %389 : vector<8x128xf32>
    %391 = vector.extract_strided_slice %378 {offsets = [0, 256], sizes = [8, 128], strides = [1, 1]} : vector<8x512xf32> to vector<8x128xf32>
    %392 = math.tanh %391 : vector<8x128xf32>
    %393 = vector.extract_strided_slice %378 {offsets = [0, 384], sizes = [8, 128], strides = [1, 1]} : vector<8x512xf32> to vector<8x128xf32>
    %394 = arith.negf %393 : vector<8x128xf32>
    %395 = math.exp %394 : vector<8x128xf32>
    %cst_120 = arith.constant 1.000000e+00 : f32
    %396 = vector.broadcast %cst_120 : f32 to vector<8x128xf32>
    %397 = arith.addf %396, %395 : vector<8x128xf32>
    %398 = arith.divf %396, %397 : vector<8x128xf32>
    %399 = arith.mulf %390, %234 : vector<8x128xf32>
    %400 = arith.mulf %384, %392 : vector<8x128xf32>
    %401 = arith.addf %399, %400 : vector<8x128xf32>
    %402 = math.tanh %401 : vector<8x128xf32>
    %403 = arith.mulf %398, %402 : vector<8x128xf32>
    %404 = tpu.concatenate %403, %268 in 1 : vector<8x128xf32>, vector<8x128xf32> -> vector<8x256xf32>
    %405 = vector.extract_strided_slice %4 {offsets = [1, 0, 0], sizes = [1, 256, 512], strides = [1, 1, 1]} : vector<2x256x512xf32> to vector<1x256x512xf32>
    %406 = vector.shape_cast %405 : vector<1x256x512xf32> to vector<256x512xf32>
    %cst_121 = arith.constant dense<0.000000e+00> : vector<8x512xf32>
    %407 = tpu.matmul %404, %406, %cst_121 {dimension_numbers = #tpu.dot_dimension_numbers<[1], [0], [0], [1], [0, 0, 1, 1], [], []>} : vector<8x256xf32>, vector<256x512xf32>, vector<8x512xf32> -> vector<8x512xf32>
    %408 = vector.extract_strided_slice %19 {offsets = [1, 0, 0], sizes = [1, 8, 512], strides = [1, 1, 1]} : vector<2x8x512xf32> to vector<1x8x512xf32>
    %409 = vector.shape_cast %408 : vector<1x8x512xf32> to vector<8x512xf32>
    %410 = arith.addf %407, %409 : vector<8x512xf32>
    %411 = vector.extract_strided_slice %410 {offsets = [0, 0], sizes = [8, 128], strides = [1, 1]} : vector<8x512xf32> to vector<8x128xf32>
    %412 = arith.negf %411 : vector<8x128xf32>
    %413 = math.exp %412 : vector<8x128xf32>
    %cst_122 = arith.constant 1.000000e+00 : f32
    %414 = vector.broadcast %cst_122 : f32 to vector<8x128xf32>
    %415 = arith.addf %414, %413 : vector<8x128xf32>
    %416 = arith.divf %414, %415 : vector<8x128xf32>
    %417 = vector.extract_strided_slice %410 {offsets = [0, 128], sizes = [8, 128], strides = [1, 1]} : vector<8x512xf32> to vector<8x128xf32>
    %418 = arith.negf %417 : vector<8x128xf32>
    %419 = math.exp %418 : vector<8x128xf32>
    %cst_123 = arith.constant 1.000000e+00 : f32
    %420 = vector.broadcast %cst_123 : f32 to vector<8x128xf32>
    %421 = arith.addf %420, %419 : vector<8x128xf32>
    %422 = arith.divf %420, %421 : vector<8x128xf32>
    %423 = vector.extract_strided_slice %410 {offsets = [0, 256], sizes = [8, 128], strides = [1, 1]} : vector<8x512xf32> to vector<8x128xf32>
    %424 = math.tanh %423 : vector<8x128xf32>
    %425 = vector.extract_strided_slice %410 {offsets = [0, 384], sizes = [8, 128], strides = [1, 1]} : vector<8x512xf32> to vector<8x128xf32>
    %426 = arith.negf %425 : vector<8x128xf32>
    %427 = math.exp %426 : vector<8x128xf32>
    %cst_124 = arith.constant 1.000000e+00 : f32
    %428 = vector.broadcast %cst_124 : f32 to vector<8x128xf32>
    %429 = arith.addf %428, %427 : vector<8x128xf32>
    %430 = arith.divf %428, %429 : vector<8x128xf32>
    %431 = arith.mulf %422, %266 : vector<8x128xf32>
    %432 = arith.mulf %416, %424 : vector<8x128xf32>
    %433 = arith.addf %431, %432 : vector<8x128xf32>
    %434 = math.tanh %433 : vector<8x128xf32>
    %435 = arith.mulf %430, %434 : vector<8x128xf32>
    %cst_125 = arith.constant dense<0.000000e+00> : vector<8x128xf32>
    %436 = tpu.matmul %435, %2, %cst_125 {dimension_numbers = #tpu.dot_dimension_numbers<[1], [0], [0], [1], [0, 0, 1, 1], [], []>} : vector<8x128xf32>, vector<128x128xf32>, vector<8x128xf32> -> vector<8x128xf32>
    %437 = arith.addf %436, %13 : vector<8x128xf32>
    %cst_126 = arith.constant 0.000000e+00 : f32
    %438 = vector.broadcast %cst_126 : f32 to vector<8x128xf32>
    %439 = arith.maximumf %437, %438 : vector<8x128xf32>
    %cst_127 = arith.constant dense<0.000000e+00> : vector<8x16xf32>
    %440 = tpu.matmul %439, %3, %cst_127 {dimension_numbers = #tpu.dot_dimension_numbers<[1], [0], [0], [1], [0, 0, 1, 1], [], []>} : vector<8x128xf32>, vector<128x16xf32>, vector<8x16xf32> -> vector<8x16xf32>
    %441 = arith.addf %440, %16 : vector<8x16xf32>
    %442 = arith.addf %441, %363 : vector<8x16xf32>
    %443 = vector.shape_cast %442 : vector<8x16xf32> to vector<1x1x8x16xf32>
    %c2_128 = arith.constant 2 : index
    %c0_129 = arith.constant 0 : index
    %c0_130 = arith.constant 0 : index
    %c0_131 = arith.constant 0 : index
    %444 = vector.load %arg12[%c2_128, %c0_129, %c0_130, %c0_131] : memref<7x2x8x16xf32, #tpu.memory_space<vmem>>, vector<1x1x8x16xf32>
    tpu.vector_store %arg12[%c2_128, %c0_129, %c0_130, %c0_131], %443 {strides = array<i32>} : memref<7x2x8x16xf32, #tpu.memory_space<vmem>>, vector<1x1x8x16xf32>,
    %cst_132 = arith.constant dense<0.000000e+00> : vector<8x128xf32>
    %445 = tpu.matmul %442, %0, %cst_132 {dimension_numbers = #tpu.dot_dimension_numbers<[1], [0], [0], [1], [0, 0, 1, 1], [], []>} : vector<8x16xf32>, vector<16x128xf32>, vector<8x128xf32> -> vector<8x128xf32>
    %446 = arith.addf %445, %7 : vector<8x128xf32>
    %cst_133 = arith.constant 0.000000e+00 : f32
    %447 = vector.broadcast %cst_133 : f32 to vector<8x128xf32>
    %448 = arith.maximumf %446, %447 : vector<8x128xf32>
    %cst_134 = arith.constant dense<0.000000e+00> : vector<8x128xf32>
    %449 = tpu.matmul %448, %1, %cst_134 {dimension_numbers = #tpu.dot_dimension_numbers<[1], [0], [0], [1], [0, 0, 1, 1], [], []>} : vector<8x128xf32>, vector<128x128xf32>, vector<8x128xf32> -> vector<8x128xf32>
    %450 = arith.addf %449, %10 : vector<8x128xf32>
    %cst_135 = arith.constant 0.000000e+00 : f32
    %451 = vector.broadcast %cst_135 : f32 to vector<8x128xf32>
    %452 = arith.maximumf %450, %451 : vector<8x128xf32>
    %453 = tpu.concatenate %452, %403 in 1 : vector<8x128xf32>, vector<8x128xf32> -> vector<8x256xf32>
    %454 = vector.extract_strided_slice %4 {offsets = [0, 0, 0], sizes = [1, 256, 512], strides = [1, 1, 1]} : vector<2x256x512xf32> to vector<1x256x512xf32>
    %455 = vector.shape_cast %454 : vector<1x256x512xf32> to vector<256x512xf32>
    %cst_136 = arith.constant dense<0.000000e+00> : vector<8x512xf32>
    %456 = tpu.matmul %453, %455, %cst_136 {dimension_numbers = #tpu.dot_dimension_numbers<[1], [0], [0], [1], [0, 0, 1, 1], [], []>} : vector<8x256xf32>, vector<256x512xf32>, vector<8x512xf32> -> vector<8x512xf32>
    %457 = vector.extract_strided_slice %19 {offsets = [0, 0, 0], sizes = [1, 8, 512], strides = [1, 1, 1]} : vector<2x8x512xf32> to vector<1x8x512xf32>
    %458 = vector.shape_cast %457 : vector<1x8x512xf32> to vector<8x512xf32>
    %459 = arith.addf %456, %458 : vector<8x512xf32>
    %460 = vector.extract_strided_slice %459 {offsets = [0, 0], sizes = [8, 128], strides = [1, 1]} : vector<8x512xf32> to vector<8x128xf32>
    %461 = arith.negf %460 : vector<8x128xf32>
    %462 = math.exp %461 : vector<8x128xf32>
    %cst_137 = arith.constant 1.000000e+00 : f32
    %463 = vector.broadcast %cst_137 : f32 to vector<8x128xf32>
    %464 = arith.addf %463, %462 : vector<8x128xf32>
    %465 = arith.divf %463, %464 : vector<8x128xf32>
    %466 = vector.extract_strided_slice %459 {offsets = [0, 128], sizes = [8, 128], strides = [1, 1]} : vector<8x512xf32> to vector<8x128xf32>
    %467 = arith.negf %466 : vector<8x128xf32>
    %468 = math.exp %467 : vector<8x128xf32>
    %cst_138 = arith.constant 1.000000e+00 : f32
    %469 = vector.broadcast %cst_138 : f32 to vector<8x128xf32>
    %470 = arith.addf %469, %468 : vector<8x128xf32>
    %471 = arith.divf %469, %470 : vector<8x128xf32>
    %472 = vector.extract_strided_slice %459 {offsets = [0, 256], sizes = [8, 128], strides = [1, 1]} : vector<8x512xf32> to vector<8x128xf32>
    %473 = math.tanh %472 : vector<8x128xf32>
    %474 = vector.extract_strided_slice %459 {offsets = [0, 384], sizes = [8, 128], strides = [1, 1]} : vector<8x512xf32> to vector<8x128xf32>
    %475 = arith.negf %474 : vector<8x128xf32>
    %476 = math.exp %475 : vector<8x128xf32>
    %cst_139 = arith.constant 1.000000e+00 : f32
    %477 = vector.broadcast %cst_139 : f32 to vector<8x128xf32>
    %478 = arith.addf %477, %476 : vector<8x128xf32>
    %479 = arith.divf %477, %478 : vector<8x128xf32>
    %480 = arith.mulf %471, %401 : vector<8x128xf32>
    %481 = arith.mulf %465, %473 : vector<8x128xf32>
    %482 = arith.addf %480, %481 : vector<8x128xf32>
    %483 = math.tanh %482 : vector<8x128xf32>
    %484 = arith.mulf %479, %483 : vector<8x128xf32>
    %485 = tpu.concatenate %484, %435 in 1 : vector<8x128xf32>, vector<8x128xf32> -> vector<8x256xf32>
    %486 = vector.extract_strided_slice %4 {offsets = [1, 0, 0], sizes = [1, 256, 512], strides = [1, 1, 1]} : vector<2x256x512xf32> to vector<1x256x512xf32>
    %487 = vector.shape_cast %486 : vector<1x256x512xf32> to vector<256x512xf32>
    %cst_140 = arith.constant dense<0.000000e+00> : vector<8x512xf32>
    %488 = tpu.matmul %485, %487, %cst_140 {dimension_numbers = #tpu.dot_dimension_numbers<[1], [0], [0], [1], [0, 0, 1, 1], [], []>} : vector<8x256xf32>, vector<256x512xf32>, vector<8x512xf32> -> vector<8x512xf32>
    %489 = vector.extract_strided_slice %19 {offsets = [1, 0, 0], sizes = [1, 8, 512], strides = [1, 1, 1]} : vector<2x8x512xf32> to vector<1x8x512xf32>
    %490 = vector.shape_cast %489 : vector<1x8x512xf32> to vector<8x512xf32>
    %491 = arith.addf %488, %490 : vector<8x512xf32>
    %492 = vector.extract_strided_slice %491 {offsets = [0, 0], sizes = [8, 128], strides = [1, 1]} : vector<8x512xf32> to vector<8x128xf32>
    %493 = arith.negf %492 : vector<8x128xf32>
    %494 = math.exp %493 : vector<8x128xf32>
    %cst_141 = arith.constant 1.000000e+00 : f32
    %495 = vector.broadcast %cst_141 : f32 to vector<8x128xf32>
    %496 = arith.addf %495, %494 : vector<8x128xf32>
    %497 = arith.divf %495, %496 : vector<8x128xf32>
    %498 = vector.extract_strided_slice %491 {offsets = [0, 128], sizes = [8, 128], strides = [1, 1]} : vector<8x512xf32> to vector<8x128xf32>
    %499 = arith.negf %498 : vector<8x128xf32>
    %500 = math.exp %499 : vector<8x128xf32>
    %cst_142 = arith.constant 1.000000e+00 : f32
    %501 = vector.broadcast %cst_142 : f32 to vector<8x128xf32>
    %502 = arith.addf %501, %500 : vector<8x128xf32>
    %503 = arith.divf %501, %502 : vector<8x128xf32>
    %504 = vector.extract_strided_slice %491 {offsets = [0, 256], sizes = [8, 128], strides = [1, 1]} : vector<8x512xf32> to vector<8x128xf32>
    %505 = math.tanh %504 : vector<8x128xf32>
    %506 = vector.extract_strided_slice %491 {offsets = [0, 384], sizes = [8, 128], strides = [1, 1]} : vector<8x512xf32> to vector<8x128xf32>
    %507 = arith.negf %506 : vector<8x128xf32>
    %508 = math.exp %507 : vector<8x128xf32>
    %cst_143 = arith.constant 1.000000e+00 : f32
    %509 = vector.broadcast %cst_143 : f32 to vector<8x128xf32>
    %510 = arith.addf %509, %508 : vector<8x128xf32>
    %511 = arith.divf %509, %510 : vector<8x128xf32>
    %512 = arith.mulf %503, %433 : vector<8x128xf32>
    %513 = arith.mulf %497, %505 : vector<8x128xf32>
    %514 = arith.addf %512, %513 : vector<8x128xf32>
    %515 = math.tanh %514 : vector<8x128xf32>
    %516 = arith.mulf %511, %515 : vector<8x128xf32>
    %cst_144 = arith.constant dense<0.000000e+00> : vector<8x128xf32>
    %517 = tpu.matmul %516, %2, %cst_144 {dimension_numbers = #tpu.dot_dimension_numbers<[1], [0], [0], [1], [0, 0, 1, 1], [], []>} : vector<8x128xf32>, vector<128x128xf32>, vector<8x128xf32> -> vector<8x128xf32>
    %518 = arith.addf %517, %13 : vector<8x128xf32>
    %cst_145 = arith.constant 0.000000e+00 : f32
    %519 = vector.broadcast %cst_145 : f32 to vector<8x128xf32>
    %520 = arith.maximumf %518, %519 : vector<8x128xf32>
    %cst_146 = arith.constant dense<0.000000e+00> : vector<8x16xf32>
    %521 = tpu.matmul %520, %3, %cst_146 {dimension_numbers = #tpu.dot_dimension_numbers<[1], [0], [0], [1], [0, 0, 1, 1], [], []>} : vector<8x128xf32>, vector<128x16xf32>, vector<8x16xf32> -> vector<8x16xf32>
    %522 = arith.addf %521, %16 : vector<8x16xf32>
    %523 = arith.addf %522, %442 : vector<8x16xf32>
    %524 = vector.shape_cast %523 : vector<8x16xf32> to vector<1x1x8x16xf32>
    %c2_147 = arith.constant 2 : index
    %c1_148 = arith.constant 1 : index
    %c0_149 = arith.constant 0 : index
    %c0_150 = arith.constant 0 : index
    %525 = vector.load %arg12[%c2_147, %c1_148, %c0_149, %c0_150] : memref<7x2x8x16xf32, #tpu.memory_space<vmem>>, vector<1x1x8x16xf32>
    tpu.vector_store %arg12[%c2_147, %c1_148, %c0_149, %c0_150], %524 {strides = array<i32>} : memref<7x2x8x16xf32, #tpu.memory_space<vmem>>, vector<1x1x8x16xf32>,
    %c3 = arith.constant 3 : index
    %526 = memref.load %arg0[%c3] : memref<7xi32, #tpu.memory_space<smem>>
    %c0_i32_151 = arith.constant 0 : i32
    %527 = arith.cmpi sgt, %526, %c0_i32_151 : i32
    %c3_152 = arith.constant 3 : index
    %c0_153 = arith.constant 0 : index
    %c0_154 = arith.constant 0 : index
    %528 = vector.load %arg1[%c3_152, %c0_153, %c0_154] : memref<8x8x16xf32, #tpu.memory_space<vmem>>, vector<1x8x16xf32>
    %529 = vector.shape_cast %528 : vector<1x8x16xf32> to vector<8x16xf32>
    %530 = arith.select %527, %529, %442 : vector<8x16xf32>
    %cst_155 = arith.constant dense<0.000000e+00> : vector<8x128xf32>
    %531 = tpu.matmul %530, %0, %cst_155 {dimension_numbers = #tpu.dot_dimension_numbers<[1], [0], [0], [1], [0, 0, 1, 1], [], []>} : vector<8x16xf32>, vector<16x128xf32>, vector<8x128xf32> -> vector<8x128xf32>
    %532 = arith.addf %531, %7 : vector<8x128xf32>
    %cst_156 = arith.constant 0.000000e+00 : f32
    %533 = vector.broadcast %cst_156 : f32 to vector<8x128xf32>
    %534 = arith.maximumf %532, %533 : vector<8x128xf32>
    %cst_157 = arith.constant dense<0.000000e+00> : vector<8x128xf32>
    %535 = tpu.matmul %534, %1, %cst_157 {dimension_numbers = #tpu.dot_dimension_numbers<[1], [0], [0], [1], [0, 0, 1, 1], [], []>} : vector<8x128xf32>, vector<128x128xf32>, vector<8x128xf32> -> vector<8x128xf32>
    %536 = arith.addf %535, %10 : vector<8x128xf32>
    %cst_158 = arith.constant 0.000000e+00 : f32
    %537 = vector.broadcast %cst_158 : f32 to vector<8x128xf32>
    %538 = arith.maximumf %536, %537 : vector<8x128xf32>
    %539 = tpu.concatenate %538, %403 in 1 : vector<8x128xf32>, vector<8x128xf32> -> vector<8x256xf32>
    %540 = vector.extract_strided_slice %4 {offsets = [0, 0, 0], sizes = [1, 256, 512], strides = [1, 1, 1]} : vector<2x256x512xf32> to vector<1x256x512xf32>
    %541 = vector.shape_cast %540 : vector<1x256x512xf32> to vector<256x512xf32>
    %cst_159 = arith.constant dense<0.000000e+00> : vector<8x512xf32>
    %542 = tpu.matmul %539, %541, %cst_159 {dimension_numbers = #tpu.dot_dimension_numbers<[1], [0], [0], [1], [0, 0, 1, 1], [], []>} : vector<8x256xf32>, vector<256x512xf32>, vector<8x512xf32> -> vector<8x512xf32>
    %543 = vector.extract_strided_slice %19 {offsets = [0, 0, 0], sizes = [1, 8, 512], strides = [1, 1, 1]} : vector<2x8x512xf32> to vector<1x8x512xf32>
    %544 = vector.shape_cast %543 : vector<1x8x512xf32> to vector<8x512xf32>
    %545 = arith.addf %542, %544 : vector<8x512xf32>
    %546 = vector.extract_strided_slice %545 {offsets = [0, 0], sizes = [8, 128], strides = [1, 1]} : vector<8x512xf32> to vector<8x128xf32>
    %547 = arith.negf %546 : vector<8x128xf32>
    %548 = math.exp %547 : vector<8x128xf32>
    %cst_160 = arith.constant 1.000000e+00 : f32
    %549 = vector.broadcast %cst_160 : f32 to vector<8x128xf32>
    %550 = arith.addf %549, %548 : vector<8x128xf32>
    %551 = arith.divf %549, %550 : vector<8x128xf32>
    %552 = vector.extract_strided_slice %545 {offsets = [0, 128], sizes = [8, 128], strides = [1, 1]} : vector<8x512xf32> to vector<8x128xf32>
    %553 = arith.negf %552 : vector<8x128xf32>
    %554 = math.exp %553 : vector<8x128xf32>
    %cst_161 = arith.constant 1.000000e+00 : f32
    %555 = vector.broadcast %cst_161 : f32 to vector<8x128xf32>
    %556 = arith.addf %555, %554 : vector<8x128xf32>
    %557 = arith.divf %555, %556 : vector<8x128xf32>
    %558 = vector.extract_strided_slice %545 {offsets = [0, 256], sizes = [8, 128], strides = [1, 1]} : vector<8x512xf32> to vector<8x128xf32>
    %559 = math.tanh %558 : vector<8x128xf32>
    %560 = vector.extract_strided_slice %545 {offsets = [0, 384], sizes = [8, 128], strides = [1, 1]} : vector<8x512xf32> to vector<8x128xf32>
    %561 = arith.negf %560 : vector<8x128xf32>
    %562 = math.exp %561 : vector<8x128xf32>
    %cst_162 = arith.constant 1.000000e+00 : f32
    %563 = vector.broadcast %cst_162 : f32 to vector<8x128xf32>
    %564 = arith.addf %563, %562 : vector<8x128xf32>
    %565 = arith.divf %563, %564 : vector<8x128xf32>
    %566 = arith.mulf %557, %401 : vector<8x128xf32>
    %567 = arith.mulf %551, %559 : vector<8x128xf32>
    %568 = arith.addf %566, %567 : vector<8x128xf32>
    %569 = math.tanh %568 : vector<8x128xf32>
    %570 = arith.mulf %565, %569 : vector<8x128xf32>
    %571 = tpu.concatenate %570, %435 in 1 : vector<8x128xf32>, vector<8x128xf32> -> vector<8x256xf32>
    %572 = vector.extract_strided_slice %4 {offsets = [1, 0, 0], sizes = [1, 256, 512], strides = [1, 1, 1]} : vector<2x256x512xf32> to vector<1x256x512xf32>
    %573 = vector.shape_cast %572 : vector<1x256x512xf32> to vector<256x512xf32>
    %cst_163 = arith.constant dense<0.000000e+00> : vector<8x512xf32>
    %574 = tpu.matmul %571, %573, %cst_163 {dimension_numbers = #tpu.dot_dimension_numbers<[1], [0], [0], [1], [0, 0, 1, 1], [], []>} : vector<8x256xf32>, vector<256x512xf32>, vector<8x512xf32> -> vector<8x512xf32>
    %575 = vector.extract_strided_slice %19 {offsets = [1, 0, 0], sizes = [1, 8, 512], strides = [1, 1, 1]} : vector<2x8x512xf32> to vector<1x8x512xf32>
    %576 = vector.shape_cast %575 : vector<1x8x512xf32> to vector<8x512xf32>
    %577 = arith.addf %574, %576 : vector<8x512xf32>
    %578 = vector.extract_strided_slice %577 {offsets = [0, 0], sizes = [8, 128], strides = [1, 1]} : vector<8x512xf32> to vector<8x128xf32>
    %579 = arith.negf %578 : vector<8x128xf32>
    %580 = math.exp %579 : vector<8x128xf32>
    %cst_164 = arith.constant 1.000000e+00 : f32
    %581 = vector.broadcast %cst_164 : f32 to vector<8x128xf32>
    %582 = arith.addf %581, %580 : vector<8x128xf32>
    %583 = arith.divf %581, %582 : vector<8x128xf32>
    %584 = vector.extract_strided_slice %577 {offsets = [0, 128], sizes = [8, 128], strides = [1, 1]} : vector<8x512xf32> to vector<8x128xf32>
    %585 = arith.negf %584 : vector<8x128xf32>
    %586 = math.exp %585 : vector<8x128xf32>
    %cst_165 = arith.constant 1.000000e+00 : f32
    %587 = vector.broadcast %cst_165 : f32 to vector<8x128xf32>
    %588 = arith.addf %587, %586 : vector<8x128xf32>
    %589 = arith.divf %587, %588 : vector<8x128xf32>
    %590 = vector.extract_strided_slice %577 {offsets = [0, 256], sizes = [8, 128], strides = [1, 1]} : vector<8x512xf32> to vector<8x128xf32>
    %591 = math.tanh %590 : vector<8x128xf32>
    %592 = vector.extract_strided_slice %577 {offsets = [0, 384], sizes = [8, 128], strides = [1, 1]} : vector<8x512xf32> to vector<8x128xf32>
    %593 = arith.negf %592 : vector<8x128xf32>
    %594 = math.exp %593 : vector<8x128xf32>
    %cst_166 = arith.constant 1.000000e+00 : f32
    %595 = vector.broadcast %cst_166 : f32 to vector<8x128xf32>
    %596 = arith.addf %595, %594 : vector<8x128xf32>
    %597 = arith.divf %595, %596 : vector<8x128xf32>
    %598 = arith.mulf %589, %433 : vector<8x128xf32>
    %599 = arith.mulf %583, %591 : vector<8x128xf32>
    %600 = arith.addf %598, %599 : vector<8x128xf32>
    %601 = math.tanh %600 : vector<8x128xf32>
    %602 = arith.mulf %597, %601 : vector<8x128xf32>
    %cst_167 = arith.constant dense<0.000000e+00> : vector<8x128xf32>
    %603 = tpu.matmul %602, %2, %cst_167 {dimension_numbers = #tpu.dot_dimension_numbers<[1], [0], [0], [1], [0, 0, 1, 1], [], []>} : vector<8x128xf32>, vector<128x128xf32>, vector<8x128xf32> -> vector<8x128xf32>
    %604 = arith.addf %603, %13 : vector<8x128xf32>
    %cst_168 = arith.constant 0.000000e+00 : f32
    %605 = vector.broadcast %cst_168 : f32 to vector<8x128xf32>
    %606 = arith.maximumf %604, %605 : vector<8x128xf32>
    %cst_169 = arith.constant dense<0.000000e+00> : vector<8x16xf32>
    %607 = tpu.matmul %606, %3, %cst_169 {dimension_numbers = #tpu.dot_dimension_numbers<[1], [0], [0], [1], [0, 0, 1, 1], [], []>} : vector<8x128xf32>, vector<128x16xf32>, vector<8x16xf32> -> vector<8x16xf32>
    %608 = arith.addf %607, %16 : vector<8x16xf32>
    %609 = arith.addf %608, %530 : vector<8x16xf32>
    %610 = vector.shape_cast %609 : vector<8x16xf32> to vector<1x1x8x16xf32>
    %c3_170 = arith.constant 3 : index
    %c0_171 = arith.constant 0 : index
    %c0_172 = arith.constant 0 : index
    %c0_173 = arith.constant 0 : index
    %611 = vector.load %arg12[%c3_170, %c0_171, %c0_172, %c0_173] : memref<7x2x8x16xf32, #tpu.memory_space<vmem>>, vector<1x1x8x16xf32>
    tpu.vector_store %arg12[%c3_170, %c0_171, %c0_172, %c0_173], %610 {strides = array<i32>} : memref<7x2x8x16xf32, #tpu.memory_space<vmem>>, vector<1x1x8x16xf32>,
    %cst_174 = arith.constant dense<0.000000e+00> : vector<8x128xf32>
    %612 = tpu.matmul %609, %0, %cst_174 {dimension_numbers = #tpu.dot_dimension_numbers<[1], [0], [0], [1], [0, 0, 1, 1], [], []>} : vector<8x16xf32>, vector<16x128xf32>, vector<8x128xf32> -> vector<8x128xf32>
    %613 = arith.addf %612, %7 : vector<8x128xf32>
    %cst_175 = arith.constant 0.000000e+00 : f32
    %614 = vector.broadcast %cst_175 : f32 to vector<8x128xf32>
    %615 = arith.maximumf %613, %614 : vector<8x128xf32>
    %cst_176 = arith.constant dense<0.000000e+00> : vector<8x128xf32>
    %616 = tpu.matmul %615, %1, %cst_176 {dimension_numbers = #tpu.dot_dimension_numbers<[1], [0], [0], [1], [0, 0, 1, 1], [], []>} : vector<8x128xf32>, vector<128x128xf32>, vector<8x128xf32> -> vector<8x128xf32>
    %617 = arith.addf %616, %10 : vector<8x128xf32>
    %cst_177 = arith.constant 0.000000e+00 : f32
    %618 = vector.broadcast %cst_177 : f32 to vector<8x128xf32>
    %619 = arith.maximumf %617, %618 : vector<8x128xf32>
    %620 = tpu.concatenate %619, %570 in 1 : vector<8x128xf32>, vector<8x128xf32> -> vector<8x256xf32>
    %621 = vector.extract_strided_slice %4 {offsets = [0, 0, 0], sizes = [1, 256, 512], strides = [1, 1, 1]} : vector<2x256x512xf32> to vector<1x256x512xf32>
    %622 = vector.shape_cast %621 : vector<1x256x512xf32> to vector<256x512xf32>
    %cst_178 = arith.constant dense<0.000000e+00> : vector<8x512xf32>
    %623 = tpu.matmul %620, %622, %cst_178 {dimension_numbers = #tpu.dot_dimension_numbers<[1], [0], [0], [1], [0, 0, 1, 1], [], []>} : vector<8x256xf32>, vector<256x512xf32>, vector<8x512xf32> -> vector<8x512xf32>
    %624 = vector.extract_strided_slice %19 {offsets = [0, 0, 0], sizes = [1, 8, 512], strides = [1, 1, 1]} : vector<2x8x512xf32> to vector<1x8x512xf32>
    %625 = vector.shape_cast %624 : vector<1x8x512xf32> to vector<8x512xf32>
    %626 = arith.addf %623, %625 : vector<8x512xf32>
    %627 = vector.extract_strided_slice %626 {offsets = [0, 0], sizes = [8, 128], strides = [1, 1]} : vector<8x512xf32> to vector<8x128xf32>
    %628 = arith.negf %627 : vector<8x128xf32>
    %629 = math.exp %628 : vector<8x128xf32>
    %cst_179 = arith.constant 1.000000e+00 : f32
    %630 = vector.broadcast %cst_179 : f32 to vector<8x128xf32>
    %631 = arith.addf %630, %629 : vector<8x128xf32>
    %632 = arith.divf %630, %631 : vector<8x128xf32>
    %633 = vector.extract_strided_slice %626 {offsets = [0, 128], sizes = [8, 128], strides = [1, 1]} : vector<8x512xf32> to vector<8x128xf32>
    %634 = arith.negf %633 : vector<8x128xf32>
    %635 = math.exp %634 : vector<8x128xf32>
    %cst_180 = arith.constant 1.000000e+00 : f32
    %636 = vector.broadcast %cst_180 : f32 to vector<8x128xf32>
    %637 = arith.addf %636, %635 : vector<8x128xf32>
    %638 = arith.divf %636, %637 : vector<8x128xf32>
    %639 = vector.extract_strided_slice %626 {offsets = [0, 256], sizes = [8, 128], strides = [1, 1]} : vector<8x512xf32> to vector<8x128xf32>
    %640 = math.tanh %639 : vector<8x128xf32>
    %641 = vector.extract_strided_slice %626 {offsets = [0, 384], sizes = [8, 128], strides = [1, 1]} : vector<8x512xf32> to vector<8x128xf32>
    %642 = arith.negf %641 : vector<8x128xf32>
    %643 = math.exp %642 : vector<8x128xf32>
    %cst_181 = arith.constant 1.000000e+00 : f32
    %644 = vector.broadcast %cst_181 : f32 to vector<8x128xf32>
    %645 = arith.addf %644, %643 : vector<8x128xf32>
    %646 = arith.divf %644, %645 : vector<8x128xf32>
    %647 = arith.mulf %638, %568 : vector<8x128xf32>
    %648 = arith.mulf %632, %640 : vector<8x128xf32>
    %649 = arith.addf %647, %648 : vector<8x128xf32>
    %650 = math.tanh %649 : vector<8x128xf32>
    %651 = arith.mulf %646, %650 : vector<8x128xf32>
    %652 = tpu.concatenate %651, %602 in 1 : vector<8x128xf32>, vector<8x128xf32> -> vector<8x256xf32>
    %653 = vector.extract_strided_slice %4 {offsets = [1, 0, 0], sizes = [1, 256, 512], strides = [1, 1, 1]} : vector<2x256x512xf32> to vector<1x256x512xf32>
    %654 = vector.shape_cast %653 : vector<1x256x512xf32> to vector<256x512xf32>
    %cst_182 = arith.constant dense<0.000000e+00> : vector<8x512xf32>
    %655 = tpu.matmul %652, %654, %cst_182 {dimension_numbers = #tpu.dot_dimension_numbers<[1], [0], [0], [1], [0, 0, 1, 1], [], []>} : vector<8x256xf32>, vector<256x512xf32>, vector<8x512xf32> -> vector<8x512xf32>
    %656 = vector.extract_strided_slice %19 {offsets = [1, 0, 0], sizes = [1, 8, 512], strides = [1, 1, 1]} : vector<2x8x512xf32> to vector<1x8x512xf32>
    %657 = vector.shape_cast %656 : vector<1x8x512xf32> to vector<8x512xf32>
    %658 = arith.addf %655, %657 : vector<8x512xf32>
    %659 = vector.extract_strided_slice %658 {offsets = [0, 0], sizes = [8, 128], strides = [1, 1]} : vector<8x512xf32> to vector<8x128xf32>
    %660 = arith.negf %659 : vector<8x128xf32>
    %661 = math.exp %660 : vector<8x128xf32>
    %cst_183 = arith.constant 1.000000e+00 : f32
    %662 = vector.broadcast %cst_183 : f32 to vector<8x128xf32>
    %663 = arith.addf %662, %661 : vector<8x128xf32>
    %664 = arith.divf %662, %663 : vector<8x128xf32>
    %665 = vector.extract_strided_slice %658 {offsets = [0, 128], sizes = [8, 128], strides = [1, 1]} : vector<8x512xf32> to vector<8x128xf32>
    %666 = arith.negf %665 : vector<8x128xf32>
    %667 = math.exp %666 : vector<8x128xf32>
    %cst_184 = arith.constant 1.000000e+00 : f32
    %668 = vector.broadcast %cst_184 : f32 to vector<8x128xf32>
    %669 = arith.addf %668, %667 : vector<8x128xf32>
    %670 = arith.divf %668, %669 : vector<8x128xf32>
    %671 = vector.extract_strided_slice %658 {offsets = [0, 256], sizes = [8, 128], strides = [1, 1]} : vector<8x512xf32> to vector<8x128xf32>
    %672 = math.tanh %671 : vector<8x128xf32>
    %673 = vector.extract_strided_slice %658 {offsets = [0, 384], sizes = [8, 128], strides = [1, 1]} : vector<8x512xf32> to vector<8x128xf32>
    %674 = arith.negf %673 : vector<8x128xf32>
    %675 = math.exp %674 : vector<8x128xf32>
    %cst_185 = arith.constant 1.000000e+00 : f32
    %676 = vector.broadcast %cst_185 : f32 to vector<8x128xf32>
    %677 = arith.addf %676, %675 : vector<8x128xf32>
    %678 = arith.divf %676, %677 : vector<8x128xf32>
    %679 = arith.mulf %670, %600 : vector<8x128xf32>
    %680 = arith.mulf %664, %672 : vector<8x128xf32>
    %681 = arith.addf %679, %680 : vector<8x128xf32>
    %682 = math.tanh %681 : vector<8x128xf32>
    %683 = arith.mulf %678, %682 : vector<8x128xf32>
    %cst_186 = arith.constant dense<0.000000e+00> : vector<8x128xf32>
    %684 = tpu.matmul %683, %2, %cst_186 {dimension_numbers = #tpu.dot_dimension_numbers<[1], [0], [0], [1], [0, 0, 1, 1], [], []>} : vector<8x128xf32>, vector<128x128xf32>, vector<8x128xf32> -> vector<8x128xf32>
    %685 = arith.addf %684, %13 : vector<8x128xf32>
    %cst_187 = arith.constant 0.000000e+00 : f32
    %686 = vector.broadcast %cst_187 : f32 to vector<8x128xf32>
    %687 = arith.maximumf %685, %686 : vector<8x128xf32>
    %cst_188 = arith.constant dense<0.000000e+00> : vector<8x16xf32>
    %688 = tpu.matmul %687, %3, %cst_188 {dimension_numbers = #tpu.dot_dimension_numbers<[1], [0], [0], [1], [0, 0, 1, 1], [], []>} : vector<8x128xf32>, vector<128x16xf32>, vector<8x16xf32> -> vector<8x16xf32>
    %689 = arith.addf %688, %16 : vector<8x16xf32>
    %690 = arith.addf %689, %609 : vector<8x16xf32>
    %691 = vector.shape_cast %690 : vector<8x16xf32> to vector<1x1x8x16xf32>
    %c3_189 = arith.constant 3 : index
    %c1_190 = arith.constant 1 : index
    %c0_191 = arith.constant 0 : index
    %c0_192 = arith.constant 0 : index
    %692 = vector.load %arg12[%c3_189, %c1_190, %c0_191, %c0_192] : memref<7x2x8x16xf32, #tpu.memory_space<vmem>>, vector<1x1x8x16xf32>
    tpu.vector_store %arg12[%c3_189, %c1_190, %c0_191, %c0_192], %691 {strides = array<i32>} : memref<7x2x8x16xf32, #tpu.memory_space<vmem>>, vector<1x1x8x16xf32>,
    %c4 = arith.constant 4 : index
    %693 = memref.load %arg0[%c4] : memref<7xi32, #tpu.memory_space<smem>>
    %c0_i32_193 = arith.constant 0 : i32
    %694 = arith.cmpi sgt, %693, %c0_i32_193 : i32
    %c4_194 = arith.constant 4 : index
    %c0_195 = arith.constant 0 : index
    %c0_196 = arith.constant 0 : index
    %695 = vector.load %arg1[%c4_194, %c0_195, %c0_196] : memref<8x8x16xf32, #tpu.memory_space<vmem>>, vector<1x8x16xf32>
    %696 = vector.shape_cast %695 : vector<1x8x16xf32> to vector<8x16xf32>
    %697 = arith.select %694, %696, %609 : vector<8x16xf32>
    %cst_197 = arith.constant dense<0.000000e+00> : vector<8x128xf32>
    %698 = tpu.matmul %697, %0, %cst_197 {dimension_numbers = #tpu.dot_dimension_numbers<[1], [0], [0], [1], [0, 0, 1, 1], [], []>} : vector<8x16xf32>, vector<16x128xf32>, vector<8x128xf32> -> vector<8x128xf32>
    %699 = arith.addf %698, %7 : vector<8x128xf32>
    %cst_198 = arith.constant 0.000000e+00 : f32
    %700 = vector.broadcast %cst_198 : f32 to vector<8x128xf32>
    %701 = arith.maximumf %699, %700 : vector<8x128xf32>
    %cst_199 = arith.constant dense<0.000000e+00> : vector<8x128xf32>
    %702 = tpu.matmul %701, %1, %cst_199 {dimension_numbers = #tpu.dot_dimension_numbers<[1], [0], [0], [1], [0, 0, 1, 1], [], []>} : vector<8x128xf32>, vector<128x128xf32>, vector<8x128xf32> -> vector<8x128xf32>
    %703 = arith.addf %702, %10 : vector<8x128xf32>
    %cst_200 = arith.constant 0.000000e+00 : f32
    %704 = vector.broadcast %cst_200 : f32 to vector<8x128xf32>
    %705 = arith.maximumf %703, %704 : vector<8x128xf32>
    %706 = tpu.concatenate %705, %570 in 1 : vector<8x128xf32>, vector<8x128xf32> -> vector<8x256xf32>
    %707 = vector.extract_strided_slice %4 {offsets = [0, 0, 0], sizes = [1, 256, 512], strides = [1, 1, 1]} : vector<2x256x512xf32> to vector<1x256x512xf32>
    %708 = vector.shape_cast %707 : vector<1x256x512xf32> to vector<256x512xf32>
    %cst_201 = arith.constant dense<0.000000e+00> : vector<8x512xf32>
    %709 = tpu.matmul %706, %708, %cst_201 {dimension_numbers = #tpu.dot_dimension_numbers<[1], [0], [0], [1], [0, 0, 1, 1], [], []>} : vector<8x256xf32>, vector<256x512xf32>, vector<8x512xf32> -> vector<8x512xf32>
    %710 = vector.extract_strided_slice %19 {offsets = [0, 0, 0], sizes = [1, 8, 512], strides = [1, 1, 1]} : vector<2x8x512xf32> to vector<1x8x512xf32>
    %711 = vector.shape_cast %710 : vector<1x8x512xf32> to vector<8x512xf32>
    %712 = arith.addf %709, %711 : vector<8x512xf32>
    %713 = vector.extract_strided_slice %712 {offsets = [0, 0], sizes = [8, 128], strides = [1, 1]} : vector<8x512xf32> to vector<8x128xf32>
    %714 = arith.negf %713 : vector<8x128xf32>
    %715 = math.exp %714 : vector<8x128xf32>
    %cst_202 = arith.constant 1.000000e+00 : f32
    %716 = vector.broadcast %cst_202 : f32 to vector<8x128xf32>
    %717 = arith.addf %716, %715 : vector<8x128xf32>
    %718 = arith.divf %716, %717 : vector<8x128xf32>
    %719 = vector.extract_strided_slice %712 {offsets = [0, 128], sizes = [8, 128], strides = [1, 1]} : vector<8x512xf32> to vector<8x128xf32>
    %720 = arith.negf %719 : vector<8x128xf32>
    %721 = math.exp %720 : vector<8x128xf32>
    %cst_203 = arith.constant 1.000000e+00 : f32
    %722 = vector.broadcast %cst_203 : f32 to vector<8x128xf32>
    %723 = arith.addf %722, %721 : vector<8x128xf32>
    %724 = arith.divf %722, %723 : vector<8x128xf32>
    %725 = vector.extract_strided_slice %712 {offsets = [0, 256], sizes = [8, 128], strides = [1, 1]} : vector<8x512xf32> to vector<8x128xf32>
    %726 = math.tanh %725 : vector<8x128xf32>
    %727 = vector.extract_strided_slice %712 {offsets = [0, 384], sizes = [8, 128], strides = [1, 1]} : vector<8x512xf32> to vector<8x128xf32>
    %728 = arith.negf %727 : vector<8x128xf32>
    %729 = math.exp %728 : vector<8x128xf32>
    %cst_204 = arith.constant 1.000000e+00 : f32
    %730 = vector.broadcast %cst_204 : f32 to vector<8x128xf32>
    %731 = arith.addf %730, %729 : vector<8x128xf32>
    %732 = arith.divf %730, %731 : vector<8x128xf32>
    %733 = arith.mulf %724, %568 : vector<8x128xf32>
    %734 = arith.mulf %718, %726 : vector<8x128xf32>
    %735 = arith.addf %733, %734 : vector<8x128xf32>
    %736 = math.tanh %735 : vector<8x128xf32>
    %737 = arith.mulf %732, %736 : vector<8x128xf32>
    %738 = tpu.concatenate %737, %602 in 1 : vector<8x128xf32>, vector<8x128xf32> -> vector<8x256xf32>
    %739 = vector.extract_strided_slice %4 {offsets = [1, 0, 0], sizes = [1, 256, 512], strides = [1, 1, 1]} : vector<2x256x512xf32> to vector<1x256x512xf32>
    %740 = vector.shape_cast %739 : vector<1x256x512xf32> to vector<256x512xf32>
    %cst_205 = arith.constant dense<0.000000e+00> : vector<8x512xf32>
    %741 = tpu.matmul %738, %740, %cst_205 {dimension_numbers = #tpu.dot_dimension_numbers<[1], [0], [0], [1], [0, 0, 1, 1], [], []>} : vector<8x256xf32>, vector<256x512xf32>, vector<8x512xf32> -> vector<8x512xf32>
    %742 = vector.extract_strided_slice %19 {offsets = [1, 0, 0], sizes = [1, 8, 512], strides = [1, 1, 1]} : vector<2x8x512xf32> to vector<1x8x512xf32>
    %743 = vector.shape_cast %742 : vector<1x8x512xf32> to vector<8x512xf32>
    %744 = arith.addf %741, %743 : vector<8x512xf32>
    %745 = vector.extract_strided_slice %744 {offsets = [0, 0], sizes = [8, 128], strides = [1, 1]} : vector<8x512xf32> to vector<8x128xf32>
    %746 = arith.negf %745 : vector<8x128xf32>
    %747 = math.exp %746 : vector<8x128xf32>
    %cst_206 = arith.constant 1.000000e+00 : f32
    %748 = vector.broadcast %cst_206 : f32 to vector<8x128xf32>
    %749 = arith.addf %748, %747 : vector<8x128xf32>
    %750 = arith.divf %748, %749 : vector<8x128xf32>
    %751 = vector.extract_strided_slice %744 {offsets = [0, 128], sizes = [8, 128], strides = [1, 1]} : vector<8x512xf32> to vector<8x128xf32>
    %752 = arith.negf %751 : vector<8x128xf32>
    %753 = math.exp %752 : vector<8x128xf32>
    %cst_207 = arith.constant 1.000000e+00 : f32
    %754 = vector.broadcast %cst_207 : f32 to vector<8x128xf32>
    %755 = arith.addf %754, %753 : vector<8x128xf32>
    %756 = arith.divf %754, %755 : vector<8x128xf32>
    %757 = vector.extract_strided_slice %744 {offsets = [0, 256], sizes = [8, 128], strides = [1, 1]} : vector<8x512xf32> to vector<8x128xf32>
    %758 = math.tanh %757 : vector<8x128xf32>
    %759 = vector.extract_strided_slice %744 {offsets = [0, 384], sizes = [8, 128], strides = [1, 1]} : vector<8x512xf32> to vector<8x128xf32>
    %760 = arith.negf %759 : vector<8x128xf32>
    %761 = math.exp %760 : vector<8x128xf32>
    %cst_208 = arith.constant 1.000000e+00 : f32
    %762 = vector.broadcast %cst_208 : f32 to vector<8x128xf32>
    %763 = arith.addf %762, %761 : vector<8x128xf32>
    %764 = arith.divf %762, %763 : vector<8x128xf32>
    %765 = arith.mulf %756, %600 : vector<8x128xf32>
    %766 = arith.mulf %750, %758 : vector<8x128xf32>
    %767 = arith.addf %765, %766 : vector<8x128xf32>
    %768 = math.tanh %767 : vector<8x128xf32>
    %769 = arith.mulf %764, %768 : vector<8x128xf32>
    %cst_209 = arith.constant dense<0.000000e+00> : vector<8x128xf32>
    %770 = tpu.matmul %769, %2, %cst_209 {dimension_numbers = #tpu.dot_dimension_numbers<[1], [0], [0], [1], [0, 0, 1, 1], [], []>} : vector<8x128xf32>, vector<128x128xf32>, vector<8x128xf32> -> vector<8x128xf32>
    %771 = arith.addf %770, %13 : vector<8x128xf32>
    %cst_210 = arith.constant 0.000000e+00 : f32
    %772 = vector.broadcast %cst_210 : f32 to vector<8x128xf32>
    %773 = arith.maximumf %771, %772 : vector<8x128xf32>
    %cst_211 = arith.constant dense<0.000000e+00> : vector<8x16xf32>
    %774 = tpu.matmul %773, %3, %cst_211 {dimension_numbers = #tpu.dot_dimension_numbers<[1], [0], [0], [1], [0, 0, 1, 1], [], []>} : vector<8x128xf32>, vector<128x16xf32>, vector<8x16xf32> -> vector<8x16xf32>
    %775 = arith.addf %774, %16 : vector<8x16xf32>
    %776 = arith.addf %775, %697 : vector<8x16xf32>
    %777 = vector.shape_cast %776 : vector<8x16xf32> to vector<1x1x8x16xf32>
    %c4_212 = arith.constant 4 : index
    %c0_213 = arith.constant 0 : index
    %c0_214 = arith.constant 0 : index
    %c0_215 = arith.constant 0 : index
    %778 = vector.load %arg12[%c4_212, %c0_213, %c0_214, %c0_215] : memref<7x2x8x16xf32, #tpu.memory_space<vmem>>, vector<1x1x8x16xf32>
    tpu.vector_store %arg12[%c4_212, %c0_213, %c0_214, %c0_215], %777 {strides = array<i32>} : memref<7x2x8x16xf32, #tpu.memory_space<vmem>>, vector<1x1x8x16xf32>,
    %cst_216 = arith.constant dense<0.000000e+00> : vector<8x128xf32>
    %779 = tpu.matmul %776, %0, %cst_216 {dimension_numbers = #tpu.dot_dimension_numbers<[1], [0], [0], [1], [0, 0, 1, 1], [], []>} : vector<8x16xf32>, vector<16x128xf32>, vector<8x128xf32> -> vector<8x128xf32>
    %780 = arith.addf %779, %7 : vector<8x128xf32>
    %cst_217 = arith.constant 0.000000e+00 : f32
    %781 = vector.broadcast %cst_217 : f32 to vector<8x128xf32>
    %782 = arith.maximumf %780, %781 : vector<8x128xf32>
    %cst_218 = arith.constant dense<0.000000e+00> : vector<8x128xf32>
    %783 = tpu.matmul %782, %1, %cst_218 {dimension_numbers = #tpu.dot_dimension_numbers<[1], [0], [0], [1], [0, 0, 1, 1], [], []>} : vector<8x128xf32>, vector<128x128xf32>, vector<8x128xf32> -> vector<8x128xf32>
    %784 = arith.addf %783, %10 : vector<8x128xf32>
    %cst_219 = arith.constant 0.000000e+00 : f32
    %785 = vector.broadcast %cst_219 : f32 to vector<8x128xf32>
    %786 = arith.maximumf %784, %785 : vector<8x128xf32>
    %787 = tpu.concatenate %786, %737 in 1 : vector<8x128xf32>, vector<8x128xf32> -> vector<8x256xf32>
    %788 = vector.extract_strided_slice %4 {offsets = [0, 0, 0], sizes = [1, 256, 512], strides = [1, 1, 1]} : vector<2x256x512xf32> to vector<1x256x512xf32>
    %789 = vector.shape_cast %788 : vector<1x256x512xf32> to vector<256x512xf32>
    %cst_220 = arith.constant dense<0.000000e+00> : vector<8x512xf32>
    %790 = tpu.matmul %787, %789, %cst_220 {dimension_numbers = #tpu.dot_dimension_numbers<[1], [0], [0], [1], [0, 0, 1, 1], [], []>} : vector<8x256xf32>, vector<256x512xf32>, vector<8x512xf32> -> vector<8x512xf32>
    %791 = vector.extract_strided_slice %19 {offsets = [0, 0, 0], sizes = [1, 8, 512], strides = [1, 1, 1]} : vector<2x8x512xf32> to vector<1x8x512xf32>
    %792 = vector.shape_cast %791 : vector<1x8x512xf32> to vector<8x512xf32>
    %793 = arith.addf %790, %792 : vector<8x512xf32>
    %794 = vector.extract_strided_slice %793 {offsets = [0, 0], sizes = [8, 128], strides = [1, 1]} : vector<8x512xf32> to vector<8x128xf32>
    %795 = arith.negf %794 : vector<8x128xf32>
    %796 = math.exp %795 : vector<8x128xf32>
    %cst_221 = arith.constant 1.000000e+00 : f32
    %797 = vector.broadcast %cst_221 : f32 to vector<8x128xf32>
    %798 = arith.addf %797, %796 : vector<8x128xf32>
    %799 = arith.divf %797, %798 : vector<8x128xf32>
    %800 = vector.extract_strided_slice %793 {offsets = [0, 128], sizes = [8, 128], strides = [1, 1]} : vector<8x512xf32> to vector<8x128xf32>
    %801 = arith.negf %800 : vector<8x128xf32>
    %802 = math.exp %801 : vector<8x128xf32>
    %cst_222 = arith.constant 1.000000e+00 : f32
    %803 = vector.broadcast %cst_222 : f32 to vector<8x128xf32>
    %804 = arith.addf %803, %802 : vector<8x128xf32>
    %805 = arith.divf %803, %804 : vector<8x128xf32>
    %806 = vector.extract_strided_slice %793 {offsets = [0, 256], sizes = [8, 128], strides = [1, 1]} : vector<8x512xf32> to vector<8x128xf32>
    %807 = math.tanh %806 : vector<8x128xf32>
    %808 = vector.extract_strided_slice %793 {offsets = [0, 384], sizes = [8, 128], strides = [1, 1]} : vector<8x512xf32> to vector<8x128xf32>
    %809 = arith.negf %808 : vector<8x128xf32>
    %810 = math.exp %809 : vector<8x128xf32>
    %cst_223 = arith.constant 1.000000e+00 : f32
    %811 = vector.broadcast %cst_223 : f32 to vector<8x128xf32>
    %812 = arith.addf %811, %810 : vector<8x128xf32>
    %813 = arith.divf %811, %812 : vector<8x128xf32>
    %814 = arith.mulf %805, %735 : vector<8x128xf32>
    %815 = arith.mulf %799, %807 : vector<8x128xf32>
    %816 = arith.addf %814, %815 : vector<8x128xf32>
    %817 = math.tanh %816 : vector<8x128xf32>
    %818 = arith.mulf %813, %817 : vector<8x128xf32>
    %819 = tpu.concatenate %818, %769 in 1 : vector<8x128xf32>, vector<8x128xf32> -> vector<8x256xf32>
    %820 = vector.extract_strided_slice %4 {offsets = [1, 0, 0], sizes = [1, 256, 512], strides = [1, 1, 1]} : vector<2x256x512xf32> to vector<1x256x512xf32>
    %821 = vector.shape_cast %820 : vector<1x256x512xf32> to vector<256x512xf32>
    %cst_224 = arith.constant dense<0.000000e+00> : vector<8x512xf32>
    %822 = tpu.matmul %819, %821, %cst_224 {dimension_numbers = #tpu.dot_dimension_numbers<[1], [0], [0], [1], [0, 0, 1, 1], [], []>} : vector<8x256xf32>, vector<256x512xf32>, vector<8x512xf32> -> vector<8x512xf32>
    %823 = vector.extract_strided_slice %19 {offsets = [1, 0, 0], sizes = [1, 8, 512], strides = [1, 1, 1]} : vector<2x8x512xf32> to vector<1x8x512xf32>
    %824 = vector.shape_cast %823 : vector<1x8x512xf32> to vector<8x512xf32>
    %825 = arith.addf %822, %824 : vector<8x512xf32>
    %826 = vector.extract_strided_slice %825 {offsets = [0, 0], sizes = [8, 128], strides = [1, 1]} : vector<8x512xf32> to vector<8x128xf32>
    %827 = arith.negf %826 : vector<8x128xf32>
    %828 = math.exp %827 : vector<8x128xf32>
    %cst_225 = arith.constant 1.000000e+00 : f32
    %829 = vector.broadcast %cst_225 : f32 to vector<8x128xf32>
    %830 = arith.addf %829, %828 : vector<8x128xf32>
    %831 = arith.divf %829, %830 : vector<8x128xf32>
    %832 = vector.extract_strided_slice %825 {offsets = [0, 128], sizes = [8, 128], strides = [1, 1]} : vector<8x512xf32> to vector<8x128xf32>
    %833 = arith.negf %832 : vector<8x128xf32>
    %834 = math.exp %833 : vector<8x128xf32>
    %cst_226 = arith.constant 1.000000e+00 : f32
    %835 = vector.broadcast %cst_226 : f32 to vector<8x128xf32>
    %836 = arith.addf %835, %834 : vector<8x128xf32>
    %837 = arith.divf %835, %836 : vector<8x128xf32>
    %838 = vector.extract_strided_slice %825 {offsets = [0, 256], sizes = [8, 128], strides = [1, 1]} : vector<8x512xf32> to vector<8x128xf32>
    %839 = math.tanh %838 : vector<8x128xf32>
    %840 = vector.extract_strided_slice %825 {offsets = [0, 384], sizes = [8, 128], strides = [1, 1]} : vector<8x512xf32> to vector<8x128xf32>
    %841 = arith.negf %840 : vector<8x128xf32>
    %842 = math.exp %841 : vector<8x128xf32>
    %cst_227 = arith.constant 1.000000e+00 : f32
    %843 = vector.broadcast %cst_227 : f32 to vector<8x128xf32>
    %844 = arith.addf %843, %842 : vector<8x128xf32>
    %845 = arith.divf %843, %844 : vector<8x128xf32>
    %846 = arith.mulf %837, %767 : vector<8x128xf32>
    %847 = arith.mulf %831, %839 : vector<8x128xf32>
    %848 = arith.addf %846, %847 : vector<8x128xf32>
    %849 = math.tanh %848 : vector<8x128xf32>
    %850 = arith.mulf %845, %849 : vector<8x128xf32>
    %cst_228 = arith.constant dense<0.000000e+00> : vector<8x128xf32>
    %851 = tpu.matmul %850, %2, %cst_228 {dimension_numbers = #tpu.dot_dimension_numbers<[1], [0], [0], [1], [0, 0, 1, 1], [], []>} : vector<8x128xf32>, vector<128x128xf32>, vector<8x128xf32> -> vector<8x128xf32>
    %852 = arith.addf %851, %13 : vector<8x128xf32>
    %cst_229 = arith.constant 0.000000e+00 : f32
    %853 = vector.broadcast %cst_229 : f32 to vector<8x128xf32>
    %854 = arith.maximumf %852, %853 : vector<8x128xf32>
    %cst_230 = arith.constant dense<0.000000e+00> : vector<8x16xf32>
    %855 = tpu.matmul %854, %3, %cst_230 {dimension_numbers = #tpu.dot_dimension_numbers<[1], [0], [0], [1], [0, 0, 1, 1], [], []>} : vector<8x128xf32>, vector<128x16xf32>, vector<8x16xf32> -> vector<8x16xf32>
    %856 = arith.addf %855, %16 : vector<8x16xf32>
    %857 = arith.addf %856, %776 : vector<8x16xf32>
    %858 = vector.shape_cast %857 : vector<8x16xf32> to vector<1x1x8x16xf32>
    %c4_231 = arith.constant 4 : index
    %c1_232 = arith.constant 1 : index
    %c0_233 = arith.constant 0 : index
    %c0_234 = arith.constant 0 : index
    %859 = vector.load %arg12[%c4_231, %c1_232, %c0_233, %c0_234] : memref<7x2x8x16xf32, #tpu.memory_space<vmem>>, vector<1x1x8x16xf32>
    tpu.vector_store %arg12[%c4_231, %c1_232, %c0_233, %c0_234], %858 {strides = array<i32>} : memref<7x2x8x16xf32, #tpu.memory_space<vmem>>, vector<1x1x8x16xf32>,
    %c5 = arith.constant 5 : index
    %860 = memref.load %arg0[%c5] : memref<7xi32, #tpu.memory_space<smem>>
    %c0_i32_235 = arith.constant 0 : i32
    %861 = arith.cmpi sgt, %860, %c0_i32_235 : i32
    %c5_236 = arith.constant 5 : index
    %c0_237 = arith.constant 0 : index
    %c0_238 = arith.constant 0 : index
    %862 = vector.load %arg1[%c5_236, %c0_237, %c0_238] : memref<8x8x16xf32, #tpu.memory_space<vmem>>, vector<1x8x16xf32>
    %863 = vector.shape_cast %862 : vector<1x8x16xf32> to vector<8x16xf32>
    %864 = arith.select %861, %863, %776 : vector<8x16xf32>
    %cst_239 = arith.constant dense<0.000000e+00> : vector<8x128xf32>
    %865 = tpu.matmul %864, %0, %cst_239 {dimension_numbers = #tpu.dot_dimension_numbers<[1], [0], [0], [1], [0, 0, 1, 1], [], []>} : vector<8x16xf32>, vector<16x128xf32>, vector<8x128xf32> -> vector<8x128xf32>
    %866 = arith.addf %865, %7 : vector<8x128xf32>
    %cst_240 = arith.constant 0.000000e+00 : f32
    %867 = vector.broadcast %cst_240 : f32 to vector<8x128xf32>
    %868 = arith.maximumf %866, %867 : vector<8x128xf32>
    %cst_241 = arith.constant dense<0.000000e+00> : vector<8x128xf32>
    %869 = tpu.matmul %868, %1, %cst_241 {dimension_numbers = #tpu.dot_dimension_numbers<[1], [0], [0], [1], [0, 0, 1, 1], [], []>} : vector<8x128xf32>, vector<128x128xf32>, vector<8x128xf32> -> vector<8x128xf32>
    %870 = arith.addf %869, %10 : vector<8x128xf32>
    %cst_242 = arith.constant 0.000000e+00 : f32
    %871 = vector.broadcast %cst_242 : f32 to vector<8x128xf32>
    %872 = arith.maximumf %870, %871 : vector<8x128xf32>
    %873 = tpu.concatenate %872, %737 in 1 : vector<8x128xf32>, vector<8x128xf32> -> vector<8x256xf32>
    %874 = vector.extract_strided_slice %4 {offsets = [0, 0, 0], sizes = [1, 256, 512], strides = [1, 1, 1]} : vector<2x256x512xf32> to vector<1x256x512xf32>
    %875 = vector.shape_cast %874 : vector<1x256x512xf32> to vector<256x512xf32>
    %cst_243 = arith.constant dense<0.000000e+00> : vector<8x512xf32>
    %876 = tpu.matmul %873, %875, %cst_243 {dimension_numbers = #tpu.dot_dimension_numbers<[1], [0], [0], [1], [0, 0, 1, 1], [], []>} : vector<8x256xf32>, vector<256x512xf32>, vector<8x512xf32> -> vector<8x512xf32>
    %877 = vector.extract_strided_slice %19 {offsets = [0, 0, 0], sizes = [1, 8, 512], strides = [1, 1, 1]} : vector<2x8x512xf32> to vector<1x8x512xf32>
    %878 = vector.shape_cast %877 : vector<1x8x512xf32> to vector<8x512xf32>
    %879 = arith.addf %876, %878 : vector<8x512xf32>
    %880 = vector.extract_strided_slice %879 {offsets = [0, 0], sizes = [8, 128], strides = [1, 1]} : vector<8x512xf32> to vector<8x128xf32>
    %881 = arith.negf %880 : vector<8x128xf32>
    %882 = math.exp %881 : vector<8x128xf32>
    %cst_244 = arith.constant 1.000000e+00 : f32
    %883 = vector.broadcast %cst_244 : f32 to vector<8x128xf32>
    %884 = arith.addf %883, %882 : vector<8x128xf32>
    %885 = arith.divf %883, %884 : vector<8x128xf32>
    %886 = vector.extract_strided_slice %879 {offsets = [0, 128], sizes = [8, 128], strides = [1, 1]} : vector<8x512xf32> to vector<8x128xf32>
    %887 = arith.negf %886 : vector<8x128xf32>
    %888 = math.exp %887 : vector<8x128xf32>
    %cst_245 = arith.constant 1.000000e+00 : f32
    %889 = vector.broadcast %cst_245 : f32 to vector<8x128xf32>
    %890 = arith.addf %889, %888 : vector<8x128xf32>
    %891 = arith.divf %889, %890 : vector<8x128xf32>
    %892 = vector.extract_strided_slice %879 {offsets = [0, 256], sizes = [8, 128], strides = [1, 1]} : vector<8x512xf32> to vector<8x128xf32>
    %893 = math.tanh %892 : vector<8x128xf32>
    %894 = vector.extract_strided_slice %879 {offsets = [0, 384], sizes = [8, 128], strides = [1, 1]} : vector<8x512xf32> to vector<8x128xf32>
    %895 = arith.negf %894 : vector<8x128xf32>
    %896 = math.exp %895 : vector<8x128xf32>
    %cst_246 = arith.constant 1.000000e+00 : f32
    %897 = vector.broadcast %cst_246 : f32 to vector<8x128xf32>
    %898 = arith.addf %897, %896 : vector<8x128xf32>
    %899 = arith.divf %897, %898 : vector<8x128xf32>
    %900 = arith.mulf %891, %735 : vector<8x128xf32>
    %901 = arith.mulf %885, %893 : vector<8x128xf32>
    %902 = arith.addf %900, %901 : vector<8x128xf32>
    %903 = math.tanh %902 : vector<8x128xf32>
    %904 = arith.mulf %899, %903 : vector<8x128xf32>
    %905 = tpu.concatenate %904, %769 in 1 : vector<8x128xf32>, vector<8x128xf32> -> vector<8x256xf32>
    %906 = vector.extract_strided_slice %4 {offsets = [1, 0, 0], sizes = [1, 256, 512], strides = [1, 1, 1]} : vector<2x256x512xf32> to vector<1x256x512xf32>
    %907 = vector.shape_cast %906 : vector<1x256x512xf32> to vector<256x512xf32>
    %cst_247 = arith.constant dense<0.000000e+00> : vector<8x512xf32>
    %908 = tpu.matmul %905, %907, %cst_247 {dimension_numbers = #tpu.dot_dimension_numbers<[1], [0], [0], [1], [0, 0, 1, 1], [], []>} : vector<8x256xf32>, vector<256x512xf32>, vector<8x512xf32> -> vector<8x512xf32>
    %909 = vector.extract_strided_slice %19 {offsets = [1, 0, 0], sizes = [1, 8, 512], strides = [1, 1, 1]} : vector<2x8x512xf32> to vector<1x8x512xf32>
    %910 = vector.shape_cast %909 : vector<1x8x512xf32> to vector<8x512xf32>
    %911 = arith.addf %908, %910 : vector<8x512xf32>
    %912 = vector.extract_strided_slice %911 {offsets = [0, 0], sizes = [8, 128], strides = [1, 1]} : vector<8x512xf32> to vector<8x128xf32>
    %913 = arith.negf %912 : vector<8x128xf32>
    %914 = math.exp %913 : vector<8x128xf32>
    %cst_248 = arith.constant 1.000000e+00 : f32
    %915 = vector.broadcast %cst_248 : f32 to vector<8x128xf32>
    %916 = arith.addf %915, %914 : vector<8x128xf32>
    %917 = arith.divf %915, %916 : vector<8x128xf32>
    %918 = vector.extract_strided_slice %911 {offsets = [0, 128], sizes = [8, 128], strides = [1, 1]} : vector<8x512xf32> to vector<8x128xf32>
    %919 = arith.negf %918 : vector<8x128xf32>
    %920 = math.exp %919 : vector<8x128xf32>
    %cst_249 = arith.constant 1.000000e+00 : f32
    %921 = vector.broadcast %cst_249 : f32 to vector<8x128xf32>
    %922 = arith.addf %921, %920 : vector<8x128xf32>
    %923 = arith.divf %921, %922 : vector<8x128xf32>
    %924 = vector.extract_strided_slice %911 {offsets = [0, 256], sizes = [8, 128], strides = [1, 1]} : vector<8x512xf32> to vector<8x128xf32>
    %925 = math.tanh %924 : vector<8x128xf32>
    %926 = vector.extract_strided_slice %911 {offsets = [0, 384], sizes = [8, 128], strides = [1, 1]} : vector<8x512xf32> to vector<8x128xf32>
    %927 = arith.negf %926 : vector<8x128xf32>
    %928 = math.exp %927 : vector<8x128xf32>
    %cst_250 = arith.constant 1.000000e+00 : f32
    %929 = vector.broadcast %cst_250 : f32 to vector<8x128xf32>
    %930 = arith.addf %929, %928 : vector<8x128xf32>
    %931 = arith.divf %929, %930 : vector<8x128xf32>
    %932 = arith.mulf %923, %767 : vector<8x128xf32>
    %933 = arith.mulf %917, %925 : vector<8x128xf32>
    %934 = arith.addf %932, %933 : vector<8x128xf32>
    %935 = math.tanh %934 : vector<8x128xf32>
    %936 = arith.mulf %931, %935 : vector<8x128xf32>
    %cst_251 = arith.constant dense<0.000000e+00> : vector<8x128xf32>
    %937 = tpu.matmul %936, %2, %cst_251 {dimension_numbers = #tpu.dot_dimension_numbers<[1], [0], [0], [1], [0, 0, 1, 1], [], []>} : vector<8x128xf32>, vector<128x128xf32>, vector<8x128xf32> -> vector<8x128xf32>
    %938 = arith.addf %937, %13 : vector<8x128xf32>
    %cst_252 = arith.constant 0.000000e+00 : f32
    %939 = vector.broadcast %cst_252 : f32 to vector<8x128xf32>
    %940 = arith.maximumf %938, %939 : vector<8x128xf32>
    %cst_253 = arith.constant dense<0.000000e+00> : vector<8x16xf32>
    %941 = tpu.matmul %940, %3, %cst_253 {dimension_numbers = #tpu.dot_dimension_numbers<[1], [0], [0], [1], [0, 0, 1, 1], [], []>} : vector<8x128xf32>, vector<128x16xf32>, vector<8x16xf32> -> vector<8x16xf32>
    %942 = arith.addf %941, %16 : vector<8x16xf32>
    %943 = arith.addf %942, %864 : vector<8x16xf32>
    %944 = vector.shape_cast %943 : vector<8x16xf32> to vector<1x1x8x16xf32>
    %c5_254 = arith.constant 5 : index
    %c0_255 = arith.constant 0 : index
    %c0_256 = arith.constant 0 : index
    %c0_257 = arith.constant 0 : index
    %945 = vector.load %arg12[%c5_254, %c0_255, %c0_256, %c0_257] : memref<7x2x8x16xf32, #tpu.memory_space<vmem>>, vector<1x1x8x16xf32>
    tpu.vector_store %arg12[%c5_254, %c0_255, %c0_256, %c0_257], %944 {strides = array<i32>} : memref<7x2x8x16xf32, #tpu.memory_space<vmem>>, vector<1x1x8x16xf32>,
    %cst_258 = arith.constant dense<0.000000e+00> : vector<8x128xf32>
    %946 = tpu.matmul %943, %0, %cst_258 {dimension_numbers = #tpu.dot_dimension_numbers<[1], [0], [0], [1], [0, 0, 1, 1], [], []>} : vector<8x16xf32>, vector<16x128xf32>, vector<8x128xf32> -> vector<8x128xf32>
    %947 = arith.addf %946, %7 : vector<8x128xf32>
    %cst_259 = arith.constant 0.000000e+00 : f32
    %948 = vector.broadcast %cst_259 : f32 to vector<8x128xf32>
    %949 = arith.maximumf %947, %948 : vector<8x128xf32>
    %cst_260 = arith.constant dense<0.000000e+00> : vector<8x128xf32>
    %950 = tpu.matmul %949, %1, %cst_260 {dimension_numbers = #tpu.dot_dimension_numbers<[1], [0], [0], [1], [0, 0, 1, 1], [], []>} : vector<8x128xf32>, vector<128x128xf32>, vector<8x128xf32> -> vector<8x128xf32>
    %951 = arith.addf %950, %10 : vector<8x128xf32>
    %cst_261 = arith.constant 0.000000e+00 : f32
    %952 = vector.broadcast %cst_261 : f32 to vector<8x128xf32>
    %953 = arith.maximumf %951, %952 : vector<8x128xf32>
    %954 = tpu.concatenate %953, %904 in 1 : vector<8x128xf32>, vector<8x128xf32> -> vector<8x256xf32>
    %955 = vector.extract_strided_slice %4 {offsets = [0, 0, 0], sizes = [1, 256, 512], strides = [1, 1, 1]} : vector<2x256x512xf32> to vector<1x256x512xf32>
    %956 = vector.shape_cast %955 : vector<1x256x512xf32> to vector<256x512xf32>
    %cst_262 = arith.constant dense<0.000000e+00> : vector<8x512xf32>
    %957 = tpu.matmul %954, %956, %cst_262 {dimension_numbers = #tpu.dot_dimension_numbers<[1], [0], [0], [1], [0, 0, 1, 1], [], []>} : vector<8x256xf32>, vector<256x512xf32>, vector<8x512xf32> -> vector<8x512xf32>
    %958 = vector.extract_strided_slice %19 {offsets = [0, 0, 0], sizes = [1, 8, 512], strides = [1, 1, 1]} : vector<2x8x512xf32> to vector<1x8x512xf32>
    %959 = vector.shape_cast %958 : vector<1x8x512xf32> to vector<8x512xf32>
    %960 = arith.addf %957, %959 : vector<8x512xf32>
    %961 = vector.extract_strided_slice %960 {offsets = [0, 0], sizes = [8, 128], strides = [1, 1]} : vector<8x512xf32> to vector<8x128xf32>
    %962 = arith.negf %961 : vector<8x128xf32>
    %963 = math.exp %962 : vector<8x128xf32>
    %cst_263 = arith.constant 1.000000e+00 : f32
    %964 = vector.broadcast %cst_263 : f32 to vector<8x128xf32>
    %965 = arith.addf %964, %963 : vector<8x128xf32>
    %966 = arith.divf %964, %965 : vector<8x128xf32>
    %967 = vector.extract_strided_slice %960 {offsets = [0, 128], sizes = [8, 128], strides = [1, 1]} : vector<8x512xf32> to vector<8x128xf32>
    %968 = arith.negf %967 : vector<8x128xf32>
    %969 = math.exp %968 : vector<8x128xf32>
    %cst_264 = arith.constant 1.000000e+00 : f32
    %970 = vector.broadcast %cst_264 : f32 to vector<8x128xf32>
    %971 = arith.addf %970, %969 : vector<8x128xf32>
    %972 = arith.divf %970, %971 : vector<8x128xf32>
    %973 = vector.extract_strided_slice %960 {offsets = [0, 256], sizes = [8, 128], strides = [1, 1]} : vector<8x512xf32> to vector<8x128xf32>
    %974 = math.tanh %973 : vector<8x128xf32>
    %975 = vector.extract_strided_slice %960 {offsets = [0, 384], sizes = [8, 128], strides = [1, 1]} : vector<8x512xf32> to vector<8x128xf32>
    %976 = arith.negf %975 : vector<8x128xf32>
    %977 = math.exp %976 : vector<8x128xf32>
    %cst_265 = arith.constant 1.000000e+00 : f32
    %978 = vector.broadcast %cst_265 : f32 to vector<8x128xf32>
    %979 = arith.addf %978, %977 : vector<8x128xf32>
    %980 = arith.divf %978, %979 : vector<8x128xf32>
    %981 = arith.mulf %972, %902 : vector<8x128xf32>
    %982 = arith.mulf %966, %974 : vector<8x128xf32>
    %983 = arith.addf %981, %982 : vector<8x128xf32>
    %984 = math.tanh %983 : vector<8x128xf32>
    %985 = arith.mulf %980, %984 : vector<8x128xf32>
    %986 = tpu.concatenate %985, %936 in 1 : vector<8x128xf32>, vector<8x128xf32> -> vector<8x256xf32>
    %987 = vector.extract_strided_slice %4 {offsets = [1, 0, 0], sizes = [1, 256, 512], strides = [1, 1, 1]} : vector<2x256x512xf32> to vector<1x256x512xf32>
    %988 = vector.shape_cast %987 : vector<1x256x512xf32> to vector<256x512xf32>
    %cst_266 = arith.constant dense<0.000000e+00> : vector<8x512xf32>
    %989 = tpu.matmul %986, %988, %cst_266 {dimension_numbers = #tpu.dot_dimension_numbers<[1], [0], [0], [1], [0, 0, 1, 1], [], []>} : vector<8x256xf32>, vector<256x512xf32>, vector<8x512xf32> -> vector<8x512xf32>
    %990 = vector.extract_strided_slice %19 {offsets = [1, 0, 0], sizes = [1, 8, 512], strides = [1, 1, 1]} : vector<2x8x512xf32> to vector<1x8x512xf32>
    %991 = vector.shape_cast %990 : vector<1x8x512xf32> to vector<8x512xf32>
    %992 = arith.addf %989, %991 : vector<8x512xf32>
    %993 = vector.extract_strided_slice %992 {offsets = [0, 0], sizes = [8, 128], strides = [1, 1]} : vector<8x512xf32> to vector<8x128xf32>
    %994 = arith.negf %993 : vector<8x128xf32>
    %995 = math.exp %994 : vector<8x128xf32>
    %cst_267 = arith.constant 1.000000e+00 : f32
    %996 = vector.broadcast %cst_267 : f32 to vector<8x128xf32>
    %997 = arith.addf %996, %995 : vector<8x128xf32>
    %998 = arith.divf %996, %997 : vector<8x128xf32>
    %999 = vector.extract_strided_slice %992 {offsets = [0, 128], sizes = [8, 128], strides = [1, 1]} : vector<8x512xf32> to vector<8x128xf32>
    %1000 = arith.negf %999 : vector<8x128xf32>
    %1001 = math.exp %1000 : vector<8x128xf32>
    %cst_268 = arith.constant 1.000000e+00 : f32
    %1002 = vector.broadcast %cst_268 : f32 to vector<8x128xf32>
    %1003 = arith.addf %1002, %1001 : vector<8x128xf32>
    %1004 = arith.divf %1002, %1003 : vector<8x128xf32>
    %1005 = vector.extract_strided_slice %992 {offsets = [0, 256], sizes = [8, 128], strides = [1, 1]} : vector<8x512xf32> to vector<8x128xf32>
    %1006 = math.tanh %1005 : vector<8x128xf32>
    %1007 = vector.extract_strided_slice %992 {offsets = [0, 384], sizes = [8, 128], strides = [1, 1]} : vector<8x512xf32> to vector<8x128xf32>
    %1008 = arith.negf %1007 : vector<8x128xf32>
    %1009 = math.exp %1008 : vector<8x128xf32>
    %cst_269 = arith.constant 1.000000e+00 : f32
    %1010 = vector.broadcast %cst_269 : f32 to vector<8x128xf32>
    %1011 = arith.addf %1010, %1009 : vector<8x128xf32>
    %1012 = arith.divf %1010, %1011 : vector<8x128xf32>
    %1013 = arith.mulf %1004, %934 : vector<8x128xf32>
    %1014 = arith.mulf %998, %1006 : vector<8x128xf32>
    %1015 = arith.addf %1013, %1014 : vector<8x128xf32>
    %1016 = math.tanh %1015 : vector<8x128xf32>
    %1017 = arith.mulf %1012, %1016 : vector<8x128xf32>
    %cst_270 = arith.constant dense<0.000000e+00> : vector<8x128xf32>
    %1018 = tpu.matmul %1017, %2, %cst_270 {dimension_numbers = #tpu.dot_dimension_numbers<[1], [0], [0], [1], [0, 0, 1, 1], [], []>} : vector<8x128xf32>, vector<128x128xf32>, vector<8x128xf32> -> vector<8x128xf32>
    %1019 = arith.addf %1018, %13 : vector<8x128xf32>
    %cst_271 = arith.constant 0.000000e+00 : f32
    %1020 = vector.broadcast %cst_271 : f32 to vector<8x128xf32>
    %1021 = arith.maximumf %1019, %1020 : vector<8x128xf32>
    %cst_272 = arith.constant dense<0.000000e+00> : vector<8x16xf32>
    %1022 = tpu.matmul %1021, %3, %cst_272 {dimension_numbers = #tpu.dot_dimension_numbers<[1], [0], [0], [1], [0, 0, 1, 1], [], []>} : vector<8x128xf32>, vector<128x16xf32>, vector<8x16xf32> -> vector<8x16xf32>
    %1023 = arith.addf %1022, %16 : vector<8x16xf32>
    %1024 = arith.addf %1023, %943 : vector<8x16xf32>
    %1025 = vector.shape_cast %1024 : vector<8x16xf32> to vector<1x1x8x16xf32>
    %c5_273 = arith.constant 5 : index
    %c1_274 = arith.constant 1 : index
    %c0_275 = arith.constant 0 : index
    %c0_276 = arith.constant 0 : index
    %1026 = vector.load %arg12[%c5_273, %c1_274, %c0_275, %c0_276] : memref<7x2x8x16xf32, #tpu.memory_space<vmem>>, vector<1x1x8x16xf32>
    tpu.vector_store %arg12[%c5_273, %c1_274, %c0_275, %c0_276], %1025 {strides = array<i32>} : memref<7x2x8x16xf32, #tpu.memory_space<vmem>>, vector<1x1x8x16xf32>,
    %c6 = arith.constant 6 : index
    %1027 = memref.load %arg0[%c6] : memref<7xi32, #tpu.memory_space<smem>>
    %c0_i32_277 = arith.constant 0 : i32
    %1028 = arith.cmpi sgt, %1027, %c0_i32_277 : i32
    %c6_278 = arith.constant 6 : index
    %c0_279 = arith.constant 0 : index
    %c0_280 = arith.constant 0 : index
    %1029 = vector.load %arg1[%c6_278, %c0_279, %c0_280] : memref<8x8x16xf32, #tpu.memory_space<vmem>>, vector<1x8x16xf32>
    %1030 = vector.shape_cast %1029 : vector<1x8x16xf32> to vector<8x16xf32>
    %1031 = arith.select %1028, %1030, %943 : vector<8x16xf32>
    %cst_281 = arith.constant dense<0.000000e+00> : vector<8x128xf32>
    %1032 = tpu.matmul %1031, %0, %cst_281 {dimension_numbers = #tpu.dot_dimension_numbers<[1], [0], [0], [1], [0, 0, 1, 1], [], []>} : vector<8x16xf32>, vector<16x128xf32>, vector<8x128xf32> -> vector<8x128xf32>
    %1033 = arith.addf %1032, %7 : vector<8x128xf32>
    %cst_282 = arith.constant 0.000000e+00 : f32
    %1034 = vector.broadcast %cst_282 : f32 to vector<8x128xf32>
    %1035 = arith.maximumf %1033, %1034 : vector<8x128xf32>
    %cst_283 = arith.constant dense<0.000000e+00> : vector<8x128xf32>
    %1036 = tpu.matmul %1035, %1, %cst_283 {dimension_numbers = #tpu.dot_dimension_numbers<[1], [0], [0], [1], [0, 0, 1, 1], [], []>} : vector<8x128xf32>, vector<128x128xf32>, vector<8x128xf32> -> vector<8x128xf32>
    %1037 = arith.addf %1036, %10 : vector<8x128xf32>
    %cst_284 = arith.constant 0.000000e+00 : f32
    %1038 = vector.broadcast %cst_284 : f32 to vector<8x128xf32>
    %1039 = arith.maximumf %1037, %1038 : vector<8x128xf32>
    %1040 = tpu.concatenate %1039, %904 in 1 : vector<8x128xf32>, vector<8x128xf32> -> vector<8x256xf32>
    %1041 = vector.extract_strided_slice %4 {offsets = [0, 0, 0], sizes = [1, 256, 512], strides = [1, 1, 1]} : vector<2x256x512xf32> to vector<1x256x512xf32>
    %1042 = vector.shape_cast %1041 : vector<1x256x512xf32> to vector<256x512xf32>
    %cst_285 = arith.constant dense<0.000000e+00> : vector<8x512xf32>
    %1043 = tpu.matmul %1040, %1042, %cst_285 {dimension_numbers = #tpu.dot_dimension_numbers<[1], [0], [0], [1], [0, 0, 1, 1], [], []>} : vector<8x256xf32>, vector<256x512xf32>, vector<8x512xf32> -> vector<8x512xf32>
    %1044 = vector.extract_strided_slice %19 {offsets = [0, 0, 0], sizes = [1, 8, 512], strides = [1, 1, 1]} : vector<2x8x512xf32> to vector<1x8x512xf32>
    %1045 = vector.shape_cast %1044 : vector<1x8x512xf32> to vector<8x512xf32>
    %1046 = arith.addf %1043, %1045 : vector<8x512xf32>
    %1047 = vector.extract_strided_slice %1046 {offsets = [0, 0], sizes = [8, 128], strides = [1, 1]} : vector<8x512xf32> to vector<8x128xf32>
    %1048 = arith.negf %1047 : vector<8x128xf32>
    %1049 = math.exp %1048 : vector<8x128xf32>
    %cst_286 = arith.constant 1.000000e+00 : f32
    %1050 = vector.broadcast %cst_286 : f32 to vector<8x128xf32>
    %1051 = arith.addf %1050, %1049 : vector<8x128xf32>
    %1052 = arith.divf %1050, %1051 : vector<8x128xf32>
    %1053 = vector.extract_strided_slice %1046 {offsets = [0, 128], sizes = [8, 128], strides = [1, 1]} : vector<8x512xf32> to vector<8x128xf32>
    %1054 = arith.negf %1053 : vector<8x128xf32>
    %1055 = math.exp %1054 : vector<8x128xf32>
    %cst_287 = arith.constant 1.000000e+00 : f32
    %1056 = vector.broadcast %cst_287 : f32 to vector<8x128xf32>
    %1057 = arith.addf %1056, %1055 : vector<8x128xf32>
    %1058 = arith.divf %1056, %1057 : vector<8x128xf32>
    %1059 = vector.extract_strided_slice %1046 {offsets = [0, 256], sizes = [8, 128], strides = [1, 1]} : vector<8x512xf32> to vector<8x128xf32>
    %1060 = math.tanh %1059 : vector<8x128xf32>
    %1061 = vector.extract_strided_slice %1046 {offsets = [0, 384], sizes = [8, 128], strides = [1, 1]} : vector<8x512xf32> to vector<8x128xf32>
    %1062 = arith.negf %1061 : vector<8x128xf32>
    %1063 = math.exp %1062 : vector<8x128xf32>
    %cst_288 = arith.constant 1.000000e+00 : f32
    %1064 = vector.broadcast %cst_288 : f32 to vector<8x128xf32>
    %1065 = arith.addf %1064, %1063 : vector<8x128xf32>
    %1066 = arith.divf %1064, %1065 : vector<8x128xf32>
    %1067 = arith.mulf %1058, %902 : vector<8x128xf32>
    %1068 = arith.mulf %1052, %1060 : vector<8x128xf32>
    %1069 = arith.addf %1067, %1068 : vector<8x128xf32>
    %1070 = math.tanh %1069 : vector<8x128xf32>
    %1071 = arith.mulf %1066, %1070 : vector<8x128xf32>
    %1072 = tpu.concatenate %1071, %936 in 1 : vector<8x128xf32>, vector<8x128xf32> -> vector<8x256xf32>
    %1073 = vector.extract_strided_slice %4 {offsets = [1, 0, 0], sizes = [1, 256, 512], strides = [1, 1, 1]} : vector<2x256x512xf32> to vector<1x256x512xf32>
    %1074 = vector.shape_cast %1073 : vector<1x256x512xf32> to vector<256x512xf32>
    %cst_289 = arith.constant dense<0.000000e+00> : vector<8x512xf32>
    %1075 = tpu.matmul %1072, %1074, %cst_289 {dimension_numbers = #tpu.dot_dimension_numbers<[1], [0], [0], [1], [0, 0, 1, 1], [], []>} : vector<8x256xf32>, vector<256x512xf32>, vector<8x512xf32> -> vector<8x512xf32>
    %1076 = vector.extract_strided_slice %19 {offsets = [1, 0, 0], sizes = [1, 8, 512], strides = [1, 1, 1]} : vector<2x8x512xf32> to vector<1x8x512xf32>
    %1077 = vector.shape_cast %1076 : vector<1x8x512xf32> to vector<8x512xf32>
    %1078 = arith.addf %1075, %1077 : vector<8x512xf32>
    %1079 = vector.extract_strided_slice %1078 {offsets = [0, 0], sizes = [8, 128], strides = [1, 1]} : vector<8x512xf32> to vector<8x128xf32>
    %1080 = arith.negf %1079 : vector<8x128xf32>
    %1081 = math.exp %1080 : vector<8x128xf32>
    %cst_290 = arith.constant 1.000000e+00 : f32
    %1082 = vector.broadcast %cst_290 : f32 to vector<8x128xf32>
    %1083 = arith.addf %1082, %1081 : vector<8x128xf32>
    %1084 = arith.divf %1082, %1083 : vector<8x128xf32>
    %1085 = vector.extract_strided_slice %1078 {offsets = [0, 128], sizes = [8, 128], strides = [1, 1]} : vector<8x512xf32> to vector<8x128xf32>
    %1086 = arith.negf %1085 : vector<8x128xf32>
    %1087 = math.exp %1086 : vector<8x128xf32>
    %cst_291 = arith.constant 1.000000e+00 : f32
    %1088 = vector.broadcast %cst_291 : f32 to vector<8x128xf32>
    %1089 = arith.addf %1088, %1087 : vector<8x128xf32>
    %1090 = arith.divf %1088, %1089 : vector<8x128xf32>
    %1091 = vector.extract_strided_slice %1078 {offsets = [0, 256], sizes = [8, 128], strides = [1, 1]} : vector<8x512xf32> to vector<8x128xf32>
    %1092 = math.tanh %1091 : vector<8x128xf32>
    %1093 = vector.extract_strided_slice %1078 {offsets = [0, 384], sizes = [8, 128], strides = [1, 1]} : vector<8x512xf32> to vector<8x128xf32>
    %1094 = arith.negf %1093 : vector<8x128xf32>
    %1095 = math.exp %1094 : vector<8x128xf32>
    %cst_292 = arith.constant 1.000000e+00 : f32
    %1096 = vector.broadcast %cst_292 : f32 to vector<8x128xf32>
    %1097 = arith.addf %1096, %1095 : vector<8x128xf32>
    %1098 = arith.divf %1096, %1097 : vector<8x128xf32>
    %1099 = arith.mulf %1090, %934 : vector<8x128xf32>
    %1100 = arith.mulf %1084, %1092 : vector<8x128xf32>
    %1101 = arith.addf %1099, %1100 : vector<8x128xf32>
    %1102 = math.tanh %1101 : vector<8x128xf32>
    %1103 = arith.mulf %1098, %1102 : vector<8x128xf32>
    %cst_293 = arith.constant dense<0.000000e+00> : vector<8x128xf32>
    %1104 = tpu.matmul %1103, %2, %cst_293 {dimension_numbers = #tpu.dot_dimension_numbers<[1], [0], [0], [1], [0, 0, 1, 1], [], []>} : vector<8x128xf32>, vector<128x128xf32>, vector<8x128xf32> -> vector<8x128xf32>
    %1105 = arith.addf %1104, %13 : vector<8x128xf32>
    %cst_294 = arith.constant 0.000000e+00 : f32
    %1106 = vector.broadcast %cst_294 : f32 to vector<8x128xf32>
    %1107 = arith.maximumf %1105, %1106 : vector<8x128xf32>
    %cst_295 = arith.constant dense<0.000000e+00> : vector<8x16xf32>
    %1108 = tpu.matmul %1107, %3, %cst_295 {dimension_numbers = #tpu.dot_dimension_numbers<[1], [0], [0], [1], [0, 0, 1, 1], [], []>} : vector<8x128xf32>, vector<128x16xf32>, vector<8x16xf32> -> vector<8x16xf32>
    %1109 = arith.addf %1108, %16 : vector<8x16xf32>
    %1110 = arith.addf %1109, %1031 : vector<8x16xf32>
    %1111 = vector.shape_cast %1110 : vector<8x16xf32> to vector<1x1x8x16xf32>
    %c6_296 = arith.constant 6 : index
    %c0_297 = arith.constant 0 : index
    %c0_298 = arith.constant 0 : index
    %c0_299 = arith.constant 0 : index
    %1112 = vector.load %arg12[%c6_296, %c0_297, %c0_298, %c0_299] : memref<7x2x8x16xf32, #tpu.memory_space<vmem>>, vector<1x1x8x16xf32>
    tpu.vector_store %arg12[%c6_296, %c0_297, %c0_298, %c0_299], %1111 {strides = array<i32>} : memref<7x2x8x16xf32, #tpu.memory_space<vmem>>, vector<1x1x8x16xf32>,
    %cst_300 = arith.constant dense<0.000000e+00> : vector<8x128xf32>
    %1113 = tpu.matmul %1110, %0, %cst_300 {dimension_numbers = #tpu.dot_dimension_numbers<[1], [0], [0], [1], [0, 0, 1, 1], [], []>} : vector<8x16xf32>, vector<16x128xf32>, vector<8x128xf32> -> vector<8x128xf32>
    %1114 = arith.addf %1113, %7 : vector<8x128xf32>
    %cst_301 = arith.constant 0.000000e+00 : f32
    %1115 = vector.broadcast %cst_301 : f32 to vector<8x128xf32>
    %1116 = arith.maximumf %1114, %1115 : vector<8x128xf32>
    %cst_302 = arith.constant dense<0.000000e+00> : vector<8x128xf32>
    %1117 = tpu.matmul %1116, %1, %cst_302 {dimension_numbers = #tpu.dot_dimension_numbers<[1], [0], [0], [1], [0, 0, 1, 1], [], []>} : vector<8x128xf32>, vector<128x128xf32>, vector<8x128xf32> -> vector<8x128xf32>
    %1118 = arith.addf %1117, %10 : vector<8x128xf32>
    %cst_303 = arith.constant 0.000000e+00 : f32
    %1119 = vector.broadcast %cst_303 : f32 to vector<8x128xf32>
    %1120 = arith.maximumf %1118, %1119 : vector<8x128xf32>
    %1121 = tpu.concatenate %1120, %1071 in 1 : vector<8x128xf32>, vector<8x128xf32> -> vector<8x256xf32>
    %1122 = vector.extract_strided_slice %4 {offsets = [0, 0, 0], sizes = [1, 256, 512], strides = [1, 1, 1]} : vector<2x256x512xf32> to vector<1x256x512xf32>
    %1123 = vector.shape_cast %1122 : vector<1x256x512xf32> to vector<256x512xf32>
    %cst_304 = arith.constant dense<0.000000e+00> : vector<8x512xf32>
    %1124 = tpu.matmul %1121, %1123, %cst_304 {dimension_numbers = #tpu.dot_dimension_numbers<[1], [0], [0], [1], [0, 0, 1, 1], [], []>} : vector<8x256xf32>, vector<256x512xf32>, vector<8x512xf32> -> vector<8x512xf32>
    %1125 = vector.extract_strided_slice %19 {offsets = [0, 0, 0], sizes = [1, 8, 512], strides = [1, 1, 1]} : vector<2x8x512xf32> to vector<1x8x512xf32>
    %1126 = vector.shape_cast %1125 : vector<1x8x512xf32> to vector<8x512xf32>
    %1127 = arith.addf %1124, %1126 : vector<8x512xf32>
    %1128 = vector.extract_strided_slice %1127 {offsets = [0, 0], sizes = [8, 128], strides = [1, 1]} : vector<8x512xf32> to vector<8x128xf32>
    %1129 = arith.negf %1128 : vector<8x128xf32>
    %1130 = math.exp %1129 : vector<8x128xf32>
    %cst_305 = arith.constant 1.000000e+00 : f32
    %1131 = vector.broadcast %cst_305 : f32 to vector<8x128xf32>
    %1132 = arith.addf %1131, %1130 : vector<8x128xf32>
    %1133 = arith.divf %1131, %1132 : vector<8x128xf32>
    %1134 = vector.extract_strided_slice %1127 {offsets = [0, 128], sizes = [8, 128], strides = [1, 1]} : vector<8x512xf32> to vector<8x128xf32>
    %1135 = arith.negf %1134 : vector<8x128xf32>
    %1136 = math.exp %1135 : vector<8x128xf32>
    %cst_306 = arith.constant 1.000000e+00 : f32
    %1137 = vector.broadcast %cst_306 : f32 to vector<8x128xf32>
    %1138 = arith.addf %1137, %1136 : vector<8x128xf32>
    %1139 = arith.divf %1137, %1138 : vector<8x128xf32>
    %1140 = vector.extract_strided_slice %1127 {offsets = [0, 256], sizes = [8, 128], strides = [1, 1]} : vector<8x512xf32> to vector<8x128xf32>
    %1141 = math.tanh %1140 : vector<8x128xf32>
    %1142 = vector.extract_strided_slice %1127 {offsets = [0, 384], sizes = [8, 128], strides = [1, 1]} : vector<8x512xf32> to vector<8x128xf32>
    %1143 = arith.negf %1142 : vector<8x128xf32>
    %1144 = math.exp %1143 : vector<8x128xf32>
    %cst_307 = arith.constant 1.000000e+00 : f32
    %1145 = vector.broadcast %cst_307 : f32 to vector<8x128xf32>
    %1146 = arith.addf %1145, %1144 : vector<8x128xf32>
    %1147 = arith.divf %1145, %1146 : vector<8x128xf32>
    %1148 = arith.mulf %1139, %1069 : vector<8x128xf32>
    %1149 = arith.mulf %1133, %1141 : vector<8x128xf32>
    %1150 = arith.addf %1148, %1149 : vector<8x128xf32>
    %1151 = math.tanh %1150 : vector<8x128xf32>
    %1152 = arith.mulf %1147, %1151 : vector<8x128xf32>
    %1153 = tpu.concatenate %1152, %1103 in 1 : vector<8x128xf32>, vector<8x128xf32> -> vector<8x256xf32>
    %1154 = vector.extract_strided_slice %4 {offsets = [1, 0, 0], sizes = [1, 256, 512], strides = [1, 1, 1]} : vector<2x256x512xf32> to vector<1x256x512xf32>
    %1155 = vector.shape_cast %1154 : vector<1x256x512xf32> to vector<256x512xf32>
    %cst_308 = arith.constant dense<0.000000e+00> : vector<8x512xf32>
    %1156 = tpu.matmul %1153, %1155, %cst_308 {dimension_numbers = #tpu.dot_dimension_numbers<[1], [0], [0], [1], [0, 0, 1, 1], [], []>} : vector<8x256xf32>, vector<256x512xf32>, vector<8x512xf32> -> vector<8x512xf32>
    %1157 = vector.extract_strided_slice %19 {offsets = [1, 0, 0], sizes = [1, 8, 512], strides = [1, 1, 1]} : vector<2x8x512xf32> to vector<1x8x512xf32>
    %1158 = vector.shape_cast %1157 : vector<1x8x512xf32> to vector<8x512xf32>
    %1159 = arith.addf %1156, %1158 : vector<8x512xf32>
    %1160 = vector.extract_strided_slice %1159 {offsets = [0, 0], sizes = [8, 128], strides = [1, 1]} : vector<8x512xf32> to vector<8x128xf32>
    %1161 = arith.negf %1160 : vector<8x128xf32>
    %1162 = math.exp %1161 : vector<8x128xf32>
    %cst_309 = arith.constant 1.000000e+00 : f32
    %1163 = vector.broadcast %cst_309 : f32 to vector<8x128xf32>
    %1164 = arith.addf %1163, %1162 : vector<8x128xf32>
    %1165 = arith.divf %1163, %1164 : vector<8x128xf32>
    %1166 = vector.extract_strided_slice %1159 {offsets = [0, 128], sizes = [8, 128], strides = [1, 1]} : vector<8x512xf32> to vector<8x128xf32>
    %1167 = arith.negf %1166 : vector<8x128xf32>
    %1168 = math.exp %1167 : vector<8x128xf32>
    %cst_310 = arith.constant 1.000000e+00 : f32
    %1169 = vector.broadcast %cst_310 : f32 to vector<8x128xf32>
    %1170 = arith.addf %1169, %1168 : vector<8x128xf32>
    %1171 = arith.divf %1169, %1170 : vector<8x128xf32>
    %1172 = vector.extract_strided_slice %1159 {offsets = [0, 256], sizes = [8, 128], strides = [1, 1]} : vector<8x512xf32> to vector<8x128xf32>
    %1173 = math.tanh %1172 : vector<8x128xf32>
    %1174 = vector.extract_strided_slice %1159 {offsets = [0, 384], sizes = [8, 128], strides = [1, 1]} : vector<8x512xf32> to vector<8x128xf32>
    %1175 = arith.negf %1174 : vector<8x128xf32>
    %1176 = math.exp %1175 : vector<8x128xf32>
    %cst_311 = arith.constant 1.000000e+00 : f32
    %1177 = vector.broadcast %cst_311 : f32 to vector<8x128xf32>
    %1178 = arith.addf %1177, %1176 : vector<8x128xf32>
    %1179 = arith.divf %1177, %1178 : vector<8x128xf32>
    %1180 = arith.mulf %1171, %1101 : vector<8x128xf32>
    %1181 = arith.mulf %1165, %1173 : vector<8x128xf32>
    %1182 = arith.addf %1180, %1181 : vector<8x128xf32>
    %1183 = math.tanh %1182 : vector<8x128xf32>
    %1184 = arith.mulf %1179, %1183 : vector<8x128xf32>
    %cst_312 = arith.constant dense<0.000000e+00> : vector<8x128xf32>
    %1185 = tpu.matmul %1184, %2, %cst_312 {dimension_numbers = #tpu.dot_dimension_numbers<[1], [0], [0], [1], [0, 0, 1, 1], [], []>} : vector<8x128xf32>, vector<128x128xf32>, vector<8x128xf32> -> vector<8x128xf32>
    %1186 = arith.addf %1185, %13 : vector<8x128xf32>
    %cst_313 = arith.constant 0.000000e+00 : f32
    %1187 = vector.broadcast %cst_313 : f32 to vector<8x128xf32>
    %1188 = arith.maximumf %1186, %1187 : vector<8x128xf32>
    %cst_314 = arith.constant dense<0.000000e+00> : vector<8x16xf32>
    %1189 = tpu.matmul %1188, %3, %cst_314 {dimension_numbers = #tpu.dot_dimension_numbers<[1], [0], [0], [1], [0, 0, 1, 1], [], []>} : vector<8x128xf32>, vector<128x16xf32>, vector<8x16xf32> -> vector<8x16xf32>
    %1190 = arith.addf %1189, %16 : vector<8x16xf32>
    %1191 = arith.addf %1190, %1110 : vector<8x16xf32>
    %1192 = vector.shape_cast %1191 : vector<8x16xf32> to vector<1x1x8x16xf32>
    %c6_315 = arith.constant 6 : index
    %c1_316 = arith.constant 1 : index
    %c0_317 = arith.constant 0 : index
    %c0_318 = arith.constant 0 : index
    %1193 = vector.load %arg12[%c6_315, %c1_316, %c0_317, %c0_318] : memref<7x2x8x16xf32, #tpu.memory_space<vmem>>, vector<1x1x8x16xf32>
    tpu.vector_store %arg12[%c6_315, %c1_316, %c0_317, %c0_318], %1192 {strides = array<i32>} : memref<7x2x8x16xf32, #tpu.memory_space<vmem>>, vector<1x1x8x16xf32>,
    return
  }
}

</mosaic_0001>

<llo_original>
// kernel: tpu_custom_call.1
$region0: #{tpu_custom_call.1}
  #allocation0 [shape = 'u32[]', space=smem, size = 0x4, offset = 0x4, fixed_abs, tag = 'smem constant byte address 0x4 - core index']
  #allocation1 [shape = 'u32[144,128]{1,0:T(1,128)}', space=vmem, size = 0x12000, scoped, tag = 'internal scratch']
  %s0 = inlined_call_operand.vmem [shape: s32[7], index: 0, kind: input, shape index: {}]
  %s1 = inlined_call_operand.hbm [shape: f32[8,8,16], index: 1, kind: input, shape index: {}]
  %s2 = inlined_call_operand.vmem [shape: f32[16,128], index: 2, kind: input, shape index: {}]
  %s3 = inlined_call_operand.vmem [shape: f32[1,128], index: 3, kind: input, shape index: {}]
  %s4 = inlined_call_operand.vmem [shape: f32[128,128], index: 4, kind: input, shape index: {}]
  %s5 = inlined_call_operand.vmem [shape: f32[1,128], index: 5, kind: input, shape index: {}]
  %s6 = inlined_call_operand.hbm [shape: f32[2,256,512], index: 6, kind: input, shape index: {}]
  %s7 = inlined_call_operand.vmem [shape: f32[2,1,512], index: 7, kind: input, shape index: {}]
  %s8 = inlined_call_operand.hbm [shape: f32[128,128], index: 8, kind: input, shape index: {}]
  %s9 = inlined_call_operand.vmem [shape: f32[1,128], index: 9, kind: input, shape index: {}]
  %s10 = inlined_call_operand.vmem [shape: f32[128,16], index: 10, kind: input, shape index: {}]
  %s11 = inlined_call_operand.vmem [shape: f32[1,16], index: 11, kind: input, shape index: {}]
  %s12 = inlined_call_operand.hbm [shape: f32[7,2,8,16], index: 12, kind: output, shape index: {}]
  %s13 = sld [smem:[#allocation0]]
  $region74: #{tpu_custom_call.1} parent=0
    _
  %s15 = ssub.s32 1, %s13
  %s16 = scalar_select 0, %s15, %s13
  $region1: #{tpu_custom_call.1} parent=0
    #allocation2 [shape = 'u8[512]{0}', space=smem, size = 0x200, scoped, tag = 'input window, operand 0, single buffered']
    #allocation3 [shape = 's32[1]{0}', space=sflag, size = 0x4, scoped, tag = 'scoped memory for tpu_custom_call.1']
    #allocation4 [shape = 's32[1]{0}', space=sflag, size = 0x4, scoped, tag = 'scoped memory for tpu_custom_call.1']
    #allocation5 [shape = 's32[1]{0}', space=sflag, size = 0x4, scoped, tag = 'scoped memory for tpu_custom_call.1']
    #allocation6 [shape = 'u8[32768]{0}', space=vmem, size = 0x8000, scoped, tag = 'input window, operand 1, single buffered']
    #allocation7 [shape = 'u8[1048576]{0}', space=vmem, size = 0x100000, scoped, tag = 'input window, operand 6, single buffered']
    #allocation8 [shape = 's32[1]{0}', space=sflag, size = 0x4, scoped, tag = 'scoped memory for tpu_custom_call.1']
    #allocation9 [shape = 'u8[65536]{0}', space=vmem, size = 0x10000, scoped, tag = 'input window, operand 8, single buffered']
    #allocation10 [shape = 'u8[57344]{0}', space=vmem, size = 0xe000, scoped, tag = 'output window, operand 0, single buffered']
    %17 = vsyncpa [#allocation5], 0
    %18 = vsyncpa [#allocation3], 0
    %19 = vsyncpa [#allocation8], 0
    %20 = vsyncpa [#allocation4], 0
    // Predicated region
    $region2: #{tpu_custom_call.1} parent=1 // pred_check
      _
    $region3: #{tpu_custom_call.1} parent=1 // pred_check_branch
      %22 = sbr.rel (0) target = $region5
    $region4: #{tpu_custom_call.1} parent=1 // pred_region
      %s24 = ssub.s32 16, 16
      %25 = vsyncadd [#allocation5], %s24
      %s27 = sshll.u32 %s0, 4
      %s28 = int_to_ptr.vmem [resolvable:$true] %s27
      %30 = dma.vmem_to_smem %s28, 16, [#allocation2], [#allocation5]
    $region5: #{tpu_custom_call.1} parent=1 // pred_fallthru
      _
    // Predicated region
    $region6: #{tpu_custom_call.1} parent=1 // pred_check
      _
    $region7: #{tpu_custom_call.1} parent=1 // pred_check_branch
      %32 = sbr.rel (0) target = $region9
    $region8: #{tpu_custom_call.1} parent=1 // pred_region
      %s34 = ssub.s32 1024, 1024
      %35 = vsyncadd [#allocation3], %s34
      %s36 = sshll.u32 [#allocation6], 4
      %s37 = int_to_ptr.vmem [resolvable:$true] %s36
      %42 = dma.hbm_to_vmem [thread:$0]  %s1, 1024, %s37, [#allocation3], 128, 128, 8
    $region9: #{tpu_custom_call.1} parent=1 // pred_fallthru
      _
    // Predicated region
    $region10: #{tpu_custom_call.1} parent=1 // pred_check
      _
    $region11: #{tpu_custom_call.1} parent=1 // pred_check_branch
      %44 = sbr.rel (0) target = $region13
    $region12: #{tpu_custom_call.1} parent=1 // pred_region
      _
    $region13: #{tpu_custom_call.1} parent=1 // pred_fallthru
      _
    // Predicated region
    $region14: #{tpu_custom_call.1} parent=1 // pred_check
      _
    $region15: #{tpu_custom_call.1} parent=1 // pred_check_branch
      %46 = sbr.rel (0) target = $region17
    $region16: #{tpu_custom_call.1} parent=1 // pred_region
      _
    $region17: #{tpu_custom_call.1} parent=1 // pred_fallthru
      _
    // Predicated region
    $region18: #{tpu_custom_call.1} parent=1 // pred_check
      _
    $region19: #{tpu_custom_call.1} parent=1 // pred_check_branch
      %48 = sbr.rel (0) target = $region21
    $region20: #{tpu_custom_call.1} parent=1 // pred_region
      _
    $region21: #{tpu_custom_call.1} parent=1 // pred_fallthru
      _
    // Predicated region
    $region22: #{tpu_custom_call.1} parent=1 // pred_check
      _
    $region23: #{tpu_custom_call.1} parent=1 // pred_check_branch
      %50 = sbr.rel (0) target = $region25
    $region24: #{tpu_custom_call.1} parent=1 // pred_region
      _
    $region25: #{tpu_custom_call.1} parent=1 // pred_fallthru
      _
    // Predicated region
    $region26: #{tpu_custom_call.1} parent=1 // pred_check
      _
    $region27: #{tpu_custom_call.1} parent=1 // pred_check_branch
      %52 = sbr.rel (0) target = $region29
    $region28: #{tpu_custom_call.1} parent=1 // pred_region
      %s54 = ssub.s32 32768, 32768
      %55 = vsyncadd [#allocation8], %s54
      %s56 = sshll.u32 [#allocation7], 4
      %s57 = int_to_ptr.vmem [resolvable:$true] %s56
      %62 = dma.hbm_to_vmem [thread:$0]  %s6, 32768, %s57, [#allocation8], 512, 512, 32
    $region29: #{tpu_custom_call.1} parent=1 // pred_fallthru
      _
    // Predicated region
    $region30: #{tpu_custom_call.1} parent=1 // pred_check
      _
    $region31: #{tpu_custom_call.1} parent=1 // pred_check_branch
      %64 = sbr.rel (0) target = $region33
    $region32: #{tpu_custom_call.1} parent=1 // pred_region
      _
    $region33: #{tpu_custom_call.1} parent=1 // pred_fallthru
      _
    // Predicated region
    $region34: #{tpu_custom_call.1} parent=1 // pred_check
      _
    $region35: #{tpu_custom_call.1} parent=1 // pred_check_branch
      %66 = sbr.rel (0) target = $region37
    $region36: #{tpu_custom_call.1} parent=1 // pred_region
      %s68 = ssub.s32 2048, 2048
      %69 = vsyncadd [#allocation8], %s68
      %s70 = sshll.u32 [#allocation9], 4
      %s71 = int_to_ptr.vmem [resolvable:$true] %s70
      %76 = dma.hbm_to_vmem [thread:$0]  %s8, 2048, %s71, [#allocation8], 128, 128, 8
    $region37: #{tpu_custom_call.1} parent=1 // pred_fallthru
      _
    // Predicated region
    $region38: #{tpu_custom_call.1} parent=1 // pred_check
      _
    $region39: #{tpu_custom_call.1} parent=1 // pred_check_branch
      %78 = sbr.rel (0) target = $region41
    $region40: #{tpu_custom_call.1} parent=1 // pred_region
      _
    $region41: #{tpu_custom_call.1} parent=1 // pred_fallthru
      _
    // Predicated region
    $region42: #{tpu_custom_call.1} parent=1 // pred_check
      _
    $region43: #{tpu_custom_call.1} parent=1 // pred_check_branch
      %80 = sbr.rel (0) target = $region45
    $region44: #{tpu_custom_call.1} parent=1 // pred_region
      _
    $region45: #{tpu_custom_call.1} parent=1 // pred_fallthru
      _
    // Predicated region
    $region46: #{tpu_custom_call.1} parent=1 // pred_check
      _
    $region47: #{tpu_custom_call.1} parent=1 // pred_check_branch
      %82 = sbr.rel (0) target = $region49
    $region48: #{tpu_custom_call.1} parent=1 // pred_region
      _
    $region49: #{tpu_custom_call.1} parent=1 // pred_fallthru
      _
    // Predicated region
    $region50: #{tpu_custom_call.1} parent=1 // pred_check
      _
    $region51: #{tpu_custom_call.1} parent=1 // pred_check_branch
      %84 = sbr.rel (0) target = $region53
    $region52: #{tpu_custom_call.1} parent=1 // pred_region
      %85 = dma.done [#allocation5], 16
    $region53: #{tpu_custom_call.1} parent=1 // pred_fallthru
      _
    // Predicated region
    $region54: #{tpu_custom_call.1} parent=1 // pred_check
      _
    $region55: #{tpu_custom_call.1} parent=1 // pred_check_branch
      %87 = sbr.rel (0) target = $region57
    $region56: #{tpu_custom_call.1} parent=1 // pred_region
      %88 = dma.done [#allocation3], 1024
    $region57: #{tpu_custom_call.1} parent=1 // pred_fallthru
      _
    // Predicated region
    $region58: #{tpu_custom_call.1} parent=1 // pred_check
      _
    $region59: #{tpu_custom_call.1} parent=1 // pred_check_branch
      %90 = sbr.rel (0) target = $region61
    $region60: #{tpu_custom_call.1} parent=1 // pred_region
      %91 = dma.done [#allocation8], 32768
    $region61: #{tpu_custom_call.1} parent=1 // pred_fallthru
      _
    // Predicated region
    $region62: #{tpu_custom_call.1} parent=1 // pred_check
      _
    $region63: #{tpu_custom_call.1} parent=1 // pred_check_branch
      %93 = sbr.rel (0) target = $region65
    $region64: #{tpu_custom_call.1} parent=1 // pred_region
      %94 = dma.done [#allocation8], 2048
    $region65: #{tpu_custom_call.1} parent=1 // pred_fallthru
      _
    %95 = sfence
    %v96 = vld [vmem:[%s2] sm:$0xff]
    %v97 = vld [vmem:[%s2 + $0x8] sm:$0xff]
    %v98 = vld [vmem:[%s4] sm:$0xff]
    %v99 = vld [vmem:[%s4 + $0x8] sm:$0xff]
    %v100 = vld [vmem:[%s4 + $0x10] sm:$0xff]
    %v101 = vld [vmem:[%s4 + $0x18] sm:$0xff]
    %v102 = vld [vmem:[%s4 + $0x20] sm:$0xff]
    %v103 = vld [vmem:[%s4 + $0x28] sm:$0xff]
    %v104 = vld [vmem:[%s4 + $0x30] sm:$0xff]
    %v105 = vld [vmem:[%s4 + $0x38] sm:$0xff]
    %v106 = vld [vmem:[%s4 + $0x40] sm:$0xff]
    %v107 = vld [vmem:[%s4 + $0x48] sm:$0xff]
    %v108 = vld [vmem:[%s4 + $0x50] sm:$0xff]
    %v109 = vld [vmem:[%s4 + $0x58] sm:$0xff]
    %v110 = vld [vmem:[%s4 + $0x60] sm:$0xff]
    %v111 = vld [vmem:[%s4 + $0x68] sm:$0xff]
    %v112 = vld [vmem:[%s4 + $0x70] sm:$0xff]
    %v113 = vld [vmem:[%s4 + $0x78] sm:$0xff]
    %v114 = vld [vmem:[#allocation9] sm:$0xff]
    %v115 = vld [vmem:[#allocation9 + $0x8] sm:$0xff]
    %v116 = vld [vmem:[#allocation9 + $0x10] sm:$0xff]
    %v117 = vld [vmem:[#allocation9 + $0x18] sm:$0xff]
    %v118 = vld [vmem:[#allocation9 + $0x20] sm:$0xff]
    %v119 = vld [vmem:[#allocation9 + $0x28] sm:$0xff]
    %v120 = vld [vmem:[#allocation9 + $0x30] sm:$0xff]
    %v121 = vld [vmem:[#allocation9 + $0x38] sm:$0xff]
    %v122 = vld [vmem:[#allocation9 + $0x40] sm:$0xff]
    %v123 = vld [vmem:[#allocation9 + $0x48] sm:$0xff]
    %v124 = vld [vmem:[#allocation9 + $0x50] sm:$0xff]
    %v125 = vld [vmem:[#allocation9 + $0x58] sm:$0xff]
    %v126 = vld [vmem:[#allocation9 + $0x60] sm:$0xff]
    %v127 = vld [vmem:[#allocation9 + $0x68] sm:$0xff]
    %v128 = vld [vmem:[#allocation9 + $0x70] sm:$0xff]
    %v129 = vld [vmem:[#allocation9 + $0x78] sm:$0xff]
    %v130 = vld [vmem:[%s10] sm:$0xff]
    %v131 = vld [vmem:[%s10 + $0x8] sm:$0xff]
    %v132 = vld [vmem:[%s10 + $0x10] sm:$0xff]
    %v133 = vld [vmem:[%s10 + $0x18] sm:$0xff]
    %v134 = vld [vmem:[%s10 + $0x20] sm:$0xff]
    %v135 = vld [vmem:[%s10 + $0x28] sm:$0xff]
    %v136 = vld [vmem:[%s10 + $0x30] sm:$0xff]
    %v137 = vld [vmem:[%s10 + $0x38] sm:$0xff]
    %v138 = vld [vmem:[%s10 + $0x40] sm:$0xff]
    %v139 = vld [vmem:[%s10 + $0x48] sm:$0xff]
    %v140 = vld [vmem:[%s10 + $0x50] sm:$0xff]
    %v141 = vld [vmem:[%s10 + $0x58] sm:$0xff]
    %v142 = vld [vmem:[%s10 + $0x60] sm:$0xff]
    %v143 = vld [vmem:[%s10 + $0x68] sm:$0xff]
    %v144 = vld [vmem:[%s10 + $0x70] sm:$0xff]
    %v145 = vld [vmem:[%s10 + $0x78] sm:$0xff]
    %v146 = vld [vmem:[#allocation7] sm:$0xff]
    %v147 = vld [vmem:[#allocation7 + $0x8] sm:$0xff]
    %v148 = vld [vmem:[#allocation7 + $0x10] sm:$0xff]
    %v149 = vld [vmem:[#allocation7 + $0x18] sm:$0xff]
    %v150 = vld [vmem:[#allocation7 + $0x20] sm:$0xff]
    %v151 = vld [vmem:[#allocation7 + $0x28] sm:$0xff]
    %v152 = vld [vmem:[#allocation7 + $0x30] sm:$0xff]
    %v153 = vld [vmem:[#allocation7 + $0x38] sm:$0xff]
    %v154 = vld [vmem:[#allocation7 + $0x40] sm:$0xff]
    %v155 = vld [vmem:[#allocation7 + $0x48] sm:$0xff]
    %v156 = vld [vmem:[#allocation7 + $0x50] sm:$0xff]
    %v157 = vld [vmem:[#allocation7 + $0x58] sm:$0xff]
    %v158 = vld [vmem:[#allocation7 + $0x60] sm:$0xff]
    %v159 = vld [vmem:[#allocation7 + $0x68] sm:$0xff]
    %v160 = vld [vmem:[#allocation7 + $0x70] sm:$0xff]
    %v161 = vld [vmem:[#allocation7 + $0x78] sm:$0xff]
    %v162 = vld [vmem:[#allocation7 + $0x80] sm:$0xff]
    %v163 = vld [vmem:[#allocation7 + $0x88] sm:$0xff]
    %v164 = vld [vmem:[#allocation7 + $0x90] sm:$0xff]
    %v165 = vld [vmem:[#allocation7 + $0x98] sm:$0xff]
    %v166 = vld [vmem:[#allocation7 + $0xa0] sm:$0xff]
    %v167 = vld [vmem:[#allocation7 + $0xa8] sm:$0xff]
    %v168 = vld [vmem:[#allocation7 + $0xb0] sm:$0xff]
    %v169 = vld [vmem:[#allocation7 + $0xb8] sm:$0xff]
    %v170 = vld [vmem:[#allocation7 + $0xc0] sm:$0xff]
    %v171 = vld [vmem:[#allocation7 + $0xc8] sm:$0xff]
    %v172 = vld [vmem:[#allocation7 + $0xd0] sm:$0xff]
    %v173 = vld [vmem:[#allocation7 + $0xd8] sm:$0xff]
    %v174 = vld [vmem:[#allocation7 + $0xe0] sm:$0xff]
    %v175 = vld [vmem:[#allocation7 + $0xe8] sm:$0xff]
    %v176 = vld [vmem:[#allocation7 + $0xf0] sm:$0xff]
    %v177 = vld [vmem:[#allocation7 + $0xf8] sm:$0xff]
    %v178 = vld [vmem:[#allocation7 + $0x100] sm:$0xff]
    %v179 = vld [vmem:[#allocation7 + $0x108] sm:$0xff]
    %v180 = vld [vmem:[#allocation7 + $0x110] sm:$0xff]
    %v181 = vld [vmem:[#allocation7 + $0x118] sm:$0xff]
    %v182 = vld [vmem:[#allocation7 + $0x120] sm:$0xff]
    %v183 = vld [vmem:[#allocation7 + $0x128] sm:$0xff]
    %v184 = vld [vmem:[#allocation7 + $0x130] sm:$0xff]
    %v185 = vld [vmem:[#allocation7 + $0x138] sm:$0xff]
    %v186 = vld [vmem:[#allocation7 + $0x140] sm:$0xff]
    %v187 = vld [vmem:[#allocation7 + $0x148] sm:$0xff]
    %v188 = vld [vmem:[#allocation7 + $0x150] sm:$0xff]
    %v189 = vld [vmem:[#allocation7 + $0x158] sm:$0xff]
    %v190 = vld [vmem:[#allocation7 + $0x160] sm:$0xff]
    %v191 = vld [vmem:[#allocation7 + $0x168] sm:$0xff]
    %v192 = vld [vmem:[#allocation7 + $0x170] sm:$0xff]
    %v193 = vld [vmem:[#allocation7 + $0x178] sm:$0xff]
    %v194 = vld [vmem:[#allocation7 + $0x180] sm:$0xff]
    %v195 = vld [vmem:[#allocation7 + $0x188] sm:$0xff]
    %v196 = vld [vmem:[#allocation7 + $0x190] sm:$0xff]
    %v197 = vld [vmem:[#allocation7 + $0x198] sm:$0xff]
    %v198 = vld [vmem:[#allocation7 + $0x1a0] sm:$0xff]
    %v199 = vld [vmem:[#allocation7 + $0x1a8] sm:$0xff]
    %v200 = vld [vmem:[#allocation7 + $0x1b0] sm:$0xff]
    %v201 = vld [vmem:[#allocation7 + $0x1b8] sm:$0xff]
    %v202 = vld [vmem:[#allocation7 + $0x1c0] sm:$0xff]
    %v203 = vld [vmem:[#allocation7 + $0x1c8] sm:$0xff]
    %v204 = vld [vmem:[#allocation7 + $0x1d0] sm:$0xff]
    %v205 = vld [vmem:[#allocation7 + $0x1d8] sm:$0xff]
    %v206 = vld [vmem:[#allocation7 + $0x1e0] sm:$0xff]
    %v207 = vld [vmem:[#allocation7 + $0x1e8] sm:$0xff]
    %v208 = vld [vmem:[#allocation7 + $0x1f0] sm:$0xff]
    %v209 = vld [vmem:[#allocation7 + $0x1f8] sm:$0xff]
    %v210 = vld [vmem:[#allocation7 + $0x200] sm:$0xff]
    %v211 = vld [vmem:[#allocation7 + $0x208] sm:$0xff]
    %v212 = vld [vmem:[#allocation7 + $0x210] sm:$0xff]
    %v213 = vld [vmem:[#allocation7 + $0x218] sm:$0xff]
    %v214 = vld [vmem:[#allocation7 + $0x220] sm:$0xff]
    %v215 = vld [vmem:[#allocation7 + $0x228] sm:$0xff]
    %v216 = vld [vmem:[#allocation7 + $0x230] sm:$0xff]
    %v217 = vld [vmem:[#allocation7 + $0x238] sm:$0xff]
    %v218 = vld [vmem:[#allocation7 + $0x240] sm:$0xff]
    %v219 = vld [vmem:[#allocation7 + $0x248] sm:$0xff]
    %v220 = vld [vmem:[#allocation7 + $0x250] sm:$0xff]
    %v221 = vld [vmem:[#allocation7 + $0x258] sm:$0xff]
    %v222 = vld [vmem:[#allocation7 + $0x260] sm:$0xff]
    %v223 = vld [vmem:[#allocation7 + $0x268] sm:$0xff]
    %v224 = vld [vmem:[#allocation7 + $0x270] sm:$0xff]
    %v225 = vld [vmem:[#allocation7 + $0x278] sm:$0xff]
    %v226 = vld [vmem:[#allocation7 + $0x280] sm:$0xff]
    %v227 = vld [vmem:[#allocation7 + $0x288] sm:$0xff]
    %v228 = vld [vmem:[#allocation7 + $0x290] sm:$0xff]
    %v229 = vld [vmem:[#allocation7 + $0x298] sm:$0xff]
    %v230 = vld [vmem:[#allocation7 + $0x2a0] sm:$0xff]
    %v231 = vld [vmem:[#allocation7 + $0x2a8] sm:$0xff]
    %v232 = vld [vmem:[#allocation7 + $0x2b0] sm:$0xff]
    %v233 = vld [vmem:[#allocation7 + $0x2b8] sm:$0xff]
    %v234 = vld [vmem:[#allocation7 + $0x2c0] sm:$0xff]
    %v235 = vld [vmem:[#allocation7 + $0x2c8] sm:$0xff]
    %v236 = vld [vmem:[#allocation7 + $0x2d0] sm:$0xff]
    %v237 = vld [vmem:[#allocation7 + $0x2d8] sm:$0xff]
    %v238 = vld [vmem:[#allocation7 + $0x2e0] sm:$0xff]
    %v239 = vld [vmem:[#allocation7 + $0x2e8] sm:$0xff]
    %v240 = vld [vmem:[#allocation7 + $0x2f0] sm:$0xff]
    %v241 = vld [vmem:[#allocation7 + $0x2f8] sm:$0xff]
    %v242 = vld [vmem:[#allocation7 + $0x300] sm:$0xff]
    %v243 = vld [vmem:[#allocation7 + $0x308] sm:$0xff]
    %v244 = vld [vmem:[#allocation7 + $0x310] sm:$0xff]
    %v245 = vld [vmem:[#allocation7 + $0x318] sm:$0xff]
    %v246 = vld [vmem:[#allocation7 + $0x320] sm:$0xff]
    %v247 = vld [vmem:[#allocation7 + $0x328] sm:$0xff]
    %v248 = vld [vmem:[#allocation7 + $0x330] sm:$0xff]
    %v249 = vld [vmem:[#allocation7 + $0x338] sm:$0xff]
    %v250 = vld [vmem:[#allocation7 + $0x340] sm:$0xff]
    %v251 = vld [vmem:[#allocation7 + $0x348] sm:$0xff]
    %v252 = vld [vmem:[#allocation7 + $0x350] sm:$0xff]
    %v253 = vld [vmem:[#allocation7 + $0x358] sm:$0xff]
    %v254 = vld [vmem:[#allocation7 + $0x360] sm:$0xff]
    %v255 = vld [vmem:[#allocation7 + $0x368] sm:$0xff]
    %v256 = vld [vmem:[#allocation7 + $0x370] sm:$0xff]
    %v257 = vld [vmem:[#allocation7 + $0x378] sm:$0xff]
    %v258 = vld [vmem:[#allocation7 + $0x380] sm:$0xff]
    %v259 = vld [vmem:[#allocation7 + $0x388] sm:$0xff]
    %v260 = vld [vmem:[#allocation7 + $0x390] sm:$0xff]
    %v261 = vld [vmem:[#allocation7 + $0x398] sm:$0xff]
    %v262 = vld [vmem:[#allocation7 + $0x3a0] sm:$0xff]
    %v263 = vld [vmem:[#allocation7 + $0x3a8] sm:$0xff]
    %v264 = vld [vmem:[#allocation7 + $0x3b0] sm:$0xff]
    %v265 = vld [vmem:[#allocation7 + $0x3b8] sm:$0xff]
    %v266 = vld [vmem:[#allocation7 + $0x3c0] sm:$0xff]
    %v267 = vld [vmem:[#allocation7 + $0x3c8] sm:$0xff]
    %v268 = vld [vmem:[#allocation7 + $0x3d0] sm:$0xff]
    %v269 = vld [vmem:[#allocation7 + $0x3d8] sm:$0xff]
    %v270 = vld [vmem:[#allocation7 + $0x3e0] sm:$0xff]
    %v271 = vld [vmem:[#allocation7 + $0x3e8] sm:$0xff]
    %v272 = vld [vmem:[#allocation7 + $0x3f0] sm:$0xff]
    %v273 = vld [vmem:[#allocation7 + $0x3f8] sm:$0xff]
    %v274 = vld [vmem:[#allocation7 + $0x400] sm:$0xff]
    %v275 = vld [vmem:[#allocation7 + $0x408] sm:$0xff]
    %v276 = vld [vmem:[#allocation7 + $0x410] sm:$0xff]
    %v277 = vld [vmem:[#allocation7 + $0x418] sm:$0xff]
    %v278 = vld [vmem:[#allocation7 + $0x420] sm:$0xff]
    %v279 = vld [vmem:[#allocation7 + $0x428] sm:$0xff]
    %v280 = vld [vmem:[#allocation7 + $0x430] sm:$0xff]
    %v281 = vld [vmem:[#allocation7 + $0x438] sm:$0xff]
    %v282 = vld [vmem:[#allocation7 + $0x440] sm:$0xff]
    %v283 = vld [vmem:[#allocation7 + $0x448] sm:$0xff]
    %v284 = vld [vmem:[#allocation7 + $0x450] sm:$0xff]
    %v285 = vld [vmem:[#allocation7 + $0x458] sm:$0xff]
    %v286 = vld [vmem:[#allocation7 + $0x460] sm:$0xff]
    %v287 = vld [vmem:[#allocation7 + $0x468] sm:$0xff]
    %v288 = vld [vmem:[#allocation7 + $0x470] sm:$0xff]
    %v289 = vld [vmem:[#allocation7 + $0x478] sm:$0xff]
    %v290 = vld [vmem:[#allocation7 + $0x480] sm:$0xff]
    %v291 = vld [vmem:[#allocation7 + $0x488] sm:$0xff]
    %v292 = vld [vmem:[#allocation7 + $0x490] sm:$0xff]
    %v293 = vld [vmem:[#allocation7 + $0x498] sm:$0xff]
    %v294 = vld [vmem:[#allocation7 + $0x4a0] sm:$0xff]
    %v295 = vld [vmem:[#allocation7 + $0x4a8] sm:$0xff]
    %v296 = vld [vmem:[#allocation7 + $0x4b0] sm:$0xff]
    %v297 = vld [vmem:[#allocation7 + $0x4b8] sm:$0xff]
    %v298 = vld [vmem:[#allocation7 + $0x4c0] sm:$0xff]
    %v299 = vld [vmem:[#allocation7 + $0x4c8] sm:$0xff]
    %v300 = vld [vmem:[#allocation7 + $0x4d0] sm:$0xff]
    %v301 = vld [vmem:[#allocation7 + $0x4d8] sm:$0xff]
    %v302 = vld [vmem:[#allocation7 + $0x4e0] sm:$0xff]
    %v303 = vld [vmem:[#allocation7 + $0x4e8] sm:$0xff]
    %v304 = vld [vmem:[#allocation7 + $0x4f0] sm:$0xff]
    %v305 = vld [vmem:[#allocation7 + $0x4f8] sm:$0xff]
    %v306 = vld [vmem:[#allocation7 + $0x500] sm:$0xff]
    %v307 = vld [vmem:[#allocation7 + $0x508] sm:$0xff]
    %v308 = vld [vmem:[#allocation7 + $0x510] sm:$0xff]
    %v309 = vld [vmem:[#allocation7 + $0x518] sm:$0xff]
    %v310 = vld [vmem:[#allocation7 + $0x520] sm:$0xff]
    %v311 = vld [vmem:[#allocation7 + $0x528] sm:$0xff]
    %v312 = vld [vmem:[#allocation7 + $0x530] sm:$0xff]
    %v313 = vld [vmem:[#allocation7 + $0x538] sm:$0xff]
    %v314 = vld [vmem:[#allocation7 + $0x540] sm:$0xff]
    %v315 = vld [vmem:[#allocation7 + $0x548] sm:$0xff]
    %v316 = vld [vmem:[#allocation7 + $0x550] sm:$0xff]
    %v317 = vld [vmem:[#allocation7 + $0x558] sm:$0xff]
    %v318 = vld [vmem:[#allocation7 + $0x560] sm:$0xff]
    %v319 = vld [vmem:[#allocation7 + $0x568] sm:$0xff]
    %v320 = vld [vmem:[#allocation7 + $0x570] sm:$0xff]
    %v321 = vld [vmem:[#allocation7 + $0x578] sm:$0xff]
    %v322 = vld [vmem:[#allocation7 + $0x580] sm:$0xff]
    %v323 = vld [vmem:[#allocation7 + $0x588] sm:$0xff]
    %v324 = vld [vmem:[#allocation7 + $0x590] sm:$0xff]
    %v325 = vld [vmem:[#allocation7 + $0x598] sm:$0xff]
    %v326 = vld [vmem:[#allocation7 + $0x5a0] sm:$0xff]
    %v327 = vld [vmem:[#allocation7 + $0x5a8] sm:$0xff]
    %v328 = vld [vmem:[#allocation7 + $0x5b0] sm:$0xff]
    %v329 = vld [vmem:[#allocation7 + $0x5b8] sm:$0xff]
    %v330 = vld [vmem:[#allocation7 + $0x5c0] sm:$0xff]
    %v331 = vld [vmem:[#allocation7 + $0x5c8] sm:$0xff]
    %v332 = vld [vmem:[#allocation7 + $0x5d0] sm:$0xff]
    %v333 = vld [vmem:[#allocation7 + $0x5d8] sm:$0xff]
    %v334 = vld [vmem:[#allocation7 + $0x5e0] sm:$0xff]
    %v335 = vld [vmem:[#allocation7 + $0x5e8] sm:$0xff]
    %v336 = vld [vmem:[#allocation7 + $0x5f0] sm:$0xff]
    %v337 = vld [vmem:[#allocation7 + $0x5f8] sm:$0xff]
    %v338 = vld [vmem:[#allocation7 + $0x600] sm:$0xff]
    %v339 = vld [vmem:[#allocation7 + $0x608] sm:$0xff]
    %v340 = vld [vmem:[#allocation7 + $0x610] sm:$0xff]
    %v341 = vld [vmem:[#allocation7 + $0x618] sm:$0xff]
    %v342 = vld [vmem:[#allocation7 + $0x620] sm:$0xff]
    %v343 = vld [vmem:[#allocation7 + $0x628] sm:$0xff]
    %v344 = vld [vmem:[#allocation7 + $0x630] sm:$0xff]
    %v345 = vld [vmem:[#allocation7 + $0x638] sm:$0xff]
    %v346 = vld [vmem:[#allocation7 + $0x640] sm:$0xff]
    %v347 = vld [vmem:[#allocation7 + $0x648] sm:$0xff]
    %v348 = vld [vmem:[#allocation7 + $0x650] sm:$0xff]
    %v349 = vld [vmem:[#allocation7 + $0x658] sm:$0xff]
    %v350 = vld [vmem:[#allocation7 + $0x660] sm:$0xff]
    %v351 = vld [vmem:[#allocation7 + $0x668] sm:$0xff]
    %v352 = vld [vmem:[#allocation7 + $0x670] sm:$0xff]
    %v353 = vld [vmem:[#allocation7 + $0x678] sm:$0xff]
    %v354 = vld [vmem:[#allocation7 + $0x680] sm:$0xff]
    %v355 = vld [vmem:[#allocation7 + $0x688] sm:$0xff]
    %v356 = vld [vmem:[#allocation7 + $0x690] sm:$0xff]
    %v357 = vld [vmem:[#allocation7 + $0x698] sm:$0xff]
    %v358 = vld [vmem:[#allocation7 + $0x6a0] sm:$0xff]
    %v359 = vld [vmem:[#allocation7 + $0x6a8] sm:$0xff]
    %v360 = vld [vmem:[#allocation7 + $0x6b0] sm:$0xff]
    %v361 = vld [vmem:[#allocation7 + $0x6b8] sm:$0xff]
    %v362 = vld [vmem:[#allocation7 + $0x6c0] sm:$0xff]
    %v363 = vld [vmem:[#allocation7 + $0x6c8] sm:$0xff]
    %v364 = vld [vmem:[#allocation7 + $0x6d0] sm:$0xff]
    %v365 = vld [vmem:[#allocation7 + $0x6d8] sm:$0xff]
    %v366 = vld [vmem:[#allocation7 + $0x6e0] sm:$0xff]
    %v367 = vld [vmem:[#allocation7 + $0x6e8] sm:$0xff]
    %v368 = vld [vmem:[#allocation7 + $0x6f0] sm:$0xff]
    %v369 = vld [vmem:[#allocation7 + $0x6f8] sm:$0xff]
    %v370 = vld [vmem:[#allocation7 + $0x700] sm:$0xff]
    %v371 = vld [vmem:[#allocation7 + $0x708] sm:$0xff]
    %v372 = vld [vmem:[#allocation7 + $0x710] sm:$0xff]
    %v373 = vld [vmem:[#allocation7 + $0x718] sm:$0xff]
    %v374 = vld [vmem:[#allocation7 + $0x720] sm:$0xff]
    %v375 = vld [vmem:[#allocation7 + $0x728] sm:$0xff]
    %v376 = vld [vmem:[#allocation7 + $0x730] sm:$0xff]
    %v377 = vld [vmem:[#allocation7 + $0x738] sm:$0xff]
    %v378 = vld [vmem:[#allocation7 + $0x740] sm:$0xff]
    %v379 = vld [vmem:[#allocation7 + $0x748] sm:$0xff]
    %v380 = vld [vmem:[#allocation7 + $0x750] sm:$0xff]
    %v381 = vld [vmem:[#allocation7 + $0x758] sm:$0xff]
    %v382 = vld [vmem:[#allocation7 + $0x760] sm:$0xff]
    %v383 = vld [vmem:[#allocation7 + $0x768] sm:$0xff]
    %v384 = vld [vmem:[#allocation7 + $0x770] sm:$0xff]
    %v385 = vld [vmem:[#allocation7 + $0x778] sm:$0xff]
    %v386 = vld [vmem:[#allocation7 + $0x780] sm:$0xff]
    %v387 = vld [vmem:[#allocation7 + $0x788] sm:$0xff]
    %v388 = vld [vmem:[#allocation7 + $0x790] sm:$0xff]
    %v389 = vld [vmem:[#allocation7 + $0x798] sm:$0xff]
    %v390 = vld [vmem:[#allocation7 + $0x7a0] sm:$0xff]
    %v391 = vld [vmem:[#allocation7 + $0x7a8] sm:$0xff]
    %v392 = vld [vmem:[#allocation7 + $0x7b0] sm:$0xff]
    %v393 = vld [vmem:[#allocation7 + $0x7b8] sm:$0xff]
    %v394 = vld [vmem:[#allocation7 + $0x7c0] sm:$0xff]
    %v395 = vld [vmem:[#allocation7 + $0x7c8] sm:$0xff]
    %v396 = vld [vmem:[#allocation7 + $0x7d0] sm:$0xff]
    %v397 = vld [vmem:[#allocation7 + $0x7d8] sm:$0xff]
    %v398 = vld [vmem:[#allocation7 + $0x7e0] sm:$0xff]
    %v399 = vld [vmem:[#allocation7 + $0x7e8] sm:$0xff]
    %v400 = vld [vmem:[#allocation7 + $0x7f0] sm:$0xff]
    %v401 = vld [vmem:[#allocation7 + $0x7f8] sm:$0xff]
    %v402 = vld [vmem:[%s3] sm:$0x1]
    %v404 = vlaneseq
    %v405 = vshrl.u32 %v404, 7
    %v406 = vsub.s32 0, %v405
    %v407 = vrot.slane %v402, %v406
    %v409 = vld [vmem:[%s5] sm:$0x1]
    %v411 = vlaneseq
    %v412 = vshrl.u32 %v411, 7
    %v413 = vsub.s32 0, %v412
    %v414 = vrot.slane %v409, %v413
    %v416 = vld [vmem:[%s9] sm:$0x1]
    %v418 = vlaneseq
    %v419 = vshrl.u32 %v418, 7
    %v420 = vsub.s32 0, %v419
    %v421 = vrot.slane %v416, %v420
    %v423 = vld [vmem:[%s11] sm:$0x1]
    %v425 = vlaneseq
    %v426 = vshrl.u32 %v425, 7
    %v427 = vsub.s32 0, %v426
    %v428 = vrot.slane %v423, %v427
    %v430 = vld [vmem:[%s7] sm:$0xf]
    %v431 = vld [vmem:[%s7 + $0x4] sm:$0xf]
    %s432 = sld [smem:[#allocation2]]
    %p433 = scmp.gt.s32.totalorder %s432, 0
    %v434 = vld [vmem:[#allocation6] sm:$0xff]
    %s435 = scalar_select %p433, 1, 0
    %v436 = vstv %s435
    %vm437 = vcmp.eq.s32.totalorder %v436, 1
    %v438 = vsel %vm437, %v434, 0.0
    %vm439 = vcmask 130048
    %v441 = vsel %vm439, %v438, 0
    %443 = vmatprep.subr.mxu0 0.0
    %444 = vmatpush1.msra.mxu0 %v96
    %445 = vmatprep.subr.mxu0 0.0
    %446 = vmatpush1.msra.mxu0 %v97
    %447 = vmatprep.subr.mxu0 0.0
    %448 = vmatpush1.msra.mxu0 0.0
    %449 = vmatprep.subr.mxu0 0.0
    %450 = vmatpush1.msra.mxu0 0.0
    %451 = vmatprep.subr.mxu0 0.0
    %452 = vmatpush1.msra.mxu0 0.0
    %453 = vmatprep.subr.mxu0 0.0
    %454 = vmatpush1.msra.mxu0 0.0
    %455 = vmatprep.subr.mxu0 0.0
    %456 = vmatpush1.msra.mxu0 0.0
    %457 = vmatprep.subr.mxu0 0.0
    %458 = vmatpush1.msra.mxu0 0.0
    %459 = vmatprep.subr.mxu0 0.0
    %460 = vmatpush1.msra.mxu0 0.0
    %461 = vmatprep.subr.mxu0 0.0
    %462 = vmatpush1.msra.mxu0 0.0
    %463 = vmatprep.subr.mxu0 0.0
    %464 = vmatpush1.msra.mxu0 0.0
    %465 = vmatprep.subr.mxu0 0.0
    %466 = vmatpush1.msra.mxu0 0.0
    %467 = vmatprep.subr.mxu0 0.0
    %468 = vmatpush1.msra.mxu0 0.0
    %469 = vmatprep.subr.mxu0 0.0
    %470 = vmatpush1.msra.mxu0 0.0
    %471 = vmatprep.subr.mxu0 0.0
    %472 = vmatpush1.msra.mxu0 0.0
    %473 = vmatprep.subr.mxu0 0.0
    %474 = vmatpush1.msra.mxu0 0.0
    %475 = vmatprep.subr.mxu0 0.0
    %476 = vmatpush1.msra.mxu0 0.0
    %477 = vmatprep.subr.mxu0 0.0
    %478 = vmatpush1.msra.mxu0 0.0
    %479 = vmatprep.subr.mxu0 0.0
    %480 = vmatpush1.msra.mxu0 0.0
    %481 = vmatprep.subr.mxu0 0.0
    %482 = vmatpush1.msra.mxu0 0.0
    %483 = vmatprep.subr.mxu0 0.0
    %484 = vmatpush1.msra.mxu0 0.0
    %485 = vmatprep.subr.mxu0 0.0
    %486 = vmatpush1.msra.mxu0 0.0
    %487 = vmatprep.subr.mxu0 0.0
    %488 = vmatpush1.msra.mxu0 0.0
    %489 = vmatprep.subr.mxu0 0.0
    %490 = vmatpush1.msra.mxu0 0.0
    %491 = vmatprep.subr.mxu0 0.0
    %492 = vmatpush1.msra.mxu0 0.0
    %493 = vmatprep.subr.mxu0 0.0
    %494 = vmatpush1.msra.mxu0 0.0
    %495 = vmatprep.subr.mxu0 0.0
    %496 = vmatpush1.msra.mxu0 0.0
    %497 = vmatprep.subr.mxu0 0.0
    %498 = vmatpush1.msra.mxu0 0.0
    %499 = vmatprep.subr.mxu0 0.0
    %500 = vmatpush1.msra.mxu0 0.0
    %501 = vmatprep.subr.mxu0 0.0
    %502 = vmatpush1.msra.mxu0 0.0
    %503 = vmatprep.subr.mxu0 0.0
    %504 = vmatpush1.msra.mxu0 0.0
    %505 = vmatprep.subr.mxu0 0.0
    %506 = vmatpush1.msra.mxu0 0.0
    %507 = vmatprep.mubr.f32.mxu0 0.0
    %508 = vmatmul.mubr.f32.gmra.mrb[0].mxu0 %v441
    %v509 = vpop.f32.mrb[0].mxu0
    %v510 = vadd.f32 %v407, %v509
    %v511 = vpop.f32.mrb[0].mxu0
    %512 = vdwg.mxu0
    %v513 = vmax.f32 %v510, 0.0
    %514 = vmatprep.subr.mxu0 0.0
    %515 = vmatpush1.msra.mxu0 %v98
    %516 = vmatprep.subr.mxu0 0.0
    %517 = vmatpush1.msra.mxu0 %v99
    %518 = vmatprep.subr.mxu0 0.0
    %519 = vmatpush1.msra.mxu0 %v100
    %520 = vmatprep.subr.mxu0 0.0
    %521 = vmatpush1.msra.mxu0 %v101
    %522 = vmatprep.subr.mxu0 0.0
    %523 = vmatpush1.msra.mxu0 %v102
    %524 = vmatprep.subr.mxu0 0.0
    %525 = vmatpush1.msra.mxu0 %v103
    %526 = vmatprep.subr.mxu0 0.0
    %527 = vmatpush1.msra.mxu0 %v104
    %528 = vmatprep.subr.mxu0 0.0
    %529 = vmatpush1.msra.mxu0 %v105
    %530 = vmatprep.subr.mxu0 0.0
    %531 = vmatpush1.msra.mxu0 %v106
    %532 = vmatprep.subr.mxu0 0.0
    %533 = vmatpush1.msra.mxu0 %v107
    %534 = vmatprep.subr.mxu0 0.0
    %535 = vmatpush1.msra.mxu0 %v108
    %536 = vmatprep.subr.mxu0 0.0
    %537 = vmatpush1.msra.mxu0 %v109
    %538 = vmatprep.subr.mxu0 0.0
    %539 = vmatpush1.msra.mxu0 %v110
    %540 = vmatprep.subr.mxu0 0.0
    %541 = vmatpush1.msra.mxu0 %v111
    %542 = vmatprep.subr.mxu0 0.0
    %543 = vmatpush1.msra.mxu0 %v112
    %544 = vmatprep.subr.mxu0 0.0
    %545 = vmatpush1.msra.mxu0 %v113
    %546 = vmatprep.subr.mxu0 0.0
    %547 = vmatpush1.msra.mxu0 0.0
    %548 = vmatprep.subr.mxu0 0.0
    %549 = vmatpush1.msra.mxu0 0.0
    %550 = vmatprep.subr.mxu0 0.0
    %551 = vmatpush1.msra.mxu0 0.0
    %552 = vmatprep.subr.mxu0 0.0
    %553 = vmatpush1.msra.mxu0 0.0
    %554 = vmatprep.subr.mxu0 0.0
    %555 = vmatpush1.msra.mxu0 0.0
    %556 = vmatprep.subr.mxu0 0.0
    %557 = vmatpush1.msra.mxu0 0.0
    %558 = vmatprep.subr.mxu0 0.0
    %559 = vmatpush1.msra.mxu0 0.0
    %560 = vmatprep.subr.mxu0 0.0
    %561 = vmatpush1.msra.mxu0 0.0
    %562 = vmatprep.subr.mxu0 0.0
    %563 = vmatpush1.msra.mxu0 0.0
    %564 = vmatprep.subr.mxu0 0.0
    %565 = vmatpush1.msra.mxu0 0.0
    %566 = vmatprep.subr.mxu0 0.0
    %567 = vmatpush1.msra.mxu0 0.0
    %568 = vmatprep.subr.mxu0 0.0
    %569 = vmatpush1.msra.mxu0 0.0
    %570 = vmatprep.subr.mxu0 0.0
    %571 = vmatpush1.msra.mxu0 0.0
    %572 = vmatprep.subr.mxu0 0.0
    %573 = vmatpush1.msra.mxu0 0.0
    %574 = vmatprep.subr.mxu0 0.0
    %575 = vmatpush1.msra.mxu0 0.0
    %576 = vmatprep.subr.mxu0 0.0
    %577 = vmatpush1.msra.mxu0 0.0
    %578 = vmatprep.mubr.f32.mxu0 0.0
    %579 = vmatmul.mubr.f32.gmra.mrb[0].mxu0 %v513
    %v580 = vpop.f32.mrb[0].mxu0
    %v581 = vadd.f32 %v414, %v580
    %v582 = vpop.f32.mrb[0].mxu0
    %583 = vdwg.mxu0
    %v584 = vmax.f32 %v581, 0.0
    %v586 = vlaneseq
    %v587 = vshrl.u32 %v586, 7
    %v588 = vsub.s32 0, %v587
    %v589 = vrot.slane %v430, %v588
    %v590 = vlaneseq
    %v591 = vshrl.u32 %v590, 7
    %v592 = vsub.s32 1, %v591
    %v593 = vrot.slane %v430, %v592
    %v594 = vlaneseq
    %v595 = vshrl.u32 %v594, 7
    %v596 = vsub.s32 2, %v595
    %v597 = vrot.slane %v430, %v596
    %v598 = vlaneseq
    %v599 = vshrl.u32 %v598, 7
    %v600 = vsub.s32 3, %v599
    %v601 = vrot.slane %v430, %v600
    %606 = vmatprep.subr.mxu0 %v147
    %607 = vmatpush1.msra.mxu0 %v146
    %608 = vmatprep.subr.mxu0 %v151
    %609 = vmatpush1.msra.mxu0 %v150
    %610 = vmatprep.subr.mxu0 %v155
    %611 = vmatpush1.msra.mxu0 %v154
    %612 = vmatprep.subr.mxu0 %v159
    %613 = vmatpush1.msra.mxu0 %v158
    %614 = vmatprep.subr.mxu0 %v163
    %615 = vmatpush1.msra.mxu0 %v162
    %616 = vmatprep.subr.mxu0 %v167
    %617 = vmatpush1.msra.mxu0 %v166
    %618 = vmatprep.subr.mxu0 %v171
    %619 = vmatpush1.msra.mxu0 %v170
    %620 = vmatprep.subr.mxu0 %v175
    %621 = vmatpush1.msra.mxu0 %v174
    %622 = vmatprep.subr.mxu0 %v179
    %623 = vmatpush1.msra.mxu0 %v178
    %624 = vmatprep.subr.mxu0 %v183
    %625 = vmatpush1.msra.mxu0 %v182
    %626 = vmatprep.subr.mxu0 %v187
    %627 = vmatpush1.msra.mxu0 %v186
    %628 = vmatprep.subr.mxu0 %v191
    %629 = vmatpush1.msra.mxu0 %v190
    %630 = vmatprep.subr.mxu0 %v195
    %631 = vmatpush1.msra.mxu0 %v194
    %632 = vmatprep.subr.mxu0 %v199
    %633 = vmatpush1.msra.mxu0 %v198
    %634 = vmatprep.subr.mxu0 %v203
    %635 = vmatpush1.msra.mxu0 %v202
    %636 = vmatprep.subr.mxu0 %v207
    %637 = vmatpush1.msra.mxu0 %v206
    %638 = vmatprep.subr.mxu0 %v211
    %639 = vmatpush1.msra.mxu0 %v210
    %640 = vmatprep.subr.mxu0 %v215
    %641 = vmatpush1.msra.mxu0 %v214
    %642 = vmatprep.subr.mxu0 %v219
    %643 = vmatpush1.msra.mxu0 %v218
    %644 = vmatprep.subr.mxu0 %v223
    %645 = vmatpush1.msra.mxu0 %v222
    %646 = vmatprep.subr.mxu0 %v227
    %647 = vmatpush1.msra.mxu0 %v226
    %648 = vmatprep.subr.mxu0 %v231
    %649 = vmatpush1.msra.mxu0 %v230
    %650 = vmatprep.subr.mxu0 %v235
    %651 = vmatpush1.msra.mxu0 %v234
    %652 = vmatprep.subr.mxu0 %v239
    %653 = vmatpush1.msra.mxu0 %v238
    %654 = vmatprep.subr.mxu0 %v243
    %655 = vmatpush1.msra.mxu0 %v242
    %656 = vmatprep.subr.mxu0 %v247
    %657 = vmatpush1.msra.mxu0 %v246
    %658 = vmatprep.subr.mxu0 %v251
    %659 = vmatpush1.msra.mxu0 %v250
    %660 = vmatprep.subr.mxu0 %v255
    %661 = vmatpush1.msra.mxu0 %v254
    %662 = vmatprep.subr.mxu0 %v259
    %663 = vmatpush1.msra.mxu0 %v258
    %664 = vmatprep.subr.mxu0 %v263
    %665 = vmatpush1.msra.mxu0 %v262
    %666 = vmatprep.subr.mxu0 %v267
    %667 = vmatpush1.msra.mxu0 %v266
    %668 = vmatprep.subr.mxu0 %v271
    %669 = vmatpush1.msra.mxu0 %v270
    %670 = vmatprep.mubr.f32.mxu0 0.0
    %671 = vmatmul.mubr.f32.gmra.mrb[0].mxu0 %v584
    %v672 = vpop.f32.mrb[0].mxu0
    %v673 = vadd.f32 %v589, %v672
    %v674 = vpop.f32.mrb[0].mxu0
    %v675 = vadd.f32 %v593, %v674
    %676 = vdwg.mxu0
    %677 = vmatprep.subr.mxu0 %v149
    %678 = vmatpush1.msra.mxu0 %v148
    %679 = vmatprep.subr.mxu0 %v153
    %680 = vmatpush1.msra.mxu0 %v152
    %681 = vmatprep.subr.mxu0 %v157
    %682 = vmatpush1.msra.mxu0 %v156
    %683 = vmatprep.subr.mxu0 %v161
    %684 = vmatpush1.msra.mxu0 %v160
    %685 = vmatprep.subr.mxu0 %v165
    %686 = vmatpush1.msra.mxu0 %v164
    %687 = vmatprep.subr.mxu0 %v169
    %688 = vmatpush1.msra.mxu0 %v168
    %689 = vmatprep.subr.mxu0 %v173
    %690 = vmatpush1.msra.mxu0 %v172
    %691 = vmatprep.subr.mxu0 %v177
    %692 = vmatpush1.msra.mxu0 %v176
    %693 = vmatprep.subr.mxu0 %v181
    %694 = vmatpush1.msra.mxu0 %v180
    %695 = vmatprep.subr.mxu0 %v185
    %696 = vmatpush1.msra.mxu0 %v184
    %697 = vmatprep.subr.mxu0 %v189
    %698 = vmatpush1.msra.mxu0 %v188
    %699 = vmatprep.subr.mxu0 %v193
    %700 = vmatpush1.msra.mxu0 %v192
    %701 = vmatprep.subr.mxu0 %v197
    %702 = vmatpush1.msra.mxu0 %v196
    %703 = vmatprep.subr.mxu0 %v201
    %704 = vmatpush1.msra.mxu0 %v200
    %705 = vmatprep.subr.mxu0 %v205
    %706 = vmatpush1.msra.mxu0 %v204
    %707 = vmatprep.subr.mxu0 %v209
    %708 = vmatpush1.msra.mxu0 %v208
    %709 = vmatprep.subr.mxu0 %v213
    %710 = vmatpush1.msra.mxu0 %v212
    %711 = vmatprep.subr.mxu0 %v217
    %712 = vmatpush1.msra.mxu0 %v216
    %713 = vmatprep.subr.mxu0 %v221
    %714 = vmatpush1.msra.mxu0 %v220
    %715 = vmatprep.subr.mxu0 %v225
    %716 = vmatpush1.msra.mxu0 %v224
    %717 = vmatprep.subr.mxu0 %v229
    %718 = vmatpush1.msra.mxu0 %v228
    %719 = vmatprep.subr.mxu0 %v233
    %720 = vmatpush1.msra.mxu0 %v232
    %721 = vmatprep.subr.mxu0 %v237
    %722 = vmatpush1.msra.mxu0 %v236
    %723 = vmatprep.subr.mxu0 %v241
    %724 = vmatpush1.msra.mxu0 %v240
    %725 = vmatprep.subr.mxu0 %v245
    %726 = vmatpush1.msra.mxu0 %v244
    %727 = vmatprep.subr.mxu0 %v249
    %728 = vmatpush1.msra.mxu0 %v248
    %729 = vmatprep.subr.mxu0 %v253
    %730 = vmatpush1.msra.mxu0 %v252
    %731 = vmatprep.subr.mxu0 %v257
    %732 = vmatpush1.msra.mxu0 %v256
    %733 = vmatprep.subr.mxu0 %v261
    %734 = vmatpush1.msra.mxu0 %v260
    %735 = vmatprep.subr.mxu0 %v265
    %736 = vmatpush1.msra.mxu0 %v264
    %737 = vmatprep.subr.mxu0 %v269
    %738 = vmatpush1.msra.mxu0 %v268
    %739 = vmatprep.subr.mxu0 %v273
    %740 = vmatpush1.msra.mxu0 %v272
    %741 = vmatprep.mubr.f32.mxu0 0.0
    %742 = vmatmul.mubr.f32.gmra.mrb[0].mxu0 %v584
    %v743 = vpop.f32.mrb[0].mxu0
    %v744 = vadd.f32 %v597, %v743
    %v745 = vpop.f32.mrb[0].mxu0
    %v746 = vadd.f32 %v601, %v745
    %747 = vdwg.mxu0
    %v748 = vxor.u32 %v673, 2147483648
    %v749 = vmul.f32 %v748, 1.442695
    %v750 = vpow.pop %v749
    %v751 = vadd.f32 %v750, 1.0
    %v752 = vrcp.pop %v751
    %v753 = vmul.f32 1.0, %v752
    %v754 = vxor.u32 %v675, 2147483648
    %v755 = vmul.f32 %v754, 1.442695
    %v756 = vpow.pop %v755
    %v757 = vadd.f32 %v756, 1.0
    %v758 = vrcp.pop %v757
    %v759 = vmul.f32 1.0, %v758
    %v760 = vtanh.pop %v744
    %v761 = vxor.u32 %v746, 2147483648
    %v762 = vmul.f32 %v761, 1.442695
    %v763 = vpow.pop %v762
    %v764 = vadd.f32 %v763, 1.0
    %v765 = vrcp.pop %v764
    %v766 = vmul.f32 1.0, %v765
    %v767 = vmul.f32 %v759, 0.0
    %v768 = vmul.f32 %v753, %v760
    %v769 = vadd.f32 %v767, %v768
    %v770 = vtanh.pop %v769
    %v771 = vmul.f32 %v766, %v770
    %v773 = vlaneseq
    %v774 = vshrl.u32 %v773, 7
    %v775 = vsub.s32 0, %v774
    %v776 = vrot.slane %v431, %v775
    %v777 = vlaneseq
    %v778 = vshrl.u32 %v777, 7
    %v779 = vsub.s32 1, %v778
    %v780 = vrot.slane %v431, %v779
    %v781 = vlaneseq
    %v782 = vshrl.u32 %v781, 7
    %v783 = vsub.s32 2, %v782
    %v784 = vrot.slane %v431, %v783
    %v785 = vlaneseq
    %v786 = vshrl.u32 %v785, 7
    %v787 = vsub.s32 3, %v786
    %v788 = vrot.slane %v431, %v787
    %793 = vmatprep.subr.mxu0 %v275
    %794 = vmatpush1.msra.mxu0 %v274
    %795 = vmatprep.subr.mxu0 %v279
    %796 = vmatpush1.msra.mxu0 %v278
    %797 = vmatprep.subr.mxu0 %v283
    %798 = vmatpush1.msra.mxu0 %v282
    %799 = vmatprep.subr.mxu0 %v287
    %800 = vmatpush1.msra.mxu0 %v286
    %801 = vmatprep.subr.mxu0 %v291
    %802 = vmatpush1.msra.mxu0 %v290
    %803 = vmatprep.subr.mxu0 %v295
    %804 = vmatpush1.msra.mxu0 %v294
    %805 = vmatprep.subr.mxu0 %v299
    %806 = vmatpush1.msra.mxu0 %v298
    %807 = vmatprep.subr.mxu0 %v303
    %808 = vmatpush1.msra.mxu0 %v302
    %809 = vmatprep.subr.mxu0 %v307
    %810 = vmatpush1.msra.mxu0 %v306
    %811 = vmatprep.subr.mxu0 %v311
    %812 = vmatpush1.msra.mxu0 %v310
    %813 = vmatprep.subr.mxu0 %v315
    %814 = vmatpush1.msra.mxu0 %v314
    %815 = vmatprep.subr.mxu0 %v319
    %816 = vmatpush1.msra.mxu0 %v318
    %817 = vmatprep.subr.mxu0 %v323
    %818 = vmatpush1.msra.mxu0 %v322
    %819 = vmatprep.subr.mxu0 %v327
    %820 = vmatpush1.msra.mxu0 %v326
    %821 = vmatprep.subr.mxu0 %v331
    %822 = vmatpush1.msra.mxu0 %v330
    %823 = vmatprep.subr.mxu0 %v335
    %824 = vmatpush1.msra.mxu0 %v334
    %825 = vmatprep.subr.mxu0 %v339
    %826 = vmatpush1.msra.mxu0 %v338
    %827 = vmatprep.subr.mxu0 %v343
    %828 = vmatpush1.msra.mxu0 %v342
    %829 = vmatprep.subr.mxu0 %v347
    %830 = vmatpush1.msra.mxu0 %v346
    %831 = vmatprep.subr.mxu0 %v351
    %832 = vmatpush1.msra.mxu0 %v350
    %833 = vmatprep.subr.mxu0 %v355
    %834 = vmatpush1.msra.mxu0 %v354
    %835 = vmatprep.subr.mxu0 %v359
    %836 = vmatpush1.msra.mxu0 %v358
    %837 = vmatprep.subr.mxu0 %v363
    %838 = vmatpush1.msra.mxu0 %v362
    %839 = vmatprep.subr.mxu0 %v367
    %840 = vmatpush1.msra.mxu0 %v366
    %841 = vmatprep.subr.mxu0 %v371
    %842 = vmatpush1.msra.mxu0 %v370
    %843 = vmatprep.subr.mxu0 %v375
    %844 = vmatpush1.msra.mxu0 %v374
    %845 = vmatprep.subr.mxu0 %v379
    %846 = vmatpush1.msra.mxu0 %v378
    %847 = vmatprep.subr.mxu0 %v383
    %848 = vmatpush1.msra.mxu0 %v382
    %849 = vmatprep.subr.mxu0 %v387
    %850 = vmatpush1.msra.mxu0 %v386
    %851 = vmatprep.subr.mxu0 %v391
    %852 = vmatpush1.msra.mxu0 %v390
    %853 = vmatprep.subr.mxu0 %v395
    %854 = vmatpush1.msra.mxu0 %v394
    %855 = vmatprep.subr.mxu0 %v399
    %856 = vmatpush1.msra.mxu0 %v398
    %857 = vmatprep.mubr.f32.mxu0 0.0
    %858 = vmatmul.mubr.f32.gmra.mrb[0].mxu0 %v771
    %v859 = vpop.f32.mrb[0].mxu0
    %v860 = vadd.f32 %v776, %v859
    %v861 = vpop.f32.mrb[0].mxu0
    %v862 = vadd.f32 %v780, %v861
    %863 = vdwg.mxu0
    %864 = vmatprep.subr.mxu0 %v277
    %865 = vmatpush1.msra.mxu0 %v276
    %866 = vmatprep.subr.mxu0 %v281
    %867 = vmatpush1.msra.mxu0 %v280
    %868 = vmatprep.subr.mxu0 %v285
    %869 = vmatpush1.msra.mxu0 %v284
    %870 = vmatprep.subr.mxu0 %v289
    %871 = vmatpush1.msra.mxu0 %v288
    %872 = vmatprep.subr.mxu0 %v293
    %873 = vmatpush1.msra.mxu0 %v292
    %874 = vmatprep.subr.mxu0 %v297
    %875 = vmatpush1.msra.mxu0 %v296
    %876 = vmatprep.subr.mxu0 %v301
    %877 = vmatpush1.msra.mxu0 %v300
    %878 = vmatprep.subr.mxu0 %v305
    %879 = vmatpush1.msra.mxu0 %v304
    %880 = vmatprep.subr.mxu0 %v309
    %881 = vmatpush1.msra.mxu0 %v308
    %882 = vmatprep.subr.mxu0 %v313
    %883 = vmatpush1.msra.mxu0 %v312
    %884 = vmatprep.subr.mxu0 %v317
    %885 = vmatpush1.msra.mxu0 %v316
    %886 = vmatprep.subr.mxu0 %v321
    %887 = vmatpush1.msra.mxu0 %v320
    %888 = vmatprep.subr.mxu0 %v325
    %889 = vmatpush1.msra.mxu0 %v324
    %890 = vmatprep.subr.mxu0 %v329
    %891 = vmatpush1.msra.mxu0 %v328
    %892 = vmatprep.subr.mxu0 %v333
    %893 = vmatpush1.msra.mxu0 %v332
    %894 = vmatprep.subr.mxu0 %v337
    %895 = vmatpush1.msra.mxu0 %v336
    %896 = vmatprep.subr.mxu0 %v341
    %897 = vmatpush1.msra.mxu0 %v340
    %898 = vmatprep.subr.mxu0 %v345
    %899 = vmatpush1.msra.mxu0 %v344
    %900 = vmatprep.subr.mxu0 %v349
    %901 = vmatpush1.msra.mxu0 %v348
    %902 = vmatprep.subr.mxu0 %v353
    %903 = vmatpush1.msra.mxu0 %v352
    %904 = vmatprep.subr.mxu0 %v357
    %905 = vmatpush1.msra.mxu0 %v356
    %906 = vmatprep.subr.mxu0 %v361
    %907 = vmatpush1.msra.mxu0 %v360
    %908 = vmatprep.subr.mxu0 %v365
    %909 = vmatpush1.msra.mxu0 %v364
    %910 = vmatprep.subr.mxu0 %v369
    %911 = vmatpush1.msra.mxu0 %v368
    %912 = vmatprep.subr.mxu0 %v373
    %913 = vmatpush1.msra.mxu0 %v372
    %914 = vmatprep.subr.mxu0 %v377
    %915 = vmatpush1.msra.mxu0 %v376
    %916 = vmatprep.subr.mxu0 %v381
    %917 = vmatpush1.msra.mxu0 %v380
    %918 = vmatprep.subr.mxu0 %v385
    %919 = vmatpush1.msra.mxu0 %v384
    %920 = vmatprep.subr.mxu0 %v389
    %921 = vmatpush1.msra.mxu0 %v388
    %922 = vmatprep.subr.mxu0 %v393
    %923 = vmatpush1.msra.mxu0 %v392
    %924 = vmatprep.subr.mxu0 %v397
    %925 = vmatpush1.msra.mxu0 %v396
    %926 = vmatprep.subr.mxu0 %v401
    %927 = vmatpush1.msra.mxu0 %v400
    %928 = vmatprep.mubr.f32.mxu0 0.0
    %929 = vmatmul.mubr.f32.gmra.mrb[0].mxu0 %v771
    %v930 = vpop.f32.mrb[0].mxu0
    %v931 = vadd.f32 %v784, %v930
    %v932 = vpop.f32.mrb[0].mxu0
    %v933 = vadd.f32 %v788, %v932
    %934 = vdwg.mxu0
    %v935 = vxor.u32 %v860, 2147483648
    %v936 = vmul.f32 %v935, 1.442695
    %v937 = vpow.pop %v936
    %v938 = vadd.f32 %v937, 1.0
    %v939 = vrcp.pop %v938
    %v940 = vmul.f32 1.0, %v939
    %v941 = vxor.u32 %v862, 2147483648
    %v942 = vmul.f32 %v941, 1.442695
    %v943 = vpow.pop %v942
    %v944 = vadd.f32 %v943, 1.0
    %v945 = vrcp.pop %v944
    %v946 = vmul.f32 1.0, %v945
    %v947 = vtanh.pop %v931
    %v948 = vxor.u32 %v933, 2147483648
    %v949 = vmul.f32 %v948, 1.442695
    %v950 = vpow.pop %v949
    %v951 = vadd.f32 %v950, 1.0
    %v952 = vrcp.pop %v951
    %v953 = vmul.f32 1.0, %v952
    %v954 = vmul.f32 %v946, 0.0
    %v955 = vmul.f32 %v940, %v947
    %v956 = vadd.f32 %v954, %v955
    %v957 = vtanh.pop %v956
    %v958 = vmul.f32 %v953, %v957
    %959 = vmatprep.subr.mxu0 0.0
    %960 = vmatpush1.msra.mxu0 %v114
    %961 = vmatprep.subr.mxu0 0.0
    %962 = vmatpush1.msra.mxu0 %v115
    %963 = vmatprep.subr.mxu0 0.0
    %964 = vmatpush1.msra.mxu0 %v116
    %965 = vmatprep.subr.mxu0 0.0
    %966 = vmatpush1.msra.mxu0 %v117
    %967 = vmatprep.subr.mxu0 0.0
    %968 = vmatpush1.msra.mxu0 %v118
    %969 = vmatprep.subr.mxu0 0.0
    %970 = vmatpush1.msra.mxu0 %v119
    %971 = vmatprep.subr.mxu0 0.0
    %972 = vmatpush1.msra.mxu0 %v120
    %973 = vmatprep.subr.mxu0 0.0
    %974 = vmatpush1.msra.mxu0 %v121
    %975 = vmatprep.subr.mxu0 0.0
    %976 = vmatpush1.msra.mxu0 %v122
    %977 = vmatprep.subr.mxu0 0.0
    %978 = vmatpush1.msra.mxu0 %v123
    %979 = vmatprep.subr.mxu0 0.0
    %980 = vmatpush1.msra.mxu0 %v124
    %981 = vmatprep.subr.mxu0 0.0
    %982 = vmatpush1.msra.mxu0 %v125
    %983 = vmatprep.subr.mxu0 0.0
    %984 = vmatpush1.msra.mxu0 %v126
    %985 = vmatprep.subr.mxu0 0.0
    %986 = vmatpush1.msra.mxu0 %v127
    %987 = vmatprep.subr.mxu0 0.0
    %988 = vmatpush1.msra.mxu0 %v128
    %989 = vmatprep.subr.mxu0 0.0
    %990 = vmatpush1.msra.mxu0 %v129
    %991 = vmatprep.subr.mxu0 0.0
    %992 = vmatpush1.msra.mxu0 0.0
    %993 = vmatprep.subr.mxu0 0.0
    %994 = vmatpush1.msra.mxu0 0.0
    %995 = vmatprep.subr.mxu0 0.0
    %996 = vmatpush1.msra.mxu0 0.0
    %997 = vmatprep.subr.mxu0 0.0
    %998 = vmatpush1.msra.mxu0 0.0
    %999 = vmatprep.subr.mxu0 0.0
    %1000 = vmatpush1.msra.mxu0 0.0
    %1001 = vmatprep.subr.mxu0 0.0
    %1002 = vmatpush1.msra.mxu0 0.0
    %1003 = vmatprep.subr.mxu0 0.0
    %1004 = vmatpush1.msra.mxu0 0.0
    %1005 = vmatprep.subr.mxu0 0.0
    %1006 = vmatpush1.msra.mxu0 0.0
    %1007 = vmatprep.subr.mxu0 0.0
    %1008 = vmatpush1.msra.mxu0 0.0
    %1009 = vmatprep.subr.mxu0 0.0
    %1010 = vmatpush1.msra.mxu0 0.0
    %1011 = vmatprep.subr.mxu0 0.0
    %1012 = vmatpush1.msra.mxu0 0.0
    %1013 = vmatprep.subr.mxu0 0.0
    %1014 = vmatpush1.msra.mxu0 0.0
    %1015 = vmatprep.subr.mxu0 0.0
    %1016 = vmatpush1.msra.mxu0 0.0
    %1017 = vmatprep.subr.mxu0 0.0
    %1018 = vmatpush1.msra.mxu0 0.0
    %1019 = vmatprep.subr.mxu0 0.0
    %1020 = vmatpush1.msra.mxu0 0.0
    %1021 = vmatprep.subr.mxu0 0.0
    %1022 = vmatpush1.msra.mxu0 0.0
    %1023 = vmatprep.mubr.f32.mxu0 0.0
    %1024 = vmatmul.mubr.f32.gmra.mrb[0].mxu0 %v958
    %v1025 = vpop.f32.mrb[0].mxu0
    %v1026 = vadd.f32 %v421, %v1025
    %v1027 = vpop.f32.mrb[0].mxu0
    %1028 = vdwg.mxu0
    %v1029 = vmax.f32 %v1026, 0.0
    %1030 = vmatprep.subr.mxu0 0.0
    %1031 = vmatpush1.msra.mxu0 %v130
    %1032 = vmatprep.subr.mxu0 0.0
    %1033 = vmatpush1.msra.mxu0 %v131
    %1034 = vmatprep.subr.mxu0 0.0
    %1035 = vmatpush1.msra.mxu0 %v132
    %1036 = vmatprep.subr.mxu0 0.0
    %1037 = vmatpush1.msra.mxu0 %v133
    %1038 = vmatprep.subr.mxu0 0.0
    %1039 = vmatpush1.msra.mxu0 %v134
    %1040 = vmatprep.subr.mxu0 0.0
    %1041 = vmatpush1.msra.mxu0 %v135
    %1042 = vmatprep.subr.mxu0 0.0
    %1043 = vmatpush1.msra.mxu0 %v136
    %1044 = vmatprep.subr.mxu0 0.0
    %1045 = vmatpush1.msra.mxu0 %v137
    %1046 = vmatprep.subr.mxu0 0.0
    %1047 = vmatpush1.msra.mxu0 %v138
    %1048 = vmatprep.subr.mxu0 0.0
    %1049 = vmatpush1.msra.mxu0 %v139
    %1050 = vmatprep.subr.mxu0 0.0
    %1051 = vmatpush1.msra.mxu0 %v140
    %1052 = vmatprep.subr.mxu0 0.0
    %1053 = vmatpush1.msra.mxu0 %v141
    %1054 = vmatprep.subr.mxu0 0.0
    %1055 = vmatpush1.msra.mxu0 %v142
    %1056 = vmatprep.subr.mxu0 0.0
    %1057 = vmatpush1.msra.mxu0 %v143
    %1058 = vmatprep.subr.mxu0 0.0
    %1059 = vmatpush1.msra.mxu0 %v144
    %1060 = vmatprep.subr.mxu0 0.0
    %1061 = vmatpush1.msra.mxu0 %v145
    %1062 = vmatprep.subr.mxu0 0.0
    %1063 = vmatpush1.msra.mxu0 0.0
    %1064 = vmatprep.subr.mxu0 0.0
    %1065 = vmatpush1.msra.mxu0 0.0
    %1066 = vmatprep.subr.mxu0 0.0
    %1067 = vmatpush1.msra.mxu0 0.0
    %1068 = vmatprep.subr.mxu0 0.0
    %1069 = vmatpush1.msra.mxu0 0.0
    %1070 = vmatprep.subr.mxu0 0.0
    %1071 = vmatpush1.msra.mxu0 0.0
    %1072 = vmatprep.subr.mxu0 0.0
    %1073 = vmatpush1.msra.mxu0 0.0
    %1074 = vmatprep.subr.mxu0 0.0
    %1075 = vmatpush1.msra.mxu0 0.0
    %1076 = vmatprep.subr.mxu0 0.0
    %1077 = vmatpush1.msra.mxu0 0.0
    %1078 = vmatprep.subr.mxu0 0.0
    %1079 = vmatpush1.msra.mxu0 0.0
    %1080 = vmatprep.subr.mxu0 0.0
    %1081 = vmatpush1.msra.mxu0 0.0
    %1082 = vmatprep.subr.mxu0 0.0
    %1083 = vmatpush1.msra.mxu0 0.0
    %1084 = vmatprep.subr.mxu0 0.0
    %1085 = vmatpush1.msra.mxu0 0.0
    %1086 = vmatprep.subr.mxu0 0.0
    %1087 = vmatpush1.msra.mxu0 0.0
    %1088 = vmatprep.subr.mxu0 0.0
    %1089 = vmatpush1.msra.mxu0 0.0
    %1090 = vmatprep.subr.mxu0 0.0
    %1091 = vmatpush1.msra.mxu0 0.0
    %1092 = vmatprep.subr.mxu0 0.0
    %1093 = vmatpush1.msra.mxu0 0.0
    %1094 = vmatprep.mubr.f32.mxu0 0.0
    %1095 = vmatmul.mubr.f32.gmra.mrb[0].mxu0 %v1029
    %v1096 = vpop.f32.mrb[0].mxu0
    %v1097 = vadd.f32 %v428, %v1096
    %v1098 = vpop.f32.mrb[0].mxu0
    %1099 = vdwg.mxu0
    %v1100 = vadd.f32 %v1097, %v438
    %1101 = vst.msk [vmem:[#allocation10] sm:$0xff] %vm439, %v1100
    %v1103 = vsel %vm439, %v1100, 0
    %1105 = vmatprep.subr.mxu0 0.0
    %1106 = vmatpush1.msra.mxu0 %v96
    %1107 = vmatprep.subr.mxu0 0.0
    %1108 = vmatpush1.msra.mxu0 %v97
    %1109 = vmatprep.subr.mxu0 0.0
    %1110 = vmatpush1.msra.mxu0 0.0
    %1111 = vmatprep.subr.mxu0 0.0
    %1112 = vmatpush1.msra.mxu0 0.0
    %1113 = vmatprep.subr.mxu0 0.0
    %1114 = vmatpush1.msra.mxu0 0.0
    %1115 = vmatprep.subr.mxu0 0.0
    %1116 = vmatpush1.msra.mxu0 0.0
    %1117 = vmatprep.subr.mxu0 0.0
    %1118 = vmatpush1.msra.mxu0 0.0
    %1119 = vmatprep.subr.mxu0 0.0
    %1120 = vmatpush1.msra.mxu0 0.0
    %1121 = vmatprep.subr.mxu0 0.0
    %1122 = vmatpush1.msra.mxu0 0.0
    %1123 = vmatprep.subr.mxu0 0.0
    %1124 = vmatpush1.msra.mxu0 0.0
    %1125 = vmatprep.subr.mxu0 0.0
    %1126 = vmatpush1.msra.mxu0 0.0
    %1127 = vmatprep.subr.mxu0 0.0
    %1128 = vmatpush1.msra.mxu0 0.0
    %1129 = vmatprep.subr.mxu0 0.0
    %1130 = vmatpush1.msra.mxu0 0.0
    %1131 = vmatprep.subr.mxu0 0.0
    %1132 = vmatpush1.msra.mxu0 0.0
    %1133 = vmatprep.subr.mxu0 0.0
    %1134 = vmatpush1.msra.mxu0 0.0
    %1135 = vmatprep.subr.mxu0 0.0
    %1136 = vmatpush1.msra.mxu0 0.0
    %1137 = vmatprep.subr.mxu0 0.0
    %1138 = vmatpush1.msra.mxu0 0.0
    %1139 = vmatprep.subr.mxu0 0.0
    %1140 = vmatpush1.msra.mxu0 0.0
    %1141 = vmatprep.subr.mxu0 0.0
    %1142 = vmatpush1.msra.mxu0 0.0
    %1143 = vmatprep.subr.mxu0 0.0
    %1144 = vmatpush1.msra.mxu0 0.0
    %1145 = vmatprep.subr.mxu0 0.0
    %1146 = vmatpush1.msra.mxu0 0.0
    %1147 = vmatprep.subr.mxu0 0.0
    %1148 = vmatpush1.msra.mxu0 0.0
    %1149 = vmatprep.subr.mxu0 0.0
    %1150 = vmatpush1.msra.mxu0 0.0
    %1151 = vmatprep.subr.mxu0 0.0
    %1152 = vmatpush1.msra.mxu0 0.0
    %1153 = vmatprep.subr.mxu0 0.0
    %1154 = vmatpush1.msra.mxu0 0.0
    %1155 = vmatprep.subr.mxu0 0.0
    %1156 = vmatpush1.msra.mxu0 0.0
    %1157 = vmatprep.subr.mxu0 0.0
    %1158 = vmatpush1.msra.mxu0 0.0
    %1159 = vmatprep.subr.mxu0 0.0
    %1160 = vmatpush1.msra.mxu0 0.0
    %1161 = vmatprep.subr.mxu0 0.0
    %1162 = vmatpush1.msra.mxu0 0.0
    %1163 = vmatprep.subr.mxu0 0.0
    %1164 = vmatpush1.msra.mxu0 0.0
    %1165 = vmatprep.subr.mxu0 0.0
    %1166 = vmatpush1.msra.mxu0 0.0
    %1167 = vmatprep.subr.mxu0 0.0
    %1168 = vmatpush1.msra.mxu0 0.0
    %1169 = vmatprep.mubr.f32.mxu0 0.0
    %1170 = vmatmul.mubr.f32.gmra.mrb[0].mxu0 %v1103
    %v1171 = vpop.f32.mrb[0].mxu0
    %v1172 = vadd.f32 %v407, %v1171
    %v1173 = vpop.f32.mrb[0].mxu0
    %1174 = vdwg.mxu0
    %v1175 = vmax.f32 %v1172, 0.0
    %1176 = vmatprep.subr.mxu0 0.0
    %1177 = vmatpush1.msra.mxu0 %v98
    %1178 = vmatprep.subr.mxu0 0.0
    %1179 = vmatpush1.msra.mxu0 %v99
    %1180 = vmatprep.subr.mxu0 0.0
    %1181 = vmatpush1.msra.mxu0 %v100
    %1182 = vmatprep.subr.mxu0 0.0
    %1183 = vmatpush1.msra.mxu0 %v101
    %1184 = vmatprep.subr.mxu0 0.0
    %1185 = vmatpush1.msra.mxu0 %v102
    %1186 = vmatprep.subr.mxu0 0.0
    %1187 = vmatpush1.msra.mxu0 %v103
    %1188 = vmatprep.subr.mxu0 0.0
    %1189 = vmatpush1.msra.mxu0 %v104
    %1190 = vmatprep.subr.mxu0 0.0
    %1191 = vmatpush1.msra.mxu0 %v105
    %1192 = vmatprep.subr.mxu0 0.0
    %1193 = vmatpush1.msra.mxu0 %v106
    %1194 = vmatprep.subr.mxu0 0.0
    %1195 = vmatpush1.msra.mxu0 %v107
    %1196 = vmatprep.subr.mxu0 0.0
    %1197 = vmatpush1.msra.mxu0 %v108
    %1198 = vmatprep.subr.mxu0 0.0
    %1199 = vmatpush1.msra.mxu0 %v109
    %1200 = vmatprep.subr.mxu0 0.0
    %1201 = vmatpush1.msra.mxu0 %v110
    %1202 = vmatprep.subr.mxu0 0.0
    %1203 = vmatpush1.msra.mxu0 %v111
    %1204 = vmatprep.subr.mxu0 0.0
    %1205 = vmatpush1.msra.mxu0 %v112
    %1206 = vmatprep.subr.mxu0 0.0
    %1207 = vmatpush1.msra.mxu0 %v113
    %1208 = vmatprep.subr.mxu0 0.0
    %1209 = vmatpush1.msra.mxu0 0.0
    %1210 = vmatprep.subr.mxu0 0.0
    %1211 = vmatpush1.msra.mxu0 0.0
    %1212 = vmatprep.subr.mxu0 0.0
    %1213 = vmatpush1.msra.mxu0 0.0
    %1214 = vmatprep.subr.mxu0 0.0
    %1215 = vmatpush1.msra.mxu0 0.0
    %1216 = vmatprep.subr.mxu0 0.0
    %1217 = vmatpush1.msra.mxu0 0.0
    %1218 = vmatprep.subr.mxu0 0.0
    %1219 = vmatpush1.msra.mxu0 0.0
    %1220 = vmatprep.subr.mxu0 0.0
    %1221 = vmatpush1.msra.mxu0 0.0
    %1222 = vmatprep.subr.mxu0 0.0
    %1223 = vmatpush1.msra.mxu0 0.0
    %1224 = vmatprep.subr.mxu0 0.0
    %1225 = vmatpush1.msra.mxu0 0.0
    %1226 = vmatprep.subr.mxu0 0.0
    %1227 = vmatpush1.msra.mxu0 0.0
    %1228 = vmatprep.subr.mxu0 0.0
    %1229 = vmatpush1.msra.mxu0 0.0
    %1230 = vmatprep.subr.mxu0 0.0
    %1231 = vmatpush1.msra.mxu0 0.0
    %1232 = vmatprep.subr.mxu0 0.0
    %1233 = vmatpush1.msra.mxu0 0.0
    %1234 = vmatprep.subr.mxu0 0.0
    %1235 = vmatpush1.msra.mxu0 0.0
    %1236 = vmatprep.subr.mxu0 0.0
    %1237 = vmatpush1.msra.mxu0 0.0
    %1238 = vmatprep.subr.mxu0 0.0
    %1239 = vmatpush1.msra.mxu0 0.0
    %1240 = vmatprep.mubr.f32.mxu0 0.0
    %1241 = vmatmul.mubr.f32.gmra.mrb[0].mxu0 %v1175
    %v1242 = vpop.f32.mrb[0].mxu0
    %v1243 = vadd.f32 %v414, %v1242
    %v1244 = vpop.f32.mrb[0].mxu0
    %1245 = vdwg.mxu0
    %v1246 = vmax.f32 %v1243, 0.0
    %1247 = vmatprep.subr.mxu0 %v147
    %1248 = vmatpush1.msra.mxu0 %v146
    %1249 = vmatprep.subr.mxu0 %v151
    %1250 = vmatpush1.msra.mxu0 %v150
    %1251 = vmatprep.subr.mxu0 %v155
    %1252 = vmatpush1.msra.mxu0 %v154
    %1253 = vmatprep.subr.mxu0 %v159
    %1254 = vmatpush1.msra.mxu0 %v158
    %1255 = vmatprep.subr.mxu0 %v163
    %1256 = vmatpush1.msra.mxu0 %v162
    %1257 = vmatprep.subr.mxu0 %v167
    %1258 = vmatpush1.msra.mxu0 %v166
    %1259 = vmatprep.subr.mxu0 %v171
    %1260 = vmatpush1.msra.mxu0 %v170
    %1261 = vmatprep.subr.mxu0 %v175
    %1262 = vmatpush1.msra.mxu0 %v174
    %1263 = vmatprep.subr.mxu0 %v179
    %1264 = vmatpush1.msra.mxu0 %v178
    %1265 = vmatprep.subr.mxu0 %v183
    %1266 = vmatpush1.msra.mxu0 %v182
    %1267 = vmatprep.subr.mxu0 %v187
    %1268 = vmatpush1.msra.mxu0 %v186
    %1269 = vmatprep.subr.mxu0 %v191
    %1270 = vmatpush1.msra.mxu0 %v190
    %1271 = vmatprep.subr.mxu0 %v195
    %1272 = vmatpush1.msra.mxu0 %v194
    %1273 = vmatprep.subr.mxu0 %v199
    %1274 = vmatpush1.msra.mxu0 %v198
    %1275 = vmatprep.subr.mxu0 %v203
    %1276 = vmatpush1.msra.mxu0 %v202
    %1277 = vmatprep.subr.mxu0 %v207
    %1278 = vmatpush1.msra.mxu0 %v206
    %1279 = vmatprep.subr.mxu0 %v211
    %1280 = vmatpush1.msra.mxu0 %v210
    %1281 = vmatprep.subr.mxu0 %v215
    %1282 = vmatpush1.msra.mxu0 %v214
    %1283 = vmatprep.subr.mxu0 %v219
    %1284 = vmatpush1.msra.mxu0 %v218
    %1285 = vmatprep.subr.mxu0 %v223
    %1286 = vmatpush1.msra.mxu0 %v222
    %1287 = vmatprep.subr.mxu0 %v227
    %1288 = vmatpush1.msra.mxu0 %v226
    %1289 = vmatprep.subr.mxu0 %v231
    %1290 = vmatpush1.msra.mxu0 %v230
    %1291 = vmatprep.subr.mxu0 %v235
    %1292 = vmatpush1.msra.mxu0 %v234
    %1293 = vmatprep.subr.mxu0 %v239
    %1294 = vmatpush1.msra.mxu0 %v238
    %1295 = vmatprep.subr.mxu0 %v243
    %1296 = vmatpush1.msra.mxu0 %v242
    %1297 = vmatprep.subr.mxu0 %v247
    %1298 = vmatpush1.msra.mxu0 %v246
    %1299 = vmatprep.subr.mxu0 %v251
    %1300 = vmatpush1.msra.mxu0 %v250
    %1301 = vmatprep.subr.mxu0 %v255
    %1302 = vmatpush1.msra.mxu0 %v254
    %1303 = vmatprep.subr.mxu0 %v259
    %1304 = vmatpush1.msra.mxu0 %v258
    %1305 = vmatprep.subr.mxu0 %v263
    %1306 = vmatpush1.msra.mxu0 %v262
    %1307 = vmatprep.subr.mxu0 %v267
    %1308 = vmatpush1.msra.mxu0 %v266
    %1309 = vmatprep.subr.mxu0 %v271
    %1310 = vmatpush1.msra.mxu0 %v270
    %1311 = vmatprep.mubr.f32.mxu0 %v771
    %1312 = vmatmul.mubr.f32.gmra.mrb[0].mxu0 %v1246
    %v1313 = vpop.f32.mrb[0].mxu0
    %v1314 = vadd.f32 %v589, %v1313
    %v1315 = vpop.f32.mrb[0].mxu0
    %v1316 = vadd.f32 %v593, %v1315
    %1317 = vdwg.mxu0
    %1318 = vmatprep.subr.mxu0 %v149
    %1319 = vmatpush1.msra.mxu0 %v148
    %1320 = vmatprep.subr.mxu0 %v153
    %1321 = vmatpush1.msra.mxu0 %v152
    %1322 = vmatprep.subr.mxu0 %v157
    %1323 = vmatpush1.msra.mxu0 %v156
    %1324 = vmatprep.subr.mxu0 %v161
    %1325 = vmatpush1.msra.mxu0 %v160
    %1326 = vmatprep.subr.mxu0 %v165
    %1327 = vmatpush1.msra.mxu0 %v164
    %1328 = vmatprep.subr.mxu0 %v169
    %1329 = vmatpush1.msra.mxu0 %v168
    %1330 = vmatprep.subr.mxu0 %v173
    %1331 = vmatpush1.msra.mxu0 %v172
    %1332 = vmatprep.subr.mxu0 %v177
    %1333 = vmatpush1.msra.mxu0 %v176
    %1334 = vmatprep.subr.mxu0 %v181
    %1335 = vmatpush1.msra.mxu0 %v180
    %1336 = vmatprep.subr.mxu0 %v185
    %1337 = vmatpush1.msra.mxu0 %v184
    %1338 = vmatprep.subr.mxu0 %v189
    %1339 = vmatpush1.msra.mxu0 %v188
    %1340 = vmatprep.subr.mxu0 %v193
    %1341 = vmatpush1.msra.mxu0 %v192
    %1342 = vmatprep.subr.mxu0 %v197
    %1343 = vmatpush1.msra.mxu0 %v196
    %1344 = vmatprep.subr.mxu0 %v201
    %1345 = vmatpush1.msra.mxu0 %v200
    %1346 = vmatprep.subr.mxu0 %v205
    %1347 = vmatpush1.msra.mxu0 %v204
    %1348 = vmatprep.subr.mxu0 %v209
    %1349 = vmatpush1.msra.mxu0 %v208
    %1350 = vmatprep.subr.mxu0 %v213
    %1351 = vmatpush1.msra.mxu0 %v212
    %1352 = vmatprep.subr.mxu0 %v217
    %1353 = vmatpush1.msra.mxu0 %v216
    %1354 = vmatprep.subr.mxu0 %v221
    %1355 = vmatpush1.msra.mxu0 %v220
    %1356 = vmatprep.subr.mxu0 %v225
    %1357 = vmatpush1.msra.mxu0 %v224
    %1358 = vmatprep.subr.mxu0 %v229
    %1359 = vmatpush1.msra.mxu0 %v228
    %1360 = vmatprep.subr.mxu0 %v233
    %1361 = vmatpush1.msra.mxu0 %v232
    %1362 = vmatprep.subr.mxu0 %v237
    %1363 = vmatpush1.msra.mxu0 %v236
    %1364 = vmatprep.subr.mxu0 %v241
    %1365 = vmatpush1.msra.mxu0 %v240
    %1366 = vmatprep.subr.mxu0 %v245
    %1367 = vmatpush1.msra.mxu0 %v244
    %1368 = vmatprep.subr.mxu0 %v249
    %1369 = vmatpush1.msra.mxu0 %v248
    %1370 = vmatprep.subr.mxu0 %v253
    %1371 = vmatpush1.msra.mxu0 %v252
    %1372 = vmatprep.subr.mxu0 %v257
    %1373 = vmatpush1.msra.mxu0 %v256
    %1374 = vmatprep.subr.mxu0 %v261
    %1375 = vmatpush1.msra.mxu0 %v260
    %1376 = vmatprep.subr.mxu0 %v265
    %1377 = vmatpush1.msra.mxu0 %v264
    %1378 = vmatprep.subr.mxu0 %v269
    %1379 = vmatpush1.msra.mxu0 %v268
    %1380 = vmatprep.subr.mxu0 %v273
    %1381 = vmatpush1.msra.mxu0 %v272
    %1382 = vmatprep.mubr.f32.mxu0 %v771
    %1383 = vmatmul.mubr.f32.gmra.mrb[0].mxu0 %v1246
    %v1384 = vpop.f32.mrb[0].mxu0
    %v1385 = vadd.f32 %v597, %v1384
    %v1386 = vpop.f32.mrb[0].mxu0
    %v1387 = vadd.f32 %v601, %v1386
    %1388 = vdwg.mxu0
    %v1389 = vxor.u32 %v1314, 2147483648
    %v1390 = vmul.f32 %v1389, 1.442695
    %v1391 = vpow.pop %v1390
    %v1392 = vadd.f32 %v1391, 1.0
    %v1393 = vrcp.pop %v1392
    %v1394 = vmul.f32 1.0, %v1393
    %v1395 = vxor.u32 %v1316, 2147483648
    %v1396 = vmul.f32 %v1395, 1.442695
    %v1397 = vpow.pop %v1396
    %v1398 = vadd.f32 %v1397, 1.0
    %v1399 = vrcp.pop %v1398
    %v1400 = vmul.f32 1.0, %v1399
    %v1401 = vtanh.pop %v1385
    %v1402 = vxor.u32 %v1387, 2147483648
    %v1403 = vmul.f32 %v1402, 1.442695
    %v1404 = vpow.pop %v1403
    %v1405 = vadd.f32 %v1404, 1.0
    %v1406 = vrcp.pop %v1405
    %v1407 = vmul.f32 1.0, %v1406
    %v1408 = vmul.f32 %v1400, %v769
    %v1409 = vmul.f32 %v1394, %v1401
    %v1410 = vadd.f32 %v1408, %v1409
    %v1411 = vtanh.pop %v1410
    %v1412 = vmul.f32 %v1407, %v1411
    %1413 = vmatprep.subr.mxu0 %v275
    %1414 = vmatpush1.msra.mxu0 %v274
    %1415 = vmatprep.subr.mxu0 %v279
    %1416 = vmatpush1.msra.mxu0 %v278
    %1417 = vmatprep.subr.mxu0 %v283
    %1418 = vmatpush1.msra.mxu0 %v282
    %1419 = vmatprep.subr.mxu0 %v287
    %1420 = vmatpush1.msra.mxu0 %v286
    %1421 = vmatprep.subr.mxu0 %v291
    %1422 = vmatpush1.msra.mxu0 %v290
    %1423 = vmatprep.subr.mxu0 %v295
    %1424 = vmatpush1.msra.mxu0 %v294
    %1425 = vmatprep.subr.mxu0 %v299
    %1426 = vmatpush1.msra.mxu0 %v298
    %1427 = vmatprep.subr.mxu0 %v303
    %1428 = vmatpush1.msra.mxu0 %v302
    %1429 = vmatprep.subr.mxu0 %v307
    %1430 = vmatpush1.msra.mxu0 %v306
    %1431 = vmatprep.subr.mxu0 %v311
    %1432 = vmatpush1.msra.mxu0 %v310
    %1433 = vmatprep.subr.mxu0 %v315
    %1434 = vmatpush1.msra.mxu0 %v314
    %1435 = vmatprep.subr.mxu0 %v319
    %1436 = vmatpush1.msra.mxu0 %v318
    %1437 = vmatprep.subr.mxu0 %v323
    %1438 = vmatpush1.msra.mxu0 %v322
    %1439 = vmatprep.subr.mxu0 %v327
    %1440 = vmatpush1.msra.mxu0 %v326
    %1441 = vmatprep.subr.mxu0 %v331
    %1442 = vmatpush1.msra.mxu0 %v330
    %1443 = vmatprep.subr.mxu0 %v335
    %1444 = vmatpush1.msra.mxu0 %v334
    %1445 = vmatprep.subr.mxu0 %v339
    %1446 = vmatpush1.msra.mxu0 %v338
    %1447 = vmatprep.subr.mxu0 %v343
    %1448 = vmatpush1.msra.mxu0 %v342
    %1449 = vmatprep.subr.mxu0 %v347
    %1450 = vmatpush1.msra.mxu0 %v346
    %1451 = vmatprep.subr.mxu0 %v351
    %1452 = vmatpush1.msra.mxu0 %v350
    %1453 = vmatprep.subr.mxu0 %v355
    %1454 = vmatpush1.msra.mxu0 %v354
    %1455 = vmatprep.subr.mxu0 %v359
    %1456 = vmatpush1.msra.mxu0 %v358
    %1457 = vmatprep.subr.mxu0 %v363
    %1458 = vmatpush1.msra.mxu0 %v362
    %1459 = vmatprep.subr.mxu0 %v367
    %1460 = vmatpush1.msra.mxu0 %v366
    %1461 = vmatprep.subr.mxu0 %v371
    %1462 = vmatpush1.msra.mxu0 %v370
    %1463 = vmatprep.subr.mxu0 %v375
    %1464 = vmatpush1.msra.mxu0 %v374
    %1465 = vmatprep.subr.mxu0 %v379
    %1466 = vmatpush1.msra.mxu0 %v378
    %1467 = vmatprep.subr.mxu0 %v383
    %1468 = vmatpush1.msra.mxu0 %v382
    %1469 = vmatprep.subr.mxu0 %v387
    %1470 = vmatpush1.msra.mxu0 %v386
    %1471 = vmatprep.subr.mxu0 %v391
    %1472 = vmatpush1.msra.mxu0 %v390
    %1473 = vmatprep.subr.mxu0 %v395
    %1474 = vmatpush1.msra.mxu0 %v394
    %1475 = vmatprep.subr.mxu0 %v399
    %1476 = vmatpush1.msra.mxu0 %v398
    %1477 = vmatprep.mubr.f32.mxu0 %v958
    %1478 = vmatmul.mubr.f32.gmra.mrb[0].mxu0 %v1412
    %v1479 = vpop.f32.mrb[0].mxu0
    %v1480 = vadd.f32 %v776, %v1479
    %v1481 = vpop.f32.mrb[0].mxu0
    %v1482 = vadd.f32 %v780, %v1481
    %1483 = vdwg.mxu0
    %1484 = vmatprep.subr.mxu0 %v277
    %1485 = vmatpush1.msra.mxu0 %v276
    %1486 = vmatprep.subr.mxu0 %v281
    %1487 = vmatpush1.msra.mxu0 %v280
    %1488 = vmatprep.subr.mxu0 %v285
    %1489 = vmatpush1.msra.mxu0 %v284
    %1490 = vmatprep.subr.mxu0 %v289
    %1491 = vmatpush1.msra.mxu0 %v288
    %1492 = vmatprep.subr.mxu0 %v293
    %1493 = vmatpush1.msra.mxu0 %v292
    %1494 = vmatprep.subr.mxu0 %v297
    %1495 = vmatpush1.msra.mxu0 %v296
    %1496 = vmatprep.subr.mxu0 %v301
    %1497 = vmatpush1.msra.mxu0 %v300
    %1498 = vmatprep.subr.mxu0 %v305
    %1499 = vmatpush1.msra.mxu0 %v304
    %1500 = vmatprep.subr.mxu0 %v309
    %1501 = vmatpush1.msra.mxu0 %v308
    %1502 = vmatprep.subr.mxu0 %v313
    %1503 = vmatpush1.msra.mxu0 %v312
    %1504 = vmatprep.subr.mxu0 %v317
    %1505 = vmatpush1.msra.mxu0 %v316
    %1506 = vmatprep.subr.mxu0 %v321
    %1507 = vmatpush1.msra.mxu0 %v320
    %1508 = vmatprep.subr.mxu0 %v325
    %1509 = vmatpush1.msra.mxu0 %v324
    %1510 = vmatprep.subr.mxu0 %v329
    %1511 = vmatpush1.msra.mxu0 %v328
    %1512 = vmatprep.subr.mxu0 %v333
    %1513 = vmatpush1.msra.mxu0 %v332
    %1514 = vmatprep.subr.mxu0 %v337
    %1515 = vmatpush1.msra.mxu0 %v336
    %1516 = vmatprep.subr.mxu0 %v341
    %1517 = vmatpush1.msra.mxu0 %v340
    %1518 = vmatprep.subr.mxu0 %v345
    %1519 = vmatpush1.msra.mxu0 %v344
    %1520 = vmatprep.subr.mxu0 %v349
    %1521 = vmatpush1.msra.mxu0 %v348
    %1522 = vmatprep.subr.mxu0 %v353
    %1523 = vmatpush1.msra.mxu0 %v352
    %1524 = vmatprep.subr.mxu0 %v357
    %1525 = vmatpush1.msra.mxu0 %v356
    %1526 = vmatprep.subr.mxu0 %v361
    %1527 = vmatpush1.msra.mxu0 %v360
    %1528 = vmatprep.subr.mxu0 %v365
    %1529 = vmatpush1.msra.mxu0 %v364
    %1530 = vmatprep.subr.mxu0 %v369
    %1531 = vmatpush1.msra.mxu0 %v368
    %1532 = vmatprep.subr.mxu0 %v373
    %1533 = vmatpush1.msra.mxu0 %v372
    %1534 = vmatprep.subr.mxu0 %v377
    %1535 = vmatpush1.msra.mxu0 %v376
    %1536 = vmatprep.subr.mxu0 %v381
    %1537 = vmatpush1.msra.mxu0 %v380
    %1538 = vmatprep.subr.mxu0 %v385
    %1539 = vmatpush1.msra.mxu0 %v384
    %1540 = vmatprep.subr.mxu0 %v389
    %1541 = vmatpush1.msra.mxu0 %v388
    %1542 = vmatprep.subr.mxu0 %v393
    %1543 = vmatpush1.msra.mxu0 %v392
    %1544 = vmatprep.subr.mxu0 %v397
    %1545 = vmatpush1.msra.mxu0 %v396
    %1546 = vmatprep.subr.mxu0 %v401
    %1547 = vmatpush1.msra.mxu0 %v400
    %1548 = vmatprep.mubr.f32.mxu0 %v958
    %1549 = vmatmul.mubr.f32.gmra.mrb[0].mxu0 %v1412
    %v1550 = vpop.f32.mrb[0].mxu0
    %v1551 = vadd.f32 %v784, %v1550
    %v1552 = vpop.f32.mrb[0].mxu0
    %v1553 = vadd.f32 %v788, %v1552
    %1554 = vdwg.mxu0
    %v1555 = vxor.u32 %v1480, 2147483648
    %v1556 = vmul.f32 %v1555, 1.442695
    %v1557 = vpow.pop %v1556
    %v1558 = vadd.f32 %v1557, 1.0
    %v1559 = vrcp.pop %v1558
    %v1560 = vmul.f32 1.0, %v1559
    %v1561 = vxor.u32 %v1482, 2147483648
    %v1562 = vmul.f32 %v1561, 1.442695
    %v1563 = vpow.pop %v1562
    %v1564 = vadd.f32 %v1563, 1.0
    %v1565 = vrcp.pop %v1564
    %v1566 = vmul.f32 1.0, %v1565
    %v1567 = vtanh.pop %v1551
    %v1568 = vxor.u32 %v1553, 2147483648
    %v1569 = vmul.f32 %v1568, 1.442695
    %v1570 = vpow.pop %v1569
    %v1571 = vadd.f32 %v1570, 1.0
    %v1572 = vrcp.pop %v1571
    %v1573 = vmul.f32 1.0, %v1572
    %v1574 = vmul.f32 %v1566, %v956
    %v1575 = vmul.f32 %v1560, %v1567
    %v1576 = vadd.f32 %v1574, %v1575
    %v1577 = vtanh.pop %v1576
    %v1578 = vmul.f32 %v1573, %v1577
    %1579 = vmatprep.subr.mxu0 0.0
    %1580 = vmatpush1.msra.mxu0 %v114
    %1581 = vmatprep.subr.mxu0 0.0
    %1582 = vmatpush1.msra.mxu0 %v115
    %1583 = vmatprep.subr.mxu0 0.0
    %1584 = vmatpush1.msra.mxu0 %v116
    %1585 = vmatprep.subr.mxu0 0.0
    %1586 = vmatpush1.msra.mxu0 %v117
    %1587 = vmatprep.subr.mxu0 0.0
    %1588 = vmatpush1.msra.mxu0 %v118
    %1589 = vmatprep.subr.mxu0 0.0
    %1590 = vmatpush1.msra.mxu0 %v119
    %1591 = vmatprep.subr.mxu0 0.0
    %1592 = vmatpush1.msra.mxu0 %v120
    %1593 = vmatprep.subr.mxu0 0.0
    %1594 = vmatpush1.msra.mxu0 %v121
    %1595 = vmatprep.subr.mxu0 0.0
    %1596 = vmatpush1.msra.mxu0 %v122
    %1597 = vmatprep.subr.mxu0 0.0
    %1598 = vmatpush1.msra.mxu0 %v123
    %1599 = vmatprep.subr.mxu0 0.0
    %1600 = vmatpush1.msra.mxu0 %v124
    %1601 = vmatprep.subr.mxu0 0.0
    %1602 = vmatpush1.msra.mxu0 %v125
    %1603 = vmatprep.subr.mxu0 0.0
    %1604 = vmatpush1.msra.mxu0 %v126
    %1605 = vmatprep.subr.mxu0 0.0
    %1606 = vmatpush1.msra.mxu0 %v127
    %1607 = vmatprep.subr.mxu0 0.0
    %1608 = vmatpush1.msra.mxu0 %v128
    %1609 = vmatprep.subr.mxu0 0.0
    %1610 = vmatpush1.msra.mxu0 %v129
    %1611 = vmatprep.subr.mxu0 0.0
    %1612 = vmatpush1.msra.mxu0 0.0
    %1613 = vmatprep.subr.mxu0 0.0
    %1614 = vmatpush1.msra.mxu0 0.0
    %1615 = vmatprep.subr.mxu0 0.0
    %1616 = vmatpush1.msra.mxu0 0.0
    %1617 = vmatprep.subr.mxu0 0.0
    %1618 = vmatpush1.msra.mxu0 0.0
    %1619 = vmatprep.subr.mxu0 0.0
    %1620 = vmatpush1.msra.mxu0 0.0
    %1621 = vmatprep.subr.mxu0 0.0
    %1622 = vmatpush1.msra.mxu0 0.0
    %1623 = vmatprep.subr.mxu0 0.0
    %1624 = vmatpush1.msra.mxu0 0.0
    %1625 = vmatprep.subr.mxu0 0.0
    %1626 = vmatpush1.msra.mxu0 0.0
    %1627 = vmatprep.subr.mxu0 0.0
    %1628 = vmatpush1.msra.mxu0 0.0
    %1629 = vmatprep.subr.mxu0 0.0
    %1630 = vmatpush1.msra.mxu0 0.0
    %1631 = vmatprep.subr.mxu0 0.0
    %1632 = vmatpush1.msra.mxu0 0.0
    %1633 = vmatprep.subr.mxu0 0.0
    %1634 = vmatpush1.msra.mxu0 0.0
    %1635 = vmatprep.subr.mxu0 0.0
    %1636 = vmatpush1.msra.mxu0 0.0
    %1637 = vmatprep.subr.mxu0 0.0
    %1638 = vmatpush1.msra.mxu0 0.0
    %1639 = vmatprep.subr.mxu0 0.0
    %1640 = vmatpush1.msra.mxu0 0.0
    %1641 = vmatprep.subr.mxu0 0.0
    %1642 = vmatpush1.msra.mxu0 0.0
    %1643 = vmatprep.mubr.f32.mxu0 0.0
    %1644 = vmatmul.mubr.f32.gmra.mrb[0].mxu0 %v1578
    %v1645 = vpop.f32.mrb[0].mxu0
    %v1646 = vadd.f32 %v421, %v1645
    %v1647 = vpop.f32.mrb[0].mxu0
    %1648 = vdwg.mxu0
    %v1649 = vmax.f32 %v1646, 0.0
    %1650 = vmatprep.subr.mxu0 0.0
    %1651 = vmatpush1.msra.mxu0 %v130
    %1652 = vmatprep.subr.mxu0 0.0
    %1653 = vmatpush1.msra.mxu0 %v131
    %1654 = vmatprep.subr.mxu0 0.0
    %1655 = vmatpush1.msra.mxu0 %v132
    %1656 = vmatprep.subr.mxu0 0.0
    %1657 = vmatpush1.msra.mxu0 %v133
    %1658 = vmatprep.subr.mxu0 0.0
    %1659 = vmatpush1.msra.mxu0 %v134
    %1660 = vmatprep.subr.mxu0 0.0
    %1661 = vmatpush1.msra.mxu0 %v135
    %1662 = vmatprep.subr.mxu0 0.0
    %1663 = vmatpush1.msra.mxu0 %v136
    %1664 = vmatprep.subr.mxu0 0.0
    %1665 = vmatpush1.msra.mxu0 %v137
    %1666 = vmatprep.subr.mxu0 0.0
    %1667 = vmatpush1.msra.mxu0 %v138
    %1668 = vmatprep.subr.mxu0 0.0
    %1669 = vmatpush1.msra.mxu0 %v139
    %1670 = vmatprep.subr.mxu0 0.0
    %1671 = vmatpush1.msra.mxu0 %v140
    %1672 = vmatprep.subr.mxu0 0.0
    %1673 = vmatpush1.msra.mxu0 %v141
    %1674 = vmatprep.subr.mxu0 0.0
    %1675 = vmatpush1.msra.mxu0 %v142
    %1676 = vmatprep.subr.mxu0 0.0
    %1677 = vmatpush1.msra.mxu0 %v143
    %1678 = vmatprep.subr.mxu0 0.0
    %1679 = vmatpush1.msra.mxu0 %v144
    %1680 = vmatprep.subr.mxu0 0.0
    %1681 = vmatpush1.msra.mxu0 %v145
    %1682 = vmatprep.subr.mxu0 0.0
    %1683 = vmatpush1.msra.mxu0 0.0
    %1684 = vmatprep.subr.mxu0 0.0
    %1685 = vmatpush1.msra.mxu0 0.0
    %1686 = vmatprep.subr.mxu0 0.0
    %1687 = vmatpush1.msra.mxu0 0.0
    %1688 = vmatprep.subr.mxu0 0.0
    %1689 = vmatpush1.msra.mxu0 0.0
    %1690 = vmatprep.subr.mxu0 0.0
    %1691 = vmatpush1.msra.mxu0 0.0
    %1692 = vmatprep.subr.mxu0 0.0
    %1693 = vmatpush1.msra.mxu0 0.0
    %1694 = vmatprep.subr.mxu0 0.0
    %1695 = vmatpush1.msra.mxu0 0.0
    %1696 = vmatprep.subr.mxu0 0.0
    %1697 = vmatpush1.msra.mxu0 0.0
    %1698 = vmatprep.subr.mxu0 0.0
    %1699 = vmatpush1.msra.mxu0 0.0
    %1700 = vmatprep.subr.mxu0 0.0
    %1701 = vmatpush1.msra.mxu0 0.0
    %1702 = vmatprep.subr.mxu0 0.0
    %1703 = vmatpush1.msra.mxu0 0.0
    %1704 = vmatprep.subr.mxu0 0.0
    %1705 = vmatpush1.msra.mxu0 0.0
    %1706 = vmatprep.subr.mxu0 0.0
    %1707 = vmatpush1.msra.mxu0 0.0
    %1708 = vmatprep.subr.mxu0 0.0
    %1709 = vmatpush1.msra.mxu0 0.0
    %1710 = vmatprep.subr.mxu0 0.0
    %1711 = vmatpush1.msra.mxu0 0.0
    %1712 = vmatprep.subr.mxu0 0.0
    %1713 = vmatpush1.msra.mxu0 0.0
    %1714 = vmatprep.mubr.f32.mxu0 0.0
    %1715 = vmatmul.mubr.f32.gmra.mrb[0].mxu0 %v1649
    %v1716 = vpop.f32.mrb[0].mxu0
    %v1717 = vadd.f32 %v428, %v1716
    %v1718 = vpop.f32.mrb[0].mxu0
    %1719 = vdwg.mxu0
    %v1720 = vadd.f32 %v1717, %v1100
    %s1721 = scalar_lea.vmem [#allocation10], 8
    %1722 = vst.msk [vmem:[%s1721] sm:$0xff] %vm439, %v1720
    %s1723 = sld [smem:[#allocation2 + $0x1]]
    %p1724 = scmp.gt.s32.totalorder %s1723, 0
    %s1725 = scalar_lea.vmem [#allocation6], 8
    %v1726 = vld [vmem:[%s1725] sm:$0xff]
    %s1727 = scalar_select %p1724, 1, 0
    %v1728 = vstv %s1727
    %vm1729 = vcmp.eq.s32.totalorder %v1728, 1
    %v1730 = vsel %vm1729, %v1726, %v1100
    %v1732 = vsel %vm439, %v1730, 0
    %1734 = vmatprep.subr.mxu0 0.0
    %1735 = vmatpush1.msra.mxu0 %v96
    %1736 = vmatprep.subr.mxu0 0.0
    %1737 = vmatpush1.msra.mxu0 %v97
    %1738 = vmatprep.subr.mxu0 0.0
    %1739 = vmatpush1.msra.mxu0 0.0
    %1740 = vmatprep.subr.mxu0 0.0
    %1741 = vmatpush1.msra.mxu0 0.0
    %1742 = vmatprep.subr.mxu0 0.0
    %1743 = vmatpush1.msra.mxu0 0.0
    %1744 = vmatprep.subr.mxu0 0.0
    %1745 = vmatpush1.msra.mxu0 0.0
    %1746 = vmatprep.subr.mxu0 0.0
    %1747 = vmatpush1.msra.mxu0 0.0
    %1748 = vmatprep.subr.mxu0 0.0
    %1749 = vmatpush1.msra.mxu0 0.0
    %1750 = vmatprep.subr.mxu0 0.0
    %1751 = vmatpush1.msra.mxu0 0.0
    %1752 = vmatprep.subr.mxu0 0.0
    %1753 = vmatpush1.msra.mxu0 0.0
    %1754 = vmatprep.subr.mxu0 0.0
    %1755 = vmatpush1.msra.mxu0 0.0
    %1756 = vmatprep.subr.mxu0 0.0
    %1757 = vmatpush1.msra.mxu0 0.0
    %1758 = vmatprep.subr.mxu0 0.0
    %1759 = vmatpush1.msra.mxu0 0.0
    %1760 = vmatprep.subr.mxu0 0.0
    %1761 = vmatpush1.msra.mxu0 0.0
    %1762 = vmatprep.subr.mxu0 0.0
    %1763 = vmatpush1.msra.mxu0 0.0
    %1764 = vmatprep.subr.mxu0 0.0
    %1765 = vmatpush1.msra.mxu0 0.0
    %1766 = vmatprep.subr.mxu0 0.0
    %1767 = vmatpush1.msra.mxu0 0.0
    %1768 = vmatprep.subr.mxu0 0.0
    %1769 = vmatpush1.msra.mxu0 0.0
    %1770 = vmatprep.subr.mxu0 0.0
    %1771 = vmatpush1.msra.mxu0 0.0
    %1772 = vmatprep.subr.mxu0 0.0
    %1773 = vmatpush1.msra.mxu0 0.0
    %1774 = vmatprep.subr.mxu0 0.0
    %1775 = vmatpush1.msra.mxu0 0.0
    %1776 = vmatprep.subr.mxu0 0.0
    %1777 = vmatpush1.msra.mxu0 0.0
    %1778 = vmatprep.subr.mxu0 0.0
    %1779 = vmatpush1.msra.mxu0 0.0
    %1780 = vmatprep.subr.mxu0 0.0
    %1781 = vmatpush1.msra.mxu0 0.0
    %1782 = vmatprep.subr.mxu0 0.0
    %1783 = vmatpush1.msra.mxu0 0.0
    %1784 = vmatprep.subr.mxu0 0.0
    %1785 = vmatpush1.msra.mxu0 0.0
    %1786 = vmatprep.subr.mxu0 0.0
    %1787 = vmatpush1.msra.mxu0 0.0
    %1788 = vmatprep.subr.mxu0 0.0
    %1789 = vmatpush1.msra.mxu0 0.0
    %1790 = vmatprep.subr.mxu0 0.0
    %1791 = vmatpush1.msra.mxu0 0.0
    %1792 = vmatprep.subr.mxu0 0.0
    %1793 = vmatpush1.msra.mxu0 0.0
    %1794 = vmatprep.subr.mxu0 0.0
    %1795 = vmatpush1.msra.mxu0 0.0
    %1796 = vmatprep.subr.mxu0 0.0
    %1797 = vmatpush1.msra.mxu0 0.0
    %1798 = vmatprep.mubr.f32.mxu0 0.0
    %1799 = vmatmul.mubr.f32.gmra.mrb[0].mxu0 %v1732
    %v1800 = vpop.f32.mrb[0].mxu0
    %v1801 = vadd.f32 %v407, %v1800
    %v1802 = vpop.f32.mrb[0].mxu0
    %1803 = vdwg.mxu0
    %v1804 = vmax.f32 %v1801, 0.0
    %1805 = vmatprep.subr.mxu0 0.0
    %1806 = vmatpush1.msra.mxu0 %v98
    %1807 = vmatprep.subr.mxu0 0.0
    %1808 = vmatpush1.msra.mxu0 %v99
    %1809 = vmatprep.subr.mxu0 0.0
    %1810 = vmatpush1.msra.mxu0 %v100
    %1811 = vmatprep.subr.mxu0 0.0
    %1812 = vmatpush1.msra.mxu0 %v101
    %1813 = vmatprep.subr.mxu0 0.0
    %1814 = vmatpush1.msra.mxu0 %v102
    %1815 = vmatprep.subr.mxu0 0.0
    %1816 = vmatpush1.msra.mxu0 %v103
    %1817 = vmatprep.subr.mxu0 0.0
    %1818 = vmatpush1.msra.mxu0 %v104
    %1819 = vmatprep.subr.mxu0 0.0
    %1820 = vmatpush1.msra.mxu0 %v105
    %1821 = vmatprep.subr.mxu0 0.0
    %1822 = vmatpush1.msra.mxu0 %v106
    %1823 = vmatprep.subr.mxu0 0.0
    %1824 = vmatpush1.msra.mxu0 %v107
    %1825 = vmatprep.subr.mxu0 0.0
    %1826 = vmatpush1.msra.mxu0 %v108
    %1827 = vmatprep.subr.mxu0 0.0
    %1828 = vmatpush1.msra.mxu0 %v109
    %1829 = vmatprep.subr.mxu0 0.0
    %1830 = vmatpush1.msra.mxu0 %v110
    %1831 = vmatprep.subr.mxu0 0.0
    %1832 = vmatpush1.msra.mxu0 %v111
    %1833 = vmatprep.subr.mxu0 0.0
    %1834 = vmatpush1.msra.mxu0 %v112
    %1835 = vmatprep.subr.mxu0 0.0
    %1836 = vmatpush1.msra.mxu0 %v113
    %1837 = vmatprep.subr.mxu0 0.0
    %1838 = vmatpush1.msra.mxu0 0.0
    %1839 = vmatprep.subr.mxu0 0.0
    %1840 = vmatpush1.msra.mxu0 0.0
    %1841 = vmatprep.subr.mxu0 0.0
    %1842 = vmatpush1.msra.mxu0 0.0
    %1843 = vmatprep.subr.mxu0 0.0
    %1844 = vmatpush1.msra.mxu0 0.0
    %1845 = vmatprep.subr.mxu0 0.0
    %1846 = vmatpush1.msra.mxu0 0.0
    %1847 = vmatprep.subr.mxu0 0.0
    %1848 = vmatpush1.msra.mxu0 0.0
    %1849 = vmatprep.subr.mxu0 0.0
    %1850 = vmatpush1.msra.mxu0 0.0
    %1851 = vmatprep.subr.mxu0 0.0
    %1852 = vmatpush1.msra.mxu0 0.0
    %1853 = vmatprep.subr.mxu0 0.0
    %1854 = vmatpush1.msra.mxu0 0.0
    %1855 = vmatprep.subr.mxu0 0.0
    %1856 = vmatpush1.msra.mxu0 0.0
    %1857 = vmatprep.subr.mxu0 0.0
    %1858 = vmatpush1.msra.mxu0 0.0
    %1859 = vmatprep.subr.mxu0 0.0
    %1860 = vmatpush1.msra.mxu0 0.0
    %1861 = vmatprep.subr.mxu0 0.0
    %1862 = vmatpush1.msra.mxu0 0.0
    %1863 = vmatprep.subr.mxu0 0.0
    %1864 = vmatpush1.msra.mxu0 0.0
    %1865 = vmatprep.subr.mxu0 0.0
    %1866 = vmatpush1.msra.mxu0 0.0
    %1867 = vmatprep.subr.mxu0 0.0
    %1868 = vmatpush1.msra.mxu0 0.0
    %1869 = vmatprep.mubr.f32.mxu0 0.0
    %1870 = vmatmul.mubr.f32.gmra.mrb[0].mxu0 %v1804
    %v1871 = vpop.f32.mrb[0].mxu0
    %v1872 = vadd.f32 %v414, %v1871
    %v1873 = vpop.f32.mrb[0].mxu0
    %1874 = vdwg.mxu0
    %v1875 = vmax.f32 %v1872, 0.0
    %1876 = vmatprep.subr.mxu0 %v147
    %1877 = vmatpush1.msra.mxu0 %v146
    %1878 = vmatprep.subr.mxu0 %v151
    %1879 = vmatpush1.msra.mxu0 %v150
    %1880 = vmatprep.subr.mxu0 %v155
    %1881 = vmatpush1.msra.mxu0 %v154
    %1882 = vmatprep.subr.mxu0 %v159
    %1883 = vmatpush1.msra.mxu0 %v158
    %1884 = vmatprep.subr.mxu0 %v163
    %1885 = vmatpush1.msra.mxu0 %v162
    %1886 = vmatprep.subr.mxu0 %v167
    %1887 = vmatpush1.msra.mxu0 %v166
    %1888 = vmatprep.subr.mxu0 %v171
    %1889 = vmatpush1.msra.mxu0 %v170
    %1890 = vmatprep.subr.mxu0 %v175
    %1891 = vmatpush1.msra.mxu0 %v174
    %1892 = vmatprep.subr.mxu0 %v179
    %1893 = vmatpush1.msra.mxu0 %v178
    %1894 = vmatprep.subr.mxu0 %v183
    %1895 = vmatpush1.msra.mxu0 %v182
    %1896 = vmatprep.subr.mxu0 %v187
    %1897 = vmatpush1.msra.mxu0 %v186
    %1898 = vmatprep.subr.mxu0 %v191
    %1899 = vmatpush1.msra.mxu0 %v190
    %1900 = vmatprep.subr.mxu0 %v195
    %1901 = vmatpush1.msra.mxu0 %v194
    %1902 = vmatprep.subr.mxu0 %v199
    %1903 = vmatpush1.msra.mxu0 %v198
    %1904 = vmatprep.subr.mxu0 %v203
    %1905 = vmatpush1.msra.mxu0 %v202
    %1906 = vmatprep.subr.mxu0 %v207
    %1907 = vmatpush1.msra.mxu0 %v206
    %1908 = vmatprep.subr.mxu0 %v211
    %1909 = vmatpush1.msra.mxu0 %v210
    %1910 = vmatprep.subr.mxu0 %v215
    %1911 = vmatpush1.msra.mxu0 %v214
    %1912 = vmatprep.subr.mxu0 %v219
    %1913 = vmatpush1.msra.mxu0 %v218
    %1914 = vmatprep.subr.mxu0 %v223
    %1915 = vmatpush1.msra.mxu0 %v222
    %1916 = vmatprep.subr.mxu0 %v227
    %1917 = vmatpush1.msra.mxu0 %v226
    %1918 = vmatprep.subr.mxu0 %v231
    %1919 = vmatpush1.msra.mxu0 %v230
    %1920 = vmatprep.subr.mxu0 %v235
    %1921 = vmatpush1.msra.mxu0 %v234
    %1922 = vmatprep.subr.mxu0 %v239
    %1923 = vmatpush1.msra.mxu0 %v238
    %1924 = vmatprep.subr.mxu0 %v243
    %1925 = vmatpush1.msra.mxu0 %v242
    %1926 = vmatprep.subr.mxu0 %v247
    %1927 = vmatpush1.msra.mxu0 %v246
    %1928 = vmatprep.subr.mxu0 %v251
    %1929 = vmatpush1.msra.mxu0 %v250
    %1930 = vmatprep.subr.mxu0 %v255
    %1931 = vmatpush1.msra.mxu0 %v254
    %1932 = vmatprep.subr.mxu0 %v259
    %1933 = vmatpush1.msra.mxu0 %v258
    %1934 = vmatprep.subr.mxu0 %v263
    %1935 = vmatpush1.msra.mxu0 %v262
    %1936 = vmatprep.subr.mxu0 %v267
    %1937 = vmatpush1.msra.mxu0 %v266
    %1938 = vmatprep.subr.mxu0 %v271
    %1939 = vmatpush1.msra.mxu0 %v270
    %1940 = vmatprep.mubr.f32.mxu0 %v771
    %1941 = vmatmul.mubr.f32.gmra.mrb[0].mxu0 %v1875
    %v1942 = vpop.f32.mrb[0].mxu0
    %v1943 = vadd.f32 %v589, %v1942
    %v1944 = vpop.f32.mrb[0].mxu0
    %v1945 = vadd.f32 %v593, %v1944
    %1946 = vdwg.mxu0
    %1947 = vmatprep.subr.mxu0 %v149
    %1948 = vmatpush1.msra.mxu0 %v148
    %1949 = vmatprep.subr.mxu0 %v153
    %1950 = vmatpush1.msra.mxu0 %v152
    %1951 = vmatprep.subr.mxu0 %v157
    %1952 = vmatpush1.msra.mxu0 %v156
    %1953 = vmatprep.subr.mxu0 %v161
    %1954 = vmatpush1.msra.mxu0 %v160
    %1955 = vmatprep.subr.mxu0 %v165
    %1956 = vmatpush1.msra.mxu0 %v164
    %1957 = vmatprep.subr.mxu0 %v169
    %1958 = vmatpush1.msra.mxu0 %v168
    %1959 = vmatprep.subr.mxu0 %v173
    %1960 = vmatpush1.msra.mxu0 %v172
    %1961 = vmatprep.subr.mxu0 %v177
    %1962 = vmatpush1.msra.mxu0 %v176
    %1963 = vmatprep.subr.mxu0 %v181
    %1964 = vmatpush1.msra.mxu0 %v180
    %1965 = vmatprep.subr.mxu0 %v185
    %1966 = vmatpush1.msra.mxu0 %v184
    %1967 = vmatprep.subr.mxu0 %v189
    %1968 = vmatpush1.msra.mxu0 %v188
    %1969 = vmatprep.subr.mxu0 %v193
    %1970 = vmatpush1.msra.mxu0 %v192
    %1971 = vmatprep.subr.mxu0 %v197
    %1972 = vmatpush1.msra.mxu0 %v196
    %1973 = vmatprep.subr.mxu0 %v201
    %1974 = vmatpush1.msra.mxu0 %v200
    %1975 = vmatprep.subr.mxu0 %v205
    %1976 = vmatpush1.msra.mxu0 %v204
    %1977 = vmatprep.subr.mxu0 %v209
    %1978 = vmatpush1.msra.mxu0 %v208
    %1979 = vmatprep.subr.mxu0 %v213
    %1980 = vmatpush1.msra.mxu0 %v212
    %1981 = vmatprep.subr.mxu0 %v217
    %1982 = vmatpush1.msra.mxu0 %v216
    %1983 = vmatprep.subr.mxu0 %v221
    %1984 = vmatpush1.msra.mxu0 %v220
    %1985 = vmatprep.subr.mxu0 %v225
    %1986 = vmatpush1.msra.mxu0 %v224
    %1987 = vmatprep.subr.mxu0 %v229
    %1988 = vmatpush1.msra.mxu0 %v228
    %1989 = vmatprep.subr.mxu0 %v233
    %1990 = vmatpush1.msra.mxu0 %v232
    %1991 = vmatprep.subr.mxu0 %v237
    %1992 = vmatpush1.msra.mxu0 %v236
    %1993 = vmatprep.subr.mxu0 %v241
    %1994 = vmatpush1.msra.mxu0 %v240
    %1995 = vmatprep.subr.mxu0 %v245
    %1996 = vmatpush1.msra.mxu0 %v244
    %1997 = vmatprep.subr.mxu0 %v249
    %1998 = vmatpush1.msra.mxu0 %v248
    %1999 = vmatprep.subr.mxu0 %v253
    %2000 = vmatpush1.msra.mxu0 %v252
    %2001 = vmatprep.subr.mxu0 %v257
    %2002 = vmatpush1.msra.mxu0 %v256
    %2003 = vmatprep.subr.mxu0 %v261
    %2004 = vmatpush1.msra.mxu0 %v260
    %2005 = vmatprep.subr.mxu0 %v265
    %2006 = vmatpush1.msra.mxu0 %v264
    %2007 = vmatprep.subr.mxu0 %v269
    %2008 = vmatpush1.msra.mxu0 %v268
    %2009 = vmatprep.subr.mxu0 %v273
    %2010 = vmatpush1.msra.mxu0 %v272
    %2011 = vmatprep.mubr.f32.mxu0 %v771
    %2012 = vmatmul.mubr.f32.gmra.mrb[0].mxu0 %v1875
    %v2013 = vpop.f32.mrb[0].mxu0
    %v2014 = vadd.f32 %v597, %v2013
    %v2015 = vpop.f32.mrb[0].mxu0
    %v2016 = vadd.f32 %v601, %v2015
    %2017 = vdwg.mxu0
    %v2018 = vxor.u32 %v1943, 2147483648
    %v2019 = vmul.f32 %v2018, 1.442695
    %v2020 = vpow.pop %v2019
    %v2021 = vadd.f32 %v2020, 1.0
    %v2022 = vrcp.pop %v2021
    %v2023 = vmul.f32 1.0, %v2022
    %v2024 = vxor.u32 %v1945, 2147483648
    %v2025 = vmul.f32 %v2024, 1.442695
    %v2026 = vpow.pop %v2025
    %v2027 = vadd.f32 %v2026, 1.0
    %v2028 = vrcp.pop %v2027
    %v2029 = vmul.f32 1.0, %v2028
    %v2030 = vtanh.pop %v2014
    %v2031 = vxor.u32 %v2016, 2147483648
    %v2032 = vmul.f32 %v2031, 1.442695
    %v2033 = vpow.pop %v2032
    %v2034 = vadd.f32 %v2033, 1.0
    %v2035 = vrcp.pop %v2034
    %v2036 = vmul.f32 1.0, %v2035
    %v2037 = vmul.f32 %v2029, %v769
    %v2038 = vmul.f32 %v2023, %v2030
    %v2039 = vadd.f32 %v2037, %v2038
    %v2040 = vtanh.pop %v2039
    %v2041 = vmul.f32 %v2036, %v2040
    %2042 = vmatprep.subr.mxu0 %v275
    %2043 = vmatpush1.msra.mxu0 %v274
    %2044 = vmatprep.subr.mxu0 %v279
    %2045 = vmatpush1.msra.mxu0 %v278
    %2046 = vmatprep.subr.mxu0 %v283
    %2047 = vmatpush1.msra.mxu0 %v282
    %2048 = vmatprep.subr.mxu0 %v287
    %2049 = vmatpush1.msra.mxu0 %v286
    %2050 = vmatprep.subr.mxu0 %v291
    %2051 = vmatpush1.msra.mxu0 %v290
    %2052 = vmatprep.subr.mxu0 %v295
    %2053 = vmatpush1.msra.mxu0 %v294
    %2054 = vmatprep.subr.mxu0 %v299
    %2055 = vmatpush1.msra.mxu0 %v298
    %2056 = vmatprep.subr.mxu0 %v303
    %2057 = vmatpush1.msra.mxu0 %v302
    %2058 = vmatprep.subr.mxu0 %v307
    %2059 = vmatpush1.msra.mxu0 %v306
    %2060 = vmatprep.subr.mxu0 %v311
    %2061 = vmatpush1.msra.mxu0 %v310
    %2062 = vmatprep.subr.mxu0 %v315
    %2063 = vmatpush1.msra.mxu0 %v314
    %2064 = vmatprep.subr.mxu0 %v319
    %2065 = vmatpush1.msra.mxu0 %v318
    %2066 = vmatprep.subr.mxu0 %v323
    %2067 = vmatpush1.msra.mxu0 %v322
    %2068 = vmatprep.subr.mxu0 %v327
    %2069 = vmatpush1.msra.mxu0 %v326
    %2070 = vmatprep.subr.mxu0 %v331
    %2071 = vmatpush1.msra.mxu0 %v330
    %2072 = vmatprep.subr.mxu0 %v335
    %2073 = vmatpush1.msra.mxu0 %v334
    %2074 = vmatprep.subr.mxu0 %v339
    %2075 = vmatpush1.msra.mxu0 %v338
    %2076 = vmatprep.subr.mxu0 %v343
    %2077 = vmatpush1.msra.mxu0 %v342
    %2078 = vmatprep.subr.mxu0 %v347
    %2079 = vmatpush1.msra.mxu0 %v346
    %2080 = vmatprep.subr.mxu0 %v351
    %2081 = vmatpush1.msra.mxu0 %v350
    %2082 = vmatprep.subr.mxu0 %v355
    %2083 = vmatpush1.msra.mxu0 %v354
    %2084 = vmatprep.subr.mxu0 %v359
    %2085 = vmatpush1.msra.mxu0 %v358
    %2086 = vmatprep.subr.mxu0 %v363
    %2087 = vmatpush1.msra.mxu0 %v362
    %2088 = vmatprep.subr.mxu0 %v367
    %2089 = vmatpush1.msra.mxu0 %v366
    %2090 = vmatprep.subr.mxu0 %v371
    %2091 = vmatpush1.msra.mxu0 %v370
    %2092 = vmatprep.subr.mxu0 %v375
    %2093 = vmatpush1.msra.mxu0 %v374
    %2094 = vmatprep.subr.mxu0 %v379
    %2095 = vmatpush1.msra.mxu0 %v378
    %2096 = vmatprep.subr.mxu0 %v383
    %2097 = vmatpush1.msra.mxu0 %v382
    %2098 = vmatprep.subr.mxu0 %v387
    %2099 = vmatpush1.msra.mxu0 %v386
    %2100 = vmatprep.subr.mxu0 %v391
    %2101 = vmatpush1.msra.mxu0 %v390
    %2102 = vmatprep.subr.mxu0 %v395
    %2103 = vmatpush1.msra.mxu0 %v394
    %2104 = vmatprep.subr.mxu0 %v399
    %2105 = vmatpush1.msra.mxu0 %v398
    %2106 = vmatprep.mubr.f32.mxu0 %v958
    %2107 = vmatmul.mubr.f32.gmra.mrb[0].mxu0 %v2041
    %v2108 = vpop.f32.mrb[0].mxu0
    %v2109 = vadd.f32 %v776, %v2108
    %v2110 = vpop.f32.mrb[0].mxu0
    %v2111 = vadd.f32 %v780, %v2110
    %2112 = vdwg.mxu0
    %2113 = vmatprep.subr.mxu0 %v277
    %2114 = vmatpush1.msra.mxu0 %v276
    %2115 = vmatprep.subr.mxu0 %v281
    %2116 = vmatpush1.msra.mxu0 %v280
    %2117 = vmatprep.subr.mxu0 %v285
    %2118 = vmatpush1.msra.mxu0 %v284
    %2119 = vmatprep.subr.mxu0 %v289
    %2120 = vmatpush1.msra.mxu0 %v288
    %2121 = vmatprep.subr.mxu0 %v293
    %2122 = vmatpush1.msra.mxu0 %v292
    %2123 = vmatprep.subr.mxu0 %v297
    %2124 = vmatpush1.msra.mxu0 %v296
    %2125 = vmatprep.subr.mxu0 %v301
    %2126 = vmatpush1.msra.mxu0 %v300
    %2127 = vmatprep.subr.mxu0 %v305
    %2128 = vmatpush1.msra.mxu0 %v304
    %2129 = vmatprep.subr.mxu0 %v309
    %2130 = vmatpush1.msra.mxu0 %v308
    %2131 = vmatprep.subr.mxu0 %v313
    %2132 = vmatpush1.msra.mxu0 %v312
    %2133 = vmatprep.subr.mxu0 %v317
    %2134 = vmatpush1.msra.mxu0 %v316
    %2135 = vmatprep.subr.mxu0 %v321
    %2136 = vmatpush1.msra.mxu0 %v320
    %2137 = vmatprep.subr.mxu0 %v325
    %2138 = vmatpush1.msra.mxu0 %v324
    %2139 = vmatprep.subr.mxu0 %v329
    %2140 = vmatpush1.msra.mxu0 %v328
    %2141 = vmatprep.subr.mxu0 %v333
    %2142 = vmatpush1.msra.mxu0 %v332
    %2143 = vmatprep.subr.mxu0 %v337
    %2144 = vmatpush1.msra.mxu0 %v336
    %2145 = vmatprep.subr.mxu0 %v341
    %2146 = vmatpush1.msra.mxu0 %v340
    %2147 = vmatprep.subr.mxu0 %v345
    %2148 = vmatpush1.msra.mxu0 %v344
    %2149 = vmatprep.subr.mxu0 %v349
    %2150 = vmatpush1.msra.mxu0 %v348
    %2151 = vmatprep.subr.mxu0 %v353
    %2152 = vmatpush1.msra.mxu0 %v352
    %2153 = vmatprep.subr.mxu0 %v357
    %2154 = vmatpush1.msra.mxu0 %v356
    %2155 = vmatprep.subr.mxu0 %v361
    %2156 = vmatpush1.msra.mxu0 %v360
    %2157 = vmatprep.subr.mxu0 %v365
    %2158 = vmatpush1.msra.mxu0 %v364
    %2159 = vmatprep.subr.mxu0 %v369
    %2160 = vmatpush1.msra.mxu0 %v368
    %2161 = vmatprep.subr.mxu0 %v373
    %2162 = vmatpush1.msra.mxu0 %v372
    %2163 = vmatprep.subr.mxu0 %v377
    %2164 = vmatpush1.msra.mxu0 %v376
    %2165 = vmatprep.subr.mxu0 %v381
    %2166 = vmatpush1.msra.mxu0 %v380
    %2167 = vmatprep.subr.mxu0 %v385
    %2168 = vmatpush1.msra.mxu0 %v384
    %2169 = vmatprep.subr.mxu0 %v389
    %2170 = vmatpush1.msra.mxu0 %v388
    %2171 = vmatprep.subr.mxu0 %v393
    %2172 = vmatpush1.msra.mxu0 %v392
    %2173 = vmatprep.subr.mxu0 %v397
    %2174 = vmatpush1.msra.mxu0 %v396
    %2175 = vmatprep.subr.mxu0 %v401
    %2176 = vmatpush1.msra.mxu0 %v400
    %2177 = vmatprep.mubr.f32.mxu0 %v958
    %2178 = vmatmul.mubr.f32.gmra.mrb[0].mxu0 %v2041
    %v2179 = vpop.f32.mrb[0].mxu0
    %v2180 = vadd.f32 %v784, %v2179
    %v2181 = vpop.f32.mrb[0].mxu0
    %v2182 = vadd.f32 %v788, %v2181
    %2183 = vdwg.mxu0
    %v2184 = vxor.u32 %v2109, 2147483648
    %v2185 = vmul.f32 %v2184, 1.442695
    %v2186 = vpow.pop %v2185
    %v2187 = vadd.f32 %v2186, 1.0
    %v2188 = vrcp.pop %v2187
    %v2189 = vmul.f32 1.0, %v2188
    %v2190 = vxor.u32 %v2111, 2147483648
    %v2191 = vmul.f32 %v2190, 1.442695
    %v2192 = vpow.pop %v2191
    %v2193 = vadd.f32 %v2192, 1.0
    %v2194 = vrcp.pop %v2193
    %v2195 = vmul.f32 1.0, %v2194
    %v2196 = vtanh.pop %v2180
    %v2197 = vxor.u32 %v2182, 2147483648
    %v2198 = vmul.f32 %v2197, 1.442695
    %v2199 = vpow.pop %v2198
    %v2200 = vadd.f32 %v2199, 1.0
    %v2201 = vrcp.pop %v2200
    %v2202 = vmul.f32 1.0, %v2201
    %v2203 = vmul.f32 %v2195, %v956
    %v2204 = vmul.f32 %v2189, %v2196
    %v2205 = vadd.f32 %v2203, %v2204
    %v2206 = vtanh.pop %v2205
    %v2207 = vmul.f32 %v2202, %v2206
    %2208 = vmatprep.subr.mxu0 0.0
    %2209 = vmatpush1.msra.mxu0 %v114
    %2210 = vmatprep.subr.mxu0 0.0
    %2211 = vmatpush1.msra.mxu0 %v115
    %2212 = vmatprep.subr.mxu0 0.0
    %2213 = vmatpush1.msra.mxu0 %v116
    %2214 = vmatprep.subr.mxu0 0.0
    %2215 = vmatpush1.msra.mxu0 %v117
    %2216 = vmatprep.subr.mxu0 0.0
    %2217 = vmatpush1.msra.mxu0 %v118
    %2218 = vmatprep.subr.mxu0 0.0
    %2219 = vmatpush1.msra.mxu0 %v119
    %2220 = vmatprep.subr.mxu0 0.0
    %2221 = vmatpush1.msra.mxu0 %v120
    %2222 = vmatprep.subr.mxu0 0.0
    %2223 = vmatpush1.msra.mxu0 %v121
    %2224 = vmatprep.subr.mxu0 0.0
    %2225 = vmatpush1.msra.mxu0 %v122
    %2226 = vmatprep.subr.mxu0 0.0
    %2227 = vmatpush1.msra.mxu0 %v123
    %2228 = vmatprep.subr.mxu0 0.0
    %2229 = vmatpush1.msra.mxu0 %v124
    %2230 = vmatprep.subr.mxu0 0.0
    %2231 = vmatpush1.msra.mxu0 %v125
    %2232 = vmatprep.subr.mxu0 0.0
    %2233 = vmatpush1.msra.mxu0 %v126
    %2234 = vmatprep.subr.mxu0 0.0
    %2235 = vmatpush1.msra.mxu0 %v127
    %2236 = vmatprep.subr.mxu0 0.0
    %2237 = vmatpush1.msra.mxu0 %v128
    %2238 = vmatprep.subr.mxu0 0.0
    %2239 = vmatpush1.msra.mxu0 %v129
    %2240 = vmatprep.subr.mxu0 0.0
    %2241 = vmatpush1.msra.mxu0 0.0
    %2242 = vmatprep.subr.mxu0 0.0
    %2243 = vmatpush1.msra.mxu0 0.0
    %2244 = vmatprep.subr.mxu0 0.0
    %2245 = vmatpush1.msra.mxu0 0.0
    %2246 = vmatprep.subr.mxu0 0.0
    %2247 = vmatpush1.msra.mxu0 0.0
    %2248 = vmatprep.subr.mxu0 0.0
    %2249 = vmatpush1.msra.mxu0 0.0
    %2250 = vmatprep.subr.mxu0 0.0
    %2251 = vmatpush1.msra.mxu0 0.0
    %2252 = vmatprep.subr.mxu0 0.0
    %2253 = vmatpush1.msra.mxu0 0.0
    %2254 = vmatprep.subr.mxu0 0.0
    %2255 = vmatpush1.msra.mxu0 0.0
    %2256 = vmatprep.subr.mxu0 0.0
    %2257 = vmatpush1.msra.mxu0 0.0
    %2258 = vmatprep.subr.mxu0 0.0
    %2259 = vmatpush1.msra.mxu0 0.0
    %2260 = vmatprep.subr.mxu0 0.0
    %2261 = vmatpush1.msra.mxu0 0.0
    %2262 = vmatprep.subr.mxu0 0.0
    %2263 = vmatpush1.msra.mxu0 0.0
    %2264 = vmatprep.subr.mxu0 0.0
    %2265 = vmatpush1.msra.mxu0 0.0
    %2266 = vmatprep.subr.mxu0 0.0
    %2267 = vmatpush1.msra.mxu0 0.0
    %2268 = vmatprep.subr.mxu0 0.0
    %2269 = vmatpush1.msra.mxu0 0.0
    %2270 = vmatprep.subr.mxu0 0.0
    %2271 = vmatpush1.msra.mxu0 0.0
    %2272 = vmatprep.mubr.f32.mxu0 0.0
    %2273 = vmatmul.mubr.f32.gmra.mrb[0].mxu0 %v2207
    %v2274 = vpop.f32.mrb[0].mxu0
    %v2275 = vadd.f32 %v421, %v2274
    %v2276 = vpop.f32.mrb[0].mxu0
    %2277 = vdwg.mxu0
    %v2278 = vmax.f32 %v2275, 0.0
    %2279 = vmatprep.subr.mxu0 0.0
    %2280 = vmatpush1.msra.mxu0 %v130
    %2281 = vmatprep.subr.mxu0 0.0
    %2282 = vmatpush1.msra.mxu0 %v131
    %2283 = vmatprep.subr.mxu0 0.0
    %2284 = vmatpush1.msra.mxu0 %v132
    %2285 = vmatprep.subr.mxu0 0.0
    %2286 = vmatpush1.msra.mxu0 %v133
    %2287 = vmatprep.subr.mxu0 0.0
    %2288 = vmatpush1.msra.mxu0 %v134
    %2289 = vmatprep.subr.mxu0 0.0
    %2290 = vmatpush1.msra.mxu0 %v135
    %2291 = vmatprep.subr.mxu0 0.0
    %2292 = vmatpush1.msra.mxu0 %v136
    %2293 = vmatprep.subr.mxu0 0.0
    %2294 = vmatpush1.msra.mxu0 %v137
    %2295 = vmatprep.subr.mxu0 0.0
    %2296 = vmatpush1.msra.mxu0 %v138
    %2297 = vmatprep.subr.mxu0 0.0
    %2298 = vmatpush1.msra.mxu0 %v139
    %2299 = vmatprep.subr.mxu0 0.0
    %2300 = vmatpush1.msra.mxu0 %v140
    %2301 = vmatprep.subr.mxu0 0.0
    %2302 = vmatpush1.msra.mxu0 %v141
    %2303 = vmatprep.subr.mxu0 0.0
    %2304 = vmatpush1.msra.mxu0 %v142
    %2305 = vmatprep.subr.mxu0 0.0
    %2306 = vmatpush1.msra.mxu0 %v143
    %2307 = vmatprep.subr.mxu0 0.0
    %2308 = vmatpush1.msra.mxu0 %v144
    %2309 = vmatprep.subr.mxu0 0.0
    %2310 = vmatpush1.msra.mxu0 %v145
    %2311 = vmatprep.subr.mxu0 0.0
    %2312 = vmatpush1.msra.mxu0 0.0
    %2313 = vmatprep.subr.mxu0 0.0
    %2314 = vmatpush1.msra.mxu0 0.0
    %2315 = vmatprep.subr.mxu0 0.0
    %2316 = vmatpush1.msra.mxu0 0.0
    %2317 = vmatprep.subr.mxu0 0.0
    %2318 = vmatpush1.msra.mxu0 0.0
    %2319 = vmatprep.subr.mxu0 0.0
    %2320 = vmatpush1.msra.mxu0 0.0
    %2321 = vmatprep.subr.mxu0 0.0
    %2322 = vmatpush1.msra.mxu0 0.0
    %2323 = vmatprep.subr.mxu0 0.0
    %2324 = vmatpush1.msra.mxu0 0.0
    %2325 = vmatprep.subr.mxu0 0.0
    %2326 = vmatpush1.msra.mxu0 0.0
    %2327 = vmatprep.subr.mxu0 0.0
    %2328 = vmatpush1.msra.mxu0 0.0
    %2329 = vmatprep.subr.mxu0 0.0
    %2330 = vmatpush1.msra.mxu0 0.0
    %2331 = vmatprep.subr.mxu0 0.0
    %2332 = vmatpush1.msra.mxu0 0.0
    %2333 = vmatprep.subr.mxu0 0.0
    %2334 = vmatpush1.msra.mxu0 0.0
    %2335 = vmatprep.subr.mxu0 0.0
    %2336 = vmatpush1.msra.mxu0 0.0
    %2337 = vmatprep.subr.mxu0 0.0
    %2338 = vmatpush1.msra.mxu0 0.0
    %2339 = vmatprep.subr.mxu0 0.0
    %2340 = vmatpush1.msra.mxu0 0.0
    %2341 = vmatprep.subr.mxu0 0.0
    %2342 = vmatpush1.msra.mxu0 0.0
    %2343 = vmatprep.mubr.f32.mxu0 0.0
    %2344 = vmatmul.mubr.f32.gmra.mrb[0].mxu0 %v2278
    %v2345 = vpop.f32.mrb[0].mxu0
    %v2346 = vadd.f32 %v428, %v2345
    %v2347 = vpop.f32.mrb[0].mxu0
    %2348 = vdwg.mxu0
    %v2349 = vadd.f32 %v2346, %v1730
    %s2350 = scalar_lea.vmem [#allocation10], 16
    %2351 = vst.msk [vmem:[%s2350] sm:$0xff] %vm439, %v2349
    %v2353 = vsel %vm439, %v2349, 0
    %2355 = vmatprep.subr.mxu0 0.0
    %2356 = vmatpush1.msra.mxu0 %v96
    %2357 = vmatprep.subr.mxu0 0.0
    %2358 = vmatpush1.msra.mxu0 %v97
    %2359 = vmatprep.subr.mxu0 0.0
    %2360 = vmatpush1.msra.mxu0 0.0
    %2361 = vmatprep.subr.mxu0 0.0
    %2362 = vmatpush1.msra.mxu0 0.0
    %2363 = vmatprep.subr.mxu0 0.0
    %2364 = vmatpush1.msra.mxu0 0.0
    %2365 = vmatprep.subr.mxu0 0.0
    %2366 = vmatpush1.msra.mxu0 0.0
    %2367 = vmatprep.subr.mxu0 0.0
    %2368 = vmatpush1.msra.mxu0 0.0
    %2369 = vmatprep.subr.mxu0 0.0
    %2370 = vmatpush1.msra.mxu0 0.0
    %2371 = vmatprep.subr.mxu0 0.0
    %2372 = vmatpush1.msra.mxu0 0.0
    %2373 = vmatprep.subr.mxu0 0.0
    %2374 = vmatpush1.msra.mxu0 0.0
    %2375 = vmatprep.subr.mxu0 0.0
    %2376 = vmatpush1.msra.mxu0 0.0
    %2377 = vmatprep.subr.mxu0 0.0
    %2378 = vmatpush1.msra.mxu0 0.0
    %2379 = vmatprep.subr.mxu0 0.0
    %2380 = vmatpush1.msra.mxu0 0.0
    %2381 = vmatprep.subr.mxu0 0.0
    %2382 = vmatpush1.msra.mxu0 0.0
    %2383 = vmatprep.subr.mxu0 0.0
    %2384 = vmatpush1.msra.mxu0 0.0
    %2385 = vmatprep.subr.mxu0 0.0
    %2386 = vmatpush1.msra.mxu0 0.0
    %2387 = vmatprep.subr.mxu0 0.0
    %2388 = vmatpush1.msra.mxu0 0.0
    %2389 = vmatprep.subr.mxu0 0.0
    %2390 = vmatpush1.msra.mxu0 0.0
    %2391 = vmatprep.subr.mxu0 0.0
    %2392 = vmatpush1.msra.mxu0 0.0
    %2393 = vmatprep.subr.mxu0 0.0
    %2394 = vmatpush1.msra.mxu0 0.0
    %2395 = vmatprep.subr.mxu0 0.0
    %2396 = vmatpush1.msra.mxu0 0.0
    %2397 = vmatprep.subr.mxu0 0.0
    %2398 = vmatpush1.msra.mxu0 0.0
    %2399 = vmatprep.subr.mxu0 0.0
    %2400 = vmatpush1.msra.mxu0 0.0
    %2401 = vmatprep.subr.mxu0 0.0
    %2402 = vmatpush1.msra.mxu0 0.0
    %2403 = vmatprep.subr.mxu0 0.0
    %2404 = vmatpush1.msra.mxu0 0.0
    %2405 = vmatprep.subr.mxu0 0.0
    %2406 = vmatpush1.msra.mxu0 0.0
    %2407 = vmatprep.subr.mxu0 0.0
    %2408 = vmatpush1.msra.mxu0 0.0
    %2409 = vmatprep.subr.mxu0 0.0
    %2410 = vmatpush1.msra.mxu0 0.0
    %2411 = vmatprep.subr.mxu0 0.0
    %2412 = vmatpush1.msra.mxu0 0.0
    %2413 = vmatprep.subr.mxu0 0.0
    %2414 = vmatpush1.msra.mxu0 0.0
    %2415 = vmatprep.subr.mxu0 0.0
    %2416 = vmatpush1.msra.mxu0 0.0
    %2417 = vmatprep.subr.mxu0 0.0
    %2418 = vmatpush1.msra.mxu0 0.0
    %2419 = vmatprep.mubr.f32.mxu0 0.0
    %2420 = vmatmul.mubr.f32.gmra.mrb[0].mxu0 %v2353
    %v2421 = vpop.f32.mrb[0].mxu0
    %v2422 = vadd.f32 %v407, %v2421
    %v2423 = vpop.f32.mrb[0].mxu0
    %2424 = vdwg.mxu0
    %v2425 = vmax.f32 %v2422, 0.0
    %2426 = vmatprep.subr.mxu0 0.0
    %2427 = vmatpush1.msra.mxu0 %v98
    %2428 = vmatprep.subr.mxu0 0.0
    %2429 = vmatpush1.msra.mxu0 %v99
    %2430 = vmatprep.subr.mxu0 0.0
    %2431 = vmatpush1.msra.mxu0 %v100
    %2432 = vmatprep.subr.mxu0 0.0
    %2433 = vmatpush1.msra.mxu0 %v101
    %2434 = vmatprep.subr.mxu0 0.0
    %2435 = vmatpush1.msra.mxu0 %v102
    %2436 = vmatprep.subr.mxu0 0.0
    %2437 = vmatpush1.msra.mxu0 %v103
    %2438 = vmatprep.subr.mxu0 0.0
    %2439 = vmatpush1.msra.mxu0 %v104
    %2440 = vmatprep.subr.mxu0 0.0
    %2441 = vmatpush1.msra.mxu0 %v105
    %2442 = vmatprep.subr.mxu0 0.0
    %2443 = vmatpush1.msra.mxu0 %v106
    %2444 = vmatprep.subr.mxu0 0.0
    %2445 = vmatpush1.msra.mxu0 %v107
    %2446 = vmatprep.subr.mxu0 0.0
    %2447 = vmatpush1.msra.mxu0 %v108
    %2448 = vmatprep.subr.mxu0 0.0
    %2449 = vmatpush1.msra.mxu0 %v109
    %2450 = vmatprep.subr.mxu0 0.0
    %2451 = vmatpush1.msra.mxu0 %v110
    %2452 = vmatprep.subr.mxu0 0.0
    %2453 = vmatpush1.msra.mxu0 %v111
    %2454 = vmatprep.subr.mxu0 0.0
    %2455 = vmatpush1.msra.mxu0 %v112
    %2456 = vmatprep.subr.mxu0 0.0
    %2457 = vmatpush1.msra.mxu0 %v113
    %2458 = vmatprep.subr.mxu0 0.0
    %2459 = vmatpush1.msra.mxu0 0.0
    %2460 = vmatprep.subr.mxu0 0.0
    %2461 = vmatpush1.msra.mxu0 0.0
    %2462 = vmatprep.subr.mxu0 0.0
    %2463 = vmatpush1.msra.mxu0 0.0
    %2464 = vmatprep.subr.mxu0 0.0
    %2465 = vmatpush1.msra.mxu0 0.0
    %2466 = vmatprep.subr.mxu0 0.0
    %2467 = vmatpush1.msra.mxu0 0.0
    %2468 = vmatprep.subr.mxu0 0.0
    %2469 = vmatpush1.msra.mxu0 0.0
    %2470 = vmatprep.subr.mxu0 0.0
    %2471 = vmatpush1.msra.mxu0 0.0
    %2472 = vmatprep.subr.mxu0 0.0
    %2473 = vmatpush1.msra.mxu0 0.0
    %2474 = vmatprep.subr.mxu0 0.0
    %2475 = vmatpush1.msra.mxu0 0.0
    %2476 = vmatprep.subr.mxu0 0.0
    %2477 = vmatpush1.msra.mxu0 0.0
    %2478 = vmatprep.subr.mxu0 0.0
    %2479 = vmatpush1.msra.mxu0 0.0
    %2480 = vmatprep.subr.mxu0 0.0
    %2481 = vmatpush1.msra.mxu0 0.0
    %2482 = vmatprep.subr.mxu0 0.0
    %2483 = vmatpush1.msra.mxu0 0.0
    %2484 = vmatprep.subr.mxu0 0.0
    %2485 = vmatpush1.msra.mxu0 0.0
    %2486 = vmatprep.subr.mxu0 0.0
    %2487 = vmatpush1.msra.mxu0 0.0
    %2488 = vmatprep.subr.mxu0 0.0
    %2489 = vmatpush1.msra.mxu0 0.0
    %2490 = vmatprep.mubr.f32.mxu0 0.0
    %2491 = vmatmul.mubr.f32.gmra.mrb[0].mxu0 %v2425
    %v2492 = vpop.f32.mrb[0].mxu0
    %v2493 = vadd.f32 %v414, %v2492
    %v2494 = vpop.f32.mrb[0].mxu0
    %2495 = vdwg.mxu0
    %v2496 = vmax.f32 %v2493, 0.0
    %2497 = vmatprep.subr.mxu0 %v147
    %2498 = vmatpush1.msra.mxu0 %v146
    %2499 = vmatprep.subr.mxu0 %v151
    %2500 = vmatpush1.msra.mxu0 %v150
    %2501 = vmatprep.subr.mxu0 %v155
    %2502 = vmatpush1.msra.mxu0 %v154
    %2503 = vmatprep.subr.mxu0 %v159
    %2504 = vmatpush1.msra.mxu0 %v158
    %2505 = vmatprep.subr.mxu0 %v163
    %2506 = vmatpush1.msra.mxu0 %v162
    %2507 = vmatprep.subr.mxu0 %v167
    %2508 = vmatpush1.msra.mxu0 %v166
    %2509 = vmatprep.subr.mxu0 %v171
    %2510 = vmatpush1.msra.mxu0 %v170
    %2511 = vmatprep.subr.mxu0 %v175
    %2512 = vmatpush1.msra.mxu0 %v174
    %2513 = vmatprep.subr.mxu0 %v179
    %2514 = vmatpush1.msra.mxu0 %v178
    %2515 = vmatprep.subr.mxu0 %v183
    %2516 = vmatpush1.msra.mxu0 %v182
    %2517 = vmatprep.subr.mxu0 %v187
    %2518 = vmatpush1.msra.mxu0 %v186
    %2519 = vmatprep.subr.mxu0 %v191
    %2520 = vmatpush1.msra.mxu0 %v190
    %2521 = vmatprep.subr.mxu0 %v195
    %2522 = vmatpush1.msra.mxu0 %v194
    %2523 = vmatprep.subr.mxu0 %v199
    %2524 = vmatpush1.msra.mxu0 %v198
    %2525 = vmatprep.subr.mxu0 %v203
    %2526 = vmatpush1.msra.mxu0 %v202
    %2527 = vmatprep.subr.mxu0 %v207
    %2528 = vmatpush1.msra.mxu0 %v206
    %2529 = vmatprep.subr.mxu0 %v211
    %2530 = vmatpush1.msra.mxu0 %v210
    %2531 = vmatprep.subr.mxu0 %v215
    %2532 = vmatpush1.msra.mxu0 %v214
    %2533 = vmatprep.subr.mxu0 %v219
    %2534 = vmatpush1.msra.mxu0 %v218
    %2535 = vmatprep.subr.mxu0 %v223
    %2536 = vmatpush1.msra.mxu0 %v222
    %2537 = vmatprep.subr.mxu0 %v227
    %2538 = vmatpush1.msra.mxu0 %v226
    %2539 = vmatprep.subr.mxu0 %v231
    %2540 = vmatpush1.msra.mxu0 %v230
    %2541 = vmatprep.subr.mxu0 %v235
    %2542 = vmatpush1.msra.mxu0 %v234
    %2543 = vmatprep.subr.mxu0 %v239
    %2544 = vmatpush1.msra.mxu0 %v238
    %2545 = vmatprep.subr.mxu0 %v243
    %2546 = vmatpush1.msra.mxu0 %v242
    %2547 = vmatprep.subr.mxu0 %v247
    %2548 = vmatpush1.msra.mxu0 %v246
    %2549 = vmatprep.subr.mxu0 %v251
    %2550 = vmatpush1.msra.mxu0 %v250
    %2551 = vmatprep.subr.mxu0 %v255
    %2552 = vmatpush1.msra.mxu0 %v254
    %2553 = vmatprep.subr.mxu0 %v259
    %2554 = vmatpush1.msra.mxu0 %v258
    %2555 = vmatprep.subr.mxu0 %v263
    %2556 = vmatpush1.msra.mxu0 %v262
    %2557 = vmatprep.subr.mxu0 %v267
    %2558 = vmatpush1.msra.mxu0 %v266
    %2559 = vmatprep.subr.mxu0 %v271
    %2560 = vmatpush1.msra.mxu0 %v270
    %2561 = vmatprep.mubr.f32.mxu0 %v2041
    %2562 = vmatmul.mubr.f32.gmra.mrb[0].mxu0 %v2496
    %v2563 = vpop.f32.mrb[0].mxu0
    %v2564 = vadd.f32 %v589, %v2563
    %v2565 = vpop.f32.mrb[0].mxu0
    %v2566 = vadd.f32 %v593, %v2565
    %2567 = vdwg.mxu0
    %2568 = vmatprep.subr.mxu0 %v149
    %2569 = vmatpush1.msra.mxu0 %v148
    %2570 = vmatprep.subr.mxu0 %v153
    %2571 = vmatpush1.msra.mxu0 %v152
    %2572 = vmatprep.subr.mxu0 %v157
    %2573 = vmatpush1.msra.mxu0 %v156
    %2574 = vmatprep.subr.mxu0 %v161
    %2575 = vmatpush1.msra.mxu0 %v160
    %2576 = vmatprep.subr.mxu0 %v165
    %2577 = vmatpush1.msra.mxu0 %v164
    %2578 = vmatprep.subr.mxu0 %v169
    %2579 = vmatpush1.msra.mxu0 %v168
    %2580 = vmatprep.subr.mxu0 %v173
    %2581 = vmatpush1.msra.mxu0 %v172
    %2582 = vmatprep.subr.mxu0 %v177
    %2583 = vmatpush1.msra.mxu0 %v176
    %2584 = vmatprep.subr.mxu0 %v181
    %2585 = vmatpush1.msra.mxu0 %v180
    %2586 = vmatprep.subr.mxu0 %v185
    %2587 = vmatpush1.msra.mxu0 %v184
    %2588 = vmatprep.subr.mxu0 %v189
    %2589 = vmatpush1.msra.mxu0 %v188
    %2590 = vmatprep.subr.mxu0 %v193
    %2591 = vmatpush1.msra.mxu0 %v192
    %2592 = vmatprep.subr.mxu0 %v197
    %2593 = vmatpush1.msra.mxu0 %v196
    %2594 = vmatprep.subr.mxu0 %v201
    %2595 = vmatpush1.msra.mxu0 %v200
    %2596 = vmatprep.subr.mxu0 %v205
    %2597 = vmatpush1.msra.mxu0 %v204
    %2598 = vmatprep.subr.mxu0 %v209
    %2599 = vmatpush1.msra.mxu0 %v208
    %2600 = vmatprep.subr.mxu0 %v213
    %2601 = vmatpush1.msra.mxu0 %v212
    %2602 = vmatprep.subr.mxu0 %v217
    %2603 = vmatpush1.msra.mxu0 %v216
    %2604 = vmatprep.subr.mxu0 %v221
    %2605 = vmatpush1.msra.mxu0 %v220
    %2606 = vmatprep.subr.mxu0 %v225
    %2607 = vmatpush1.msra.mxu0 %v224
    %2608 = vmatprep.subr.mxu0 %v229
    %2609 = vmatpush1.msra.mxu0 %v228
    %2610 = vmatprep.subr.mxu0 %v233
    %2611 = vmatpush1.msra.mxu0 %v232
    %2612 = vmatprep.subr.mxu0 %v237
    %2613 = vmatpush1.msra.mxu0 %v236
    %2614 = vmatprep.subr.mxu0 %v241
    %2615 = vmatpush1.msra.mxu0 %v240
    %2616 = vmatprep.subr.mxu0 %v245
    %2617 = vmatpush1.msra.mxu0 %v244
    %2618 = vmatprep.subr.mxu0 %v249
    %2619 = vmatpush1.msra.mxu0 %v248
    %2620 = vmatprep.subr.mxu0 %v253
    %2621 = vmatpush1.msra.mxu0 %v252
    %2622 = vmatprep.subr.mxu0 %v257
    %2623 = vmatpush1.msra.mxu0 %v256
    %2624 = vmatprep.subr.mxu0 %v261
    %2625 = vmatpush1.msra.mxu0 %v260
    %2626 = vmatprep.subr.mxu0 %v265
    %2627 = vmatpush1.msra.mxu0 %v264
    %2628 = vmatprep.subr.mxu0 %v269
    %2629 = vmatpush1.msra.mxu0 %v268
    %2630 = vmatprep.subr.mxu0 %v273
    %2631 = vmatpush1.msra.mxu0 %v272
    %2632 = vmatprep.mubr.f32.mxu0 %v2041
    %2633 = vmatmul.mubr.f32.gmra.mrb[0].mxu0 %v2496
    %v2634 = vpop.f32.mrb[0].mxu0
    %v2635 = vadd.f32 %v597, %v2634
    %v2636 = vpop.f32.mrb[0].mxu0
    %v2637 = vadd.f32 %v601, %v2636
    %2638 = vdwg.mxu0
    %v2639 = vxor.u32 %v2564, 2147483648
    %v2640 = vmul.f32 %v2639, 1.442695
    %v2641 = vpow.pop %v2640
    %v2642 = vadd.f32 %v2641, 1.0
    %v2643 = vrcp.pop %v2642
    %v2644 = vmul.f32 1.0, %v2643
    %v2645 = vxor.u32 %v2566, 2147483648
    %v2646 = vmul.f32 %v2645, 1.442695
    %v2647 = vpow.pop %v2646
    %v2648 = vadd.f32 %v2647, 1.0
    %v2649 = vrcp.pop %v2648
    %v2650 = vmul.f32 1.0, %v2649
    %v2651 = vtanh.pop %v2635
    %v2652 = vxor.u32 %v2637, 2147483648
    %v2653 = vmul.f32 %v2652, 1.442695
    %v2654 = vpow.pop %v2653
    %v2655 = vadd.f32 %v2654, 1.0
    %v2656 = vrcp.pop %v2655
    %v2657 = vmul.f32 1.0, %v2656
    %v2658 = vmul.f32 %v2650, %v2039
    %v2659 = vmul.f32 %v2644, %v2651
    %v2660 = vadd.f32 %v2658, %v2659
    %v2661 = vtanh.pop %v2660
    %v2662 = vmul.f32 %v2657, %v2661
    %2663 = vmatprep.subr.mxu0 %v275
    %2664 = vmatpush1.msra.mxu0 %v274
    %2665 = vmatprep.subr.mxu0 %v279
    %2666 = vmatpush1.msra.mxu0 %v278
    %2667 = vmatprep.subr.mxu0 %v283
    %2668 = vmatpush1.msra.mxu0 %v282
    %2669 = vmatprep.subr.mxu0 %v287
    %2670 = vmatpush1.msra.mxu0 %v286
    %2671 = vmatprep.subr.mxu0 %v291
    %2672 = vmatpush1.msra.mxu0 %v290
    %2673 = vmatprep.subr.mxu0 %v295
    %2674 = vmatpush1.msra.mxu0 %v294
    %2675 = vmatprep.subr.mxu0 %v299
    %2676 = vmatpush1.msra.mxu0 %v298
    %2677 = vmatprep.subr.mxu0 %v303
    %2678 = vmatpush1.msra.mxu0 %v302
    %2679 = vmatprep.subr.mxu0 %v307
    %2680 = vmatpush1.msra.mxu0 %v306
    %2681 = vmatprep.subr.mxu0 %v311
    %2682 = vmatpush1.msra.mxu0 %v310
    %2683 = vmatprep.subr.mxu0 %v315
    %2684 = vmatpush1.msra.mxu0 %v314
    %2685 = vmatprep.subr.mxu0 %v319
    %2686 = vmatpush1.msra.mxu0 %v318
    %2687 = vmatprep.subr.mxu0 %v323
    %2688 = vmatpush1.msra.mxu0 %v322
    %2689 = vmatprep.subr.mxu0 %v327
    %2690 = vmatpush1.msra.mxu0 %v326
    %2691 = vmatprep.subr.mxu0 %v331
    %2692 = vmatpush1.msra.mxu0 %v330
    %2693 = vmatprep.subr.mxu0 %v335
    %2694 = vmatpush1.msra.mxu0 %v334
    %2695 = vmatprep.subr.mxu0 %v339
    %2696 = vmatpush1.msra.mxu0 %v338
    %2697 = vmatprep.subr.mxu0 %v343
    %2698 = vmatpush1.msra.mxu0 %v342
    %2699 = vmatprep.subr.mxu0 %v347
    %2700 = vmatpush1.msra.mxu0 %v346
    %2701 = vmatprep.subr.mxu0 %v351
    %2702 = vmatpush1.msra.mxu0 %v350
    %2703 = vmatprep.subr.mxu0 %v355
    %2704 = vmatpush1.msra.mxu0 %v354
    %2705 = vmatprep.subr.mxu0 %v359
    %2706 = vmatpush1.msra.mxu0 %v358
    %2707 = vmatprep.subr.mxu0 %v363
    %2708 = vmatpush1.msra.mxu0 %v362
    %2709 = vmatprep.subr.mxu0 %v367
    %2710 = vmatpush1.msra.mxu0 %v366
    %2711 = vmatprep.subr.mxu0 %v371
    %2712 = vmatpush1.msra.mxu0 %v370
    %2713 = vmatprep.subr.mxu0 %v375
    %2714 = vmatpush1.msra.mxu0 %v374
    %2715 = vmatprep.subr.mxu0 %v379
    %2716 = vmatpush1.msra.mxu0 %v378
    %2717 = vmatprep.subr.mxu0 %v383
    %2718 = vmatpush1.msra.mxu0 %v382
    %2719 = vmatprep.subr.mxu0 %v387
    %2720 = vmatpush1.msra.mxu0 %v386
    %2721 = vmatprep.subr.mxu0 %v391
    %2722 = vmatpush1.msra.mxu0 %v390
    %2723 = vmatprep.subr.mxu0 %v395
    %2724 = vmatpush1.msra.mxu0 %v394
    %2725 = vmatprep.subr.mxu0 %v399
    %2726 = vmatpush1.msra.mxu0 %v398
    %2727 = vmatprep.mubr.f32.mxu0 %v2207
    %2728 = vmatmul.mubr.f32.gmra.mrb[0].mxu0 %v2662
    %v2729 = vpop.f32.mrb[0].mxu0
    %v2730 = vadd.f32 %v776, %v2729
    %v2731 = vpop.f32.mrb[0].mxu0
    %v2732 = vadd.f32 %v780, %v2731
    %2733 = vdwg.mxu0
    %2734 = vmatprep.subr.mxu0 %v277
    %2735 = vmatpush1.msra.mxu0 %v276
    %2736 = vmatprep.subr.mxu0 %v281
    %2737 = vmatpush1.msra.mxu0 %v280
    %2738 = vmatprep.subr.mxu0 %v285
    %2739 = vmatpush1.msra.mxu0 %v284
    %2740 = vmatprep.subr.mxu0 %v289
    %2741 = vmatpush1.msra.mxu0 %v288
    %2742 = vmatprep.subr.mxu0 %v293
    %2743 = vmatpush1.msra.mxu0 %v292
    %2744 = vmatprep.subr.mxu0 %v297
    %2745 = vmatpush1.msra.mxu0 %v296
    %2746 = vmatprep.subr.mxu0 %v301
    %2747 = vmatpush1.msra.mxu0 %v300
    %2748 = vmatprep.subr.mxu0 %v305
    %2749 = vmatpush1.msra.mxu0 %v304
    %2750 = vmatprep.subr.mxu0 %v309
    %2751 = vmatpush1.msra.mxu0 %v308
    %2752 = vmatprep.subr.mxu0 %v313
    %2753 = vmatpush1.msra.mxu0 %v312
    %2754 = vmatprep.subr.mxu0 %v317
    %2755 = vmatpush1.msra.mxu0 %v316
    %2756 = vmatprep.subr.mxu0 %v321
    %2757 = vmatpush1.msra.mxu0 %v320
    %2758 = vmatprep.subr.mxu0 %v325
    %2759 = vmatpush1.msra.mxu0 %v324
    %2760 = vmatprep.subr.mxu0 %v329
    %2761 = vmatpush1.msra.mxu0 %v328
    %2762 = vmatprep.subr.mxu0 %v333
    %2763 = vmatpush1.msra.mxu0 %v332
    %2764 = vmatprep.subr.mxu0 %v337
    %2765 = vmatpush1.msra.mxu0 %v336
    %2766 = vmatprep.subr.mxu0 %v341
    %2767 = vmatpush1.msra.mxu0 %v340
    %2768 = vmatprep.subr.mxu0 %v345
    %2769 = vmatpush1.msra.mxu0 %v344
    %2770 = vmatprep.subr.mxu0 %v349
    %2771 = vmatpush1.msra.mxu0 %v348
    %2772 = vmatprep.subr.mxu0 %v353
    %2773 = vmatpush1.msra.mxu0 %v352
    %2774 = vmatprep.subr.mxu0 %v357
    %2775 = vmatpush1.msra.mxu0 %v356
    %2776 = vmatprep.subr.mxu0 %v361
    %2777 = vmatpush1.msra.mxu0 %v360
    %2778 = vmatprep.subr.mxu0 %v365
    %2779 = vmatpush1.msra.mxu0 %v364
    %2780 = vmatprep.subr.mxu0 %v369
    %2781 = vmatpush1.msra.mxu0 %v368
    %2782 = vmatprep.subr.mxu0 %v373
    %2783 = vmatpush1.msra.mxu0 %v372
    %2784 = vmatprep.subr.mxu0 %v377
    %2785 = vmatpush1.msra.mxu0 %v376
    %2786 = vmatprep.subr.mxu0 %v381
    %2787 = vmatpush1.msra.mxu0 %v380
    %2788 = vmatprep.subr.mxu0 %v385
    %2789 = vmatpush1.msra.mxu0 %v384
    %2790 = vmatprep.subr.mxu0 %v389
    %2791 = vmatpush1.msra.mxu0 %v388
    %2792 = vmatprep.subr.mxu0 %v393
    %2793 = vmatpush1.msra.mxu0 %v392
    %2794 = vmatprep.subr.mxu0 %v397
    %2795 = vmatpush1.msra.mxu0 %v396
    %2796 = vmatprep.subr.mxu0 %v401
    %2797 = vmatpush1.msra.mxu0 %v400
    %2798 = vmatprep.mubr.f32.mxu0 %v2207
    %2799 = vmatmul.mubr.f32.gmra.mrb[0].mxu0 %v2662
    %v2800 = vpop.f32.mrb[0].mxu0
    %v2801 = vadd.f32 %v784, %v2800
    %v2802 = vpop.f32.mrb[0].mxu0
    %v2803 = vadd.f32 %v788, %v2802
    %2804 = vdwg.mxu0
    %v2805 = vxor.u32 %v2730, 2147483648
    %v2806 = vmul.f32 %v2805, 1.442695
    %v2807 = vpow.pop %v2806
    %v2808 = vadd.f32 %v2807, 1.0
    %v2809 = vrcp.pop %v2808
    %v2810 = vmul.f32 1.0, %v2809
    %v2811 = vxor.u32 %v2732, 2147483648
    %v2812 = vmul.f32 %v2811, 1.442695
    %v2813 = vpow.pop %v2812
    %v2814 = vadd.f32 %v2813, 1.0
    %v2815 = vrcp.pop %v2814
    %v2816 = vmul.f32 1.0, %v2815
    %v2817 = vtanh.pop %v2801
    %v2818 = vxor.u32 %v2803, 2147483648
    %v2819 = vmul.f32 %v2818, 1.442695
    %v2820 = vpow.pop %v2819
    %v2821 = vadd.f32 %v2820, 1.0
    %v2822 = vrcp.pop %v2821
    %v2823 = vmul.f32 1.0, %v2822
    %v2824 = vmul.f32 %v2816, %v2205
    %v2825 = vmul.f32 %v2810, %v2817
    %v2826 = vadd.f32 %v2824, %v2825
    %v2827 = vtanh.pop %v2826
    %v2828 = vmul.f32 %v2823, %v2827
    %2829 = vmatprep.subr.mxu0 0.0
    %2830 = vmatpush1.msra.mxu0 %v114
    %2831 = vmatprep.subr.mxu0 0.0
    %2832 = vmatpush1.msra.mxu0 %v115
    %2833 = vmatprep.subr.mxu0 0.0
    %2834 = vmatpush1.msra.mxu0 %v116
    %2835 = vmatprep.subr.mxu0 0.0
    %2836 = vmatpush1.msra.mxu0 %v117
    %2837 = vmatprep.subr.mxu0 0.0
    %2838 = vmatpush1.msra.mxu0 %v118
    %2839 = vmatprep.subr.mxu0 0.0
    %2840 = vmatpush1.msra.mxu0 %v119
    %2841 = vmatprep.subr.mxu0 0.0
    %2842 = vmatpush1.msra.mxu0 %v120
    %2843 = vmatprep.subr.mxu0 0.0
    %2844 = vmatpush1.msra.mxu0 %v121
    %2845 = vmatprep.subr.mxu0 0.0
    %2846 = vmatpush1.msra.mxu0 %v122
    %2847 = vmatprep.subr.mxu0 0.0
    %2848 = vmatpush1.msra.mxu0 %v123
    %2849 = vmatprep.subr.mxu0 0.0
    %2850 = vmatpush1.msra.mxu0 %v124
    %2851 = vmatprep.subr.mxu0 0.0
    %2852 = vmatpush1.msra.mxu0 %v125
    %2853 = vmatprep.subr.mxu0 0.0
    %2854 = vmatpush1.msra.mxu0 %v126
    %2855 = vmatprep.subr.mxu0 0.0
    %2856 = vmatpush1.msra.mxu0 %v127
    %2857 = vmatprep.subr.mxu0 0.0
    %2858 = vmatpush1.msra.mxu0 %v128
    %2859 = vmatprep.subr.mxu0 0.0
    %2860 = vmatpush1.msra.mxu0 %v129
    %2861 = vmatprep.subr.mxu0 0.0
    %2862 = vmatpush1.msra.mxu0 0.0
    %2863 = vmatprep.subr.mxu0 0.0
    %2864 = vmatpush1.msra.mxu0 0.0
    %2865 = vmatprep.subr.mxu0 0.0
    %2866 = vmatpush1.msra.mxu0 0.0
    %2867 = vmatprep.subr.mxu0 0.0
    %2868 = vmatpush1.msra.mxu0 0.0
    %2869 = vmatprep.subr.mxu0 0.0
    %2870 = vmatpush1.msra.mxu0 0.0
    %2871 = vmatprep.subr.mxu0 0.0
    %2872 = vmatpush1.msra.mxu0 0.0
    %2873 = vmatprep.subr.mxu0 0.0
    %2874 = vmatpush1.msra.mxu0 0.0
    %2875 = vmatprep.subr.mxu0 0.0
    %2876 = vmatpush1.msra.mxu0 0.0
    %2877 = vmatprep.subr.mxu0 0.0
    %2878 = vmatpush1.msra.mxu0 0.0
    %2879 = vmatprep.subr.mxu0 0.0
    %2880 = vmatpush1.msra.mxu0 0.0
    %2881 = vmatprep.subr.mxu0 0.0
    %2882 = vmatpush1.msra.mxu0 0.0
    %2883 = vmatprep.subr.mxu0 0.0
    %2884 = vmatpush1.msra.mxu0 0.0
    %2885 = vmatprep.subr.mxu0 0.0
    %2886 = vmatpush1.msra.mxu0 0.0
    %2887 = vmatprep.subr.mxu0 0.0
    %2888 = vmatpush1.msra.mxu0 0.0
    %2889 = vmatprep.subr.mxu0 0.0
    %2890 = vmatpush1.msra.mxu0 0.0
    %2891 = vmatprep.subr.mxu0 0.0
    %2892 = vmatpush1.msra.mxu0 0.0
    %2893 = vmatprep.mubr.f32.mxu0 0.0
    %2894 = vmatmul.mubr.f32.gmra.mrb[0].mxu0 %v2828
    %v2895 = vpop.f32.mrb[0].mxu0
    %v2896 = vadd.f32 %v421, %v2895
    %v2897 = vpop.f32.mrb[0].mxu0
    %2898 = vdwg.mxu0
    %v2899 = vmax.f32 %v2896, 0.0
    %2900 = vmatprep.subr.mxu0 0.0
    %2901 = vmatpush1.msra.mxu0 %v130
    %2902 = vmatprep.subr.mxu0 0.0
    %2903 = vmatpush1.msra.mxu0 %v131
    %2904 = vmatprep.subr.mxu0 0.0
    %2905 = vmatpush1.msra.mxu0 %v132
    %2906 = vmatprep.subr.mxu0 0.0
    %2907 = vmatpush1.msra.mxu0 %v133
    %2908 = vmatprep.subr.mxu0 0.0
    %2909 = vmatpush1.msra.mxu0 %v134
    %2910 = vmatprep.subr.mxu0 0.0
    %2911 = vmatpush1.msra.mxu0 %v135
    %2912 = vmatprep.subr.mxu0 0.0
    %2913 = vmatpush1.msra.mxu0 %v136
    %2914 = vmatprep.subr.mxu0 0.0
    %2915 = vmatpush1.msra.mxu0 %v137
    %2916 = vmatprep.subr.mxu0 0.0
    %2917 = vmatpush1.msra.mxu0 %v138
    %2918 = vmatprep.subr.mxu0 0.0
    %2919 = vmatpush1.msra.mxu0 %v139
    %2920 = vmatprep.subr.mxu0 0.0
    %2921 = vmatpush1.msra.mxu0 %v140
    %2922 = vmatprep.subr.mxu0 0.0
    %2923 = vmatpush1.msra.mxu0 %v141
    %2924 = vmatprep.subr.mxu0 0.0
    %2925 = vmatpush1.msra.mxu0 %v142
    %2926 = vmatprep.subr.mxu0 0.0
    %2927 = vmatpush1.msra.mxu0 %v143
    %2928 = vmatprep.subr.mxu0 0.0
    %2929 = vmatpush1.msra.mxu0 %v144
    %2930 = vmatprep.subr.mxu0 0.0
    %2931 = vmatpush1.msra.mxu0 %v145
    %2932 = vmatprep.subr.mxu0 0.0
    %2933 = vmatpush1.msra.mxu0 0.0
    %2934 = vmatprep.subr.mxu0 0.0
    %2935 = vmatpush1.msra.mxu0 0.0
    %2936 = vmatprep.subr.mxu0 0.0
    %2937 = vmatpush1.msra.mxu0 0.0
    %2938 = vmatprep.subr.mxu0 0.0
    %2939 = vmatpush1.msra.mxu0 0.0
    %2940 = vmatprep.subr.mxu0 0.0
    %2941 = vmatpush1.msra.mxu0 0.0
    %2942 = vmatprep.subr.mxu0 0.0
    %2943 = vmatpush1.msra.mxu0 0.0
    %2944 = vmatprep.subr.mxu0 0.0
    %2945 = vmatpush1.msra.mxu0 0.0
    %2946 = vmatprep.subr.mxu0 0.0
    %2947 = vmatpush1.msra.mxu0 0.0
    %2948 = vmatprep.subr.mxu0 0.0
    %2949 = vmatpush1.msra.mxu0 0.0
    %2950 = vmatprep.subr.mxu0 0.0
    %2951 = vmatpush1.msra.mxu0 0.0
    %2952 = vmatprep.subr.mxu0 0.0
    %2953 = vmatpush1.msra.mxu0 0.0
    %2954 = vmatprep.subr.mxu0 0.0
    %2955 = vmatpush1.msra.mxu0 0.0
    %2956 = vmatprep.subr.mxu0 0.0
    %2957 = vmatpush1.msra.mxu0 0.0
    %2958 = vmatprep.subr.mxu0 0.0
    %2959 = vmatpush1.msra.mxu0 0.0
    %2960 = vmatprep.subr.mxu0 0.0
    %2961 = vmatpush1.msra.mxu0 0.0
    %2962 = vmatprep.subr.mxu0 0.0
    %2963 = vmatpush1.msra.mxu0 0.0
    %2964 = vmatprep.mubr.f32.mxu0 0.0
    %2965 = vmatmul.mubr.f32.gmra.mrb[0].mxu0 %v2899
    %v2966 = vpop.f32.mrb[0].mxu0
    %v2967 = vadd.f32 %v428, %v2966
    %v2968 = vpop.f32.mrb[0].mxu0
    %2969 = vdwg.mxu0
    %v2970 = vadd.f32 %v2967, %v2349
    %s2971 = scalar_lea.vmem [#allocation10], 24
    %2972 = vst.msk [vmem:[%s2971] sm:$0xff] %vm439, %v2970
    %s2973 = sld [smem:[#allocation2 + $0x2]]
    %p2974 = scmp.gt.s32.totalorder %s2973, 0
    %s2975 = scalar_lea.vmem [#allocation6], 16
    %v2976 = vld [vmem:[%s2975] sm:$0xff]
    %s2977 = scalar_select %p2974, 1, 0
    %v2978 = vstv %s2977
    %vm2979 = vcmp.eq.s32.totalorder %v2978, 1
    %v2980 = vsel %vm2979, %v2976, %v2349
    %v2982 = vsel %vm439, %v2980, 0
    %2984 = vmatprep.subr.mxu0 0.0
    %2985 = vmatpush1.msra.mxu0 %v96
    %2986 = vmatprep.subr.mxu0 0.0
    %2987 = vmatpush1.msra.mxu0 %v97
    %2988 = vmatprep.subr.mxu0 0.0
    %2989 = vmatpush1.msra.mxu0 0.0
    %2990 = vmatprep.subr.mxu0 0.0
    %2991 = vmatpush1.msra.mxu0 0.0
    %2992 = vmatprep.subr.mxu0 0.0
    %2993 = vmatpush1.msra.mxu0 0.0
    %2994 = vmatprep.subr.mxu0 0.0
    %2995 = vmatpush1.msra.mxu0 0.0
    %2996 = vmatprep.subr.mxu0 0.0
    %2997 = vmatpush1.msra.mxu0 0.0
    %2998 = vmatprep.subr.mxu0 0.0
    %2999 = vmatpush1.msra.mxu0 0.0
    %3000 = vmatprep.subr.mxu0 0.0
    %3001 = vmatpush1.msra.mxu0 0.0
    %3002 = vmatprep.subr.mxu0 0.0
    %3003 = vmatpush1.msra.mxu0 0.0
    %3004 = vmatprep.subr.mxu0 0.0
    %3005 = vmatpush1.msra.mxu0 0.0
    %3006 = vmatprep.subr.mxu0 0.0
    %3007 = vmatpush1.msra.mxu0 0.0
    %3008 = vmatprep.subr.mxu0 0.0
    %3009 = vmatpush1.msra.mxu0 0.0
    %3010 = vmatprep.subr.mxu0 0.0
    %3011 = vmatpush1.msra.mxu0 0.0
    %3012 = vmatprep.subr.mxu0 0.0
    %3013 = vmatpush1.msra.mxu0 0.0
    %3014 = vmatprep.subr.mxu0 0.0
    %3015 = vmatpush1.msra.mxu0 0.0
    %3016 = vmatprep.subr.mxu0 0.0
    %3017 = vmatpush1.msra.mxu0 0.0
    %3018 = vmatprep.subr.mxu0 0.0
    %3019 = vmatpush1.msra.mxu0 0.0
    %3020 = vmatprep.subr.mxu0 0.0
    %3021 = vmatpush1.msra.mxu0 0.0
    %3022 = vmatprep.subr.mxu0 0.0
    %3023 = vmatpush1.msra.mxu0 0.0
    %3024 = vmatprep.subr.mxu0 0.0
    %3025 = vmatpush1.msra.mxu0 0.0
    %3026 = vmatprep.subr.mxu0 0.0
    %3027 = vmatpush1.msra.mxu0 0.0
    %3028 = vmatprep.subr.mxu0 0.0
    %3029 = vmatpush1.msra.mxu0 0.0
    %3030 = vmatprep.subr.mxu0 0.0
    %3031 = vmatpush1.msra.mxu0 0.0
    %3032 = vmatprep.subr.mxu0 0.0
    %3033 = vmatpush1.msra.mxu0 0.0
    %3034 = vmatprep.subr.mxu0 0.0
    %3035 = vmatpush1.msra.mxu0 0.0
    %3036 = vmatprep.subr.mxu0 0.0
    %3037 = vmatpush1.msra.mxu0 0.0
    %3038 = vmatprep.subr.mxu0 0.0
    %3039 = vmatpush1.msra.mxu0 0.0
    %3040 = vmatprep.subr.mxu0 0.0
    %3041 = vmatpush1.msra.mxu0 0.0
    %3042 = vmatprep.subr.mxu0 0.0
    %3043 = vmatpush1.msra.mxu0 0.0
    %3044 = vmatprep.subr.mxu0 0.0
    %3045 = vmatpush1.msra.mxu0 0.0
    %3046 = vmatprep.subr.mxu0 0.0
    %3047 = vmatpush1.msra.mxu0 0.0
    %3048 = vmatprep.mubr.f32.mxu0 0.0
    %3049 = vmatmul.mubr.f32.gmra.mrb[0].mxu0 %v2982
    %v3050 = vpop.f32.mrb[0].mxu0
    %v3051 = vadd.f32 %v407, %v3050
    %v3052 = vpop.f32.mrb[0].mxu0
    %3053 = vdwg.mxu0
    %v3054 = vmax.f32 %v3051, 0.0
    %3055 = vmatprep.subr.mxu0 0.0
    %3056 = vmatpush1.msra.mxu0 %v98
    %3057 = vmatprep.subr.mxu0 0.0
    %3058 = vmatpush1.msra.mxu0 %v99
    %3059 = vmatprep.subr.mxu0 0.0
    %3060 = vmatpush1.msra.mxu0 %v100
    %3061 = vmatprep.subr.mxu0 0.0
    %3062 = vmatpush1.msra.mxu0 %v101
    %3063 = vmatprep.subr.mxu0 0.0
    %3064 = vmatpush1.msra.mxu0 %v102
    %3065 = vmatprep.subr.mxu0 0.0
    %3066 = vmatpush1.msra.mxu0 %v103
    %3067 = vmatprep.subr.mxu0 0.0
    %3068 = vmatpush1.msra.mxu0 %v104
    %3069 = vmatprep.subr.mxu0 0.0
    %3070 = vmatpush1.msra.mxu0 %v105
    %3071 = vmatprep.subr.mxu0 0.0
    %3072 = vmatpush1.msra.mxu0 %v106
    %3073 = vmatprep.subr.mxu0 0.0
    %3074 = vmatpush1.msra.mxu0 %v107
    %3075 = vmatprep.subr.mxu0 0.0
    %3076 = vmatpush1.msra.mxu0 %v108
    %3077 = vmatprep.subr.mxu0 0.0
    %3078 = vmatpush1.msra.mxu0 %v109
    %3079 = vmatprep.subr.mxu0 0.0
    %3080 = vmatpush1.msra.mxu0 %v110
    %3081 = vmatprep.subr.mxu0 0.0
    %3082 = vmatpush1.msra.mxu0 %v111
    %3083 = vmatprep.subr.mxu0 0.0
    %3084 = vmatpush1.msra.mxu0 %v112
    %3085 = vmatprep.subr.mxu0 0.0
    %3086 = vmatpush1.msra.mxu0 %v113
    %3087 = vmatprep.subr.mxu0 0.0
    %3088 = vmatpush1.msra.mxu0 0.0
    %3089 = vmatprep.subr.mxu0 0.0
    %3090 = vmatpush1.msra.mxu0 0.0
    %3091 = vmatprep.subr.mxu0 0.0
    %3092 = vmatpush1.msra.mxu0 0.0
    %3093 = vmatprep.subr.mxu0 0.0
    %3094 = vmatpush1.msra.mxu0 0.0
    %3095 = vmatprep.subr.mxu0 0.0
    %3096 = vmatpush1.msra.mxu0 0.0
    %3097 = vmatprep.subr.mxu0 0.0
    %3098 = vmatpush1.msra.mxu0 0.0
    %3099 = vmatprep.subr.mxu0 0.0
    %3100 = vmatpush1.msra.mxu0 0.0
    %3101 = vmatprep.subr.mxu0 0.0
    %3102 = vmatpush1.msra.mxu0 0.0
    %3103 = vmatprep.subr.mxu0 0.0
    %3104 = vmatpush1.msra.mxu0 0.0
    %3105 = vmatprep.subr.mxu0 0.0
    %3106 = vmatpush1.msra.mxu0 0.0
    %3107 = vmatprep.subr.mxu0 0.0
    %3108 = vmatpush1.msra.mxu0 0.0
    %3109 = vmatprep.subr.mxu0 0.0
    %3110 = vmatpush1.msra.mxu0 0.0
    %3111 = vmatprep.subr.mxu0 0.0
    %3112 = vmatpush1.msra.mxu0 0.0
    %3113 = vmatprep.subr.mxu0 0.0
    %3114 = vmatpush1.msra.mxu0 0.0
    %3115 = vmatprep.subr.mxu0 0.0
    %3116 = vmatpush1.msra.mxu0 0.0
    %3117 = vmatprep.subr.mxu0 0.0
    %3118 = vmatpush1.msra.mxu0 0.0
    %3119 = vmatprep.mubr.f32.mxu0 0.0
    %3120 = vmatmul.mubr.f32.gmra.mrb[0].mxu0 %v3054
    %v3121 = vpop.f32.mrb[0].mxu0
    %v3122 = vadd.f32 %v414, %v3121
    %v3123 = vpop.f32.mrb[0].mxu0
    %3124 = vdwg.mxu0
    %v3125 = vmax.f32 %v3122, 0.0
    %3126 = vmatprep.subr.mxu0 %v147
    %3127 = vmatpush1.msra.mxu0 %v146
    %3128 = vmatprep.subr.mxu0 %v151
    %3129 = vmatpush1.msra.mxu0 %v150
    %3130 = vmatprep.subr.mxu0 %v155
    %3131 = vmatpush1.msra.mxu0 %v154
    %3132 = vmatprep.subr.mxu0 %v159
    %3133 = vmatpush1.msra.mxu0 %v158
    %3134 = vmatprep.subr.mxu0 %v163
    %3135 = vmatpush1.msra.mxu0 %v162
    %3136 = vmatprep.subr.mxu0 %v167
    %3137 = vmatpush1.msra.mxu0 %v166
    %3138 = vmatprep.subr.mxu0 %v171
    %3139 = vmatpush1.msra.mxu0 %v170
    %3140 = vmatprep.subr.mxu0 %v175
    %3141 = vmatpush1.msra.mxu0 %v174
    %3142 = vmatprep.subr.mxu0 %v179
    %3143 = vmatpush1.msra.mxu0 %v178
    %3144 = vmatprep.subr.mxu0 %v183
    %3145 = vmatpush1.msra.mxu0 %v182
    %3146 = vmatprep.subr.mxu0 %v187
    %3147 = vmatpush1.msra.mxu0 %v186
    %3148 = vmatprep.subr.mxu0 %v191
    %3149 = vmatpush1.msra.mxu0 %v190
    %3150 = vmatprep.subr.mxu0 %v195
    %3151 = vmatpush1.msra.mxu0 %v194
    %3152 = vmatprep.subr.mxu0 %v199
    %3153 = vmatpush1.msra.mxu0 %v198
    %3154 = vmatprep.subr.mxu0 %v203
    %3155 = vmatpush1.msra.mxu0 %v202
    %3156 = vmatprep.subr.mxu0 %v207
    %3157 = vmatpush1.msra.mxu0 %v206
    %3158 = vmatprep.subr.mxu0 %v211
    %3159 = vmatpush1.msra.mxu0 %v210
    %3160 = vmatprep.subr.mxu0 %v215
    %3161 = vmatpush1.msra.mxu0 %v214
    %3162 = vmatprep.subr.mxu0 %v219
    %3163 = vmatpush1.msra.mxu0 %v218
    %3164 = vmatprep.subr.mxu0 %v223
    %3165 = vmatpush1.msra.mxu0 %v222
    %3166 = vmatprep.subr.mxu0 %v227
    %3167 = vmatpush1.msra.mxu0 %v226
    %3168 = vmatprep.subr.mxu0 %v231
    %3169 = vmatpush1.msra.mxu0 %v230
    %3170 = vmatprep.subr.mxu0 %v235
    %3171 = vmatpush1.msra.mxu0 %v234
    %3172 = vmatprep.subr.mxu0 %v239
    %3173 = vmatpush1.msra.mxu0 %v238
    %3174 = vmatprep.subr.mxu0 %v243
    %3175 = vmatpush1.msra.mxu0 %v242
    %3176 = vmatprep.subr.mxu0 %v247
    %3177 = vmatpush1.msra.mxu0 %v246
    %3178 = vmatprep.subr.mxu0 %v251
    %3179 = vmatpush1.msra.mxu0 %v250
    %3180 = vmatprep.subr.mxu0 %v255
    %3181 = vmatpush1.msra.mxu0 %v254
    %3182 = vmatprep.subr.mxu0 %v259
    %3183 = vmatpush1.msra.mxu0 %v258
    %3184 = vmatprep.subr.mxu0 %v263
    %3185 = vmatpush1.msra.mxu0 %v262
    %3186 = vmatprep.subr.mxu0 %v267
    %3187 = vmatpush1.msra.mxu0 %v266
    %3188 = vmatprep.subr.mxu0 %v271
    %3189 = vmatpush1.msra.mxu0 %v270
    %3190 = vmatprep.mubr.f32.mxu0 %v2041
    %3191 = vmatmul.mubr.f32.gmra.mrb[0].mxu0 %v3125
    %v3192 = vpop.f32.mrb[0].mxu0
    %v3193 = vadd.f32 %v589, %v3192
    %v3194 = vpop.f32.mrb[0].mxu0
    %v3195 = vadd.f32 %v593, %v3194
    %3196 = vdwg.mxu0
    %3197 = vmatprep.subr.mxu0 %v149
    %3198 = vmatpush1.msra.mxu0 %v148
    %3199 = vmatprep.subr.mxu0 %v153
    %3200 = vmatpush1.msra.mxu0 %v152
    %3201 = vmatprep.subr.mxu0 %v157
    %3202 = vmatpush1.msra.mxu0 %v156
    %3203 = vmatprep.subr.mxu0 %v161
    %3204 = vmatpush1.msra.mxu0 %v160
    %3205 = vmatprep.subr.mxu0 %v165
    %3206 = vmatpush1.msra.mxu0 %v164
    %3207 = vmatprep.subr.mxu0 %v169
    %3208 = vmatpush1.msra.mxu0 %v168
    %3209 = vmatprep.subr.mxu0 %v173
    %3210 = vmatpush1.msra.mxu0 %v172
    %3211 = vmatprep.subr.mxu0 %v177
    %3212 = vmatpush1.msra.mxu0 %v176
    %3213 = vmatprep.subr.mxu0 %v181
    %3214 = vmatpush1.msra.mxu0 %v180
    %3215 = vmatprep.subr.mxu0 %v185
    %3216 = vmatpush1.msra.mxu0 %v184
    %3217 = vmatprep.subr.mxu0 %v189
    %3218 = vmatpush1.msra.mxu0 %v188
    %3219 = vmatprep.subr.mxu0 %v193
    %3220 = vmatpush1.msra.mxu0 %v192
    %3221 = vmatprep.subr.mxu0 %v197
    %3222 = vmatpush1.msra.mxu0 %v196
    %3223 = vmatprep.subr.mxu0 %v201
    %3224 = vmatpush1.msra.mxu0 %v200
    %3225 = vmatprep.subr.mxu0 %v205
    %3226 = vmatpush1.msra.mxu0 %v204
    %3227 = vmatprep.subr.mxu0 %v209
    %3228 = vmatpush1.msra.mxu0 %v208
    %3229 = vmatprep.subr.mxu0 %v213
    %3230 = vmatpush1.msra.mxu0 %v212
    %3231 = vmatprep.subr.mxu0 %v217
    %3232 = vmatpush1.msra.mxu0 %v216
    %3233 = vmatprep.subr.mxu0 %v221
    %3234 = vmatpush1.msra.mxu0 %v220
    %3235 = vmatprep.subr.mxu0 %v225
    %3236 = vmatpush1.msra.mxu0 %v224
    %3237 = vmatprep.subr.mxu0 %v229
    %3238 = vmatpush1.msra.mxu0 %v228
    %3239 = vmatprep.subr.mxu0 %v233
    %3240 = vmatpush1.msra.mxu0 %v232
    %3241 = vmatprep.subr.mxu0 %v237
    %3242 = vmatpush1.msra.mxu0 %v236
    %3243 = vmatprep.subr.mxu0 %v241
    %3244 = vmatpush1.msra.mxu0 %v240
    %3245 = vmatprep.subr.mxu0 %v245
    %3246 = vmatpush1.msra.mxu0 %v244
    %3247 = vmatprep.subr.mxu0 %v249
    %3248 = vmatpush1.msra.mxu0 %v248
    %3249 = vmatprep.subr.mxu0 %v253
    %3250 = vmatpush1.msra.mxu0 %v252
    %3251 = vmatprep.subr.mxu0 %v257
    %3252 = vmatpush1.msra.mxu0 %v256
    %3253 = vmatprep.subr.mxu0 %v261
    %3254 = vmatpush1.msra.mxu0 %v260
    %3255 = vmatprep.subr.mxu0 %v265
    %3256 = vmatpush1.msra.mxu0 %v264
    %3257 = vmatprep.subr.mxu0 %v269
    %3258 = vmatpush1.msra.mxu0 %v268
    %3259 = vmatprep.subr.mxu0 %v273
    %3260 = vmatpush1.msra.mxu0 %v272
    %3261 = vmatprep.mubr.f32.mxu0 %v2041
    %3262 = vmatmul.mubr.f32.gmra.mrb[0].mxu0 %v3125
    %v3263 = vpop.f32.mrb[0].mxu0
    %v3264 = vadd.f32 %v597, %v3263
    %v3265 = vpop.f32.mrb[0].mxu0
    %v3266 = vadd.f32 %v601, %v3265
    %3267 = vdwg.mxu0
    %v3268 = vxor.u32 %v3193, 2147483648
    %v3269 = vmul.f32 %v3268, 1.442695
    %v3270 = vpow.pop %v3269
    %v3271 = vadd.f32 %v3270, 1.0
    %v3272 = vrcp.pop %v3271
    %v3273 = vmul.f32 1.0, %v3272
    %v3274 = vxor.u32 %v3195, 2147483648
    %v3275 = vmul.f32 %v3274, 1.442695
    %v3276 = vpow.pop %v3275
    %v3277 = vadd.f32 %v3276, 1.0
    %v3278 = vrcp.pop %v3277
    %v3279 = vmul.f32 1.0, %v3278
    %v3280 = vtanh.pop %v3264
    %v3281 = vxor.u32 %v3266, 2147483648
    %v3282 = vmul.f32 %v3281, 1.442695
    %v3283 = vpow.pop %v3282
    %v3284 = vadd.f32 %v3283, 1.0
    %v3285 = vrcp.pop %v3284
    %v3286 = vmul.f32 1.0, %v3285
    %v3287 = vmul.f32 %v3279, %v2039
    %v3288 = vmul.f32 %v3273, %v3280
    %v3289 = vadd.f32 %v3287, %v3288
    %v3290 = vtanh.pop %v3289
    %v3291 = vmul.f32 %v3286, %v3290
    %3292 = vmatprep.subr.mxu0 %v275
    %3293 = vmatpush1.msra.mxu0 %v274
    %3294 = vmatprep.subr.mxu0 %v279
    %3295 = vmatpush1.msra.mxu0 %v278
    %3296 = vmatprep.subr.mxu0 %v283
    %3297 = vmatpush1.msra.mxu0 %v282
    %3298 = vmatprep.subr.mxu0 %v287
    %3299 = vmatpush1.msra.mxu0 %v286
    %3300 = vmatprep.subr.mxu0 %v291
    %3301 = vmatpush1.msra.mxu0 %v290
    %3302 = vmatprep.subr.mxu0 %v295
    %3303 = vmatpush1.msra.mxu0 %v294
    %3304 = vmatprep.subr.mxu0 %v299
    %3305 = vmatpush1.msra.mxu0 %v298
    %3306 = vmatprep.subr.mxu0 %v303
    %3307 = vmatpush1.msra.mxu0 %v302
    %3308 = vmatprep.subr.mxu0 %v307
    %3309 = vmatpush1.msra.mxu0 %v306
    %3310 = vmatprep.subr.mxu0 %v311
    %3311 = vmatpush1.msra.mxu0 %v310
    %3312 = vmatprep.subr.mxu0 %v315
    %3313 = vmatpush1.msra.mxu0 %v314
    %3314 = vmatprep.subr.mxu0 %v319
    %3315 = vmatpush1.msra.mxu0 %v318
    %3316 = vmatprep.subr.mxu0 %v323
    %3317 = vmatpush1.msra.mxu0 %v322
    %3318 = vmatprep.subr.mxu0 %v327
    %3319 = vmatpush1.msra.mxu0 %v326
    %3320 = vmatprep.subr.mxu0 %v331
    %3321 = vmatpush1.msra.mxu0 %v330
    %3322 = vmatprep.subr.mxu0 %v335
    %3323 = vmatpush1.msra.mxu0 %v334
    %3324 = vmatprep.subr.mxu0 %v339
    %3325 = vmatpush1.msra.mxu0 %v338
    %3326 = vmatprep.subr.mxu0 %v343
    %3327 = vmatpush1.msra.mxu0 %v342
    %3328 = vmatprep.subr.mxu0 %v347
    %3329 = vmatpush1.msra.mxu0 %v346
    %3330 = vmatprep.subr.mxu0 %v351
    %3331 = vmatpush1.msra.mxu0 %v350
    %3332 = vmatprep.subr.mxu0 %v355
    %3333 = vmatpush1.msra.mxu0 %v354
    %3334 = vmatprep.subr.mxu0 %v359
    %3335 = vmatpush1.msra.mxu0 %v358
    %3336 = vmatprep.subr.mxu0 %v363
    %3337 = vmatpush1.msra.mxu0 %v362
    %3338 = vmatprep.subr.mxu0 %v367
    %3339 = vmatpush1.msra.mxu0 %v366
    %3340 = vmatprep.subr.mxu0 %v371
    %3341 = vmatpush1.msra.mxu0 %v370
    %3342 = vmatprep.subr.mxu0 %v375
    %3343 = vmatpush1.msra.mxu0 %v374
    %3344 = vmatprep.subr.mxu0 %v379
    %3345 = vmatpush1.msra.mxu0 %v378
    %3346 = vmatprep.subr.mxu0 %v383
    %3347 = vmatpush1.msra.mxu0 %v382
    %3348 = vmatprep.subr.mxu0 %v387
    %3349 = vmatpush1.msra.mxu0 %v386
    %3350 = vmatprep.subr.mxu0 %v391
    %3351 = vmatpush1.msra.mxu0 %v390
    %3352 = vmatprep.subr.mxu0 %v395
    %3353 = vmatpush1.msra.mxu0 %v394
    %3354 = vmatprep.subr.mxu0 %v399
    %3355 = vmatpush1.msra.mxu0 %v398
    %3356 = vmatprep.mubr.f32.mxu0 %v2207
    %3357 = vmatmul.mubr.f32.gmra.mrb[0].mxu0 %v3291
    %v3358 = vpop.f32.mrb[0].mxu0
    %v3359 = vadd.f32 %v776, %v3358
    %v3360 = vpop.f32.mrb[0].mxu0
    %v3361 = vadd.f32 %v780, %v3360
    %3362 = vdwg.mxu0
    %3363 = vmatprep.subr.mxu0 %v277
    %3364 = vmatpush1.msra.mxu0 %v276
    %3365 = vmatprep.subr.mxu0 %v281
    %3366 = vmatpush1.msra.mxu0 %v280
    %3367 = vmatprep.subr.mxu0 %v285
    %3368 = vmatpush1.msra.mxu0 %v284
    %3369 = vmatprep.subr.mxu0 %v289
    %3370 = vmatpush1.msra.mxu0 %v288
    %3371 = vmatprep.subr.mxu0 %v293
    %3372 = vmatpush1.msra.mxu0 %v292
    %3373 = vmatprep.subr.mxu0 %v297
    %3374 = vmatpush1.msra.mxu0 %v296
    %3375 = vmatprep.subr.mxu0 %v301
    %3376 = vmatpush1.msra.mxu0 %v300
    %3377 = vmatprep.subr.mxu0 %v305
    %3378 = vmatpush1.msra.mxu0 %v304
    %3379 = vmatprep.subr.mxu0 %v309
    %3380 = vmatpush1.msra.mxu0 %v308
    %3381 = vmatprep.subr.mxu0 %v313
    %3382 = vmatpush1.msra.mxu0 %v312
    %3383 = vmatprep.subr.mxu0 %v317
    %3384 = vmatpush1.msra.mxu0 %v316
    %3385 = vmatprep.subr.mxu0 %v321
    %3386 = vmatpush1.msra.mxu0 %v320
    %3387 = vmatprep.subr.mxu0 %v325
    %3388 = vmatpush1.msra.mxu0 %v324
    %3389 = vmatprep.subr.mxu0 %v329
    %3390 = vmatpush1.msra.mxu0 %v328
    %3391 = vmatprep.subr.mxu0 %v333
    %3392 = vmatpush1.msra.mxu0 %v332
    %3393 = vmatprep.subr.mxu0 %v337
    %3394 = vmatpush1.msra.mxu0 %v336
    %3395 = vmatprep.subr.mxu0 %v341
    %3396 = vmatpush1.msra.mxu0 %v340
    %3397 = vmatprep.subr.mxu0 %v345
    %3398 = vmatpush1.msra.mxu0 %v344
    %3399 = vmatprep.subr.mxu0 %v349
    %3400 = vmatpush1.msra.mxu0 %v348
    %3401 = vmatprep.subr.mxu0 %v353
    %3402 = vmatpush1.msra.mxu0 %v352
    %3403 = vmatprep.subr.mxu0 %v357
    %3404 = vmatpush1.msra.mxu0 %v356
    %3405 = vmatprep.subr.mxu0 %v361
    %3406 = vmatpush1.msra.mxu0 %v360
    %3407 = vmatprep.subr.mxu0 %v365
    %3408 = vmatpush1.msra.mxu0 %v364
    %3409 = vmatprep.subr.mxu0 %v369
    %3410 = vmatpush1.msra.mxu0 %v368
    %3411 = vmatprep.subr.mxu0 %v373
    %3412 = vmatpush1.msra.mxu0 %v372
    %3413 = vmatprep.subr.mxu0 %v377
    %3414 = vmatpush1.msra.mxu0 %v376
    %3415 = vmatprep.subr.mxu0 %v381
    %3416 = vmatpush1.msra.mxu0 %v380
    %3417 = vmatprep.subr.mxu0 %v385
    %3418 = vmatpush1.msra.mxu0 %v384
    %3419 = vmatprep.subr.mxu0 %v389
    %3420 = vmatpush1.msra.mxu0 %v388
    %3421 = vmatprep.subr.mxu0 %v393
    %3422 = vmatpush1.msra.mxu0 %v392
    %3423 = vmatprep.subr.mxu0 %v397
    %3424 = vmatpush1.msra.mxu0 %v396
    %3425 = vmatprep.subr.mxu0 %v401
    %3426 = vmatpush1.msra.mxu0 %v400
    %3427 = vmatprep.mubr.f32.mxu0 %v2207
    %3428 = vmatmul.mubr.f32.gmra.mrb[0].mxu0 %v3291
    %v3429 = vpop.f32.mrb[0].mxu0
    %v3430 = vadd.f32 %v784, %v3429
    %v3431 = vpop.f32.mrb[0].mxu0
    %v3432 = vadd.f32 %v788, %v3431
    %3433 = vdwg.mxu0
    %v3434 = vxor.u32 %v3359, 2147483648
    %v3435 = vmul.f32 %v3434, 1.442695
    %v3436 = vpow.pop %v3435
    %v3437 = vadd.f32 %v3436, 1.0
    %v3438 = vrcp.pop %v3437
    %v3439 = vmul.f32 1.0, %v3438
    %v3440 = vxor.u32 %v3361, 2147483648
    %v3441 = vmul.f32 %v3440, 1.442695
    %v3442 = vpow.pop %v3441
    %v3443 = vadd.f32 %v3442, 1.0
    %v3444 = vrcp.pop %v3443
    %v3445 = vmul.f32 1.0, %v3444
    %v3446 = vtanh.pop %v3430
    %v3447 = vxor.u32 %v3432, 2147483648
    %v3448 = vmul.f32 %v3447, 1.442695
    %v3449 = vpow.pop %v3448
    %v3450 = vadd.f32 %v3449, 1.0
    %v3451 = vrcp.pop %v3450
    %v3452 = vmul.f32 1.0, %v3451
    %v3453 = vmul.f32 %v3445, %v2205
    %v3454 = vmul.f32 %v3439, %v3446
    %v3455 = vadd.f32 %v3453, %v3454
    %v3456 = vtanh.pop %v3455
    %v3457 = vmul.f32 %v3452, %v3456
    %3458 = vmatprep.subr.mxu0 0.0
    %3459 = vmatpush1.msra.mxu0 %v114
    %3460 = vmatprep.subr.mxu0 0.0
    %3461 = vmatpush1.msra.mxu0 %v115
    %3462 = vmatprep.subr.mxu0 0.0
    %3463 = vmatpush1.msra.mxu0 %v116
    %3464 = vmatprep.subr.mxu0 0.0
    %3465 = vmatpush1.msra.mxu0 %v117
    %3466 = vmatprep.subr.mxu0 0.0
    %3467 = vmatpush1.msra.mxu0 %v118
    %3468 = vmatprep.subr.mxu0 0.0
    %3469 = vmatpush1.msra.mxu0 %v119
    %3470 = vmatprep.subr.mxu0 0.0
    %3471 = vmatpush1.msra.mxu0 %v120
    %3472 = vmatprep.subr.mxu0 0.0
    %3473 = vmatpush1.msra.mxu0 %v121
    %3474 = vmatprep.subr.mxu0 0.0
    %3475 = vmatpush1.msra.mxu0 %v122
    %3476 = vmatprep.subr.mxu0 0.0
    %3477 = vmatpush1.msra.mxu0 %v123
    %3478 = vmatprep.subr.mxu0 0.0
    %3479 = vmatpush1.msra.mxu0 %v124
    %3480 = vmatprep.subr.mxu0 0.0
    %3481 = vmatpush1.msra.mxu0 %v125
    %3482 = vmatprep.subr.mxu0 0.0
    %3483 = vmatpush1.msra.mxu0 %v126
    %3484 = vmatprep.subr.mxu0 0.0
    %3485 = vmatpush1.msra.mxu0 %v127
    %3486 = vmatprep.subr.mxu0 0.0
    %3487 = vmatpush1.msra.mxu0 %v128
    %3488 = vmatprep.subr.mxu0 0.0
    %3489 = vmatpush1.msra.mxu0 %v129
    %3490 = vmatprep.subr.mxu0 0.0
    %3491 = vmatpush1.msra.mxu0 0.0
    %3492 = vmatprep.subr.mxu0 0.0
    %3493 = vmatpush1.msra.mxu0 0.0
    %3494 = vmatprep.subr.mxu0 0.0
    %3495 = vmatpush1.msra.mxu0 0.0
    %3496 = vmatprep.subr.mxu0 0.0
    %3497 = vmatpush1.msra.mxu0 0.0
    %3498 = vmatprep.subr.mxu0 0.0
    %3499 = vmatpush1.msra.mxu0 0.0
    %3500 = vmatprep.subr.mxu0 0.0
    %3501 = vmatpush1.msra.mxu0 0.0
    %3502 = vmatprep.subr.mxu0 0.0
    %3503 = vmatpush1.msra.mxu0 0.0
    %3504 = vmatprep.subr.mxu0 0.0
    %3505 = vmatpush1.msra.mxu0 0.0
    %3506 = vmatprep.subr.mxu0 0.0
    %3507 = vmatpush1.msra.mxu0 0.0
    %3508 = vmatprep.subr.mxu0 0.0
    %3509 = vmatpush1.msra.mxu0 0.0
    %3510 = vmatprep.subr.mxu0 0.0
    %3511 = vmatpush1.msra.mxu0 0.0
    %3512 = vmatprep.subr.mxu0 0.0
    %3513 = vmatpush1.msra.mxu0 0.0
    %3514 = vmatprep.subr.mxu0 0.0
    %3515 = vmatpush1.msra.mxu0 0.0
    %3516 = vmatprep.subr.mxu0 0.0
    %3517 = vmatpush1.msra.mxu0 0.0
    %3518 = vmatprep.subr.mxu0 0.0
    %3519 = vmatpush1.msra.mxu0 0.0
    %3520 = vmatprep.subr.mxu0 0.0
    %3521 = vmatpush1.msra.mxu0 0.0
    %3522 = vmatprep.mubr.f32.mxu0 0.0
    %3523 = vmatmul.mubr.f32.gmra.mrb[0].mxu0 %v3457
    %v3524 = vpop.f32.mrb[0].mxu0
    %v3525 = vadd.f32 %v421, %v3524
    %v3526 = vpop.f32.mrb[0].mxu0
    %3527 = vdwg.mxu0
    %v3528 = vmax.f32 %v3525, 0.0
    %3529 = vmatprep.subr.mxu0 0.0
    %3530 = vmatpush1.msra.mxu0 %v130
    %3531 = vmatprep.subr.mxu0 0.0
    %3532 = vmatpush1.msra.mxu0 %v131
    %3533 = vmatprep.subr.mxu0 0.0
    %3534 = vmatpush1.msra.mxu0 %v132
    %3535 = vmatprep.subr.mxu0 0.0
    %3536 = vmatpush1.msra.mxu0 %v133
    %3537 = vmatprep.subr.mxu0 0.0
    %3538 = vmatpush1.msra.mxu0 %v134
    %3539 = vmatprep.subr.mxu0 0.0
    %3540 = vmatpush1.msra.mxu0 %v135
    %3541 = vmatprep.subr.mxu0 0.0
    %3542 = vmatpush1.msra.mxu0 %v136
    %3543 = vmatprep.subr.mxu0 0.0
    %3544 = vmatpush1.msra.mxu0 %v137
    %3545 = vmatprep.subr.mxu0 0.0
    %3546 = vmatpush1.msra.mxu0 %v138
    %3547 = vmatprep.subr.mxu0 0.0
    %3548 = vmatpush1.msra.mxu0 %v139
    %3549 = vmatprep.subr.mxu0 0.0
    %3550 = vmatpush1.msra.mxu0 %v140
    %3551 = vmatprep.subr.mxu0 0.0
    %3552 = vmatpush1.msra.mxu0 %v141
    %3553 = vmatprep.subr.mxu0 0.0
    %3554 = vmatpush1.msra.mxu0 %v142
    %3555 = vmatprep.subr.mxu0 0.0
    %3556 = vmatpush1.msra.mxu0 %v143
    %3557 = vmatprep.subr.mxu0 0.0
    %3558 = vmatpush1.msra.mxu0 %v144
    %3559 = vmatprep.subr.mxu0 0.0
    %3560 = vmatpush1.msra.mxu0 %v145
    %3561 = vmatprep.subr.mxu0 0.0
    %3562 = vmatpush1.msra.mxu0 0.0
    %3563 = vmatprep.subr.mxu0 0.0
    %3564 = vmatpush1.msra.mxu0 0.0
    %3565 = vmatprep.subr.mxu0 0.0
    %3566 = vmatpush1.msra.mxu0 0.0
    %3567 = vmatprep.subr.mxu0 0.0
    %3568 = vmatpush1.msra.mxu0 0.0
    %3569 = vmatprep.subr.mxu0 0.0
    %3570 = vmatpush1.msra.mxu0 0.0
    %3571 = vmatprep.subr.mxu0 0.0
    %3572 = vmatpush1.msra.mxu0 0.0
    %3573 = vmatprep.subr.mxu0 0.0
    %3574 = vmatpush1.msra.mxu0 0.0
    %3575 = vmatprep.subr.mxu0 0.0
    %3576 = vmatpush1.msra.mxu0 0.0
    %3577 = vmatprep.subr.mxu0 0.0
    %3578 = vmatpush1.msra.mxu0 0.0
    %3579 = vmatprep.subr.mxu0 0.0
    %3580 = vmatpush1.msra.mxu0 0.0
    %3581 = vmatprep.subr.mxu0 0.0
    %3582 = vmatpush1.msra.mxu0 0.0
    %3583 = vmatprep.subr.mxu0 0.0
    %3584 = vmatpush1.msra.mxu0 0.0
    %3585 = vmatprep.subr.mxu0 0.0
    %3586 = vmatpush1.msra.mxu0 0.0
    %3587 = vmatprep.subr.mxu0 0.0
    %3588 = vmatpush1.msra.mxu0 0.0
    %3589 = vmatprep.subr.mxu0 0.0
    %3590 = vmatpush1.msra.mxu0 0.0
    %3591 = vmatprep.subr.mxu0 0.0
    %3592 = vmatpush1.msra.mxu0 0.0
    %3593 = vmatprep.mubr.f32.mxu0 0.0
    %3594 = vmatmul.mubr.f32.gmra.mrb[0].mxu0 %v3528
    %v3595 = vpop.f32.mrb[0].mxu0
    %v3596 = vadd.f32 %v428, %v3595
    %v3597 = vpop.f32.mrb[0].mxu0
    %3598 = vdwg.mxu0
    %v3599 = vadd.f32 %v3596, %v2980
    %s3600 = scalar_lea.vmem [#allocation10], 32
    %3601 = vst.msk [vmem:[%s3600] sm:$0xff] %vm439, %v3599
    %v3603 = vsel %vm439, %v3599, 0
    %3605 = vmatprep.subr.mxu0 0.0
    %3606 = vmatpush1.msra.mxu0 %v96
    %3607 = vmatprep.subr.mxu0 0.0
    %3608 = vmatpush1.msra.mxu0 %v97
    %3609 = vmatprep.subr.mxu0 0.0
    %3610 = vmatpush1.msra.mxu0 0.0
    %3611 = vmatprep.subr.mxu0 0.0
    %3612 = vmatpush1.msra.mxu0 0.0
    %3613 = vmatprep.subr.mxu0 0.0
    %3614 = vmatpush1.msra.mxu0 0.0
    %3615 = vmatprep.subr.mxu0 0.0
    %3616 = vmatpush1.msra.mxu0 0.0
    %3617 = vmatprep.subr.mxu0 0.0
    %3618 = vmatpush1.msra.mxu0 0.0
    %3619 = vmatprep.subr.mxu0 0.0
    %3620 = vmatpush1.msra.mxu0 0.0
    %3621 = vmatprep.subr.mxu0 0.0
    %3622 = vmatpush1.msra.mxu0 0.0
    %3623 = vmatprep.subr.mxu0 0.0
    %3624 = vmatpush1.msra.mxu0 0.0
    %3625 = vmatprep.subr.mxu0 0.0
    %3626 = vmatpush1.msra.mxu0 0.0
    %3627 = vmatprep.subr.mxu0 0.0
    %3628 = vmatpush1.msra.mxu0 0.0
    %3629 = vmatprep.subr.mxu0 0.0
    %3630 = vmatpush1.msra.mxu0 0.0
    %3631 = vmatprep.subr.mxu0 0.0
    %3632 = vmatpush1.msra.mxu0 0.0
    %3633 = vmatprep.subr.mxu0 0.0
    %3634 = vmatpush1.msra.mxu0 0.0
    %3635 = vmatprep.subr.mxu0 0.0
    %3636 = vmatpush1.msra.mxu0 0.0
    %3637 = vmatprep.subr.mxu0 0.0
    %3638 = vmatpush1.msra.mxu0 0.0
    %3639 = vmatprep.subr.mxu0 0.0
    %3640 = vmatpush1.msra.mxu0 0.0
    %3641 = vmatprep.subr.mxu0 0.0
    %3642 = vmatpush1.msra.mxu0 0.0
    %3643 = vmatprep.subr.mxu0 0.0
    %3644 = vmatpush1.msra.mxu0 0.0
    %3645 = vmatprep.subr.mxu0 0.0
    %3646 = vmatpush1.msra.mxu0 0.0
    %3647 = vmatprep.subr.mxu0 0.0
    %3648 = vmatpush1.msra.mxu0 0.0
    %3649 = vmatprep.subr.mxu0 0.0
    %3650 = vmatpush1.msra.mxu0 0.0
    %3651 = vmatprep.subr.mxu0 0.0
    %3652 = vmatpush1.msra.mxu0 0.0
    %3653 = vmatprep.subr.mxu0 0.0
    %3654 = vmatpush1.msra.mxu0 0.0
    %3655 = vmatprep.subr.mxu0 0.0
    %3656 = vmatpush1.msra.mxu0 0.0
    %3657 = vmatprep.subr.mxu0 0.0
    %3658 = vmatpush1.msra.mxu0 0.0
    %3659 = vmatprep.subr.mxu0 0.0
    %3660 = vmatpush1.msra.mxu0 0.0
    %3661 = vmatprep.subr.mxu0 0.0
    %3662 = vmatpush1.msra.mxu0 0.0
    %3663 = vmatprep.subr.mxu0 0.0
    %3664 = vmatpush1.msra.mxu0 0.0
    %3665 = vmatprep.subr.mxu0 0.0
    %3666 = vmatpush1.msra.mxu0 0.0
    %3667 = vmatprep.subr.mxu0 0.0
    %3668 = vmatpush1.msra.mxu0 0.0
    %3669 = vmatprep.mubr.f32.mxu0 0.0
    %3670 = vmatmul.mubr.f32.gmra.mrb[0].mxu0 %v3603
    %v3671 = vpop.f32.mrb[0].mxu0
    %v3672 = vadd.f32 %v407, %v3671
    %v3673 = vpop.f32.mrb[0].mxu0
    %3674 = vdwg.mxu0
    %v3675 = vmax.f32 %v3672, 0.0
    %3676 = vmatprep.subr.mxu0 0.0
    %3677 = vmatpush1.msra.mxu0 %v98
    %3678 = vmatprep.subr.mxu0 0.0
    %3679 = vmatpush1.msra.mxu0 %v99
    %3680 = vmatprep.subr.mxu0 0.0
    %3681 = vmatpush1.msra.mxu0 %v100
    %3682 = vmatprep.subr.mxu0 0.0
    %3683 = vmatpush1.msra.mxu0 %v101
    %3684 = vmatprep.subr.mxu0 0.0
    %3685 = vmatpush1.msra.mxu0 %v102
    %3686 = vmatprep.subr.mxu0 0.0
    %3687 = vmatpush1.msra.mxu0 %v103
    %3688 = vmatprep.subr.mxu0 0.0
    %3689 = vmatpush1.msra.mxu0 %v104
    %3690 = vmatprep.subr.mxu0 0.0
    %3691 = vmatpush1.msra.mxu0 %v105
    %3692 = vmatprep.subr.mxu0 0.0
    %3693 = vmatpush1.msra.mxu0 %v106
    %3694 = vmatprep.subr.mxu0 0.0
    %3695 = vmatpush1.msra.mxu0 %v107
    %3696 = vmatprep.subr.mxu0 0.0
    %3697 = vmatpush1.msra.mxu0 %v108
    %3698 = vmatprep.subr.mxu0 0.0
    %3699 = vmatpush1.msra.mxu0 %v109
    %3700 = vmatprep.subr.mxu0 0.0
    %3701 = vmatpush1.msra.mxu0 %v110
    %3702 = vmatprep.subr.mxu0 0.0
    %3703 = vmatpush1.msra.mxu0 %v111
    %3704 = vmatprep.subr.mxu0 0.0
    %3705 = vmatpush1.msra.mxu0 %v112
    %3706 = vmatprep.subr.mxu0 0.0
    %3707 = vmatpush1.msra.mxu0 %v113
    %3708 = vmatprep.subr.mxu0 0.0
    %3709 = vmatpush1.msra.mxu0 0.0
    %3710 = vmatprep.subr.mxu0 0.0
    %3711 = vmatpush1.msra.mxu0 0.0
    %3712 = vmatprep.subr.mxu0 0.0
    %3713 = vmatpush1.msra.mxu0 0.0
    %3714 = vmatprep.subr.mxu0 0.0
    %3715 = vmatpush1.msra.mxu0 0.0
    %3716 = vmatprep.subr.mxu0 0.0
    %3717 = vmatpush1.msra.mxu0 0.0
    %3718 = vmatprep.subr.mxu0 0.0
    %3719 = vmatpush1.msra.mxu0 0.0
    %3720 = vmatprep.subr.mxu0 0.0
    %3721 = vmatpush1.msra.mxu0 0.0
    %3722 = vmatprep.subr.mxu0 0.0
    %3723 = vmatpush1.msra.mxu0 0.0
    %3724 = vmatprep.subr.mxu0 0.0
    %3725 = vmatpush1.msra.mxu0 0.0
    %3726 = vmatprep.subr.mxu0 0.0
    %3727 = vmatpush1.msra.mxu0 0.0
    %3728 = vmatprep.subr.mxu0 0.0
    %3729 = vmatpush1.msra.mxu0 0.0
    %3730 = vmatprep.subr.mxu0 0.0
    %3731 = vmatpush1.msra.mxu0 0.0
    %3732 = vmatprep.subr.mxu0 0.0
    %3733 = vmatpush1.msra.mxu0 0.0
    %3734 = vmatprep.subr.mxu0 0.0
    %3735 = vmatpush1.msra.mxu0 0.0
    %3736 = vmatprep.subr.mxu0 0.0
    %3737 = vmatpush1.msra.mxu0 0.0
    %3738 = vmatprep.subr.mxu0 0.0
    %3739 = vmatpush1.msra.mxu0 0.0
    %3740 = vmatprep.mubr.f32.mxu0 0.0
    %3741 = vmatmul.mubr.f32.gmra.mrb[0].mxu0 %v3675
    %v3742 = vpop.f32.mrb[0].mxu0
    %v3743 = vadd.f32 %v414, %v3742
    %v3744 = vpop.f32.mrb[0].mxu0
    %3745 = vdwg.mxu0
    %v3746 = vmax.f32 %v3743, 0.0
    %3747 = vmatprep.subr.mxu0 %v147
    %3748 = vmatpush1.msra.mxu0 %v146
    %3749 = vmatprep.subr.mxu0 %v151
    %3750 = vmatpush1.msra.mxu0 %v150
    %3751 = vmatprep.subr.mxu0 %v155
    %3752 = vmatpush1.msra.mxu0 %v154
    %3753 = vmatprep.subr.mxu0 %v159
    %3754 = vmatpush1.msra.mxu0 %v158
    %3755 = vmatprep.subr.mxu0 %v163
    %3756 = vmatpush1.msra.mxu0 %v162
    %3757 = vmatprep.subr.mxu0 %v167
    %3758 = vmatpush1.msra.mxu0 %v166
    %3759 = vmatprep.subr.mxu0 %v171
    %3760 = vmatpush1.msra.mxu0 %v170
    %3761 = vmatprep.subr.mxu0 %v175
    %3762 = vmatpush1.msra.mxu0 %v174
    %3763 = vmatprep.subr.mxu0 %v179
    %3764 = vmatpush1.msra.mxu0 %v178
    %3765 = vmatprep.subr.mxu0 %v183
    %3766 = vmatpush1.msra.mxu0 %v182
    %3767 = vmatprep.subr.mxu0 %v187
    %3768 = vmatpush1.msra.mxu0 %v186
    %3769 = vmatprep.subr.mxu0 %v191
    %3770 = vmatpush1.msra.mxu0 %v190
    %3771 = vmatprep.subr.mxu0 %v195
    %3772 = vmatpush1.msra.mxu0 %v194
    %3773 = vmatprep.subr.mxu0 %v199
    %3774 = vmatpush1.msra.mxu0 %v198
    %3775 = vmatprep.subr.mxu0 %v203
    %3776 = vmatpush1.msra.mxu0 %v202
    %3777 = vmatprep.subr.mxu0 %v207
    %3778 = vmatpush1.msra.mxu0 %v206
    %3779 = vmatprep.subr.mxu0 %v211
    %3780 = vmatpush1.msra.mxu0 %v210
    %3781 = vmatprep.subr.mxu0 %v215
    %3782 = vmatpush1.msra.mxu0 %v214
    %3783 = vmatprep.subr.mxu0 %v219
    %3784 = vmatpush1.msra.mxu0 %v218
    %3785 = vmatprep.subr.mxu0 %v223
    %3786 = vmatpush1.msra.mxu0 %v222
    %3787 = vmatprep.subr.mxu0 %v227
    %3788 = vmatpush1.msra.mxu0 %v226
    %3789 = vmatprep.subr.mxu0 %v231
    %3790 = vmatpush1.msra.mxu0 %v230
    %3791 = vmatprep.subr.mxu0 %v235
    %3792 = vmatpush1.msra.mxu0 %v234
    %3793 = vmatprep.subr.mxu0 %v239
    %3794 = vmatpush1.msra.mxu0 %v238
    %3795 = vmatprep.subr.mxu0 %v243
    %3796 = vmatpush1.msra.mxu0 %v242
    %3797 = vmatprep.subr.mxu0 %v247
    %3798 = vmatpush1.msra.mxu0 %v246
    %3799 = vmatprep.subr.mxu0 %v251
    %3800 = vmatpush1.msra.mxu0 %v250
    %3801 = vmatprep.subr.mxu0 %v255
    %3802 = vmatpush1.msra.mxu0 %v254
    %3803 = vmatprep.subr.mxu0 %v259
    %3804 = vmatpush1.msra.mxu0 %v258
    %3805 = vmatprep.subr.mxu0 %v263
    %3806 = vmatpush1.msra.mxu0 %v262
    %3807 = vmatprep.subr.mxu0 %v267
    %3808 = vmatpush1.msra.mxu0 %v266
    %3809 = vmatprep.subr.mxu0 %v271
    %3810 = vmatpush1.msra.mxu0 %v270
    %3811 = vmatprep.mubr.f32.mxu0 %v3291
    %3812 = vmatmul.mubr.f32.gmra.mrb[0].mxu0 %v3746
    %v3813 = vpop.f32.mrb[0].mxu0
    %v3814 = vadd.f32 %v589, %v3813
    %v3815 = vpop.f32.mrb[0].mxu0
    %v3816 = vadd.f32 %v593, %v3815
    %3817 = vdwg.mxu0
    %3818 = vmatprep.subr.mxu0 %v149
    %3819 = vmatpush1.msra.mxu0 %v148
    %3820 = vmatprep.subr.mxu0 %v153
    %3821 = vmatpush1.msra.mxu0 %v152
    %3822 = vmatprep.subr.mxu0 %v157
    %3823 = vmatpush1.msra.mxu0 %v156
    %3824 = vmatprep.subr.mxu0 %v161
    %3825 = vmatpush1.msra.mxu0 %v160
    %3826 = vmatprep.subr.mxu0 %v165
    %3827 = vmatpush1.msra.mxu0 %v164
    %3828 = vmatprep.subr.mxu0 %v169
    %3829 = vmatpush1.msra.mxu0 %v168
    %3830 = vmatprep.subr.mxu0 %v173
    %3831 = vmatpush1.msra.mxu0 %v172
    %3832 = vmatprep.subr.mxu0 %v177
    %3833 = vmatpush1.msra.mxu0 %v176
    %3834 = vmatprep.subr.mxu0 %v181
    %3835 = vmatpush1.msra.mxu0 %v180
    %3836 = vmatprep.subr.mxu0 %v185
    %3837 = vmatpush1.msra.mxu0 %v184
    %3838 = vmatprep.subr.mxu0 %v189
    %3839 = vmatpush1.msra.mxu0 %v188
    %3840 = vmatprep.subr.mxu0 %v193
    %3841 = vmatpush1.msra.mxu0 %v192
    %3842 = vmatprep.subr.mxu0 %v197
    %3843 = vmatpush1.msra.mxu0 %v196
    %3844 = vmatprep.subr.mxu0 %v201
    %3845 = vmatpush1.msra.mxu0 %v200
    %3846 = vmatprep.subr.mxu0 %v205
    %3847 = vmatpush1.msra.mxu0 %v204
    %3848 = vmatprep.subr.mxu0 %v209
    %3849 = vmatpush1.msra.mxu0 %v208
    %3850 = vmatprep.subr.mxu0 %v213
    %3851 = vmatpush1.msra.mxu0 %v212
    %3852 = vmatprep.subr.mxu0 %v217
    %3853 = vmatpush1.msra.mxu0 %v216
    %3854 = vmatprep.subr.mxu0 %v221
    %3855 = vmatpush1.msra.mxu0 %v220
    %3856 = vmatprep.subr.mxu0 %v225
    %3857 = vmatpush1.msra.mxu0 %v224
    %3858 = vmatprep.subr.mxu0 %v229
    %3859 = vmatpush1.msra.mxu0 %v228
    %3860 = vmatprep.subr.mxu0 %v233
    %3861 = vmatpush1.msra.mxu0 %v232
    %3862 = vmatprep.subr.mxu0 %v237
    %3863 = vmatpush1.msra.mxu0 %v236
    %3864 = vmatprep.subr.mxu0 %v241
    %3865 = vmatpush1.msra.mxu0 %v240
    %3866 = vmatprep.subr.mxu0 %v245
    %3867 = vmatpush1.msra.mxu0 %v244
    %3868 = vmatprep.subr.mxu0 %v249
    %3869 = vmatpush1.msra.mxu0 %v248
    %3870 = vmatprep.subr.mxu0 %v253
    %3871 = vmatpush1.msra.mxu0 %v252
    %3872 = vmatprep.subr.mxu0 %v257
    %3873 = vmatpush1.msra.mxu0 %v256
    %3874 = vmatprep.subr.mxu0 %v261
    %3875 = vmatpush1.msra.mxu0 %v260
    %3876 = vmatprep.subr.mxu0 %v265
    %3877 = vmatpush1.msra.mxu0 %v264
    %3878 = vmatprep.subr.mxu0 %v269
    %3879 = vmatpush1.msra.mxu0 %v268
    %3880 = vmatprep.subr.mxu0 %v273
    %3881 = vmatpush1.msra.mxu0 %v272
    %3882 = vmatprep.mubr.f32.mxu0 %v3291
    %3883 = vmatmul.mubr.f32.gmra.mrb[0].mxu0 %v3746
    %v3884 = vpop.f32.mrb[0].mxu0
    %v3885 = vadd.f32 %v597, %v3884
    %v3886 = vpop.f32.mrb[0].mxu0
    %v3887 = vadd.f32 %v601, %v3886
    %3888 = vdwg.mxu0
    %v3889 = vxor.u32 %v3814, 2147483648
    %v3890 = vmul.f32 %v3889, 1.442695
    %v3891 = vpow.pop %v3890
    %v3892 = vadd.f32 %v3891, 1.0
    %v3893 = vrcp.pop %v3892
    %v3894 = vmul.f32 1.0, %v3893
    %v3895 = vxor.u32 %v3816, 2147483648
    %v3896 = vmul.f32 %v3895, 1.442695
    %v3897 = vpow.pop %v3896
    %v3898 = vadd.f32 %v3897, 1.0
    %v3899 = vrcp.pop %v3898
    %v3900 = vmul.f32 1.0, %v3899
    %v3901 = vtanh.pop %v3885
    %v3902 = vxor.u32 %v3887, 2147483648
    %v3903 = vmul.f32 %v3902, 1.442695
    %v3904 = vpow.pop %v3903
    %v3905 = vadd.f32 %v3904, 1.0
    %v3906 = vrcp.pop %v3905
    %v3907 = vmul.f32 1.0, %v3906
    %v3908 = vmul.f32 %v3900, %v3289
    %v3909 = vmul.f32 %v3894, %v3901
    %v3910 = vadd.f32 %v3908, %v3909
    %v3911 = vtanh.pop %v3910
    %v3912 = vmul.f32 %v3907, %v3911
    %3913 = vmatprep.subr.mxu0 %v275
    %3914 = vmatpush1.msra.mxu0 %v274
    %3915 = vmatprep.subr.mxu0 %v279
    %3916 = vmatpush1.msra.mxu0 %v278
    %3917 = vmatprep.subr.mxu0 %v283
    %3918 = vmatpush1.msra.mxu0 %v282
    %3919 = vmatprep.subr.mxu0 %v287
    %3920 = vmatpush1.msra.mxu0 %v286
    %3921 = vmatprep.subr.mxu0 %v291
    %3922 = vmatpush1.msra.mxu0 %v290
    %3923 = vmatprep.subr.mxu0 %v295
    %3924 = vmatpush1.msra.mxu0 %v294
    %3925 = vmatprep.subr.mxu0 %v299
    %3926 = vmatpush1.msra.mxu0 %v298
    %3927 = vmatprep.subr.mxu0 %v303
    %3928 = vmatpush1.msra.mxu0 %v302
    %3929 = vmatprep.subr.mxu0 %v307
    %3930 = vmatpush1.msra.mxu0 %v306
    %3931 = vmatprep.subr.mxu0 %v311
    %3932 = vmatpush1.msra.mxu0 %v310
    %3933 = vmatprep.subr.mxu0 %v315
    %3934 = vmatpush1.msra.mxu0 %v314
    %3935 = vmatprep.subr.mxu0 %v319
    %3936 = vmatpush1.msra.mxu0 %v318
    %3937 = vmatprep.subr.mxu0 %v323
    %3938 = vmatpush1.msra.mxu0 %v322
    %3939 = vmatprep.subr.mxu0 %v327
    %3940 = vmatpush1.msra.mxu0 %v326
    %3941 = vmatprep.subr.mxu0 %v331
    %3942 = vmatpush1.msra.mxu0 %v330
    %3943 = vmatprep.subr.mxu0 %v335
    %3944 = vmatpush1.msra.mxu0 %v334
    %3945 = vmatprep.subr.mxu0 %v339
    %3946 = vmatpush1.msra.mxu0 %v338
    %3947 = vmatprep.subr.mxu0 %v343
    %3948 = vmatpush1.msra.mxu0 %v342
    %3949 = vmatprep.subr.mxu0 %v347
    %3950 = vmatpush1.msra.mxu0 %v346
    %3951 = vmatprep.subr.mxu0 %v351
    %3952 = vmatpush1.msra.mxu0 %v350
    %3953 = vmatprep.subr.mxu0 %v355
    %3954 = vmatpush1.msra.mxu0 %v354
    %3955 = vmatprep.subr.mxu0 %v359
    %3956 = vmatpush1.msra.mxu0 %v358
    %3957 = vmatprep.subr.mxu0 %v363
    %3958 = vmatpush1.msra.mxu0 %v362
    %3959 = vmatprep.subr.mxu0 %v367
    %3960 = vmatpush1.msra.mxu0 %v366
    %3961 = vmatprep.subr.mxu0 %v371
    %3962 = vmatpush1.msra.mxu0 %v370
    %3963 = vmatprep.subr.mxu0 %v375
    %3964 = vmatpush1.msra.mxu0 %v374
    %3965 = vmatprep.subr.mxu0 %v379
    %3966 = vmatpush1.msra.mxu0 %v378
    %3967 = vmatprep.subr.mxu0 %v383
    %3968 = vmatpush1.msra.mxu0 %v382
    %3969 = vmatprep.subr.mxu0 %v387
    %3970 = vmatpush1.msra.mxu0 %v386
    %3971 = vmatprep.subr.mxu0 %v391
    %3972 = vmatpush1.msra.mxu0 %v390
    %3973 = vmatprep.subr.mxu0 %v395
    %3974 = vmatpush1.msra.mxu0 %v394
    %3975 = vmatprep.subr.mxu0 %v399
    %3976 = vmatpush1.msra.mxu0 %v398
    %3977 = vmatprep.mubr.f32.mxu0 %v3457
    %3978 = vmatmul.mubr.f32.gmra.mrb[0].mxu0 %v3912
    %v3979 = vpop.f32.mrb[0].mxu0
    %v3980 = vadd.f32 %v776, %v3979
    %v3981 = vpop.f32.mrb[0].mxu0
    %v3982 = vadd.f32 %v780, %v3981
    %3983 = vdwg.mxu0
    %3984 = vmatprep.subr.mxu0 %v277
    %3985 = vmatpush1.msra.mxu0 %v276
    %3986 = vmatprep.subr.mxu0 %v281
    %3987 = vmatpush1.msra.mxu0 %v280
    %3988 = vmatprep.subr.mxu0 %v285
    %3989 = vmatpush1.msra.mxu0 %v284
    %3990 = vmatprep.subr.mxu0 %v289
    %3991 = vmatpush1.msra.mxu0 %v288
    %3992 = vmatprep.subr.mxu0 %v293
    %3993 = vmatpush1.msra.mxu0 %v292
    %3994 = vmatprep.subr.mxu0 %v297
    %3995 = vmatpush1.msra.mxu0 %v296
    %3996 = vmatprep.subr.mxu0 %v301
    %3997 = vmatpush1.msra.mxu0 %v300
    %3998 = vmatprep.subr.mxu0 %v305
    %3999 = vmatpush1.msra.mxu0 %v304
    %4000 = vmatprep.subr.mxu0 %v309
    %4001 = vmatpush1.msra.mxu0 %v308
    %4002 = vmatprep.subr.mxu0 %v313
    %4003 = vmatpush1.msra.mxu0 %v312
    %4004 = vmatprep.subr.mxu0 %v317
    %4005 = vmatpush1.msra.mxu0 %v316
    %4006 = vmatprep.subr.mxu0 %v321
    %4007 = vmatpush1.msra.mxu0 %v320
    %4008 = vmatprep.subr.mxu0 %v325
    %4009 = vmatpush1.msra.mxu0 %v324
    %4010 = vmatprep.subr.mxu0 %v329
    %4011 = vmatpush1.msra.mxu0 %v328
    %4012 = vmatprep.subr.mxu0 %v333
    %4013 = vmatpush1.msra.mxu0 %v332
    %4014 = vmatprep.subr.mxu0 %v337
    %4015 = vmatpush1.msra.mxu0 %v336
    %4016 = vmatprep.subr.mxu0 %v341
    %4017 = vmatpush1.msra.mxu0 %v340
    %4018 = vmatprep.subr.mxu0 %v345
    %4019 = vmatpush1.msra.mxu0 %v344
    %4020 = vmatprep.subr.mxu0 %v349
    %4021 = vmatpush1.msra.mxu0 %v348
    %4022 = vmatprep.subr.mxu0 %v353
    %4023 = vmatpush1.msra.mxu0 %v352
    %4024 = vmatprep.subr.mxu0 %v357
    %4025 = vmatpush1.msra.mxu0 %v356
    %4026 = vmatprep.subr.mxu0 %v361
    %4027 = vmatpush1.msra.mxu0 %v360
    %4028 = vmatprep.subr.mxu0 %v365
    %4029 = vmatpush1.msra.mxu0 %v364
    %4030 = vmatprep.subr.mxu0 %v369
    %4031 = vmatpush1.msra.mxu0 %v368
    %4032 = vmatprep.subr.mxu0 %v373
    %4033 = vmatpush1.msra.mxu0 %v372
    %4034 = vmatprep.subr.mxu0 %v377
    %4035 = vmatpush1.msra.mxu0 %v376
    %4036 = vmatprep.subr.mxu0 %v381
    %4037 = vmatpush1.msra.mxu0 %v380
    %4038 = vmatprep.subr.mxu0 %v385
    %4039 = vmatpush1.msra.mxu0 %v384
    %4040 = vmatprep.subr.mxu0 %v389
    %4041 = vmatpush1.msra.mxu0 %v388
    %4042 = vmatprep.subr.mxu0 %v393
    %4043 = vmatpush1.msra.mxu0 %v392
    %4044 = vmatprep.subr.mxu0 %v397
    %4045 = vmatpush1.msra.mxu0 %v396
    %4046 = vmatprep.subr.mxu0 %v401
    %4047 = vmatpush1.msra.mxu0 %v400
    %4048 = vmatprep.mubr.f32.mxu0 %v3457
    %4049 = vmatmul.mubr.f32.gmra.mrb[0].mxu0 %v3912
    %v4050 = vpop.f32.mrb[0].mxu0
    %v4051 = vadd.f32 %v784, %v4050
    %v4052 = vpop.f32.mrb[0].mxu0
    %v4053 = vadd.f32 %v788, %v4052
    %4054 = vdwg.mxu0
    %v4055 = vxor.u32 %v3980, 2147483648
    %v4056 = vmul.f32 %v4055, 1.442695
    %v4057 = vpow.pop %v4056
    %v4058 = vadd.f32 %v4057, 1.0
    %v4059 = vrcp.pop %v4058
    %v4060 = vmul.f32 1.0, %v4059
    %v4061 = vxor.u32 %v3982, 2147483648
    %v4062 = vmul.f32 %v4061, 1.442695
    %v4063 = vpow.pop %v4062
    %v4064 = vadd.f32 %v4063, 1.0
    %v4065 = vrcp.pop %v4064
    %v4066 = vmul.f32 1.0, %v4065
    %v4067 = vtanh.pop %v4051
    %v4068 = vxor.u32 %v4053, 2147483648
    %v4069 = vmul.f32 %v4068, 1.442695
    %v4070 = vpow.pop %v4069
    %v4071 = vadd.f32 %v4070, 1.0
    %v4072 = vrcp.pop %v4071
    %v4073 = vmul.f32 1.0, %v4072
    %v4074 = vmul.f32 %v4066, %v3455
    %v4075 = vmul.f32 %v4060, %v4067
    %v4076 = vadd.f32 %v4074, %v4075
    %v4077 = vtanh.pop %v4076
    %v4078 = vmul.f32 %v4073, %v4077
    %4079 = vmatprep.subr.mxu0 0.0
    %4080 = vmatpush1.msra.mxu0 %v114
    %4081 = vmatprep.subr.mxu0 0.0
    %4082 = vmatpush1.msra.mxu0 %v115
    %4083 = vmatprep.subr.mxu0 0.0
    %4084 = vmatpush1.msra.mxu0 %v116
    %4085 = vmatprep.subr.mxu0 0.0
    %4086 = vmatpush1.msra.mxu0 %v117
    %4087 = vmatprep.subr.mxu0 0.0
    %4088 = vmatpush1.msra.mxu0 %v118
    %4089 = vmatprep.subr.mxu0 0.0
    %4090 = vmatpush1.msra.mxu0 %v119
    %4091 = vmatprep.subr.mxu0 0.0
    %4092 = vmatpush1.msra.mxu0 %v120
    %4093 = vmatprep.subr.mxu0 0.0
    %4094 = vmatpush1.msra.mxu0 %v121
    %4095 = vmatprep.subr.mxu0 0.0
    %4096 = vmatpush1.msra.mxu0 %v122
    %4097 = vmatprep.subr.mxu0 0.0
    %4098 = vmatpush1.msra.mxu0 %v123
    %4099 = vmatprep.subr.mxu0 0.0
    %4100 = vmatpush1.msra.mxu0 %v124
    %4101 = vmatprep.subr.mxu0 0.0
    %4102 = vmatpush1.msra.mxu0 %v125
    %4103 = vmatprep.subr.mxu0 0.0
    %4104 = vmatpush1.msra.mxu0 %v126
    %4105 = vmatprep.subr.mxu0 0.0
    %4106 = vmatpush1.msra.mxu0 %v127
    %4107 = vmatprep.subr.mxu0 0.0
    %4108 = vmatpush1.msra.mxu0 %v128
    %4109 = vmatprep.subr.mxu0 0.0
    %4110 = vmatpush1.msra.mxu0 %v129
    %4111 = vmatprep.subr.mxu0 0.0
    %4112 = vmatpush1.msra.mxu0 0.0
    %4113 = vmatprep.subr.mxu0 0.0
    %4114 = vmatpush1.msra.mxu0 0.0
    %4115 = vmatprep.subr.mxu0 0.0
    %4116 = vmatpush1.msra.mxu0 0.0
    %4117 = vmatprep.subr.mxu0 0.0
    %4118 = vmatpush1.msra.mxu0 0.0
    %4119 = vmatprep.subr.mxu0 0.0
    %4120 = vmatpush1.msra.mxu0 0.0
    %4121 = vmatprep.subr.mxu0 0.0
    %4122 = vmatpush1.msra.mxu0 0.0
    %4123 = vmatprep.subr.mxu0 0.0
    %4124 = vmatpush1.msra.mxu0 0.0
    %4125 = vmatprep.subr.mxu0 0.0
    %4126 = vmatpush1.msra.mxu0 0.0
    %4127 = vmatprep.subr.mxu0 0.0
    %4128 = vmatpush1.msra.mxu0 0.0
    %4129 = vmatprep.subr.mxu0 0.0
    %4130 = vmatpush1.msra.mxu0 0.0
    %4131 = vmatprep.subr.mxu0 0.0
    %4132 = vmatpush1.msra.mxu0 0.0
    %4133 = vmatprep.subr.mxu0 0.0
    %4134 = vmatpush1.msra.mxu0 0.0
    %4135 = vmatprep.subr.mxu0 0.0
    %4136 = vmatpush1.msra.mxu0 0.0
    %4137 = vmatprep.subr.mxu0 0.0
    %4138 = vmatpush1.msra.mxu0 0.0
    %4139 = vmatprep.subr.mxu0 0.0
    %4140 = vmatpush1.msra.mxu0 0.0
    %4141 = vmatprep.subr.mxu0 0.0
    %4142 = vmatpush1.msra.mxu0 0.0
    %4143 = vmatprep.mubr.f32.mxu0 0.0
    %4144 = vmatmul.mubr.f32.gmra.mrb[0].mxu0 %v4078
    %v4145 = vpop.f32.mrb[0].mxu0
    %v4146 = vadd.f32 %v421, %v4145
    %v4147 = vpop.f32.mrb[0].mxu0
    %4148 = vdwg.mxu0
    %v4149 = vmax.f32 %v4146, 0.0
    %4150 = vmatprep.subr.mxu0 0.0
    %4151 = vmatpush1.msra.mxu0 %v130
    %4152 = vmatprep.subr.mxu0 0.0
    %4153 = vmatpush1.msra.mxu0 %v131
    %4154 = vmatprep.subr.mxu0 0.0
    %4155 = vmatpush1.msra.mxu0 %v132
    %4156 = vmatprep.subr.mxu0 0.0
    %4157 = vmatpush1.msra.mxu0 %v133
    %4158 = vmatprep.subr.mxu0 0.0
    %4159 = vmatpush1.msra.mxu0 %v134
    %4160 = vmatprep.subr.mxu0 0.0
    %4161 = vmatpush1.msra.mxu0 %v135
    %4162 = vmatprep.subr.mxu0 0.0
    %4163 = vmatpush1.msra.mxu0 %v136
    %4164 = vmatprep.subr.mxu0 0.0
    %4165 = vmatpush1.msra.mxu0 %v137
    %4166 = vmatprep.subr.mxu0 0.0
    %4167 = vmatpush1.msra.mxu0 %v138
    %4168 = vmatprep.subr.mxu0 0.0
    %4169 = vmatpush1.msra.mxu0 %v139
    %4170 = vmatprep.subr.mxu0 0.0
    %4171 = vmatpush1.msra.mxu0 %v140
    %4172 = vmatprep.subr.mxu0 0.0
    %4173 = vmatpush1.msra.mxu0 %v141
    %4174 = vmatprep.subr.mxu0 0.0
    %4175 = vmatpush1.msra.mxu0 %v142
    %4176 = vmatprep.subr.mxu0 0.0
    %4177 = vmatpush1.msra.mxu0 %v143
    %4178 = vmatprep.subr.mxu0 0.0
    %4179 = vmatpush1.msra.mxu0 %v144
    %4180 = vmatprep.subr.mxu0 0.0
    %4181 = vmatpush1.msra.mxu0 %v145
    %4182 = vmatprep.subr.mxu0 0.0
    %4183 = vmatpush1.msra.mxu0 0.0
    %4184 = vmatprep.subr.mxu0 0.0
    %4185 = vmatpush1.msra.mxu0 0.0
    %4186 = vmatprep.subr.mxu0 0.0
    %4187 = vmatpush1.msra.mxu0 0.0
    %4188 = vmatprep.subr.mxu0 0.0
    %4189 = vmatpush1.msra.mxu0 0.0
    %4190 = vmatprep.subr.mxu0 0.0
    %4191 = vmatpush1.msra.mxu0 0.0
    %4192 = vmatprep.subr.mxu0 0.0
    %4193 = vmatpush1.msra.mxu0 0.0
    %4194 = vmatprep.subr.mxu0 0.0
    %4195 = vmatpush1.msra.mxu0 0.0
    %4196 = vmatprep.subr.mxu0 0.0
    %4197 = vmatpush1.msra.mxu0 0.0
    %4198 = vmatprep.subr.mxu0 0.0
    %4199 = vmatpush1.msra.mxu0 0.0
    %4200 = vmatprep.subr.mxu0 0.0
    %4201 = vmatpush1.msra.mxu0 0.0
    %4202 = vmatprep.subr.mxu0 0.0
    %4203 = vmatpush1.msra.mxu0 0.0
    %4204 = vmatprep.subr.mxu0 0.0
    %4205 = vmatpush1.msra.mxu0 0.0
    %4206 = vmatprep.subr.mxu0 0.0
    %4207 = vmatpush1.msra.mxu0 0.0
    %4208 = vmatprep.subr.mxu0 0.0
    %4209 = vmatpush1.msra.mxu0 0.0
    %4210 = vmatprep.subr.mxu0 0.0
    %4211 = vmatpush1.msra.mxu0 0.0
    %4212 = vmatprep.subr.mxu0 0.0
    %4213 = vmatpush1.msra.mxu0 0.0
    %4214 = vmatprep.mubr.f32.mxu0 0.0
    %4215 = vmatmul.mubr.f32.gmra.mrb[0].mxu0 %v4149
    %v4216 = vpop.f32.mrb[0].mxu0
    %v4217 = vadd.f32 %v428, %v4216
    %v4218 = vpop.f32.mrb[0].mxu0
    %4219 = vdwg.mxu0
    %v4220 = vadd.f32 %v4217, %v3599
    %s4221 = scalar_lea.vmem [#allocation10], 40
    %4222 = vst.msk [vmem:[%s4221] sm:$0xff] %vm439, %v4220
    %s4223 = sld [smem:[#allocation2 + $0x3]]
    %p4224 = scmp.gt.s32.totalorder %s4223, 0
    %s4225 = scalar_lea.vmem [#allocation6], 24
    %v4226 = vld [vmem:[%s4225] sm:$0xff]
    %s4227 = scalar_select %p4224, 1, 0
    %v4228 = vstv %s4227
    %vm4229 = vcmp.eq.s32.totalorder %v4228, 1
    %v4230 = vsel %vm4229, %v4226, %v3599
    %v4232 = vsel %vm439, %v4230, 0
    %4234 = vmatprep.subr.mxu0 0.0
    %4235 = vmatpush1.msra.mxu0 %v96
    %4236 = vmatprep.subr.mxu0 0.0
    %4237 = vmatpush1.msra.mxu0 %v97
    %4238 = vmatprep.subr.mxu0 0.0
    %4239 = vmatpush1.msra.mxu0 0.0
    %4240 = vmatprep.subr.mxu0 0.0
    %4241 = vmatpush1.msra.mxu0 0.0
    %4242 = vmatprep.subr.mxu0 0.0
    %4243 = vmatpush1.msra.mxu0 0.0
    %4244 = vmatprep.subr.mxu0 0.0
    %4245 = vmatpush1.msra.mxu0 0.0
    %4246 = vmatprep.subr.mxu0 0.0
    %4247 = vmatpush1.msra.mxu0 0.0
    %4248 = vmatprep.subr.mxu0 0.0
    %4249 = vmatpush1.msra.mxu0 0.0
    %4250 = vmatprep.subr.mxu0 0.0
    %4251 = vmatpush1.msra.mxu0 0.0
    %4252 = vmatprep.subr.mxu0 0.0
    %4253 = vmatpush1.msra.mxu0 0.0
    %4254 = vmatprep.subr.mxu0 0.0
    %4255 = vmatpush1.msra.mxu0 0.0
    %4256 = vmatprep.subr.mxu0 0.0
    %4257 = vmatpush1.msra.mxu0 0.0
    %4258 = vmatprep.subr.mxu0 0.0
    %4259 = vmatpush1.msra.mxu0 0.0
    %4260 = vmatprep.subr.mxu0 0.0
    %4261 = vmatpush1.msra.mxu0 0.0
    %4262 = vmatprep.subr.mxu0 0.0
    %4263 = vmatpush1.msra.mxu0 0.0
    %4264 = vmatprep.subr.mxu0 0.0
    %4265 = vmatpush1.msra.mxu0 0.0
    %4266 = vmatprep.subr.mxu0 0.0
    %4267 = vmatpush1.msra.mxu0 0.0
    %4268 = vmatprep.subr.mxu0 0.0
    %4269 = vmatpush1.msra.mxu0 0.0
    %4270 = vmatprep.subr.mxu0 0.0
    %4271 = vmatpush1.msra.mxu0 0.0
    %4272 = vmatprep.subr.mxu0 0.0
    %4273 = vmatpush1.msra.mxu0 0.0
    %4274 = vmatprep.subr.mxu0 0.0
    %4275 = vmatpush1.msra.mxu0 0.0
    %4276 = vmatprep.subr.mxu0 0.0
    %4277 = vmatpush1.msra.mxu0 0.0
    %4278 = vmatprep.subr.mxu0 0.0
    %4279 = vmatpush1.msra.mxu0 0.0
    %4280 = vmatprep.subr.mxu0 0.0
    %4281 = vmatpush1.msra.mxu0 0.0
    %4282 = vmatprep.subr.mxu0 0.0
    %4283 = vmatpush1.msra.mxu0 0.0
    %4284 = vmatprep.subr.mxu0 0.0
    %4285 = vmatpush1.msra.mxu0 0.0
    %4286 = vmatprep.subr.mxu0 0.0
    %4287 = vmatpush1.msra.mxu0 0.0
    %4288 = vmatprep.subr.mxu0 0.0
    %4289 = vmatpush1.msra.mxu0 0.0
    %4290 = vmatprep.subr.mxu0 0.0
    %4291 = vmatpush1.msra.mxu0 0.0
    %4292 = vmatprep.subr.mxu0 0.0
    %4293 = vmatpush1.msra.mxu0 0.0
    %4294 = vmatprep.subr.mxu0 0.0
    %4295 = vmatpush1.msra.mxu0 0.0
    %4296 = vmatprep.subr.mxu0 0.0
    %4297 = vmatpush1.msra.mxu0 0.0
    %4298 = vmatprep.mubr.f32.mxu0 0.0
    %4299 = vmatmul.mubr.f32.gmra.mrb[0].mxu0 %v4232
    %v4300 = vpop.f32.mrb[0].mxu0
    %v4301 = vadd.f32 %v407, %v4300
    %v4302 = vpop.f32.mrb[0].mxu0
    %4303 = vdwg.mxu0
    %v4304 = vmax.f32 %v4301, 0.0
    %4305 = vmatprep.subr.mxu0 0.0
    %4306 = vmatpush1.msra.mxu0 %v98
    %4307 = vmatprep.subr.mxu0 0.0
    %4308 = vmatpush1.msra.mxu0 %v99
    %4309 = vmatprep.subr.mxu0 0.0
    %4310 = vmatpush1.msra.mxu0 %v100
    %4311 = vmatprep.subr.mxu0 0.0
    %4312 = vmatpush1.msra.mxu0 %v101
    %4313 = vmatprep.subr.mxu0 0.0
    %4314 = vmatpush1.msra.mxu0 %v102
    %4315 = vmatprep.subr.mxu0 0.0
    %4316 = vmatpush1.msra.mxu0 %v103
    %4317 = vmatprep.subr.mxu0 0.0
    %4318 = vmatpush1.msra.mxu0 %v104
    %4319 = vmatprep.subr.mxu0 0.0
    %4320 = vmatpush1.msra.mxu0 %v105
    %4321 = vmatprep.subr.mxu0 0.0
    %4322 = vmatpush1.msra.mxu0 %v106
    %4323 = vmatprep.subr.mxu0 0.0
    %4324 = vmatpush1.msra.mxu0 %v107
    %4325 = vmatprep.subr.mxu0 0.0
    %4326 = vmatpush1.msra.mxu0 %v108
    %4327 = vmatprep.subr.mxu0 0.0
    %4328 = vmatpush1.msra.mxu0 %v109
    %4329 = vmatprep.subr.mxu0 0.0
    %4330 = vmatpush1.msra.mxu0 %v110
    %4331 = vmatprep.subr.mxu0 0.0
    %4332 = vmatpush1.msra.mxu0 %v111
    %4333 = vmatprep.subr.mxu0 0.0
    %4334 = vmatpush1.msra.mxu0 %v112
    %4335 = vmatprep.subr.mxu0 0.0
    %4336 = vmatpush1.msra.mxu0 %v113
    %4337 = vmatprep.subr.mxu0 0.0
    %4338 = vmatpush1.msra.mxu0 0.0
    %4339 = vmatprep.subr.mxu0 0.0
    %4340 = vmatpush1.msra.mxu0 0.0
    %4341 = vmatprep.subr.mxu0 0.0
    %4342 = vmatpush1.msra.mxu0 0.0
    %4343 = vmatprep.subr.mxu0 0.0
    %4344 = vmatpush1.msra.mxu0 0.0
    %4345 = vmatprep.subr.mxu0 0.0
    %4346 = vmatpush1.msra.mxu0 0.0
    %4347 = vmatprep.subr.mxu0 0.0
    %4348 = vmatpush1.msra.mxu0 0.0
    %4349 = vmatprep.subr.mxu0 0.0
    %4350 = vmatpush1.msra.mxu0 0.0
    %4351 = vmatprep.subr.mxu0 0.0
    %4352 = vmatpush1.msra.mxu0 0.0
    %4353 = vmatprep.subr.mxu0 0.0
    %4354 = vmatpush1.msra.mxu0 0.0
    %4355 = vmatprep.subr.mxu0 0.0
    %4356 = vmatpush1.msra.mxu0 0.0
    %4357 = vmatprep.subr.mxu0 0.0
    %4358 = vmatpush1.msra.mxu0 0.0
    %4359 = vmatprep.subr.mxu0 0.0
    %4360 = vmatpush1.msra.mxu0 0.0
    %4361 = vmatprep.subr.mxu0 0.0
    %4362 = vmatpush1.msra.mxu0 0.0
    %4363 = vmatprep.subr.mxu0 0.0
    %4364 = vmatpush1.msra.mxu0 0.0
    %4365 = vmatprep.subr.mxu0 0.0
    %4366 = vmatpush1.msra.mxu0 0.0
    %4367 = vmatprep.subr.mxu0 0.0
    %4368 = vmatpush1.msra.mxu0 0.0
    %4369 = vmatprep.mubr.f32.mxu0 0.0
    %4370 = vmatmul.mubr.f32.gmra.mrb[0].mxu0 %v4304
    %v4371 = vpop.f32.mrb[0].mxu0
    %v4372 = vadd.f32 %v414, %v4371
    %v4373 = vpop.f32.mrb[0].mxu0
    %4374 = vdwg.mxu0
    %v4375 = vmax.f32 %v4372, 0.0
    %4376 = vmatprep.subr.mxu0 %v147
    %4377 = vmatpush1.msra.mxu0 %v146
    %4378 = vmatprep.subr.mxu0 %v151
    %4379 = vmatpush1.msra.mxu0 %v150
    %4380 = vmatprep.subr.mxu0 %v155
    %4381 = vmatpush1.msra.mxu0 %v154
    %4382 = vmatprep.subr.mxu0 %v159
    %4383 = vmatpush1.msra.mxu0 %v158
    %4384 = vmatprep.subr.mxu0 %v163
    %4385 = vmatpush1.msra.mxu0 %v162
    %4386 = vmatprep.subr.mxu0 %v167
    %4387 = vmatpush1.msra.mxu0 %v166
    %4388 = vmatprep.subr.mxu0 %v171
    %4389 = vmatpush1.msra.mxu0 %v170
    %4390 = vmatprep.subr.mxu0 %v175
    %4391 = vmatpush1.msra.mxu0 %v174
    %4392 = vmatprep.subr.mxu0 %v179
    %4393 = vmatpush1.msra.mxu0 %v178
    %4394 = vmatprep.subr.mxu0 %v183
    %4395 = vmatpush1.msra.mxu0 %v182
    %4396 = vmatprep.subr.mxu0 %v187
    %4397 = vmatpush1.msra.mxu0 %v186
    %4398 = vmatprep.subr.mxu0 %v191
    %4399 = vmatpush1.msra.mxu0 %v190
    %4400 = vmatprep.subr.mxu0 %v195
    %4401 = vmatpush1.msra.mxu0 %v194
    %4402 = vmatprep.subr.mxu0 %v199
    %4403 = vmatpush1.msra.mxu0 %v198
    %4404 = vmatprep.subr.mxu0 %v203
    %4405 = vmatpush1.msra.mxu0 %v202
    %4406 = vmatprep.subr.mxu0 %v207
    %4407 = vmatpush1.msra.mxu0 %v206
    %4408 = vmatprep.subr.mxu0 %v211
    %4409 = vmatpush1.msra.mxu0 %v210
    %4410 = vmatprep.subr.mxu0 %v215
    %4411 = vmatpush1.msra.mxu0 %v214
    %4412 = vmatprep.subr.mxu0 %v219
    %4413 = vmatpush1.msra.mxu0 %v218
    %4414 = vmatprep.subr.mxu0 %v223
    %4415 = vmatpush1.msra.mxu0 %v222
    %4416 = vmatprep.subr.mxu0 %v227
    %4417 = vmatpush1.msra.mxu0 %v226
    %4418 = vmatprep.subr.mxu0 %v231
    %4419 = vmatpush1.msra.mxu0 %v230
    %4420 = vmatprep.subr.mxu0 %v235
    %4421 = vmatpush1.msra.mxu0 %v234
    %4422 = vmatprep.subr.mxu0 %v239
    %4423 = vmatpush1.msra.mxu0 %v238
    %4424 = vmatprep.subr.mxu0 %v243
    %4425 = vmatpush1.msra.mxu0 %v242
    %4426 = vmatprep.subr.mxu0 %v247
    %4427 = vmatpush1.msra.mxu0 %v246
    %4428 = vmatprep.subr.mxu0 %v251
    %4429 = vmatpush1.msra.mxu0 %v250
    %4430 = vmatprep.subr.mxu0 %v255
    %4431 = vmatpush1.msra.mxu0 %v254
    %4432 = vmatprep.subr.mxu0 %v259
    %4433 = vmatpush1.msra.mxu0 %v258
    %4434 = vmatprep.subr.mxu0 %v263
    %4435 = vmatpush1.msra.mxu0 %v262
    %4436 = vmatprep.subr.mxu0 %v267
    %4437 = vmatpush1.msra.mxu0 %v266
    %4438 = vmatprep.subr.mxu0 %v271
    %4439 = vmatpush1.msra.mxu0 %v270
    %4440 = vmatprep.mubr.f32.mxu0 %v3291
    %4441 = vmatmul.mubr.f32.gmra.mrb[0].mxu0 %v4375
    %v4442 = vpop.f32.mrb[0].mxu0
    %v4443 = vadd.f32 %v589, %v4442
    %v4444 = vpop.f32.mrb[0].mxu0
    %v4445 = vadd.f32 %v593, %v4444
    %4446 = vdwg.mxu0
    %4447 = vmatprep.subr.mxu0 %v149
    %4448 = vmatpush1.msra.mxu0 %v148
    %4449 = vmatprep.subr.mxu0 %v153
    %4450 = vmatpush1.msra.mxu0 %v152
    %4451 = vmatprep.subr.mxu0 %v157
    %4452 = vmatpush1.msra.mxu0 %v156
    %4453 = vmatprep.subr.mxu0 %v161
    %4454 = vmatpush1.msra.mxu0 %v160
    %4455 = vmatprep.subr.mxu0 %v165
    %4456 = vmatpush1.msra.mxu0 %v164
    %4457 = vmatprep.subr.mxu0 %v169
    %4458 = vmatpush1.msra.mxu0 %v168
    %4459 = vmatprep.subr.mxu0 %v173
    %4460 = vmatpush1.msra.mxu0 %v172
    %4461 = vmatprep.subr.mxu0 %v177
    %4462 = vmatpush1.msra.mxu0 %v176
    %4463 = vmatprep.subr.mxu0 %v181
    %4464 = vmatpush1.msra.mxu0 %v180
    %4465 = vmatprep.subr.mxu0 %v185
    %4466 = vmatpush1.msra.mxu0 %v184
    %4467 = vmatprep.subr.mxu0 %v189
    %4468 = vmatpush1.msra.mxu0 %v188
    %4469 = vmatprep.subr.mxu0 %v193
    %4470 = vmatpush1.msra.mxu0 %v192
    %4471 = vmatprep.subr.mxu0 %v197
    %4472 = vmatpush1.msra.mxu0 %v196
    %4473 = vmatprep.subr.mxu0 %v201
    %4474 = vmatpush1.msra.mxu0 %v200
    %4475 = vmatprep.subr.mxu0 %v205
    %4476 = vmatpush1.msra.mxu0 %v204
    %4477 = vmatprep.subr.mxu0 %v209
    %4478 = vmatpush1.msra.mxu0 %v208
    %4479 = vmatprep.subr.mxu0 %v213
    %4480 = vmatpush1.msra.mxu0 %v212
    %4481 = vmatprep.subr.mxu0 %v217
    %4482 = vmatpush1.msra.mxu0 %v216
    %4483 = vmatprep.subr.mxu0 %v221
    %4484 = vmatpush1.msra.mxu0 %v220
    %4485 = vmatprep.subr.mxu0 %v225
    %4486 = vmatpush1.msra.mxu0 %v224
    %4487 = vmatprep.subr.mxu0 %v229
    %4488 = vmatpush1.msra.mxu0 %v228
    %4489 = vmatprep.subr.mxu0 %v233
    %4490 = vmatpush1.msra.mxu0 %v232
    %4491 = vmatprep.subr.mxu0 %v237
    %4492 = vmatpush1.msra.mxu0 %v236
    %4493 = vmatprep.subr.mxu0 %v241
    %4494 = vmatpush1.msra.mxu0 %v240
    %4495 = vmatprep.subr.mxu0 %v245
    %4496 = vmatpush1.msra.mxu0 %v244
    %4497 = vmatprep.subr.mxu0 %v249
    %4498 = vmatpush1.msra.mxu0 %v248
    %4499 = vmatprep.subr.mxu0 %v253
    %4500 = vmatpush1.msra.mxu0 %v252
    %4501 = vmatprep.subr.mxu0 %v257
    %4502 = vmatpush1.msra.mxu0 %v256
    %4503 = vmatprep.subr.mxu0 %v261
    %4504 = vmatpush1.msra.mxu0 %v260
    %4505 = vmatprep.subr.mxu0 %v265
    %4506 = vmatpush1.msra.mxu0 %v264
    %4507 = vmatprep.subr.mxu0 %v269
    %4508 = vmatpush1.msra.mxu0 %v268
    %4509 = vmatprep.subr.mxu0 %v273
    %4510 = vmatpush1.msra.mxu0 %v272
    %4511 = vmatprep.mubr.f32.mxu0 %v3291
    %4512 = vmatmul.mubr.f32.gmra.mrb[0].mxu0 %v4375
    %v4513 = vpop.f32.mrb[0].mxu0
    %v4514 = vadd.f32 %v597, %v4513
    %v4515 = vpop.f32.mrb[0].mxu0
    %v4516 = vadd.f32 %v601, %v4515
    %4517 = vdwg.mxu0
    %v4518 = vxor.u32 %v4443, 2147483648
    %v4519 = vmul.f32 %v4518, 1.442695
    %v4520 = vpow.pop %v4519
    %v4521 = vadd.f32 %v4520, 1.0
    %v4522 = vrcp.pop %v4521
    %v4523 = vmul.f32 1.0, %v4522
    %v4524 = vxor.u32 %v4445, 2147483648
    %v4525 = vmul.f32 %v4524, 1.442695
    %v4526 = vpow.pop %v4525
    %v4527 = vadd.f32 %v4526, 1.0
    %v4528 = vrcp.pop %v4527
    %v4529 = vmul.f32 1.0, %v4528
    %v4530 = vtanh.pop %v4514
    %v4531 = vxor.u32 %v4516, 2147483648
    %v4532 = vmul.f32 %v4531, 1.442695
    %v4533 = vpow.pop %v4532
    %v4534 = vadd.f32 %v4533, 1.0
    %v4535 = vrcp.pop %v4534
    %v4536 = vmul.f32 1.0, %v4535
    %v4537 = vmul.f32 %v4529, %v3289
    %v4538 = vmul.f32 %v4523, %v4530
    %v4539 = vadd.f32 %v4537, %v4538
    %v4540 = vtanh.pop %v4539
    %v4541 = vmul.f32 %v4536, %v4540
    %4542 = vmatprep.subr.mxu0 %v275
    %4543 = vmatpush1.msra.mxu0 %v274
    %4544 = vmatprep.subr.mxu0 %v279
    %4545 = vmatpush1.msra.mxu0 %v278
    %4546 = vmatprep.subr.mxu0 %v283
    %4547 = vmatpush1.msra.mxu0 %v282
    %4548 = vmatprep.subr.mxu0 %v287
    %4549 = vmatpush1.msra.mxu0 %v286
    %4550 = vmatprep.subr.mxu0 %v291
    %4551 = vmatpush1.msra.mxu0 %v290
    %4552 = vmatprep.subr.mxu0 %v295
    %4553 = vmatpush1.msra.mxu0 %v294
    %4554 = vmatprep.subr.mxu0 %v299
    %4555 = vmatpush1.msra.mxu0 %v298
    %4556 = vmatprep.subr.mxu0 %v303
    %4557 = vmatpush1.msra.mxu0 %v302
    %4558 = vmatprep.subr.mxu0 %v307
    %4559 = vmatpush1.msra.mxu0 %v306
    %4560 = vmatprep.subr.mxu0 %v311
    %4561 = vmatpush1.msra.mxu0 %v310
    %4562 = vmatprep.subr.mxu0 %v315
    %4563 = vmatpush1.msra.mxu0 %v314
    %4564 = vmatprep.subr.mxu0 %v319
    %4565 = vmatpush1.msra.mxu0 %v318
    %4566 = vmatprep.subr.mxu0 %v323
    %4567 = vmatpush1.msra.mxu0 %v322
    %4568 = vmatprep.subr.mxu0 %v327
    %4569 = vmatpush1.msra.mxu0 %v326
    %4570 = vmatprep.subr.mxu0 %v331
    %4571 = vmatpush1.msra.mxu0 %v330
    %4572 = vmatprep.subr.mxu0 %v335
    %4573 = vmatpush1.msra.mxu0 %v334
    %4574 = vmatprep.subr.mxu0 %v339
    %4575 = vmatpush1.msra.mxu0 %v338
    %4576 = vmatprep.subr.mxu0 %v343
    %4577 = vmatpush1.msra.mxu0 %v342
    %4578 = vmatprep.subr.mxu0 %v347
    %4579 = vmatpush1.msra.mxu0 %v346
    %4580 = vmatprep.subr.mxu0 %v351
    %4581 = vmatpush1.msra.mxu0 %v350
    %4582 = vmatprep.subr.mxu0 %v355
    %4583 = vmatpush1.msra.mxu0 %v354
    %4584 = vmatprep.subr.mxu0 %v359
    %4585 = vmatpush1.msra.mxu0 %v358
    %4586 = vmatprep.subr.mxu0 %v363
    %4587 = vmatpush1.msra.mxu0 %v362
    %4588 = vmatprep.subr.mxu0 %v367
    %4589 = vmatpush1.msra.mxu0 %v366
    %4590 = vmatprep.subr.mxu0 %v371
    %4591 = vmatpush1.msra.mxu0 %v370
    %4592 = vmatprep.subr.mxu0 %v375
    %4593 = vmatpush1.msra.mxu0 %v374
    %4594 = vmatprep.subr.mxu0 %v379
    %4595 = vmatpush1.msra.mxu0 %v378
    %4596 = vmatprep.subr.mxu0 %v383
    %4597 = vmatpush1.msra.mxu0 %v382
    %4598 = vmatprep.subr.mxu0 %v387
    %4599 = vmatpush1.msra.mxu0 %v386
    %4600 = vmatprep.subr.mxu0 %v391
    %4601 = vmatpush1.msra.mxu0 %v390
    %4602 = vmatprep.subr.mxu0 %v395
    %4603 = vmatpush1.msra.mxu0 %v394
    %4604 = vmatprep.subr.mxu0 %v399
    %4605 = vmatpush1.msra.mxu0 %v398
    %4606 = vmatprep.mubr.f32.mxu0 %v3457
    %4607 = vmatmul.mubr.f32.gmra.mrb[0].mxu0 %v4541
    %v4608 = vpop.f32.mrb[0].mxu0
    %v4609 = vadd.f32 %v776, %v4608
    %v4610 = vpop.f32.mrb[0].mxu0
    %v4611 = vadd.f32 %v780, %v4610
    %4612 = vdwg.mxu0
    %4613 = vmatprep.subr.mxu0 %v277
    %4614 = vmatpush1.msra.mxu0 %v276
    %4615 = vmatprep.subr.mxu0 %v281
    %4616 = vmatpush1.msra.mxu0 %v280
    %4617 = vmatprep.subr.mxu0 %v285
    %4618 = vmatpush1.msra.mxu0 %v284
    %4619 = vmatprep.subr.mxu0 %v289
    %4620 = vmatpush1.msra.mxu0 %v288
    %4621 = vmatprep.subr.mxu0 %v293
    %4622 = vmatpush1.msra.mxu0 %v292
    %4623 = vmatprep.subr.mxu0 %v297
    %4624 = vmatpush1.msra.mxu0 %v296
    %4625 = vmatprep.subr.mxu0 %v301
    %4626 = vmatpush1.msra.mxu0 %v300
    %4627 = vmatprep.subr.mxu0 %v305
    %4628 = vmatpush1.msra.mxu0 %v304
    %4629 = vmatprep.subr.mxu0 %v309
    %4630 = vmatpush1.msra.mxu0 %v308
    %4631 = vmatprep.subr.mxu0 %v313
    %4632 = vmatpush1.msra.mxu0 %v312
    %4633 = vmatprep.subr.mxu0 %v317
    %4634 = vmatpush1.msra.mxu0 %v316
    %4635 = vmatprep.subr.mxu0 %v321
    %4636 = vmatpush1.msra.mxu0 %v320
    %4637 = vmatprep.subr.mxu0 %v325
    %4638 = vmatpush1.msra.mxu0 %v324
    %4639 = vmatprep.subr.mxu0 %v329
    %4640 = vmatpush1.msra.mxu0 %v328
    %4641 = vmatprep.subr.mxu0 %v333
    %4642 = vmatpush1.msra.mxu0 %v332
    %4643 = vmatprep.subr.mxu0 %v337
    %4644 = vmatpush1.msra.mxu0 %v336
    %4645 = vmatprep.subr.mxu0 %v341
    %4646 = vmatpush1.msra.mxu0 %v340
    %4647 = vmatprep.subr.mxu0 %v345
    %4648 = vmatpush1.msra.mxu0 %v344
    %4649 = vmatprep.subr.mxu0 %v349
    %4650 = vmatpush1.msra.mxu0 %v348
    %4651 = vmatprep.subr.mxu0 %v353
    %4652 = vmatpush1.msra.mxu0 %v352
    %4653 = vmatprep.subr.mxu0 %v357
    %4654 = vmatpush1.msra.mxu0 %v356
    %4655 = vmatprep.subr.mxu0 %v361
    %4656 = vmatpush1.msra.mxu0 %v360
    %4657 = vmatprep.subr.mxu0 %v365
    %4658 = vmatpush1.msra.mxu0 %v364
    %4659 = vmatprep.subr.mxu0 %v369
    %4660 = vmatpush1.msra.mxu0 %v368
    %4661 = vmatprep.subr.mxu0 %v373
    %4662 = vmatpush1.msra.mxu0 %v372
    %4663 = vmatprep.subr.mxu0 %v377
    %4664 = vmatpush1.msra.mxu0 %v376
    %4665 = vmatprep.subr.mxu0 %v381
    %4666 = vmatpush1.msra.mxu0 %v380
    %4667 = vmatprep.subr.mxu0 %v385
    %4668 = vmatpush1.msra.mxu0 %v384
    %4669 = vmatprep.subr.mxu0 %v389
    %4670 = vmatpush1.msra.mxu0 %v388
    %4671 = vmatprep.subr.mxu0 %v393
    %4672 = vmatpush1.msra.mxu0 %v392
    %4673 = vmatprep.subr.mxu0 %v397
    %4674 = vmatpush1.msra.mxu0 %v396
    %4675 = vmatprep.subr.mxu0 %v401
    %4676 = vmatpush1.msra.mxu0 %v400
    %4677 = vmatprep.mubr.f32.mxu0 %v3457
    %4678 = vmatmul.mubr.f32.gmra.mrb[0].mxu0 %v4541
    %v4679 = vpop.f32.mrb[0].mxu0
    %v4680 = vadd.f32 %v784, %v4679
    %v4681 = vpop.f32.mrb[0].mxu0
    %v4682 = vadd.f32 %v788, %v4681
    %4683 = vdwg.mxu0
    %v4684 = vxor.u32 %v4609, 2147483648
    %v4685 = vmul.f32 %v4684, 1.442695
    %v4686 = vpow.pop %v4685
    %v4687 = vadd.f32 %v4686, 1.0
    %v4688 = vrcp.pop %v4687
    %v4689 = vmul.f32 1.0, %v4688
    %v4690 = vxor.u32 %v4611, 2147483648
    %v4691 = vmul.f32 %v4690, 1.442695
    %v4692 = vpow.pop %v4691
    %v4693 = vadd.f32 %v4692, 1.0
    %v4694 = vrcp.pop %v4693
    %v4695 = vmul.f32 1.0, %v4694
    %v4696 = vtanh.pop %v4680
    %v4697 = vxor.u32 %v4682, 2147483648
    %v4698 = vmul.f32 %v4697, 1.442695
    %v4699 = vpow.pop %v4698
    %v4700 = vadd.f32 %v4699, 1.0
    %v4701 = vrcp.pop %v4700
    %v4702 = vmul.f32 1.0, %v4701
    %v4703 = vmul.f32 %v4695, %v3455
    %v4704 = vmul.f32 %v4689, %v4696
    %v4705 = vadd.f32 %v4703, %v4704
    %v4706 = vtanh.pop %v4705
    %v4707 = vmul.f32 %v4702, %v4706
    %4708 = vmatprep.subr.mxu0 0.0
    %4709 = vmatpush1.msra.mxu0 %v114
    %4710 = vmatprep.subr.mxu0 0.0
    %4711 = vmatpush1.msra.mxu0 %v115
    %4712 = vmatprep.subr.mxu0 0.0
    %4713 = vmatpush1.msra.mxu0 %v116
    %4714 = vmatprep.subr.mxu0 0.0
    %4715 = vmatpush1.msra.mxu0 %v117
    %4716 = vmatprep.subr.mxu0 0.0
    %4717 = vmatpush1.msra.mxu0 %v118
    %4718 = vmatprep.subr.mxu0 0.0
    %4719 = vmatpush1.msra.mxu0 %v119
    %4720 = vmatprep.subr.mxu0 0.0
    %4721 = vmatpush1.msra.mxu0 %v120
    %4722 = vmatprep.subr.mxu0 0.0
    %4723 = vmatpush1.msra.mxu0 %v121
    %4724 = vmatprep.subr.mxu0 0.0
    %4725 = vmatpush1.msra.mxu0 %v122
    %4726 = vmatprep.subr.mxu0 0.0
    %4727 = vmatpush1.msra.mxu0 %v123
    %4728 = vmatprep.subr.mxu0 0.0
    %4729 = vmatpush1.msra.mxu0 %v124
    %4730 = vmatprep.subr.mxu0 0.0
    %4731 = vmatpush1.msra.mxu0 %v125
    %4732 = vmatprep.subr.mxu0 0.0
    %4733 = vmatpush1.msra.mxu0 %v126
    %4734 = vmatprep.subr.mxu0 0.0
    %4735 = vmatpush1.msra.mxu0 %v127
    %4736 = vmatprep.subr.mxu0 0.0
    %4737 = vmatpush1.msra.mxu0 %v128
    %4738 = vmatprep.subr.mxu0 0.0
    %4739 = vmatpush1.msra.mxu0 %v129
    %4740 = vmatprep.subr.mxu0 0.0
    %4741 = vmatpush1.msra.mxu0 0.0
    %4742 = vmatprep.subr.mxu0 0.0
    %4743 = vmatpush1.msra.mxu0 0.0
    %4744 = vmatprep.subr.mxu0 0.0
    %4745 = vmatpush1.msra.mxu0 0.0
    %4746 = vmatprep.subr.mxu0 0.0
    %4747 = vmatpush1.msra.mxu0 0.0
    %4748 = vmatprep.subr.mxu0 0.0
    %4749 = vmatpush1.msra.mxu0 0.0
    %4750 = vmatprep.subr.mxu0 0.0
    %4751 = vmatpush1.msra.mxu0 0.0
    %4752 = vmatprep.subr.mxu0 0.0
    %4753 = vmatpush1.msra.mxu0 0.0
    %4754 = vmatprep.subr.mxu0 0.0
    %4755 = vmatpush1.msra.mxu0 0.0
    %4756 = vmatprep.subr.mxu0 0.0
    %4757 = vmatpush1.msra.mxu0 0.0
    %4758 = vmatprep.subr.mxu0 0.0
    %4759 = vmatpush1.msra.mxu0 0.0
    %4760 = vmatprep.subr.mxu0 0.0
    %4761 = vmatpush1.msra.mxu0 0.0
    %4762 = vmatprep.subr.mxu0 0.0
    %4763 = vmatpush1.msra.mxu0 0.0
    %4764 = vmatprep.subr.mxu0 0.0
    %4765 = vmatpush1.msra.mxu0 0.0
    %4766 = vmatprep.subr.mxu0 0.0
    %4767 = vmatpush1.msra.mxu0 0.0
    %4768 = vmatprep.subr.mxu0 0.0
    %4769 = vmatpush1.msra.mxu0 0.0
    %4770 = vmatprep.subr.mxu0 0.0
    %4771 = vmatpush1.msra.mxu0 0.0
    %4772 = vmatprep.mubr.f32.mxu0 0.0
    %4773 = vmatmul.mubr.f32.gmra.mrb[0].mxu0 %v4707
    %v4774 = vpop.f32.mrb[0].mxu0
    %v4775 = vadd.f32 %v421, %v4774
    %v4776 = vpop.f32.mrb[0].mxu0
    %4777 = vdwg.mxu0
    %v4778 = vmax.f32 %v4775, 0.0
    %4779 = vmatprep.subr.mxu0 0.0
    %4780 = vmatpush1.msra.mxu0 %v130
    %4781 = vmatprep.subr.mxu0 0.0
    %4782 = vmatpush1.msra.mxu0 %v131
    %4783 = vmatprep.subr.mxu0 0.0
    %4784 = vmatpush1.msra.mxu0 %v132
    %4785 = vmatprep.subr.mxu0 0.0
    %4786 = vmatpush1.msra.mxu0 %v133
    %4787 = vmatprep.subr.mxu0 0.0
    %4788 = vmatpush1.msra.mxu0 %v134
    %4789 = vmatprep.subr.mxu0 0.0
    %4790 = vmatpush1.msra.mxu0 %v135
    %4791 = vmatprep.subr.mxu0 0.0
    %4792 = vmatpush1.msra.mxu0 %v136
    %4793 = vmatprep.subr.mxu0 0.0
    %4794 = vmatpush1.msra.mxu0 %v137
    %4795 = vmatprep.subr.mxu0 0.0
    %4796 = vmatpush1.msra.mxu0 %v138
    %4797 = vmatprep.subr.mxu0 0.0
    %4798 = vmatpush1.msra.mxu0 %v139
    %4799 = vmatprep.subr.mxu0 0.0
    %4800 = vmatpush1.msra.mxu0 %v140
    %4801 = vmatprep.subr.mxu0 0.0
    %4802 = vmatpush1.msra.mxu0 %v141
    %4803 = vmatprep.subr.mxu0 0.0
    %4804 = vmatpush1.msra.mxu0 %v142
    %4805 = vmatprep.subr.mxu0 0.0
    %4806 = vmatpush1.msra.mxu0 %v143
    %4807 = vmatprep.subr.mxu0 0.0
    %4808 = vmatpush1.msra.mxu0 %v144
    %4809 = vmatprep.subr.mxu0 0.0
    %4810 = vmatpush1.msra.mxu0 %v145
    %4811 = vmatprep.subr.mxu0 0.0
    %4812 = vmatpush1.msra.mxu0 0.0
    %4813 = vmatprep.subr.mxu0 0.0
    %4814 = vmatpush1.msra.mxu0 0.0
    %4815 = vmatprep.subr.mxu0 0.0
    %4816 = vmatpush1.msra.mxu0 0.0
    %4817 = vmatprep.subr.mxu0 0.0
    %4818 = vmatpush1.msra.mxu0 0.0
    %4819 = vmatprep.subr.mxu0 0.0
    %4820 = vmatpush1.msra.mxu0 0.0
    %4821 = vmatprep.subr.mxu0 0.0
    %4822 = vmatpush1.msra.mxu0 0.0
    %4823 = vmatprep.subr.mxu0 0.0
    %4824 = vmatpush1.msra.mxu0 0.0
    %4825 = vmatprep.subr.mxu0 0.0
    %4826 = vmatpush1.msra.mxu0 0.0
    %4827 = vmatprep.subr.mxu0 0.0
    %4828 = vmatpush1.msra.mxu0 0.0
    %4829 = vmatprep.subr.mxu0 0.0
    %4830 = vmatpush1.msra.mxu0 0.0
    %4831 = vmatprep.subr.mxu0 0.0
    %4832 = vmatpush1.msra.mxu0 0.0
    %4833 = vmatprep.subr.mxu0 0.0
    %4834 = vmatpush1.msra.mxu0 0.0
    %4835 = vmatprep.subr.mxu0 0.0
    %4836 = vmatpush1.msra.mxu0 0.0
    %4837 = vmatprep.subr.mxu0 0.0
    %4838 = vmatpush1.msra.mxu0 0.0
    %4839 = vmatprep.subr.mxu0 0.0
    %4840 = vmatpush1.msra.mxu0 0.0
    %4841 = vmatprep.subr.mxu0 0.0
    %4842 = vmatpush1.msra.mxu0 0.0
    %4843 = vmatprep.mubr.f32.mxu0 0.0
    %4844 = vmatmul.mubr.f32.gmra.mrb[0].mxu0 %v4778
    %v4845 = vpop.f32.mrb[0].mxu0
    %v4846 = vadd.f32 %v428, %v4845
    %v4847 = vpop.f32.mrb[0].mxu0
    %4848 = vdwg.mxu0
    %v4849 = vadd.f32 %v4846, %v4230
    %s4850 = scalar_lea.vmem [#allocation10], 48
    %4851 = vst.msk [vmem:[%s4850] sm:$0xff] %vm439, %v4849
    %v4853 = vsel %vm439, %v4849, 0
    %4855 = vmatprep.subr.mxu0 0.0
    %4856 = vmatpush1.msra.mxu0 %v96
    %4857 = vmatprep.subr.mxu0 0.0
    %4858 = vmatpush1.msra.mxu0 %v97
    %4859 = vmatprep.subr.mxu0 0.0
    %4860 = vmatpush1.msra.mxu0 0.0
    %4861 = vmatprep.subr.mxu0 0.0
    %4862 = vmatpush1.msra.mxu0 0.0
    %4863 = vmatprep.subr.mxu0 0.0
    %4864 = vmatpush1.msra.mxu0 0.0
    %4865 = vmatprep.subr.mxu0 0.0
    %4866 = vmatpush1.msra.mxu0 0.0
    %4867 = vmatprep.subr.mxu0 0.0
    %4868 = vmatpush1.msra.mxu0 0.0
    %4869 = vmatprep.subr.mxu0 0.0
    %4870 = vmatpush1.msra.mxu0 0.0
    %4871 = vmatprep.subr.mxu0 0.0
    %4872 = vmatpush1.msra.mxu0 0.0
    %4873 = vmatprep.subr.mxu0 0.0
    %4874 = vmatpush1.msra.mxu0 0.0
    %4875 = vmatprep.subr.mxu0 0.0
    %4876 = vmatpush1.msra.mxu0 0.0
    %4877 = vmatprep.subr.mxu0 0.0
    %4878 = vmatpush1.msra.mxu0 0.0
    %4879 = vmatprep.subr.mxu0 0.0
    %4880 = vmatpush1.msra.mxu0 0.0
    %4881 = vmatprep.subr.mxu0 0.0
    %4882 = vmatpush1.msra.mxu0 0.0
    %4883 = vmatprep.subr.mxu0 0.0
    %4884 = vmatpush1.msra.mxu0 0.0
    %4885 = vmatprep.subr.mxu0 0.0
    %4886 = vmatpush1.msra.mxu0 0.0
    %4887 = vmatprep.subr.mxu0 0.0
    %4888 = vmatpush1.msra.mxu0 0.0
    %4889 = vmatprep.subr.mxu0 0.0
    %4890 = vmatpush1.msra.mxu0 0.0
    %4891 = vmatprep.subr.mxu0 0.0
    %4892 = vmatpush1.msra.mxu0 0.0
    %4893 = vmatprep.subr.mxu0 0.0
    %4894 = vmatpush1.msra.mxu0 0.0
    %4895 = vmatprep.subr.mxu0 0.0
    %4896 = vmatpush1.msra.mxu0 0.0
    %4897 = vmatprep.subr.mxu0 0.0
    %4898 = vmatpush1.msra.mxu0 0.0
    %4899 = vmatprep.subr.mxu0 0.0
    %4900 = vmatpush1.msra.mxu0 0.0
    %4901 = vmatprep.subr.mxu0 0.0
    %4902 = vmatpush1.msra.mxu0 0.0
    %4903 = vmatprep.subr.mxu0 0.0
    %4904 = vmatpush1.msra.mxu0 0.0
    %4905 = vmatprep.subr.mxu0 0.0
    %4906 = vmatpush1.msra.mxu0 0.0
    %4907 = vmatprep.subr.mxu0 0.0
    %4908 = vmatpush1.msra.mxu0 0.0
    %4909 = vmatprep.subr.mxu0 0.0
    %4910 = vmatpush1.msra.mxu0 0.0
    %4911 = vmatprep.subr.mxu0 0.0
    %4912 = vmatpush1.msra.mxu0 0.0
    %4913 = vmatprep.subr.mxu0 0.0
    %4914 = vmatpush1.msra.mxu0 0.0
    %4915 = vmatprep.subr.mxu0 0.0
    %4916 = vmatpush1.msra.mxu0 0.0
    %4917 = vmatprep.subr.mxu0 0.0
    %4918 = vmatpush1.msra.mxu0 0.0
    %4919 = vmatprep.mubr.f32.mxu0 0.0
    %4920 = vmatmul.mubr.f32.gmra.mrb[0].mxu0 %v4853
    %v4921 = vpop.f32.mrb[0].mxu0
    %v4922 = vadd.f32 %v407, %v4921
    %v4923 = vpop.f32.mrb[0].mxu0
    %4924 = vdwg.mxu0
    %v4925 = vmax.f32 %v4922, 0.0
    %4926 = vmatprep.subr.mxu0 0.0
    %4927 = vmatpush1.msra.mxu0 %v98
    %4928 = vmatprep.subr.mxu0 0.0
    %4929 = vmatpush1.msra.mxu0 %v99
    %4930 = vmatprep.subr.mxu0 0.0
    %4931 = vmatpush1.msra.mxu0 %v100
    %4932 = vmatprep.subr.mxu0 0.0
    %4933 = vmatpush1.msra.mxu0 %v101
    %4934 = vmatprep.subr.mxu0 0.0
    %4935 = vmatpush1.msra.mxu0 %v102
    %4936 = vmatprep.subr.mxu0 0.0
    %4937 = vmatpush1.msra.mxu0 %v103
    %4938 = vmatprep.subr.mxu0 0.0
    %4939 = vmatpush1.msra.mxu0 %v104
    %4940 = vmatprep.subr.mxu0 0.0
    %4941 = vmatpush1.msra.mxu0 %v105
    %4942 = vmatprep.subr.mxu0 0.0
    %4943 = vmatpush1.msra.mxu0 %v106
    %4944 = vmatprep.subr.mxu0 0.0
    %4945 = vmatpush1.msra.mxu0 %v107
    %4946 = vmatprep.subr.mxu0 0.0
    %4947 = vmatpush1.msra.mxu0 %v108
    %4948 = vmatprep.subr.mxu0 0.0
    %4949 = vmatpush1.msra.mxu0 %v109
    %4950 = vmatprep.subr.mxu0 0.0
    %4951 = vmatpush1.msra.mxu0 %v110
    %4952 = vmatprep.subr.mxu0 0.0
    %4953 = vmatpush1.msra.mxu0 %v111
    %4954 = vmatprep.subr.mxu0 0.0
    %4955 = vmatpush1.msra.mxu0 %v112
    %4956 = vmatprep.subr.mxu0 0.0
    %4957 = vmatpush1.msra.mxu0 %v113
    %4958 = vmatprep.subr.mxu0 0.0
    %4959 = vmatpush1.msra.mxu0 0.0
    %4960 = vmatprep.subr.mxu0 0.0
    %4961 = vmatpush1.msra.mxu0 0.0
    %4962 = vmatprep.subr.mxu0 0.0
    %4963 = vmatpush1.msra.mxu0 0.0
    %4964 = vmatprep.subr.mxu0 0.0
    %4965 = vmatpush1.msra.mxu0 0.0
    %4966 = vmatprep.subr.mxu0 0.0
    %4967 = vmatpush1.msra.mxu0 0.0
    %4968 = vmatprep.subr.mxu0 0.0
    %4969 = vmatpush1.msra.mxu0 0.0
    %4970 = vmatprep.subr.mxu0 0.0
    %4971 = vmatpush1.msra.mxu0 0.0
    %4972 = vmatprep.subr.mxu0 0.0
    %4973 = vmatpush1.msra.mxu0 0.0
    %4974 = vmatprep.subr.mxu0 0.0
    %4975 = vmatpush1.msra.mxu0 0.0
    %4976 = vmatprep.subr.mxu0 0.0
    %4977 = vmatpush1.msra.mxu0 0.0
    %4978 = vmatprep.subr.mxu0 0.0
    %4979 = vmatpush1.msra.mxu0 0.0
    %4980 = vmatprep.subr.mxu0 0.0
    %4981 = vmatpush1.msra.mxu0 0.0
    %4982 = vmatprep.subr.mxu0 0.0
    %4983 = vmatpush1.msra.mxu0 0.0
    %4984 = vmatprep.subr.mxu0 0.0
    %4985 = vmatpush1.msra.mxu0 0.0
    %4986 = vmatprep.subr.mxu0 0.0
    %4987 = vmatpush1.msra.mxu0 0.0
    %4988 = vmatprep.subr.mxu0 0.0
    %4989 = vmatpush1.msra.mxu0 0.0
    %4990 = vmatprep.mubr.f32.mxu0 0.0
    %4991 = vmatmul.mubr.f32.gmra.mrb[0].mxu0 %v4925
    %v4992 = vpop.f32.mrb[0].mxu0
    %v4993 = vadd.f32 %v414, %v4992
    %v4994 = vpop.f32.mrb[0].mxu0
    %4995 = vdwg.mxu0
    %v4996 = vmax.f32 %v4993, 0.0
    %4997 = vmatprep.subr.mxu0 %v147
    %4998 = vmatpush1.msra.mxu0 %v146
    %4999 = vmatprep.subr.mxu0 %v151
    %5000 = vmatpush1.msra.mxu0 %v150
    %5001 = vmatprep.subr.mxu0 %v155
    %5002 = vmatpush1.msra.mxu0 %v154
    %5003 = vmatprep.subr.mxu0 %v159
    %5004 = vmatpush1.msra.mxu0 %v158
    %5005 = vmatprep.subr.mxu0 %v163
    %5006 = vmatpush1.msra.mxu0 %v162
    %5007 = vmatprep.subr.mxu0 %v167
    %5008 = vmatpush1.msra.mxu0 %v166
    %5009 = vmatprep.subr.mxu0 %v171
    %5010 = vmatpush1.msra.mxu0 %v170
    %5011 = vmatprep.subr.mxu0 %v175
    %5012 = vmatpush1.msra.mxu0 %v174
    %5013 = vmatprep.subr.mxu0 %v179
    %5014 = vmatpush1.msra.mxu0 %v178
    %5015 = vmatprep.subr.mxu0 %v183
    %5016 = vmatpush1.msra.mxu0 %v182
    %5017 = vmatprep.subr.mxu0 %v187
    %5018 = vmatpush1.msra.mxu0 %v186
    %5019 = vmatprep.subr.mxu0 %v191
    %5020 = vmatpush1.msra.mxu0 %v190
    %5021 = vmatprep.subr.mxu0 %v195
    %5022 = vmatpush1.msra.mxu0 %v194
    %5023 = vmatprep.subr.mxu0 %v199
    %5024 = vmatpush1.msra.mxu0 %v198
    %5025 = vmatprep.subr.mxu0 %v203
    %5026 = vmatpush1.msra.mxu0 %v202
    %5027 = vmatprep.subr.mxu0 %v207
    %5028 = vmatpush1.msra.mxu0 %v206
    %5029 = vmatprep.subr.mxu0 %v211
    %5030 = vmatpush1.msra.mxu0 %v210
    %5031 = vmatprep.subr.mxu0 %v215
    %5032 = vmatpush1.msra.mxu0 %v214
    %5033 = vmatprep.subr.mxu0 %v219
    %5034 = vmatpush1.msra.mxu0 %v218
    %5035 = vmatprep.subr.mxu0 %v223
    %5036 = vmatpush1.msra.mxu0 %v222
    %5037 = vmatprep.subr.mxu0 %v227
    %5038 = vmatpush1.msra.mxu0 %v226
    %5039 = vmatprep.subr.mxu0 %v231
    %5040 = vmatpush1.msra.mxu0 %v230
    %5041 = vmatprep.subr.mxu0 %v235
    %5042 = vmatpush1.msra.mxu0 %v234
    %5043 = vmatprep.subr.mxu0 %v239
    %5044 = vmatpush1.msra.mxu0 %v238
    %5045 = vmatprep.subr.mxu0 %v243
    %5046 = vmatpush1.msra.mxu0 %v242
    %5047 = vmatprep.subr.mxu0 %v247
    %5048 = vmatpush1.msra.mxu0 %v246
    %5049 = vmatprep.subr.mxu0 %v251
    %5050 = vmatpush1.msra.mxu0 %v250
    %5051 = vmatprep.subr.mxu0 %v255
    %5052 = vmatpush1.msra.mxu0 %v254
    %5053 = vmatprep.subr.mxu0 %v259
    %5054 = vmatpush1.msra.mxu0 %v258
    %5055 = vmatprep.subr.mxu0 %v263
    %5056 = vmatpush1.msra.mxu0 %v262
    %5057 = vmatprep.subr.mxu0 %v267
    %5058 = vmatpush1.msra.mxu0 %v266
    %5059 = vmatprep.subr.mxu0 %v271
    %5060 = vmatpush1.msra.mxu0 %v270
    %5061 = vmatprep.mubr.f32.mxu0 %v4541
    %5062 = vmatmul.mubr.f32.gmra.mrb[0].mxu0 %v4996
    %v5063 = vpop.f32.mrb[0].mxu0
    %v5064 = vadd.f32 %v589, %v5063
    %v5065 = vpop.f32.mrb[0].mxu0
    %v5066 = vadd.f32 %v593, %v5065
    %5067 = vdwg.mxu0
    %5068 = vmatprep.subr.mxu0 %v149
    %5069 = vmatpush1.msra.mxu0 %v148
    %5070 = vmatprep.subr.mxu0 %v153
    %5071 = vmatpush1.msra.mxu0 %v152
    %5072 = vmatprep.subr.mxu0 %v157
    %5073 = vmatpush1.msra.mxu0 %v156
    %5074 = vmatprep.subr.mxu0 %v161
    %5075 = vmatpush1.msra.mxu0 %v160
    %5076 = vmatprep.subr.mxu0 %v165
    %5077 = vmatpush1.msra.mxu0 %v164
    %5078 = vmatprep.subr.mxu0 %v169
    %5079 = vmatpush1.msra.mxu0 %v168
    %5080 = vmatprep.subr.mxu0 %v173
    %5081 = vmatpush1.msra.mxu0 %v172
    %5082 = vmatprep.subr.mxu0 %v177
    %5083 = vmatpush1.msra.mxu0 %v176
    %5084 = vmatprep.subr.mxu0 %v181
    %5085 = vmatpush1.msra.mxu0 %v180
    %5086 = vmatprep.subr.mxu0 %v185
    %5087 = vmatpush1.msra.mxu0 %v184
    %5088 = vmatprep.subr.mxu0 %v189
    %5089 = vmatpush1.msra.mxu0 %v188
    %5090 = vmatprep.subr.mxu0 %v193
    %5091 = vmatpush1.msra.mxu0 %v192
    %5092 = vmatprep.subr.mxu0 %v197
    %5093 = vmatpush1.msra.mxu0 %v196
    %5094 = vmatprep.subr.mxu0 %v201
    %5095 = vmatpush1.msra.mxu0 %v200
    %5096 = vmatprep.subr.mxu0 %v205
    %5097 = vmatpush1.msra.mxu0 %v204
    %5098 = vmatprep.subr.mxu0 %v209
    %5099 = vmatpush1.msra.mxu0 %v208
    %5100 = vmatprep.subr.mxu0 %v213
    %5101 = vmatpush1.msra.mxu0 %v212
    %5102 = vmatprep.subr.mxu0 %v217
    %5103 = vmatpush1.msra.mxu0 %v216
    %5104 = vmatprep.subr.mxu0 %v221
    %5105 = vmatpush1.msra.mxu0 %v220
    %5106 = vmatprep.subr.mxu0 %v225
    %5107 = vmatpush1.msra.mxu0 %v224
    %5108 = vmatprep.subr.mxu0 %v229
    %5109 = vmatpush1.msra.mxu0 %v228
    %5110 = vmatprep.subr.mxu0 %v233
    %5111 = vmatpush1.msra.mxu0 %v232
    %5112 = vmatprep.subr.mxu0 %v237
    %5113 = vmatpush1.msra.mxu0 %v236
    %5114 = vmatprep.subr.mxu0 %v241
    %5115 = vmatpush1.msra.mxu0 %v240
    %5116 = vmatprep.subr.mxu0 %v245
    %5117 = vmatpush1.msra.mxu0 %v244
    %5118 = vmatprep.subr.mxu0 %v249
    %5119 = vmatpush1.msra.mxu0 %v248
    %5120 = vmatprep.subr.mxu0 %v253
    %5121 = vmatpush1.msra.mxu0 %v252
    %5122 = vmatprep.subr.mxu0 %v257
    %5123 = vmatpush1.msra.mxu0 %v256
    %5124 = vmatprep.subr.mxu0 %v261
    %5125 = vmatpush1.msra.mxu0 %v260
    %5126 = vmatprep.subr.mxu0 %v265
    %5127 = vmatpush1.msra.mxu0 %v264
    %5128 = vmatprep.subr.mxu0 %v269
    %5129 = vmatpush1.msra.mxu0 %v268
    %5130 = vmatprep.subr.mxu0 %v273
    %5131 = vmatpush1.msra.mxu0 %v272
    %5132 = vmatprep.mubr.f32.mxu0 %v4541
    %5133 = vmatmul.mubr.f32.gmra.mrb[0].mxu0 %v4996
    %v5134 = vpop.f32.mrb[0].mxu0
    %v5135 = vadd.f32 %v597, %v5134
    %v5136 = vpop.f32.mrb[0].mxu0
    %v5137 = vadd.f32 %v601, %v5136
    %5138 = vdwg.mxu0
    %v5139 = vxor.u32 %v5064, 2147483648
    %v5140 = vmul.f32 %v5139, 1.442695
    %v5141 = vpow.pop %v5140
    %v5142 = vadd.f32 %v5141, 1.0
    %v5143 = vrcp.pop %v5142
    %v5144 = vmul.f32 1.0, %v5143
    %v5145 = vxor.u32 %v5066, 2147483648
    %v5146 = vmul.f32 %v5145, 1.442695
    %v5147 = vpow.pop %v5146
    %v5148 = vadd.f32 %v5147, 1.0
    %v5149 = vrcp.pop %v5148
    %v5150 = vmul.f32 1.0, %v5149
    %v5151 = vtanh.pop %v5135
    %v5152 = vxor.u32 %v5137, 2147483648
    %v5153 = vmul.f32 %v5152, 1.442695
    %v5154 = vpow.pop %v5153
    %v5155 = vadd.f32 %v5154, 1.0
    %v5156 = vrcp.pop %v5155
    %v5157 = vmul.f32 1.0, %v5156
    %v5158 = vmul.f32 %v5150, %v4539
    %v5159 = vmul.f32 %v5144, %v5151
    %v5160 = vadd.f32 %v5158, %v5159
    %v5161 = vtanh.pop %v5160
    %v5162 = vmul.f32 %v5157, %v5161
    %5163 = vmatprep.subr.mxu0 %v275
    %5164 = vmatpush1.msra.mxu0 %v274
    %5165 = vmatprep.subr.mxu0 %v279
    %5166 = vmatpush1.msra.mxu0 %v278
    %5167 = vmatprep.subr.mxu0 %v283
    %5168 = vmatpush1.msra.mxu0 %v282
    %5169 = vmatprep.subr.mxu0 %v287
    %5170 = vmatpush1.msra.mxu0 %v286
    %5171 = vmatprep.subr.mxu0 %v291
    %5172 = vmatpush1.msra.mxu0 %v290
    %5173 = vmatprep.subr.mxu0 %v295
    %5174 = vmatpush1.msra.mxu0 %v294
    %5175 = vmatprep.subr.mxu0 %v299
    %5176 = vmatpush1.msra.mxu0 %v298
    %5177 = vmatprep.subr.mxu0 %v303
    %5178 = vmatpush1.msra.mxu0 %v302
    %5179 = vmatprep.subr.mxu0 %v307
    %5180 = vmatpush1.msra.mxu0 %v306
    %5181 = vmatprep.subr.mxu0 %v311
    %5182 = vmatpush1.msra.mxu0 %v310
    %5183 = vmatprep.subr.mxu0 %v315
    %5184 = vmatpush1.msra.mxu0 %v314
    %5185 = vmatprep.subr.mxu0 %v319
    %5186 = vmatpush1.msra.mxu0 %v318
    %5187 = vmatprep.subr.mxu0 %v323
    %5188 = vmatpush1.msra.mxu0 %v322
    %5189 = vmatprep.subr.mxu0 %v327
    %5190 = vmatpush1.msra.mxu0 %v326
    %5191 = vmatprep.subr.mxu0 %v331
    %5192 = vmatpush1.msra.mxu0 %v330
    %5193 = vmatprep.subr.mxu0 %v335
    %5194 = vmatpush1.msra.mxu0 %v334
    %5195 = vmatprep.subr.mxu0 %v339
    %5196 = vmatpush1.msra.mxu0 %v338
    %5197 = vmatprep.subr.mxu0 %v343
    %5198 = vmatpush1.msra.mxu0 %v342
    %5199 = vmatprep.subr.mxu0 %v347
    %5200 = vmatpush1.msra.mxu0 %v346
    %5201 = vmatprep.subr.mxu0 %v351
    %5202 = vmatpush1.msra.mxu0 %v350
    %5203 = vmatprep.subr.mxu0 %v355
    %5204 = vmatpush1.msra.mxu0 %v354
    %5205 = vmatprep.subr.mxu0 %v359
    %5206 = vmatpush1.msra.mxu0 %v358
    %5207 = vmatprep.subr.mxu0 %v363
    %5208 = vmatpush1.msra.mxu0 %v362
    %5209 = vmatprep.subr.mxu0 %v367
    %5210 = vmatpush1.msra.mxu0 %v366
    %5211 = vmatprep.subr.mxu0 %v371
    %5212 = vmatpush1.msra.mxu0 %v370
    %5213 = vmatprep.subr.mxu0 %v375
    %5214 = vmatpush1.msra.mxu0 %v374
    %5215 = vmatprep.subr.mxu0 %v379
    %5216 = vmatpush1.msra.mxu0 %v378
    %5217 = vmatprep.subr.mxu0 %v383
    %5218 = vmatpush1.msra.mxu0 %v382
    %5219 = vmatprep.subr.mxu0 %v387
    %5220 = vmatpush1.msra.mxu0 %v386
    %5221 = vmatprep.subr.mxu0 %v391
    %5222 = vmatpush1.msra.mxu0 %v390
    %5223 = vmatprep.subr.mxu0 %v395
    %5224 = vmatpush1.msra.mxu0 %v394
    %5225 = vmatprep.subr.mxu0 %v399
    %5226 = vmatpush1.msra.mxu0 %v398
    %5227 = vmatprep.mubr.f32.mxu0 %v4707
    %5228 = vmatmul.mubr.f32.gmra.mrb[0].mxu0 %v5162
    %v5229 = vpop.f32.mrb[0].mxu0
    %v5230 = vadd.f32 %v776, %v5229
    %v5231 = vpop.f32.mrb[0].mxu0
    %v5232 = vadd.f32 %v780, %v5231
    %5233 = vdwg.mxu0
    %5234 = vmatprep.subr.mxu0 %v277
    %5235 = vmatpush1.msra.mxu0 %v276
    %5236 = vmatprep.subr.mxu0 %v281
    %5237 = vmatpush1.msra.mxu0 %v280
    %5238 = vmatprep.subr.mxu0 %v285
    %5239 = vmatpush1.msra.mxu0 %v284
    %5240 = vmatprep.subr.mxu0 %v289
    %5241 = vmatpush1.msra.mxu0 %v288
    %5242 = vmatprep.subr.mxu0 %v293
    %5243 = vmatpush1.msra.mxu0 %v292
    %5244 = vmatprep.subr.mxu0 %v297
    %5245 = vmatpush1.msra.mxu0 %v296
    %5246 = vmatprep.subr.mxu0 %v301
    %5247 = vmatpush1.msra.mxu0 %v300
    %5248 = vmatprep.subr.mxu0 %v305
    %5249 = vmatpush1.msra.mxu0 %v304
    %5250 = vmatprep.subr.mxu0 %v309
    %5251 = vmatpush1.msra.mxu0 %v308
    %5252 = vmatprep.subr.mxu0 %v313
    %5253 = vmatpush1.msra.mxu0 %v312
    %5254 = vmatprep.subr.mxu0 %v317
    %5255 = vmatpush1.msra.mxu0 %v316
    %5256 = vmatprep.subr.mxu0 %v321
    %5257 = vmatpush1.msra.mxu0 %v320
    %5258 = vmatprep.subr.mxu0 %v325
    %5259 = vmatpush1.msra.mxu0 %v324
    %5260 = vmatprep.subr.mxu0 %v329
    %5261 = vmatpush1.msra.mxu0 %v328
    %5262 = vmatprep.subr.mxu0 %v333
    %5263 = vmatpush1.msra.mxu0 %v332
    %5264 = vmatprep.subr.mxu0 %v337
    %5265 = vmatpush1.msra.mxu0 %v336
    %5266 = vmatprep.subr.mxu0 %v341
    %5267 = vmatpush1.msra.mxu0 %v340
    %5268 = vmatprep.subr.mxu0 %v345
    %5269 = vmatpush1.msra.mxu0 %v344
    %5270 = vmatprep.subr.mxu0 %v349
    %5271 = vmatpush1.msra.mxu0 %v348
    %5272 = vmatprep.subr.mxu0 %v353
    %5273 = vmatpush1.msra.mxu0 %v352
    %5274 = vmatprep.subr.mxu0 %v357
    %5275 = vmatpush1.msra.mxu0 %v356
    %5276 = vmatprep.subr.mxu0 %v361
    %5277 = vmatpush1.msra.mxu0 %v360
    %5278 = vmatprep.subr.mxu0 %v365
    %5279 = vmatpush1.msra.mxu0 %v364
    %5280 = vmatprep.subr.mxu0 %v369
    %5281 = vmatpush1.msra.mxu0 %v368
    %5282 = vmatprep.subr.mxu0 %v373
    %5283 = vmatpush1.msra.mxu0 %v372
    %5284 = vmatprep.subr.mxu0 %v377
    %5285 = vmatpush1.msra.mxu0 %v376
    %5286 = vmatprep.subr.mxu0 %v381
    %5287 = vmatpush1.msra.mxu0 %v380
    %5288 = vmatprep.subr.mxu0 %v385
    %5289 = vmatpush1.msra.mxu0 %v384
    %5290 = vmatprep.subr.mxu0 %v389
    %5291 = vmatpush1.msra.mxu0 %v388
    %5292 = vmatprep.subr.mxu0 %v393
    %5293 = vmatpush1.msra.mxu0 %v392
    %5294 = vmatprep.subr.mxu0 %v397
    %5295 = vmatpush1.msra.mxu0 %v396
    %5296 = vmatprep.subr.mxu0 %v401
    %5297 = vmatpush1.msra.mxu0 %v400
    %5298 = vmatprep.mubr.f32.mxu0 %v4707
    %5299 = vmatmul.mubr.f32.gmra.mrb[0].mxu0 %v5162
    %v5300 = vpop.f32.mrb[0].mxu0
    %v5301 = vadd.f32 %v784, %v5300
    %v5302 = vpop.f32.mrb[0].mxu0
    %v5303 = vadd.f32 %v788, %v5302
    %5304 = vdwg.mxu0
    %v5305 = vxor.u32 %v5230, 2147483648
    %v5306 = vmul.f32 %v5305, 1.442695
    %v5307 = vpow.pop %v5306
    %v5308 = vadd.f32 %v5307, 1.0
    %v5309 = vrcp.pop %v5308
    %v5310 = vmul.f32 1.0, %v5309
    %v5311 = vxor.u32 %v5232, 2147483648
    %v5312 = vmul.f32 %v5311, 1.442695
    %v5313 = vpow.pop %v5312
    %v5314 = vadd.f32 %v5313, 1.0
    %v5315 = vrcp.pop %v5314
    %v5316 = vmul.f32 1.0, %v5315
    %v5317 = vtanh.pop %v5301
    %v5318 = vxor.u32 %v5303, 2147483648
    %v5319 = vmul.f32 %v5318, 1.442695
    %v5320 = vpow.pop %v5319
    %v5321 = vadd.f32 %v5320, 1.0
    %v5322 = vrcp.pop %v5321
    %v5323 = vmul.f32 1.0, %v5322
    %v5324 = vmul.f32 %v5316, %v4705
    %v5325 = vmul.f32 %v5310, %v5317
    %v5326 = vadd.f32 %v5324, %v5325
    %v5327 = vtanh.pop %v5326
    %v5328 = vmul.f32 %v5323, %v5327
    %5329 = vmatprep.subr.mxu0 0.0
    %5330 = vmatpush1.msra.mxu0 %v114
    %5331 = vmatprep.subr.mxu0 0.0
    %5332 = vmatpush1.msra.mxu0 %v115
    %5333 = vmatprep.subr.mxu0 0.0
    %5334 = vmatpush1.msra.mxu0 %v116
    %5335 = vmatprep.subr.mxu0 0.0
    %5336 = vmatpush1.msra.mxu0 %v117
    %5337 = vmatprep.subr.mxu0 0.0
    %5338 = vmatpush1.msra.mxu0 %v118
    %5339 = vmatprep.subr.mxu0 0.0
    %5340 = vmatpush1.msra.mxu0 %v119
    %5341 = vmatprep.subr.mxu0 0.0
    %5342 = vmatpush1.msra.mxu0 %v120
    %5343 = vmatprep.subr.mxu0 0.0
    %5344 = vmatpush1.msra.mxu0 %v121
    %5345 = vmatprep.subr.mxu0 0.0
    %5346 = vmatpush1.msra.mxu0 %v122
    %5347 = vmatprep.subr.mxu0 0.0
    %5348 = vmatpush1.msra.mxu0 %v123
    %5349 = vmatprep.subr.mxu0 0.0
    %5350 = vmatpush1.msra.mxu0 %v124
    %5351 = vmatprep.subr.mxu0 0.0
    %5352 = vmatpush1.msra.mxu0 %v125
    %5353 = vmatprep.subr.mxu0 0.0
    %5354 = vmatpush1.msra.mxu0 %v126
    %5355 = vmatprep.subr.mxu0 0.0
    %5356 = vmatpush1.msra.mxu0 %v127
    %5357 = vmatprep.subr.mxu0 0.0
    %5358 = vmatpush1.msra.mxu0 %v128
    %5359 = vmatprep.subr.mxu0 0.0
    %5360 = vmatpush1.msra.mxu0 %v129
    %5361 = vmatprep.subr.mxu0 0.0
    %5362 = vmatpush1.msra.mxu0 0.0
    %5363 = vmatprep.subr.mxu0 0.0
    %5364 = vmatpush1.msra.mxu0 0.0
    %5365 = vmatprep.subr.mxu0 0.0
    %5366 = vmatpush1.msra.mxu0 0.0
    %5367 = vmatprep.subr.mxu0 0.0
    %5368 = vmatpush1.msra.mxu0 0.0
    %5369 = vmatprep.subr.mxu0 0.0
    %5370 = vmatpush1.msra.mxu0 0.0
    %5371 = vmatprep.subr.mxu0 0.0
    %5372 = vmatpush1.msra.mxu0 0.0
    %5373 = vmatprep.subr.mxu0 0.0
    %5374 = vmatpush1.msra.mxu0 0.0
    %5375 = vmatprep.subr.mxu0 0.0
    %5376 = vmatpush1.msra.mxu0 0.0
    %5377 = vmatprep.subr.mxu0 0.0
    %5378 = vmatpush1.msra.mxu0 0.0
    %5379 = vmatprep.subr.mxu0 0.0
    %5380 = vmatpush1.msra.mxu0 0.0
    %5381 = vmatprep.subr.mxu0 0.0
    %5382 = vmatpush1.msra.mxu0 0.0
    %5383 = vmatprep.subr.mxu0 0.0
    %5384 = vmatpush1.msra.mxu0 0.0
    %5385 = vmatprep.subr.mxu0 0.0
    %5386 = vmatpush1.msra.mxu0 0.0
    %5387 = vmatprep.subr.mxu0 0.0
    %5388 = vmatpush1.msra.mxu0 0.0
    %5389 = vmatprep.subr.mxu0 0.0
    %5390 = vmatpush1.msra.mxu0 0.0
    %5391 = vmatprep.subr.mxu0 0.0
    %5392 = vmatpush1.msra.mxu0 0.0
    %5393 = vmatprep.mubr.f32.mxu0 0.0
    %5394 = vmatmul.mubr.f32.gmra.mrb[0].mxu0 %v5328
    %v5395 = vpop.f32.mrb[0].mxu0
    %v5396 = vadd.f32 %v421, %v5395
    %v5397 = vpop.f32.mrb[0].mxu0
    %5398 = vdwg.mxu0
    %v5399 = vmax.f32 %v5396, 0.0
    %5400 = vmatprep.subr.mxu0 0.0
    %5401 = vmatpush1.msra.mxu0 %v130
    %5402 = vmatprep.subr.mxu0 0.0
    %5403 = vmatpush1.msra.mxu0 %v131
    %5404 = vmatprep.subr.mxu0 0.0
    %5405 = vmatpush1.msra.mxu0 %v132
    %5406 = vmatprep.subr.mxu0 0.0
    %5407 = vmatpush1.msra.mxu0 %v133
    %5408 = vmatprep.subr.mxu0 0.0
    %5409 = vmatpush1.msra.mxu0 %v134
    %5410 = vmatprep.subr.mxu0 0.0
    %5411 = vmatpush1.msra.mxu0 %v135
    %5412 = vmatprep.subr.mxu0 0.0
    %5413 = vmatpush1.msra.mxu0 %v136
    %5414 = vmatprep.subr.mxu0 0.0
    %5415 = vmatpush1.msra.mxu0 %v137
    %5416 = vmatprep.subr.mxu0 0.0
    %5417 = vmatpush1.msra.mxu0 %v138
    %5418 = vmatprep.subr.mxu0 0.0
    %5419 = vmatpush1.msra.mxu0 %v139
    %5420 = vmatprep.subr.mxu0 0.0
    %5421 = vmatpush1.msra.mxu0 %v140
    %5422 = vmatprep.subr.mxu0 0.0
    %5423 = vmatpush1.msra.mxu0 %v141
    %5424 = vmatprep.subr.mxu0 0.0
    %5425 = vmatpush1.msra.mxu0 %v142
    %5426 = vmatprep.subr.mxu0 0.0
    %5427 = vmatpush1.msra.mxu0 %v143
    %5428 = vmatprep.subr.mxu0 0.0
    %5429 = vmatpush1.msra.mxu0 %v144
    %5430 = vmatprep.subr.mxu0 0.0
    %5431 = vmatpush1.msra.mxu0 %v145
    %5432 = vmatprep.subr.mxu0 0.0
    %5433 = vmatpush1.msra.mxu0 0.0
    %5434 = vmatprep.subr.mxu0 0.0
    %5435 = vmatpush1.msra.mxu0 0.0
    %5436 = vmatprep.subr.mxu0 0.0
    %5437 = vmatpush1.msra.mxu0 0.0
    %5438 = vmatprep.subr.mxu0 0.0
    %5439 = vmatpush1.msra.mxu0 0.0
    %5440 = vmatprep.subr.mxu0 0.0
    %5441 = vmatpush1.msra.mxu0 0.0
    %5442 = vmatprep.subr.mxu0 0.0
    %5443 = vmatpush1.msra.mxu0 0.0
    %5444 = vmatprep.subr.mxu0 0.0
    %5445 = vmatpush1.msra.mxu0 0.0
    %5446 = vmatprep.subr.mxu0 0.0
    %5447 = vmatpush1.msra.mxu0 0.0
    %5448 = vmatprep.subr.mxu0 0.0
    %5449 = vmatpush1.msra.mxu0 0.0
    %5450 = vmatprep.subr.mxu0 0.0
    %5451 = vmatpush1.msra.mxu0 0.0
    %5452 = vmatprep.subr.mxu0 0.0
    %5453 = vmatpush1.msra.mxu0 0.0
    %5454 = vmatprep.subr.mxu0 0.0
    %5455 = vmatpush1.msra.mxu0 0.0
    %5456 = vmatprep.subr.mxu0 0.0
    %5457 = vmatpush1.msra.mxu0 0.0
    %5458 = vmatprep.subr.mxu0 0.0
    %5459 = vmatpush1.msra.mxu0 0.0
    %5460 = vmatprep.subr.mxu0 0.0
    %5461 = vmatpush1.msra.mxu0 0.0
    %5462 = vmatprep.subr.mxu0 0.0
    %5463 = vmatpush1.msra.mxu0 0.0
    %5464 = vmatprep.mubr.f32.mxu0 0.0
    %5465 = vmatmul.mubr.f32.gmra.mrb[0].mxu0 %v5399
    %v5466 = vpop.f32.mrb[0].mxu0
    %v5467 = vadd.f32 %v428, %v5466
    %v5468 = vpop.f32.mrb[0].mxu0
    %5469 = vdwg.mxu0
    %v5470 = vadd.f32 %v5467, %v4849
    %s5471 = scalar_lea.vmem [#allocation10], 56
    %5472 = vst.msk [vmem:[%s5471] sm:$0xff] %vm439, %v5470
    %s5473 = sld [smem:[#allocation2 + $0x4]]
    %p5474 = scmp.gt.s32.totalorder %s5473, 0
    %s5475 = scalar_lea.vmem [#allocation6], 32
    %v5476 = vld [vmem:[%s5475] sm:$0xff]
    %s5477 = scalar_select %p5474, 1, 0
    %v5478 = vstv %s5477
    %vm5479 = vcmp.eq.s32.totalorder %v5478, 1
    %v5480 = vsel %vm5479, %v5476, %v4849
    %v5482 = vsel %vm439, %v5480, 0
    %5484 = vmatprep.subr.mxu0 0.0
    %5485 = vmatpush1.msra.mxu0 %v96
    %5486 = vmatprep.subr.mxu0 0.0
    %5487 = vmatpush1.msra.mxu0 %v97
    %5488 = vmatprep.subr.mxu0 0.0
    %5489 = vmatpush1.msra.mxu0 0.0
    %5490 = vmatprep.subr.mxu0 0.0
    %5491 = vmatpush1.msra.mxu0 0.0
    %5492 = vmatprep.subr.mxu0 0.0
    %5493 = vmatpush1.msra.mxu0 0.0
    %5494 = vmatprep.subr.mxu0 0.0
    %5495 = vmatpush1.msra.mxu0 0.0
    %5496 = vmatprep.subr.mxu0 0.0
    %5497 = vmatpush1.msra.mxu0 0.0
    %5498 = vmatprep.subr.mxu0 0.0
    %5499 = vmatpush1.msra.mxu0 0.0
    %5500 = vmatprep.subr.mxu0 0.0
    %5501 = vmatpush1.msra.mxu0 0.0
    %5502 = vmatprep.subr.mxu0 0.0
    %5503 = vmatpush1.msra.mxu0 0.0
    %5504 = vmatprep.subr.mxu0 0.0
    %5505 = vmatpush1.msra.mxu0 0.0
    %5506 = vmatprep.subr.mxu0 0.0
    %5507 = vmatpush1.msra.mxu0 0.0
    %5508 = vmatprep.subr.mxu0 0.0
    %5509 = vmatpush1.msra.mxu0 0.0
    %5510 = vmatprep.subr.mxu0 0.0
    %5511 = vmatpush1.msra.mxu0 0.0
    %5512 = vmatprep.subr.mxu0 0.0
    %5513 = vmatpush1.msra.mxu0 0.0
    %5514 = vmatprep.subr.mxu0 0.0
    %5515 = vmatpush1.msra.mxu0 0.0
    %5516 = vmatprep.subr.mxu0 0.0
    %5517 = vmatpush1.msra.mxu0 0.0
    %5518 = vmatprep.subr.mxu0 0.0
    %5519 = vmatpush1.msra.mxu0 0.0
    %5520 = vmatprep.subr.mxu0 0.0
    %5521 = vmatpush1.msra.mxu0 0.0
    %5522 = vmatprep.subr.mxu0 0.0
    %5523 = vmatpush1.msra.mxu0 0.0
    %5524 = vmatprep.subr.mxu0 0.0
    %5525 = vmatpush1.msra.mxu0 0.0
    %5526 = vmatprep.subr.mxu0 0.0
    %5527 = vmatpush1.msra.mxu0 0.0
    %5528 = vmatprep.subr.mxu0 0.0
    %5529 = vmatpush1.msra.mxu0 0.0
    %5530 = vmatprep.subr.mxu0 0.0
    %5531 = vmatpush1.msra.mxu0 0.0
    %5532 = vmatprep.subr.mxu0 0.0
    %5533 = vmatpush1.msra.mxu0 0.0
    %5534 = vmatprep.subr.mxu0 0.0
    %5535 = vmatpush1.msra.mxu0 0.0
    %5536 = vmatprep.subr.mxu0 0.0
    %5537 = vmatpush1.msra.mxu0 0.0
    %5538 = vmatprep.subr.mxu0 0.0
    %5539 = vmatpush1.msra.mxu0 0.0
    %5540 = vmatprep.subr.mxu0 0.0
    %5541 = vmatpush1.msra.mxu0 0.0
    %5542 = vmatprep.subr.mxu0 0.0
    %5543 = vmatpush1.msra.mxu0 0.0
    %5544 = vmatprep.subr.mxu0 0.0
    %5545 = vmatpush1.msra.mxu0 0.0
    %5546 = vmatprep.subr.mxu0 0.0
    %5547 = vmatpush1.msra.mxu0 0.0
    %5548 = vmatprep.mubr.f32.mxu0 0.0
    %5549 = vmatmul.mubr.f32.gmra.mrb[0].mxu0 %v5482
    %v5550 = vpop.f32.mrb[0].mxu0
    %v5551 = vadd.f32 %v407, %v5550
    %v5552 = vpop.f32.mrb[0].mxu0
    %5553 = vdwg.mxu0
    %v5554 = vmax.f32 %v5551, 0.0
    %5555 = vmatprep.subr.mxu0 0.0
    %5556 = vmatpush1.msra.mxu0 %v98
    %5557 = vmatprep.subr.mxu0 0.0
    %5558 = vmatpush1.msra.mxu0 %v99
    %5559 = vmatprep.subr.mxu0 0.0
    %5560 = vmatpush1.msra.mxu0 %v100
    %5561 = vmatprep.subr.mxu0 0.0
    %5562 = vmatpush1.msra.mxu0 %v101
    %5563 = vmatprep.subr.mxu0 0.0
    %5564 = vmatpush1.msra.mxu0 %v102
    %5565 = vmatprep.subr.mxu0 0.0
    %5566 = vmatpush1.msra.mxu0 %v103
    %5567 = vmatprep.subr.mxu0 0.0
    %5568 = vmatpush1.msra.mxu0 %v104
    %5569 = vmatprep.subr.mxu0 0.0
    %5570 = vmatpush1.msra.mxu0 %v105
    %5571 = vmatprep.subr.mxu0 0.0
    %5572 = vmatpush1.msra.mxu0 %v106
    %5573 = vmatprep.subr.mxu0 0.0
    %5574 = vmatpush1.msra.mxu0 %v107
    %5575 = vmatprep.subr.mxu0 0.0
    %5576 = vmatpush1.msra.mxu0 %v108
    %5577 = vmatprep.subr.mxu0 0.0
    %5578 = vmatpush1.msra.mxu0 %v109
    %5579 = vmatprep.subr.mxu0 0.0
    %5580 = vmatpush1.msra.mxu0 %v110
    %5581 = vmatprep.subr.mxu0 0.0
    %5582 = vmatpush1.msra.mxu0 %v111
    %5583 = vmatprep.subr.mxu0 0.0
    %5584 = vmatpush1.msra.mxu0 %v112
    %5585 = vmatprep.subr.mxu0 0.0
    %5586 = vmatpush1.msra.mxu0 %v113
    %5587 = vmatprep.subr.mxu0 0.0
    %5588 = vmatpush1.msra.mxu0 0.0
    %5589 = vmatprep.subr.mxu0 0.0
    %5590 = vmatpush1.msra.mxu0 0.0
    %5591 = vmatprep.subr.mxu0 0.0
    %5592 = vmatpush1.msra.mxu0 0.0
    %5593 = vmatprep.subr.mxu0 0.0
    %5594 = vmatpush1.msra.mxu0 0.0
    %5595 = vmatprep.subr.mxu0 0.0
    %5596 = vmatpush1.msra.mxu0 0.0
    %5597 = vmatprep.subr.mxu0 0.0
    %5598 = vmatpush1.msra.mxu0 0.0
    %5599 = vmatprep.subr.mxu0 0.0
    %5600 = vmatpush1.msra.mxu0 0.0
    %5601 = vmatprep.subr.mxu0 0.0
    %5602 = vmatpush1.msra.mxu0 0.0
    %5603 = vmatprep.subr.mxu0 0.0
    %5604 = vmatpush1.msra.mxu0 0.0
    %5605 = vmatprep.subr.mxu0 0.0
    %5606 = vmatpush1.msra.mxu0 0.0
    %5607 = vmatprep.subr.mxu0 0.0
    %5608 = vmatpush1.msra.mxu0 0.0
    %5609 = vmatprep.subr.mxu0 0.0
    %5610 = vmatpush1.msra.mxu0 0.0
    %5611 = vmatprep.subr.mxu0 0.0
    %5612 = vmatpush1.msra.mxu0 0.0
    %5613 = vmatprep.subr.mxu0 0.0
    %5614 = vmatpush1.msra.mxu0 0.0
    %5615 = vmatprep.subr.mxu0 0.0
    %5616 = vmatpush1.msra.mxu0 0.0
    %5617 = vmatprep.subr.mxu0 0.0
    %5618 = vmatpush1.msra.mxu0 0.0
    %5619 = vmatprep.mubr.f32.mxu0 0.0
    %5620 = vmatmul.mubr.f32.gmra.mrb[0].mxu0 %v5554
    %v5621 = vpop.f32.mrb[0].mxu0
    %v5622 = vadd.f32 %v414, %v5621
    %v5623 = vpop.f32.mrb[0].mxu0
    %5624 = vdwg.mxu0
    %v5625 = vmax.f32 %v5622, 0.0
    %5626 = vmatprep.subr.mxu0 %v147
    %5627 = vmatpush1.msra.mxu0 %v146
    %5628 = vmatprep.subr.mxu0 %v151
    %5629 = vmatpush1.msra.mxu0 %v150
    %5630 = vmatprep.subr.mxu0 %v155
    %5631 = vmatpush1.msra.mxu0 %v154
    %5632 = vmatprep.subr.mxu0 %v159
    %5633 = vmatpush1.msra.mxu0 %v158
    %5634 = vmatprep.subr.mxu0 %v163
    %5635 = vmatpush1.msra.mxu0 %v162
    %5636 = vmatprep.subr.mxu0 %v167
    %5637 = vmatpush1.msra.mxu0 %v166
    %5638 = vmatprep.subr.mxu0 %v171
    %5639 = vmatpush1.msra.mxu0 %v170
    %5640 = vmatprep.subr.mxu0 %v175
    %5641 = vmatpush1.msra.mxu0 %v174
    %5642 = vmatprep.subr.mxu0 %v179
    %5643 = vmatpush1.msra.mxu0 %v178
    %5644 = vmatprep.subr.mxu0 %v183
    %5645 = vmatpush1.msra.mxu0 %v182
    %5646 = vmatprep.subr.mxu0 %v187
    %5647 = vmatpush1.msra.mxu0 %v186
    %5648 = vmatprep.subr.mxu0 %v191
    %5649 = vmatpush1.msra.mxu0 %v190
    %5650 = vmatprep.subr.mxu0 %v195
    %5651 = vmatpush1.msra.mxu0 %v194
    %5652 = vmatprep.subr.mxu0 %v199
    %5653 = vmatpush1.msra.mxu0 %v198
    %5654 = vmatprep.subr.mxu0 %v203
    %5655 = vmatpush1.msra.mxu0 %v202
    %5656 = vmatprep.subr.mxu0 %v207
    %5657 = vmatpush1.msra.mxu0 %v206
    %5658 = vmatprep.subr.mxu0 %v211
    %5659 = vmatpush1.msra.mxu0 %v210
    %5660 = vmatprep.subr.mxu0 %v215
    %5661 = vmatpush1.msra.mxu0 %v214
    %5662 = vmatprep.subr.mxu0 %v219
    %5663 = vmatpush1.msra.mxu0 %v218
    %5664 = vmatprep.subr.mxu0 %v223
    %5665 = vmatpush1.msra.mxu0 %v222
    %5666 = vmatprep.subr.mxu0 %v227
    %5667 = vmatpush1.msra.mxu0 %v226
    %5668 = vmatprep.subr.mxu0 %v231
    %5669 = vmatpush1.msra.mxu0 %v230
    %5670 = vmatprep.subr.mxu0 %v235
    %5671 = vmatpush1.msra.mxu0 %v234
    %5672 = vmatprep.subr.mxu0 %v239
    %5673 = vmatpush1.msra.mxu0 %v238
    %5674 = vmatprep.subr.mxu0 %v243
    %5675 = vmatpush1.msra.mxu0 %v242
    %5676 = vmatprep.subr.mxu0 %v247
    %5677 = vmatpush1.msra.mxu0 %v246
    %5678 = vmatprep.subr.mxu0 %v251
    %5679 = vmatpush1.msra.mxu0 %v250
    %5680 = vmatprep.subr.mxu0 %v255
    %5681 = vmatpush1.msra.mxu0 %v254
    %5682 = vmatprep.subr.mxu0 %v259
    %5683 = vmatpush1.msra.mxu0 %v258
    %5684 = vmatprep.subr.mxu0 %v263
    %5685 = vmatpush1.msra.mxu0 %v262
    %5686 = vmatprep.subr.mxu0 %v267
    %5687 = vmatpush1.msra.mxu0 %v266
    %5688 = vmatprep.subr.mxu0 %v271
    %5689 = vmatpush1.msra.mxu0 %v270
    %5690 = vmatprep.mubr.f32.mxu0 %v4541
    %5691 = vmatmul.mubr.f32.gmra.mrb[0].mxu0 %v5625
    %v5692 = vpop.f32.mrb[0].mxu0
    %v5693 = vadd.f32 %v589, %v5692
    %v5694 = vpop.f32.mrb[0].mxu0
    %v5695 = vadd.f32 %v593, %v5694
    %5696 = vdwg.mxu0
    %5697 = vmatprep.subr.mxu0 %v149
    %5698 = vmatpush1.msra.mxu0 %v148
    %5699 = vmatprep.subr.mxu0 %v153
    %5700 = vmatpush1.msra.mxu0 %v152
    %5701 = vmatprep.subr.mxu0 %v157
    %5702 = vmatpush1.msra.mxu0 %v156
    %5703 = vmatprep.subr.mxu0 %v161
    %5704 = vmatpush1.msra.mxu0 %v160
    %5705 = vmatprep.subr.mxu0 %v165
    %5706 = vmatpush1.msra.mxu0 %v164
    %5707 = vmatprep.subr.mxu0 %v169
    %5708 = vmatpush1.msra.mxu0 %v168
    %5709 = vmatprep.subr.mxu0 %v173
    %5710 = vmatpush1.msra.mxu0 %v172
    %5711 = vmatprep.subr.mxu0 %v177
    %5712 = vmatpush1.msra.mxu0 %v176
    %5713 = vmatprep.subr.mxu0 %v181
    %5714 = vmatpush1.msra.mxu0 %v180
    %5715 = vmatprep.subr.mxu0 %v185
    %5716 = vmatpush1.msra.mxu0 %v184
    %5717 = vmatprep.subr.mxu0 %v189
    %5718 = vmatpush1.msra.mxu0 %v188
    %5719 = vmatprep.subr.mxu0 %v193
    %5720 = vmatpush1.msra.mxu0 %v192
    %5721 = vmatprep.subr.mxu0 %v197
    %5722 = vmatpush1.msra.mxu0 %v196
    %5723 = vmatprep.subr.mxu0 %v201
    %5724 = vmatpush1.msra.mxu0 %v200
    %5725 = vmatprep.subr.mxu0 %v205
    %5726 = vmatpush1.msra.mxu0 %v204
    %5727 = vmatprep.subr.mxu0 %v209
    %5728 = vmatpush1.msra.mxu0 %v208
    %5729 = vmatprep.subr.mxu0 %v213
    %5730 = vmatpush1.msra.mxu0 %v212
    %5731 = vmatprep.subr.mxu0 %v217
    %5732 = vmatpush1.msra.mxu0 %v216
    %5733 = vmatprep.subr.mxu0 %v221
    %5734 = vmatpush1.msra.mxu0 %v220
    %5735 = vmatprep.subr.mxu0 %v225
    %5736 = vmatpush1.msra.mxu0 %v224
    %5737 = vmatprep.subr.mxu0 %v229
    %5738 = vmatpush1.msra.mxu0 %v228
    %5739 = vmatprep.subr.mxu0 %v233
    %5740 = vmatpush1.msra.mxu0 %v232
    %5741 = vmatprep.subr.mxu0 %v237
    %5742 = vmatpush1.msra.mxu0 %v236
    %5743 = vmatprep.subr.mxu0 %v241
    %5744 = vmatpush1.msra.mxu0 %v240
    %5745 = vmatprep.subr.mxu0 %v245
    %5746 = vmatpush1.msra.mxu0 %v244
    %5747 = vmatprep.subr.mxu0 %v249
    %5748 = vmatpush1.msra.mxu0 %v248
    %5749 = vmatprep.subr.mxu0 %v253
    %5750 = vmatpush1.msra.mxu0 %v252
    %5751 = vmatprep.subr.mxu0 %v257
    %5752 = vmatpush1.msra.mxu0 %v256
    %5753 = vmatprep.subr.mxu0 %v261
    %5754 = vmatpush1.msra.mxu0 %v260
    %5755 = vmatprep.subr.mxu0 %v265
    %5756 = vmatpush1.msra.mxu0 %v264
    %5757 = vmatprep.subr.mxu0 %v269
    %5758 = vmatpush1.msra.mxu0 %v268
    %5759 = vmatprep.subr.mxu0 %v273
    %5760 = vmatpush1.msra.mxu0 %v272
    %5761 = vmatprep.mubr.f32.mxu0 %v4541
    %5762 = vmatmul.mubr.f32.gmra.mrb[0].mxu0 %v5625
    %v5763 = vpop.f32.mrb[0].mxu0
    %v5764 = vadd.f32 %v597, %v5763
    %v5765 = vpop.f32.mrb[0].mxu0
    %v5766 = vadd.f32 %v601, %v5765
    %5767 = vdwg.mxu0
    %v5768 = vxor.u32 %v5693, 2147483648
    %v5769 = vmul.f32 %v5768, 1.442695
    %v5770 = vpow.pop %v5769
    %v5771 = vadd.f32 %v5770, 1.0
    %v5772 = vrcp.pop %v5771
    %v5773 = vmul.f32 1.0, %v5772
    %v5774 = vxor.u32 %v5695, 2147483648
    %v5775 = vmul.f32 %v5774, 1.442695
    %v5776 = vpow.pop %v5775
    %v5777 = vadd.f32 %v5776, 1.0
    %v5778 = vrcp.pop %v5777
    %v5779 = vmul.f32 1.0, %v5778
    %v5780 = vtanh.pop %v5764
    %v5781 = vxor.u32 %v5766, 2147483648
    %v5782 = vmul.f32 %v5781, 1.442695
    %v5783 = vpow.pop %v5782
    %v5784 = vadd.f32 %v5783, 1.0
    %v5785 = vrcp.pop %v5784
    %v5786 = vmul.f32 1.0, %v5785
    %v5787 = vmul.f32 %v5779, %v4539
    %v5788 = vmul.f32 %v5773, %v5780
    %v5789 = vadd.f32 %v5787, %v5788
    %v5790 = vtanh.pop %v5789
    %v5791 = vmul.f32 %v5786, %v5790
    %5792 = vmatprep.subr.mxu0 %v275
    %5793 = vmatpush1.msra.mxu0 %v274
    %5794 = vmatprep.subr.mxu0 %v279
    %5795 = vmatpush1.msra.mxu0 %v278
    %5796 = vmatprep.subr.mxu0 %v283
    %5797 = vmatpush1.msra.mxu0 %v282
    %5798 = vmatprep.subr.mxu0 %v287
    %5799 = vmatpush1.msra.mxu0 %v286
    %5800 = vmatprep.subr.mxu0 %v291
    %5801 = vmatpush1.msra.mxu0 %v290
    %5802 = vmatprep.subr.mxu0 %v295
    %5803 = vmatpush1.msra.mxu0 %v294
    %5804 = vmatprep.subr.mxu0 %v299
    %5805 = vmatpush1.msra.mxu0 %v298
    %5806 = vmatprep.subr.mxu0 %v303
    %5807 = vmatpush1.msra.mxu0 %v302
    %5808 = vmatprep.subr.mxu0 %v307
    %5809 = vmatpush1.msra.mxu0 %v306
    %5810 = vmatprep.subr.mxu0 %v311
    %5811 = vmatpush1.msra.mxu0 %v310
    %5812 = vmatprep.subr.mxu0 %v315
    %5813 = vmatpush1.msra.mxu0 %v314
    %5814 = vmatprep.subr.mxu0 %v319
    %5815 = vmatpush1.msra.mxu0 %v318
    %5816 = vmatprep.subr.mxu0 %v323
    %5817 = vmatpush1.msra.mxu0 %v322
    %5818 = vmatprep.subr.mxu0 %v327
    %5819 = vmatpush1.msra.mxu0 %v326
    %5820 = vmatprep.subr.mxu0 %v331
    %5821 = vmatpush1.msra.mxu0 %v330
    %5822 = vmatprep.subr.mxu0 %v335
    %5823 = vmatpush1.msra.mxu0 %v334
    %5824 = vmatprep.subr.mxu0 %v339
    %5825 = vmatpush1.msra.mxu0 %v338
    %5826 = vmatprep.subr.mxu0 %v343
    %5827 = vmatpush1.msra.mxu0 %v342
    %5828 = vmatprep.subr.mxu0 %v347
    %5829 = vmatpush1.msra.mxu0 %v346
    %5830 = vmatprep.subr.mxu0 %v351
    %5831 = vmatpush1.msra.mxu0 %v350
    %5832 = vmatprep.subr.mxu0 %v355
    %5833 = vmatpush1.msra.mxu0 %v354
    %5834 = vmatprep.subr.mxu0 %v359
    %5835 = vmatpush1.msra.mxu0 %v358
    %5836 = vmatprep.subr.mxu0 %v363
    %5837 = vmatpush1.msra.mxu0 %v362
    %5838 = vmatprep.subr.mxu0 %v367
    %5839 = vmatpush1.msra.mxu0 %v366
    %5840 = vmatprep.subr.mxu0 %v371
    %5841 = vmatpush1.msra.mxu0 %v370
    %5842 = vmatprep.subr.mxu0 %v375
    %5843 = vmatpush1.msra.mxu0 %v374
    %5844 = vmatprep.subr.mxu0 %v379
    %5845 = vmatpush1.msra.mxu0 %v378
    %5846 = vmatprep.subr.mxu0 %v383
    %5847 = vmatpush1.msra.mxu0 %v382
    %5848 = vmatprep.subr.mxu0 %v387
    %5849 = vmatpush1.msra.mxu0 %v386
    %5850 = vmatprep.subr.mxu0 %v391
    %5851 = vmatpush1.msra.mxu0 %v390
    %5852 = vmatprep.subr.mxu0 %v395
    %5853 = vmatpush1.msra.mxu0 %v394
    %5854 = vmatprep.subr.mxu0 %v399
    %5855 = vmatpush1.msra.mxu0 %v398
    %5856 = vmatprep.mubr.f32.mxu0 %v4707
    %5857 = vmatmul.mubr.f32.gmra.mrb[0].mxu0 %v5791
    %v5858 = vpop.f32.mrb[0].mxu0
    %v5859 = vadd.f32 %v776, %v5858
    %v5860 = vpop.f32.mrb[0].mxu0
    %v5861 = vadd.f32 %v780, %v5860
    %5862 = vdwg.mxu0
    %5863 = vmatprep.subr.mxu0 %v277
    %5864 = vmatpush1.msra.mxu0 %v276
    %5865 = vmatprep.subr.mxu0 %v281
    %5866 = vmatpush1.msra.mxu0 %v280
    %5867 = vmatprep.subr.mxu0 %v285
    %5868 = vmatpush1.msra.mxu0 %v284
    %5869 = vmatprep.subr.mxu0 %v289
    %5870 = vmatpush1.msra.mxu0 %v288
    %5871 = vmatprep.subr.mxu0 %v293
    %5872 = vmatpush1.msra.mxu0 %v292
    %5873 = vmatprep.subr.mxu0 %v297
    %5874 = vmatpush1.msra.mxu0 %v296
    %5875 = vmatprep.subr.mxu0 %v301
    %5876 = vmatpush1.msra.mxu0 %v300
    %5877 = vmatprep.subr.mxu0 %v305
    %5878 = vmatpush1.msra.mxu0 %v304
    %5879 = vmatprep.subr.mxu0 %v309
    %5880 = vmatpush1.msra.mxu0 %v308
    %5881 = vmatprep.subr.mxu0 %v313
    %5882 = vmatpush1.msra.mxu0 %v312
    %5883 = vmatprep.subr.mxu0 %v317
    %5884 = vmatpush1.msra.mxu0 %v316
    %5885 = vmatprep.subr.mxu0 %v321
    %5886 = vmatpush1.msra.mxu0 %v320
    %5887 = vmatprep.subr.mxu0 %v325
    %5888 = vmatpush1.msra.mxu0 %v324
    %5889 = vmatprep.subr.mxu0 %v329
    %5890 = vmatpush1.msra.mxu0 %v328
    %5891 = vmatprep.subr.mxu0 %v333
    %5892 = vmatpush1.msra.mxu0 %v332
    %5893 = vmatprep.subr.mxu0 %v337
    %5894 = vmatpush1.msra.mxu0 %v336
    %5895 = vmatprep.subr.mxu0 %v341
    %5896 = vmatpush1.msra.mxu0 %v340
    %5897 = vmatprep.subr.mxu0 %v345
    %5898 = vmatpush1.msra.mxu0 %v344
    %5899 = vmatprep.subr.mxu0 %v349
    %5900 = vmatpush1.msra.mxu0 %v348
    %5901 = vmatprep.subr.mxu0 %v353
    %5902 = vmatpush1.msra.mxu0 %v352
    %5903 = vmatprep.subr.mxu0 %v357
    %5904 = vmatpush1.msra.mxu0 %v356
    %5905 = vmatprep.subr.mxu0 %v361
    %5906 = vmatpush1.msra.mxu0 %v360
    %5907 = vmatprep.subr.mxu0 %v365
    %5908 = vmatpush1.msra.mxu0 %v364
    %5909 = vmatprep.subr.mxu0 %v369
    %5910 = vmatpush1.msra.mxu0 %v368
    %5911 = vmatprep.subr.mxu0 %v373
    %5912 = vmatpush1.msra.mxu0 %v372
    %5913 = vmatprep.subr.mxu0 %v377
    %5914 = vmatpush1.msra.mxu0 %v376
    %5915 = vmatprep.subr.mxu0 %v381
    %5916 = vmatpush1.msra.mxu0 %v380
    %5917 = vmatprep.subr.mxu0 %v385
    %5918 = vmatpush1.msra.mxu0 %v384
    %5919 = vmatprep.subr.mxu0 %v389
    %5920 = vmatpush1.msra.mxu0 %v388
    %5921 = vmatprep.subr.mxu0 %v393
    %5922 = vmatpush1.msra.mxu0 %v392
    %5923 = vmatprep.subr.mxu0 %v397
    %5924 = vmatpush1.msra.mxu0 %v396
    %5925 = vmatprep.subr.mxu0 %v401
    %5926 = vmatpush1.msra.mxu0 %v400
    %5927 = vmatprep.mubr.f32.mxu0 %v4707
    %5928 = vmatmul.mubr.f32.gmra.mrb[0].mxu0 %v5791
    %v5929 = vpop.f32.mrb[0].mxu0
    %v5930 = vadd.f32 %v784, %v5929
    %v5931 = vpop.f32.mrb[0].mxu0
    %v5932 = vadd.f32 %v788, %v5931
    %5933 = vdwg.mxu0
    %v5934 = vxor.u32 %v5859, 2147483648
    %v5935 = vmul.f32 %v5934, 1.442695
    %v5936 = vpow.pop %v5935
    %v5937 = vadd.f32 %v5936, 1.0
    %v5938 = vrcp.pop %v5937
    %v5939 = vmul.f32 1.0, %v5938
    %v5940 = vxor.u32 %v5861, 2147483648
    %v5941 = vmul.f32 %v5940, 1.442695
    %v5942 = vpow.pop %v5941
    %v5943 = vadd.f32 %v5942, 1.0
    %v5944 = vrcp.pop %v5943
    %v5945 = vmul.f32 1.0, %v5944
    %v5946 = vtanh.pop %v5930
    %v5947 = vxor.u32 %v5932, 2147483648
    %v5948 = vmul.f32 %v5947, 1.442695
    %v5949 = vpow.pop %v5948
    %v5950 = vadd.f32 %v5949, 1.0
    %v5951 = vrcp.pop %v5950
    %v5952 = vmul.f32 1.0, %v5951
    %v5953 = vmul.f32 %v5945, %v4705
    %v5954 = vmul.f32 %v5939, %v5946
    %v5955 = vadd.f32 %v5953, %v5954
    %v5956 = vtanh.pop %v5955
    %v5957 = vmul.f32 %v5952, %v5956
    %5958 = vmatprep.subr.mxu0 0.0
    %5959 = vmatpush1.msra.mxu0 %v114
    %5960 = vmatprep.subr.mxu0 0.0
    %5961 = vmatpush1.msra.mxu0 %v115
    %5962 = vmatprep.subr.mxu0 0.0
    %5963 = vmatpush1.msra.mxu0 %v116
    %5964 = vmatprep.subr.mxu0 0.0
    %5965 = vmatpush1.msra.mxu0 %v117
    %5966 = vmatprep.subr.mxu0 0.0
    %5967 = vmatpush1.msra.mxu0 %v118
    %5968 = vmatprep.subr.mxu0 0.0
    %5969 = vmatpush1.msra.mxu0 %v119
    %5970 = vmatprep.subr.mxu0 0.0
    %5971 = vmatpush1.msra.mxu0 %v120
    %5972 = vmatprep.subr.mxu0 0.0
    %5973 = vmatpush1.msra.mxu0 %v121
    %5974 = vmatprep.subr.mxu0 0.0
    %5975 = vmatpush1.msra.mxu0 %v122
    %5976 = vmatprep.subr.mxu0 0.0
    %5977 = vmatpush1.msra.mxu0 %v123
    %5978 = vmatprep.subr.mxu0 0.0
    %5979 = vmatpush1.msra.mxu0 %v124
    %5980 = vmatprep.subr.mxu0 0.0
    %5981 = vmatpush1.msra.mxu0 %v125
    %5982 = vmatprep.subr.mxu0 0.0
    %5983 = vmatpush1.msra.mxu0 %v126
    %5984 = vmatprep.subr.mxu0 0.0
    %5985 = vmatpush1.msra.mxu0 %v127
    %5986 = vmatprep.subr.mxu0 0.0
    %5987 = vmatpush1.msra.mxu0 %v128
    %5988 = vmatprep.subr.mxu0 0.0
    %5989 = vmatpush1.msra.mxu0 %v129
    %5990 = vmatprep.subr.mxu0 0.0
    %5991 = vmatpush1.msra.mxu0 0.0
    %5992 = vmatprep.subr.mxu0 0.0
    %5993 = vmatpush1.msra.mxu0 0.0
    %5994 = vmatprep.subr.mxu0 0.0
    %5995 = vmatpush1.msra.mxu0 0.0
    %5996 = vmatprep.subr.mxu0 0.0
    %5997 = vmatpush1.msra.mxu0 0.0
    %5998 = vmatprep.subr.mxu0 0.0
    %5999 = vmatpush1.msra.mxu0 0.0
    %6000 = vmatprep.subr.mxu0 0.0
    %6001 = vmatpush1.msra.mxu0 0.0
    %6002 = vmatprep.subr.mxu0 0.0
    %6003 = vmatpush1.msra.mxu0 0.0
    %6004 = vmatprep.subr.mxu0 0.0
    %6005 = vmatpush1.msra.mxu0 0.0
    %6006 = vmatprep.subr.mxu0 0.0
    %6007 = vmatpush1.msra.mxu0 0.0
    %6008 = vmatprep.subr.mxu0 0.0
    %6009 = vmatpush1.msra.mxu0 0.0
    %6010 = vmatprep.subr.mxu0 0.0
    %6011 = vmatpush1.msra.mxu0 0.0
    %6012 = vmatprep.subr.mxu0 0.0
    %6013 = vmatpush1.msra.mxu0 0.0
    %6014 = vmatprep.subr.mxu0 0.0
    %6015 = vmatpush1.msra.mxu0 0.0
    %6016 = vmatprep.subr.mxu0 0.0
    %6017 = vmatpush1.msra.mxu0 0.0
    %6018 = vmatprep.subr.mxu0 0.0
    %6019 = vmatpush1.msra.mxu0 0.0
    %6020 = vmatprep.subr.mxu0 0.0
    %6021 = vmatpush1.msra.mxu0 0.0
    %6022 = vmatprep.mubr.f32.mxu0 0.0
    %6023 = vmatmul.mubr.f32.gmra.mrb[0].mxu0 %v5957
    %v6024 = vpop.f32.mrb[0].mxu0
    %v6025 = vadd.f32 %v421, %v6024
    %v6026 = vpop.f32.mrb[0].mxu0
    %6027 = vdwg.mxu0
    %v6028 = vmax.f32 %v6025, 0.0
    %6029 = vmatprep.subr.mxu0 0.0
    %6030 = vmatpush1.msra.mxu0 %v130
    %6031 = vmatprep.subr.mxu0 0.0
    %6032 = vmatpush1.msra.mxu0 %v131
    %6033 = vmatprep.subr.mxu0 0.0
    %6034 = vmatpush1.msra.mxu0 %v132
    %6035 = vmatprep.subr.mxu0 0.0
    %6036 = vmatpush1.msra.mxu0 %v133
    %6037 = vmatprep.subr.mxu0 0.0
    %6038 = vmatpush1.msra.mxu0 %v134
    %6039 = vmatprep.subr.mxu0 0.0
    %6040 = vmatpush1.msra.mxu0 %v135
    %6041 = vmatprep.subr.mxu0 0.0
    %6042 = vmatpush1.msra.mxu0 %v136
    %6043 = vmatprep.subr.mxu0 0.0
    %6044 = vmatpush1.msra.mxu0 %v137
    %6045 = vmatprep.subr.mxu0 0.0
    %6046 = vmatpush1.msra.mxu0 %v138
    %6047 = vmatprep.subr.mxu0 0.0
    %6048 = vmatpush1.msra.mxu0 %v139
    %6049 = vmatprep.subr.mxu0 0.0
    %6050 = vmatpush1.msra.mxu0 %v140
    %6051 = vmatprep.subr.mxu0 0.0
    %6052 = vmatpush1.msra.mxu0 %v141
    %6053 = vmatprep.subr.mxu0 0.0
    %6054 = vmatpush1.msra.mxu0 %v142
    %6055 = vmatprep.subr.mxu0 0.0
    %6056 = vmatpush1.msra.mxu0 %v143
    %6057 = vmatprep.subr.mxu0 0.0
    %6058 = vmatpush1.msra.mxu0 %v144
    %6059 = vmatprep.subr.mxu0 0.0
    %6060 = vmatpush1.msra.mxu0 %v145
    %6061 = vmatprep.subr.mxu0 0.0
    %6062 = vmatpush1.msra.mxu0 0.0
    %6063 = vmatprep.subr.mxu0 0.0
    %6064 = vmatpush1.msra.mxu0 0.0
    %6065 = vmatprep.subr.mxu0 0.0
    %6066 = vmatpush1.msra.mxu0 0.0
    %6067 = vmatprep.subr.mxu0 0.0
    %6068 = vmatpush1.msra.mxu0 0.0
    %6069 = vmatprep.subr.mxu0 0.0
    %6070 = vmatpush1.msra.mxu0 0.0
    %6071 = vmatprep.subr.mxu0 0.0
    %6072 = vmatpush1.msra.mxu0 0.0
    %6073 = vmatprep.subr.mxu0 0.0
    %6074 = vmatpush1.msra.mxu0 0.0
    %6075 = vmatprep.subr.mxu0 0.0
    %6076 = vmatpush1.msra.mxu0 0.0
    %6077 = vmatprep.subr.mxu0 0.0
    %6078 = vmatpush1.msra.mxu0 0.0
    %6079 = vmatprep.subr.mxu0 0.0
    %6080 = vmatpush1.msra.mxu0 0.0
    %6081 = vmatprep.subr.mxu0 0.0
    %6082 = vmatpush1.msra.mxu0 0.0
    %6083 = vmatprep.subr.mxu0 0.0
    %6084 = vmatpush1.msra.mxu0 0.0
    %6085 = vmatprep.subr.mxu0 0.0
    %6086 = vmatpush1.msra.mxu0 0.0
    %6087 = vmatprep.subr.mxu0 0.0
    %6088 = vmatpush1.msra.mxu0 0.0
    %6089 = vmatprep.subr.mxu0 0.0
    %6090 = vmatpush1.msra.mxu0 0.0
    %6091 = vmatprep.subr.mxu0 0.0
    %6092 = vmatpush1.msra.mxu0 0.0
    %6093 = vmatprep.mubr.f32.mxu0 0.0
    %6094 = vmatmul.mubr.f32.gmra.mrb[0].mxu0 %v6028
    %v6095 = vpop.f32.mrb[0].mxu0
    %v6096 = vadd.f32 %v428, %v6095
    %v6097 = vpop.f32.mrb[0].mxu0
    %6098 = vdwg.mxu0
    %v6099 = vadd.f32 %v6096, %v5480
    %s6100 = scalar_lea.vmem [#allocation10], 64
    %6101 = vst.msk [vmem:[%s6100] sm:$0xff] %vm439, %v6099
    %v6103 = vsel %vm439, %v6099, 0
    %6105 = vmatprep.subr.mxu0 0.0
    %6106 = vmatpush1.msra.mxu0 %v96
    %6107 = vmatprep.subr.mxu0 0.0
    %6108 = vmatpush1.msra.mxu0 %v97
    %6109 = vmatprep.subr.mxu0 0.0
    %6110 = vmatpush1.msra.mxu0 0.0
    %6111 = vmatprep.subr.mxu0 0.0
    %6112 = vmatpush1.msra.mxu0 0.0
    %6113 = vmatprep.subr.mxu0 0.0
    %6114 = vmatpush1.msra.mxu0 0.0
    %6115 = vmatprep.subr.mxu0 0.0
    %6116 = vmatpush1.msra.mxu0 0.0
    %6117 = vmatprep.subr.mxu0 0.0
    %6118 = vmatpush1.msra.mxu0 0.0
    %6119 = vmatprep.subr.mxu0 0.0
    %6120 = vmatpush1.msra.mxu0 0.0
    %6121 = vmatprep.subr.mxu0 0.0
    %6122 = vmatpush1.msra.mxu0 0.0
    %6123 = vmatprep.subr.mxu0 0.0
    %6124 = vmatpush1.msra.mxu0 0.0
    %6125 = vmatprep.subr.mxu0 0.0
    %6126 = vmatpush1.msra.mxu0 0.0
    %6127 = vmatprep.subr.mxu0 0.0
    %6128 = vmatpush1.msra.mxu0 0.0
    %6129 = vmatprep.subr.mxu0 0.0
    %6130 = vmatpush1.msra.mxu0 0.0
    %6131 = vmatprep.subr.mxu0 0.0
    %6132 = vmatpush1.msra.mxu0 0.0
    %6133 = vmatprep.subr.mxu0 0.0
    %6134 = vmatpush1.msra.mxu0 0.0
    %6135 = vmatprep.subr.mxu0 0.0
    %6136 = vmatpush1.msra.mxu0 0.0
    %6137 = vmatprep.subr.mxu0 0.0
    %6138 = vmatpush1.msra.mxu0 0.0
    %6139 = vmatprep.subr.mxu0 0.0
    %6140 = vmatpush1.msra.mxu0 0.0
    %6141 = vmatprep.subr.mxu0 0.0
    %6142 = vmatpush1.msra.mxu0 0.0
    %6143 = vmatprep.subr.mxu0 0.0
    %6144 = vmatpush1.msra.mxu0 0.0
    %6145 = vmatprep.subr.mxu0 0.0
    %6146 = vmatpush1.msra.mxu0 0.0
    %6147 = vmatprep.subr.mxu0 0.0
    %6148 = vmatpush1.msra.mxu0 0.0
    %6149 = vmatprep.subr.mxu0 0.0
    %6150 = vmatpush1.msra.mxu0 0.0
    %6151 = vmatprep.subr.mxu0 0.0
    %6152 = vmatpush1.msra.mxu0 0.0
    %6153 = vmatprep.subr.mxu0 0.0
    %6154 = vmatpush1.msra.mxu0 0.0
    %6155 = vmatprep.subr.mxu0 0.0
    %6156 = vmatpush1.msra.mxu0 0.0
    %6157 = vmatprep.subr.mxu0 0.0
    %6158 = vmatpush1.msra.mxu0 0.0
    %6159 = vmatprep.subr.mxu0 0.0
    %6160 = vmatpush1.msra.mxu0 0.0
    %6161 = vmatprep.subr.mxu0 0.0
    %6162 = vmatpush1.msra.mxu0 0.0
    %6163 = vmatprep.subr.mxu0 0.0
    %6164 = vmatpush1.msra.mxu0 0.0
    %6165 = vmatprep.subr.mxu0 0.0
    %6166 = vmatpush1.msra.mxu0 0.0
    %6167 = vmatprep.subr.mxu0 0.0
    %6168 = vmatpush1.msra.mxu0 0.0
    %6169 = vmatprep.mubr.f32.mxu0 0.0
    %6170 = vmatmul.mubr.f32.gmra.mrb[0].mxu0 %v6103
    %v6171 = vpop.f32.mrb[0].mxu0
    %v6172 = vadd.f32 %v407, %v6171
    %v6173 = vpop.f32.mrb[0].mxu0
    %6174 = vdwg.mxu0
    %v6175 = vmax.f32 %v6172, 0.0
    %6176 = vmatprep.subr.mxu0 0.0
    %6177 = vmatpush1.msra.mxu0 %v98
    %6178 = vmatprep.subr.mxu0 0.0
    %6179 = vmatpush1.msra.mxu0 %v99
    %6180 = vmatprep.subr.mxu0 0.0
    %6181 = vmatpush1.msra.mxu0 %v100
    %6182 = vmatprep.subr.mxu0 0.0
    %6183 = vmatpush1.msra.mxu0 %v101
    %6184 = vmatprep.subr.mxu0 0.0
    %6185 = vmatpush1.msra.mxu0 %v102
    %6186 = vmatprep.subr.mxu0 0.0
    %6187 = vmatpush1.msra.mxu0 %v103
    %6188 = vmatprep.subr.mxu0 0.0
    %6189 = vmatpush1.msra.mxu0 %v104
    %6190 = vmatprep.subr.mxu0 0.0
    %6191 = vmatpush1.msra.mxu0 %v105
    %6192 = vmatprep.subr.mxu0 0.0
    %6193 = vmatpush1.msra.mxu0 %v106
    %6194 = vmatprep.subr.mxu0 0.0
    %6195 = vmatpush1.msra.mxu0 %v107
    %6196 = vmatprep.subr.mxu0 0.0
    %6197 = vmatpush1.msra.mxu0 %v108
    %6198 = vmatprep.subr.mxu0 0.0
    %6199 = vmatpush1.msra.mxu0 %v109
    %6200 = vmatprep.subr.mxu0 0.0
    %6201 = vmatpush1.msra.mxu0 %v110
    %6202 = vmatprep.subr.mxu0 0.0
    %6203 = vmatpush1.msra.mxu0 %v111
    %6204 = vmatprep.subr.mxu0 0.0
    %6205 = vmatpush1.msra.mxu0 %v112
    %6206 = vmatprep.subr.mxu0 0.0
    %6207 = vmatpush1.msra.mxu0 %v113
    %6208 = vmatprep.subr.mxu0 0.0
    %6209 = vmatpush1.msra.mxu0 0.0
    %6210 = vmatprep.subr.mxu0 0.0
    %6211 = vmatpush1.msra.mxu0 0.0
    %6212 = vmatprep.subr.mxu0 0.0
    %6213 = vmatpush1.msra.mxu0 0.0
    %6214 = vmatprep.subr.mxu0 0.0
    %6215 = vmatpush1.msra.mxu0 0.0
    %6216 = vmatprep.subr.mxu0 0.0
    %6217 = vmatpush1.msra.mxu0 0.0
    %6218 = vmatprep.subr.mxu0 0.0
    %6219 = vmatpush1.msra.mxu0 0.0
    %6220 = vmatprep.subr.mxu0 0.0
    %6221 = vmatpush1.msra.mxu0 0.0
    %6222 = vmatprep.subr.mxu0 0.0
    %6223 = vmatpush1.msra.mxu0 0.0
    %6224 = vmatprep.subr.mxu0 0.0
    %6225 = vmatpush1.msra.mxu0 0.0
    %6226 = vmatprep.subr.mxu0 0.0
    %6227 = vmatpush1.msra.mxu0 0.0
    %6228 = vmatprep.subr.mxu0 0.0
    %6229 = vmatpush1.msra.mxu0 0.0
    %6230 = vmatprep.subr.mxu0 0.0
    %6231 = vmatpush1.msra.mxu0 0.0
    %6232 = vmatprep.subr.mxu0 0.0
    %6233 = vmatpush1.msra.mxu0 0.0
    %6234 = vmatprep.subr.mxu0 0.0
    %6235 = vmatpush1.msra.mxu0 0.0
    %6236 = vmatprep.subr.mxu0 0.0
    %6237 = vmatpush1.msra.mxu0 0.0
    %6238 = vmatprep.subr.mxu0 0.0
    %6239 = vmatpush1.msra.mxu0 0.0
    %6240 = vmatprep.mubr.f32.mxu0 0.0
    %6241 = vmatmul.mubr.f32.gmra.mrb[0].mxu0 %v6175
    %v6242 = vpop.f32.mrb[0].mxu0
    %v6243 = vadd.f32 %v414, %v6242
    %v6244 = vpop.f32.mrb[0].mxu0
    %6245 = vdwg.mxu0
    %v6246 = vmax.f32 %v6243, 0.0
    %6247 = vmatprep.subr.mxu0 %v147
    %6248 = vmatpush1.msra.mxu0 %v146
    %6249 = vmatprep.subr.mxu0 %v151
    %6250 = vmatpush1.msra.mxu0 %v150
    %6251 = vmatprep.subr.mxu0 %v155
    %6252 = vmatpush1.msra.mxu0 %v154
    %6253 = vmatprep.subr.mxu0 %v159
    %6254 = vmatpush1.msra.mxu0 %v158
    %6255 = vmatprep.subr.mxu0 %v163
    %6256 = vmatpush1.msra.mxu0 %v162
    %6257 = vmatprep.subr.mxu0 %v167
    %6258 = vmatpush1.msra.mxu0 %v166
    %6259 = vmatprep.subr.mxu0 %v171
    %6260 = vmatpush1.msra.mxu0 %v170
    %6261 = vmatprep.subr.mxu0 %v175
    %6262 = vmatpush1.msra.mxu0 %v174
    %6263 = vmatprep.subr.mxu0 %v179
    %6264 = vmatpush1.msra.mxu0 %v178
    %6265 = vmatprep.subr.mxu0 %v183
    %6266 = vmatpush1.msra.mxu0 %v182
    %6267 = vmatprep.subr.mxu0 %v187
    %6268 = vmatpush1.msra.mxu0 %v186
    %6269 = vmatprep.subr.mxu0 %v191
    %6270 = vmatpush1.msra.mxu0 %v190
    %6271 = vmatprep.subr.mxu0 %v195
    %6272 = vmatpush1.msra.mxu0 %v194
    %6273 = vmatprep.subr.mxu0 %v199
    %6274 = vmatpush1.msra.mxu0 %v198
    %6275 = vmatprep.subr.mxu0 %v203
    %6276 = vmatpush1.msra.mxu0 %v202
    %6277 = vmatprep.subr.mxu0 %v207
    %6278 = vmatpush1.msra.mxu0 %v206
    %6279 = vmatprep.subr.mxu0 %v211
    %6280 = vmatpush1.msra.mxu0 %v210
    %6281 = vmatprep.subr.mxu0 %v215
    %6282 = vmatpush1.msra.mxu0 %v214
    %6283 = vmatprep.subr.mxu0 %v219
    %6284 = vmatpush1.msra.mxu0 %v218
    %6285 = vmatprep.subr.mxu0 %v223
    %6286 = vmatpush1.msra.mxu0 %v222
    %6287 = vmatprep.subr.mxu0 %v227
    %6288 = vmatpush1.msra.mxu0 %v226
    %6289 = vmatprep.subr.mxu0 %v231
    %6290 = vmatpush1.msra.mxu0 %v230
    %6291 = vmatprep.subr.mxu0 %v235
    %6292 = vmatpush1.msra.mxu0 %v234
    %6293 = vmatprep.subr.mxu0 %v239
    %6294 = vmatpush1.msra.mxu0 %v238
    %6295 = vmatprep.subr.mxu0 %v243
    %6296 = vmatpush1.msra.mxu0 %v242
    %6297 = vmatprep.subr.mxu0 %v247
    %6298 = vmatpush1.msra.mxu0 %v246
    %6299 = vmatprep.subr.mxu0 %v251
    %6300 = vmatpush1.msra.mxu0 %v250
    %6301 = vmatprep.subr.mxu0 %v255
    %6302 = vmatpush1.msra.mxu0 %v254
    %6303 = vmatprep.subr.mxu0 %v259
    %6304 = vmatpush1.msra.mxu0 %v258
    %6305 = vmatprep.subr.mxu0 %v263
    %6306 = vmatpush1.msra.mxu0 %v262
    %6307 = vmatprep.subr.mxu0 %v267
    %6308 = vmatpush1.msra.mxu0 %v266
    %6309 = vmatprep.subr.mxu0 %v271
    %6310 = vmatpush1.msra.mxu0 %v270
    %6311 = vmatprep.mubr.f32.mxu0 %v5791
    %6312 = vmatmul.mubr.f32.gmra.mrb[0].mxu0 %v6246
    %v6313 = vpop.f32.mrb[0].mxu0
    %v6314 = vadd.f32 %v589, %v6313
    %v6315 = vpop.f32.mrb[0].mxu0
    %v6316 = vadd.f32 %v593, %v6315
    %6317 = vdwg.mxu0
    %6318 = vmatprep.subr.mxu0 %v149
    %6319 = vmatpush1.msra.mxu0 %v148
    %6320 = vmatprep.subr.mxu0 %v153
    %6321 = vmatpush1.msra.mxu0 %v152
    %6322 = vmatprep.subr.mxu0 %v157
    %6323 = vmatpush1.msra.mxu0 %v156
    %6324 = vmatprep.subr.mxu0 %v161
    %6325 = vmatpush1.msra.mxu0 %v160
    %6326 = vmatprep.subr.mxu0 %v165
    %6327 = vmatpush1.msra.mxu0 %v164
    %6328 = vmatprep.subr.mxu0 %v169
    %6329 = vmatpush1.msra.mxu0 %v168
    %6330 = vmatprep.subr.mxu0 %v173
    %6331 = vmatpush1.msra.mxu0 %v172
    %6332 = vmatprep.subr.mxu0 %v177
    %6333 = vmatpush1.msra.mxu0 %v176
    %6334 = vmatprep.subr.mxu0 %v181
    %6335 = vmatpush1.msra.mxu0 %v180
    %6336 = vmatprep.subr.mxu0 %v185
    %6337 = vmatpush1.msra.mxu0 %v184
    %6338 = vmatprep.subr.mxu0 %v189
    %6339 = vmatpush1.msra.mxu0 %v188
    %6340 = vmatprep.subr.mxu0 %v193
    %6341 = vmatpush1.msra.mxu0 %v192
    %6342 = vmatprep.subr.mxu0 %v197
    %6343 = vmatpush1.msra.mxu0 %v196
    %6344 = vmatprep.subr.mxu0 %v201
    %6345 = vmatpush1.msra.mxu0 %v200
    %6346 = vmatprep.subr.mxu0 %v205
    %6347 = vmatpush1.msra.mxu0 %v204
    %6348 = vmatprep.subr.mxu0 %v209
    %6349 = vmatpush1.msra.mxu0 %v208
    %6350 = vmatprep.subr.mxu0 %v213
    %6351 = vmatpush1.msra.mxu0 %v212
    %6352 = vmatprep.subr.mxu0 %v217
    %6353 = vmatpush1.msra.mxu0 %v216
    %6354 = vmatprep.subr.mxu0 %v221
    %6355 = vmatpush1.msra.mxu0 %v220
    %6356 = vmatprep.subr.mxu0 %v225
    %6357 = vmatpush1.msra.mxu0 %v224
    %6358 = vmatprep.subr.mxu0 %v229
    %6359 = vmatpush1.msra.mxu0 %v228
    %6360 = vmatprep.subr.mxu0 %v233
    %6361 = vmatpush1.msra.mxu0 %v232
    %6362 = vmatprep.subr.mxu0 %v237
    %6363 = vmatpush1.msra.mxu0 %v236
    %6364 = vmatprep.subr.mxu0 %v241
    %6365 = vmatpush1.msra.mxu0 %v240
    %6366 = vmatprep.subr.mxu0 %v245
    %6367 = vmatpush1.msra.mxu0 %v244
    %6368 = vmatprep.subr.mxu0 %v249
    %6369 = vmatpush1.msra.mxu0 %v248
    %6370 = vmatprep.subr.mxu0 %v253
    %6371 = vmatpush1.msra.mxu0 %v252
    %6372 = vmatprep.subr.mxu0 %v257
    %6373 = vmatpush1.msra.mxu0 %v256
    %6374 = vmatprep.subr.mxu0 %v261
    %6375 = vmatpush1.msra.mxu0 %v260
    %6376 = vmatprep.subr.mxu0 %v265
    %6377 = vmatpush1.msra.mxu0 %v264
    %6378 = vmatprep.subr.mxu0 %v269
    %6379 = vmatpush1.msra.mxu0 %v268
    %6380 = vmatprep.subr.mxu0 %v273
    %6381 = vmatpush1.msra.mxu0 %v272
    %6382 = vmatprep.mubr.f32.mxu0 %v5791
    %6383 = vmatmul.mubr.f32.gmra.mrb[0].mxu0 %v6246
    %v6384 = vpop.f32.mrb[0].mxu0
    %v6385 = vadd.f32 %v597, %v6384
    %v6386 = vpop.f32.mrb[0].mxu0
    %v6387 = vadd.f32 %v601, %v6386
    %6388 = vdwg.mxu0
    %v6389 = vxor.u32 %v6314, 2147483648
    %v6390 = vmul.f32 %v6389, 1.442695
    %v6391 = vpow.pop %v6390
    %v6392 = vadd.f32 %v6391, 1.0
    %v6393 = vrcp.pop %v6392
    %v6394 = vmul.f32 1.0, %v6393
    %v6395 = vxor.u32 %v6316, 2147483648
    %v6396 = vmul.f32 %v6395, 1.442695
    %v6397 = vpow.pop %v6396
    %v6398 = vadd.f32 %v6397, 1.0
    %v6399 = vrcp.pop %v6398
    %v6400 = vmul.f32 1.0, %v6399
    %v6401 = vtanh.pop %v6385
    %v6402 = vxor.u32 %v6387, 2147483648
    %v6403 = vmul.f32 %v6402, 1.442695
    %v6404 = vpow.pop %v6403
    %v6405 = vadd.f32 %v6404, 1.0
    %v6406 = vrcp.pop %v6405
    %v6407 = vmul.f32 1.0, %v6406
    %v6408 = vmul.f32 %v6400, %v5789
    %v6409 = vmul.f32 %v6394, %v6401
    %v6410 = vadd.f32 %v6408, %v6409
    %v6411 = vtanh.pop %v6410
    %v6412 = vmul.f32 %v6407, %v6411
    %6413 = vmatprep.subr.mxu0 %v275
    %6414 = vmatpush1.msra.mxu0 %v274
    %6415 = vmatprep.subr.mxu0 %v279
    %6416 = vmatpush1.msra.mxu0 %v278
    %6417 = vmatprep.subr.mxu0 %v283
    %6418 = vmatpush1.msra.mxu0 %v282
    %6419 = vmatprep.subr.mxu0 %v287
    %6420 = vmatpush1.msra.mxu0 %v286
    %6421 = vmatprep.subr.mxu0 %v291
    %6422 = vmatpush1.msra.mxu0 %v290
    %6423 = vmatprep.subr.mxu0 %v295
    %6424 = vmatpush1.msra.mxu0 %v294
    %6425 = vmatprep.subr.mxu0 %v299
    %6426 = vmatpush1.msra.mxu0 %v298
    %6427 = vmatprep.subr.mxu0 %v303
    %6428 = vmatpush1.msra.mxu0 %v302
    %6429 = vmatprep.subr.mxu0 %v307
    %6430 = vmatpush1.msra.mxu0 %v306
    %6431 = vmatprep.subr.mxu0 %v311
    %6432 = vmatpush1.msra.mxu0 %v310
    %6433 = vmatprep.subr.mxu0 %v315
    %6434 = vmatpush1.msra.mxu0 %v314
    %6435 = vmatprep.subr.mxu0 %v319
    %6436 = vmatpush1.msra.mxu0 %v318
    %6437 = vmatprep.subr.mxu0 %v323
    %6438 = vmatpush1.msra.mxu0 %v322
    %6439 = vmatprep.subr.mxu0 %v327
    %6440 = vmatpush1.msra.mxu0 %v326
    %6441 = vmatprep.subr.mxu0 %v331
    %6442 = vmatpush1.msra.mxu0 %v330
    %6443 = vmatprep.subr.mxu0 %v335
    %6444 = vmatpush1.msra.mxu0 %v334
    %6445 = vmatprep.subr.mxu0 %v339
    %6446 = vmatpush1.msra.mxu0 %v338
    %6447 = vmatprep.subr.mxu0 %v343
    %6448 = vmatpush1.msra.mxu0 %v342
    %6449 = vmatprep.subr.mxu0 %v347
    %6450 = vmatpush1.msra.mxu0 %v346
    %6451 = vmatprep.subr.mxu0 %v351
    %6452 = vmatpush1.msra.mxu0 %v350
    %6453 = vmatprep.subr.mxu0 %v355
    %6454 = vmatpush1.msra.mxu0 %v354
    %6455 = vmatprep.subr.mxu0 %v359
    %6456 = vmatpush1.msra.mxu0 %v358
    %6457 = vmatprep.subr.mxu0 %v363
    %6458 = vmatpush1.msra.mxu0 %v362
    %6459 = vmatprep.subr.mxu0 %v367
    %6460 = vmatpush1.msra.mxu0 %v366
    %6461 = vmatprep.subr.mxu0 %v371
    %6462 = vmatpush1.msra.mxu0 %v370
    %6463 = vmatprep.subr.mxu0 %v375
    %6464 = vmatpush1.msra.mxu0 %v374
    %6465 = vmatprep.subr.mxu0 %v379
    %6466 = vmatpush1.msra.mxu0 %v378
    %6467 = vmatprep.subr.mxu0 %v383
    %6468 = vmatpush1.msra.mxu0 %v382
    %6469 = vmatprep.subr.mxu0 %v387
    %6470 = vmatpush1.msra.mxu0 %v386
    %6471 = vmatprep.subr.mxu0 %v391
    %6472 = vmatpush1.msra.mxu0 %v390
    %6473 = vmatprep.subr.mxu0 %v395
    %6474 = vmatpush1.msra.mxu0 %v394
    %6475 = vmatprep.subr.mxu0 %v399
    %6476 = vmatpush1.msra.mxu0 %v398
    %6477 = vmatprep.mubr.f32.mxu0 %v5957
    %6478 = vmatmul.mubr.f32.gmra.mrb[0].mxu0 %v6412
    %v6479 = vpop.f32.mrb[0].mxu0
    %v6480 = vadd.f32 %v776, %v6479
    %v6481 = vpop.f32.mrb[0].mxu0
    %v6482 = vadd.f32 %v780, %v6481
    %6483 = vdwg.mxu0
    %6484 = vmatprep.subr.mxu0 %v277
    %6485 = vmatpush1.msra.mxu0 %v276
    %6486 = vmatprep.subr.mxu0 %v281
    %6487 = vmatpush1.msra.mxu0 %v280
    %6488 = vmatprep.subr.mxu0 %v285
    %6489 = vmatpush1.msra.mxu0 %v284
    %6490 = vmatprep.subr.mxu0 %v289
    %6491 = vmatpush1.msra.mxu0 %v288
    %6492 = vmatprep.subr.mxu0 %v293
    %6493 = vmatpush1.msra.mxu0 %v292
    %6494 = vmatprep.subr.mxu0 %v297
    %6495 = vmatpush1.msra.mxu0 %v296
    %6496 = vmatprep.subr.mxu0 %v301
    %6497 = vmatpush1.msra.mxu0 %v300
    %6498 = vmatprep.subr.mxu0 %v305
    %6499 = vmatpush1.msra.mxu0 %v304
    %6500 = vmatprep.subr.mxu0 %v309
    %6501 = vmatpush1.msra.mxu0 %v308
    %6502 = vmatprep.subr.mxu0 %v313
    %6503 = vmatpush1.msra.mxu0 %v312
    %6504 = vmatprep.subr.mxu0 %v317
    %6505 = vmatpush1.msra.mxu0 %v316
    %6506 = vmatprep.subr.mxu0 %v321
    %6507 = vmatpush1.msra.mxu0 %v320
    %6508 = vmatprep.subr.mxu0 %v325
    %6509 = vmatpush1.msra.mxu0 %v324
    %6510 = vmatprep.subr.mxu0 %v329
    %6511 = vmatpush1.msra.mxu0 %v328
    %6512 = vmatprep.subr.mxu0 %v333
    %6513 = vmatpush1.msra.mxu0 %v332
    %6514 = vmatprep.subr.mxu0 %v337
    %6515 = vmatpush1.msra.mxu0 %v336
    %6516 = vmatprep.subr.mxu0 %v341
    %6517 = vmatpush1.msra.mxu0 %v340
    %6518 = vmatprep.subr.mxu0 %v345
    %6519 = vmatpush1.msra.mxu0 %v344
    %6520 = vmatprep.subr.mxu0 %v349
    %6521 = vmatpush1.msra.mxu0 %v348
    %6522 = vmatprep.subr.mxu0 %v353
    %6523 = vmatpush1.msra.mxu0 %v352
    %6524 = vmatprep.subr.mxu0 %v357
    %6525 = vmatpush1.msra.mxu0 %v356
    %6526 = vmatprep.subr.mxu0 %v361
    %6527 = vmatpush1.msra.mxu0 %v360
    %6528 = vmatprep.subr.mxu0 %v365
    %6529 = vmatpush1.msra.mxu0 %v364
    %6530 = vmatprep.subr.mxu0 %v369
    %6531 = vmatpush1.msra.mxu0 %v368
    %6532 = vmatprep.subr.mxu0 %v373
    %6533 = vmatpush1.msra.mxu0 %v372
    %6534 = vmatprep.subr.mxu0 %v377
    %6535 = vmatpush1.msra.mxu0 %v376
    %6536 = vmatprep.subr.mxu0 %v381
    %6537 = vmatpush1.msra.mxu0 %v380
    %6538 = vmatprep.subr.mxu0 %v385
    %6539 = vmatpush1.msra.mxu0 %v384
    %6540 = vmatprep.subr.mxu0 %v389
    %6541 = vmatpush1.msra.mxu0 %v388
    %6542 = vmatprep.subr.mxu0 %v393
    %6543 = vmatpush1.msra.mxu0 %v392
    %6544 = vmatprep.subr.mxu0 %v397
    %6545 = vmatpush1.msra.mxu0 %v396
    %6546 = vmatprep.subr.mxu0 %v401
    %6547 = vmatpush1.msra.mxu0 %v400
    %6548 = vmatprep.mubr.f32.mxu0 %v5957
    %6549 = vmatmul.mubr.f32.gmra.mrb[0].mxu0 %v6412
    %v6550 = vpop.f32.mrb[0].mxu0
    %v6551 = vadd.f32 %v784, %v6550
    %v6552 = vpop.f32.mrb[0].mxu0
    %v6553 = vadd.f32 %v788, %v6552
    %6554 = vdwg.mxu0
    %v6555 = vxor.u32 %v6480, 2147483648
    %v6556 = vmul.f32 %v6555, 1.442695
    %v6557 = vpow.pop %v6556
    %v6558 = vadd.f32 %v6557, 1.0
    %v6559 = vrcp.pop %v6558
    %v6560 = vmul.f32 1.0, %v6559
    %v6561 = vxor.u32 %v6482, 2147483648
    %v6562 = vmul.f32 %v6561, 1.442695
    %v6563 = vpow.pop %v6562
    %v6564 = vadd.f32 %v6563, 1.0
    %v6565 = vrcp.pop %v6564
    %v6566 = vmul.f32 1.0, %v6565
    %v6567 = vtanh.pop %v6551
    %v6568 = vxor.u32 %v6553, 2147483648
    %v6569 = vmul.f32 %v6568, 1.442695
    %v6570 = vpow.pop %v6569
    %v6571 = vadd.f32 %v6570, 1.0
    %v6572 = vrcp.pop %v6571
    %v6573 = vmul.f32 1.0, %v6572
    %v6574 = vmul.f32 %v6566, %v5955
    %v6575 = vmul.f32 %v6560, %v6567
    %v6576 = vadd.f32 %v6574, %v6575
    %v6577 = vtanh.pop %v6576
    %v6578 = vmul.f32 %v6573, %v6577
    %6579 = vmatprep.subr.mxu0 0.0
    %6580 = vmatpush1.msra.mxu0 %v114
    %6581 = vmatprep.subr.mxu0 0.0
    %6582 = vmatpush1.msra.mxu0 %v115
    %6583 = vmatprep.subr.mxu0 0.0
    %6584 = vmatpush1.msra.mxu0 %v116
    %6585 = vmatprep.subr.mxu0 0.0
    %6586 = vmatpush1.msra.mxu0 %v117
    %6587 = vmatprep.subr.mxu0 0.0
    %6588 = vmatpush1.msra.mxu0 %v118
    %6589 = vmatprep.subr.mxu0 0.0
    %6590 = vmatpush1.msra.mxu0 %v119
    %6591 = vmatprep.subr.mxu0 0.0
    %6592 = vmatpush1.msra.mxu0 %v120
    %6593 = vmatprep.subr.mxu0 0.0
    %6594 = vmatpush1.msra.mxu0 %v121
    %6595 = vmatprep.subr.mxu0 0.0
    %6596 = vmatpush1.msra.mxu0 %v122
    %6597 = vmatprep.subr.mxu0 0.0
    %6598 = vmatpush1.msra.mxu0 %v123
    %6599 = vmatprep.subr.mxu0 0.0
    %6600 = vmatpush1.msra.mxu0 %v124
    %6601 = vmatprep.subr.mxu0 0.0
    %6602 = vmatpush1.msra.mxu0 %v125
    %6603 = vmatprep.subr.mxu0 0.0
    %6604 = vmatpush1.msra.mxu0 %v126
    %6605 = vmatprep.subr.mxu0 0.0
    %6606 = vmatpush1.msra.mxu0 %v127
    %6607 = vmatprep.subr.mxu0 0.0
    %6608 = vmatpush1.msra.mxu0 %v128
    %6609 = vmatprep.subr.mxu0 0.0
    %6610 = vmatpush1.msra.mxu0 %v129
    %6611 = vmatprep.subr.mxu0 0.0
    %6612 = vmatpush1.msra.mxu0 0.0
    %6613 = vmatprep.subr.mxu0 0.0
    %6614 = vmatpush1.msra.mxu0 0.0
    %6615 = vmatprep.subr.mxu0 0.0
    %6616 = vmatpush1.msra.mxu0 0.0
    %6617 = vmatprep.subr.mxu0 0.0
    %6618 = vmatpush1.msra.mxu0 0.0
    %6619 = vmatprep.subr.mxu0 0.0
    %6620 = vmatpush1.msra.mxu0 0.0
    %6621 = vmatprep.subr.mxu0 0.0
    %6622 = vmatpush1.msra.mxu0 0.0
    %6623 = vmatprep.subr.mxu0 0.0
    %6624 = vmatpush1.msra.mxu0 0.0
    %6625 = vmatprep.subr.mxu0 0.0
    %6626 = vmatpush1.msra.mxu0 0.0
    %6627 = vmatprep.subr.mxu0 0.0
    %6628 = vmatpush1.msra.mxu0 0.0
    %6629 = vmatprep.subr.mxu0 0.0
    %6630 = vmatpush1.msra.mxu0 0.0
    %6631 = vmatprep.subr.mxu0 0.0
    %6632 = vmatpush1.msra.mxu0 0.0
    %6633 = vmatprep.subr.mxu0 0.0
    %6634 = vmatpush1.msra.mxu0 0.0
    %6635 = vmatprep.subr.mxu0 0.0
    %6636 = vmatpush1.msra.mxu0 0.0
    %6637 = vmatprep.subr.mxu0 0.0
    %6638 = vmatpush1.msra.mxu0 0.0
    %6639 = vmatprep.subr.mxu0 0.0
    %6640 = vmatpush1.msra.mxu0 0.0
    %6641 = vmatprep.subr.mxu0 0.0
    %6642 = vmatpush1.msra.mxu0 0.0
    %6643 = vmatprep.mubr.f32.mxu0 0.0
    %6644 = vmatmul.mubr.f32.gmra.mrb[0].mxu0 %v6578
    %v6645 = vpop.f32.mrb[0].mxu0
    %v6646 = vadd.f32 %v421, %v6645
    %v6647 = vpop.f32.mrb[0].mxu0
    %6648 = vdwg.mxu0
    %v6649 = vmax.f32 %v6646, 0.0
    %6650 = vmatprep.subr.mxu0 0.0
    %6651 = vmatpush1.msra.mxu0 %v130
    %6652 = vmatprep.subr.mxu0 0.0
    %6653 = vmatpush1.msra.mxu0 %v131
    %6654 = vmatprep.subr.mxu0 0.0
    %6655 = vmatpush1.msra.mxu0 %v132
    %6656 = vmatprep.subr.mxu0 0.0
    %6657 = vmatpush1.msra.mxu0 %v133
    %6658 = vmatprep.subr.mxu0 0.0
    %6659 = vmatpush1.msra.mxu0 %v134
    %6660 = vmatprep.subr.mxu0 0.0
    %6661 = vmatpush1.msra.mxu0 %v135
    %6662 = vmatprep.subr.mxu0 0.0
    %6663 = vmatpush1.msra.mxu0 %v136
    %6664 = vmatprep.subr.mxu0 0.0
    %6665 = vmatpush1.msra.mxu0 %v137
    %6666 = vmatprep.subr.mxu0 0.0
    %6667 = vmatpush1.msra.mxu0 %v138
    %6668 = vmatprep.subr.mxu0 0.0
    %6669 = vmatpush1.msra.mxu0 %v139
    %6670 = vmatprep.subr.mxu0 0.0
    %6671 = vmatpush1.msra.mxu0 %v140
    %6672 = vmatprep.subr.mxu0 0.0
    %6673 = vmatpush1.msra.mxu0 %v141
    %6674 = vmatprep.subr.mxu0 0.0
    %6675 = vmatpush1.msra.mxu0 %v142
    %6676 = vmatprep.subr.mxu0 0.0
    %6677 = vmatpush1.msra.mxu0 %v143
    %6678 = vmatprep.subr.mxu0 0.0
    %6679 = vmatpush1.msra.mxu0 %v144
    %6680 = vmatprep.subr.mxu0 0.0
    %6681 = vmatpush1.msra.mxu0 %v145
    %6682 = vmatprep.subr.mxu0 0.0
    %6683 = vmatpush1.msra.mxu0 0.0
    %6684 = vmatprep.subr.mxu0 0.0
    %6685 = vmatpush1.msra.mxu0 0.0
    %6686 = vmatprep.subr.mxu0 0.0
    %6687 = vmatpush1.msra.mxu0 0.0
    %6688 = vmatprep.subr.mxu0 0.0
    %6689 = vmatpush1.msra.mxu0 0.0
    %6690 = vmatprep.subr.mxu0 0.0
    %6691 = vmatpush1.msra.mxu0 0.0
    %6692 = vmatprep.subr.mxu0 0.0
    %6693 = vmatpush1.msra.mxu0 0.0
    %6694 = vmatprep.subr.mxu0 0.0
    %6695 = vmatpush1.msra.mxu0 0.0
    %6696 = vmatprep.subr.mxu0 0.0
    %6697 = vmatpush1.msra.mxu0 0.0
    %6698 = vmatprep.subr.mxu0 0.0
    %6699 = vmatpush1.msra.mxu0 0.0
    %6700 = vmatprep.subr.mxu0 0.0
    %6701 = vmatpush1.msra.mxu0 0.0
    %6702 = vmatprep.subr.mxu0 0.0
    %6703 = vmatpush1.msra.mxu0 0.0
    %6704 = vmatprep.subr.mxu0 0.0
    %6705 = vmatpush1.msra.mxu0 0.0
    %6706 = vmatprep.subr.mxu0 0.0
    %6707 = vmatpush1.msra.mxu0 0.0
    %6708 = vmatprep.subr.mxu0 0.0
    %6709 = vmatpush1.msra.mxu0 0.0
    %6710 = vmatprep.subr.mxu0 0.0
    %6711 = vmatpush1.msra.mxu0 0.0
    %6712 = vmatprep.subr.mxu0 0.0
    %6713 = vmatpush1.msra.mxu0 0.0
    %6714 = vmatprep.mubr.f32.mxu0 0.0
    %6715 = vmatmul.mubr.f32.gmra.mrb[0].mxu0 %v6649
    %v6716 = vpop.f32.mrb[0].mxu0
    %v6717 = vadd.f32 %v428, %v6716
    %v6718 = vpop.f32.mrb[0].mxu0
    %6719 = vdwg.mxu0
    %v6720 = vadd.f32 %v6717, %v6099
    %s6721 = scalar_lea.vmem [#allocation10], 72
    %6722 = vst.msk [vmem:[%s6721] sm:$0xff] %vm439, %v6720
    %s6723 = sld [smem:[#allocation2 + $0x5]]
    %p6724 = scmp.gt.s32.totalorder %s6723, 0
    %s6725 = scalar_lea.vmem [#allocation6], 40
    %v6726 = vld [vmem:[%s6725] sm:$0xff]
    %s6727 = scalar_select %p6724, 1, 0
    %v6728 = vstv %s6727
    %vm6729 = vcmp.eq.s32.totalorder %v6728, 1
    %v6730 = vsel %vm6729, %v6726, %v6099
    %v6732 = vsel %vm439, %v6730, 0
    %6734 = vmatprep.subr.mxu0 0.0
    %6735 = vmatpush1.msra.mxu0 %v96
    %6736 = vmatprep.subr.mxu0 0.0
    %6737 = vmatpush1.msra.mxu0 %v97
    %6738 = vmatprep.subr.mxu0 0.0
    %6739 = vmatpush1.msra.mxu0 0.0
    %6740 = vmatprep.subr.mxu0 0.0
    %6741 = vmatpush1.msra.mxu0 0.0
    %6742 = vmatprep.subr.mxu0 0.0
    %6743 = vmatpush1.msra.mxu0 0.0
    %6744 = vmatprep.subr.mxu0 0.0
    %6745 = vmatpush1.msra.mxu0 0.0
    %6746 = vmatprep.subr.mxu0 0.0
    %6747 = vmatpush1.msra.mxu0 0.0
    %6748 = vmatprep.subr.mxu0 0.0
    %6749 = vmatpush1.msra.mxu0 0.0
    %6750 = vmatprep.subr.mxu0 0.0
    %6751 = vmatpush1.msra.mxu0 0.0
    %6752 = vmatprep.subr.mxu0 0.0
    %6753 = vmatpush1.msra.mxu0 0.0
    %6754 = vmatprep.subr.mxu0 0.0
    %6755 = vmatpush1.msra.mxu0 0.0
    %6756 = vmatprep.subr.mxu0 0.0
    %6757 = vmatpush1.msra.mxu0 0.0
    %6758 = vmatprep.subr.mxu0 0.0
    %6759 = vmatpush1.msra.mxu0 0.0
    %6760 = vmatprep.subr.mxu0 0.0
    %6761 = vmatpush1.msra.mxu0 0.0
    %6762 = vmatprep.subr.mxu0 0.0
    %6763 = vmatpush1.msra.mxu0 0.0
    %6764 = vmatprep.subr.mxu0 0.0
    %6765 = vmatpush1.msra.mxu0 0.0
    %6766 = vmatprep.subr.mxu0 0.0
    %6767 = vmatpush1.msra.mxu0 0.0
    %6768 = vmatprep.subr.mxu0 0.0
    %6769 = vmatpush1.msra.mxu0 0.0
    %6770 = vmatprep.subr.mxu0 0.0
    %6771 = vmatpush1.msra.mxu0 0.0
    %6772 = vmatprep.subr.mxu0 0.0
    %6773 = vmatpush1.msra.mxu0 0.0
    %6774 = vmatprep.subr.mxu0 0.0
    %6775 = vmatpush1.msra.mxu0 0.0
    %6776 = vmatprep.subr.mxu0 0.0
    %6777 = vmatpush1.msra.mxu0 0.0
    %6778 = vmatprep.subr.mxu0 0.0
    %6779 = vmatpush1.msra.mxu0 0.0
    %6780 = vmatprep.subr.mxu0 0.0
    %6781 = vmatpush1.msra.mxu0 0.0
    %6782 = vmatprep.subr.mxu0 0.0
    %6783 = vmatpush1.msra.mxu0 0.0
    %6784 = vmatprep.subr.mxu0 0.0
    %6785 = vmatpush1.msra.mxu0 0.0
    %6786 = vmatprep.subr.mxu0 0.0
    %6787 = vmatpush1.msra.mxu0 0.0
    %6788 = vmatprep.subr.mxu0 0.0
    %6789 = vmatpush1.msra.mxu0 0.0
    %6790 = vmatprep.subr.mxu0 0.0
    %6791 = vmatpush1.msra.mxu0 0.0
    %6792 = vmatprep.subr.mxu0 0.0
    %6793 = vmatpush1.msra.mxu0 0.0
    %6794 = vmatprep.subr.mxu0 0.0
    %6795 = vmatpush1.msra.mxu0 0.0
    %6796 = vmatprep.subr.mxu0 0.0
    %6797 = vmatpush1.msra.mxu0 0.0
    %6798 = vmatprep.mubr.f32.mxu0 0.0
    %6799 = vmatmul.mubr.f32.gmra.mrb[0].mxu0 %v6732
    %v6800 = vpop.f32.mrb[0].mxu0
    %v6801 = vadd.f32 %v407, %v6800
    %v6802 = vpop.f32.mrb[0].mxu0
    %6803 = vdwg.mxu0
    %v6804 = vmax.f32 %v6801, 0.0
    %6805 = vmatprep.subr.mxu0 0.0
    %6806 = vmatpush1.msra.mxu0 %v98
    %6807 = vmatprep.subr.mxu0 0.0
    %6808 = vmatpush1.msra.mxu0 %v99
    %6809 = vmatprep.subr.mxu0 0.0
    %6810 = vmatpush1.msra.mxu0 %v100
    %6811 = vmatprep.subr.mxu0 0.0
    %6812 = vmatpush1.msra.mxu0 %v101
    %6813 = vmatprep.subr.mxu0 0.0
    %6814 = vmatpush1.msra.mxu0 %v102
    %6815 = vmatprep.subr.mxu0 0.0
    %6816 = vmatpush1.msra.mxu0 %v103
    %6817 = vmatprep.subr.mxu0 0.0
    %6818 = vmatpush1.msra.mxu0 %v104
    %6819 = vmatprep.subr.mxu0 0.0
    %6820 = vmatpush1.msra.mxu0 %v105
    %6821 = vmatprep.subr.mxu0 0.0
    %6822 = vmatpush1.msra.mxu0 %v106
    %6823 = vmatprep.subr.mxu0 0.0
    %6824 = vmatpush1.msra.mxu0 %v107
    %6825 = vmatprep.subr.mxu0 0.0
    %6826 = vmatpush1.msra.mxu0 %v108
    %6827 = vmatprep.subr.mxu0 0.0
    %6828 = vmatpush1.msra.mxu0 %v109
    %6829 = vmatprep.subr.mxu0 0.0
    %6830 = vmatpush1.msra.mxu0 %v110
    %6831 = vmatprep.subr.mxu0 0.0
    %6832 = vmatpush1.msra.mxu0 %v111
    %6833 = vmatprep.subr.mxu0 0.0
    %6834 = vmatpush1.msra.mxu0 %v112
    %6835 = vmatprep.subr.mxu0 0.0
    %6836 = vmatpush1.msra.mxu0 %v113
    %6837 = vmatprep.subr.mxu0 0.0
    %6838 = vmatpush1.msra.mxu0 0.0
    %6839 = vmatprep.subr.mxu0 0.0
    %6840 = vmatpush1.msra.mxu0 0.0
    %6841 = vmatprep.subr.mxu0 0.0
    %6842 = vmatpush1.msra.mxu0 0.0
    %6843 = vmatprep.subr.mxu0 0.0
    %6844 = vmatpush1.msra.mxu0 0.0
    %6845 = vmatprep.subr.mxu0 0.0
    %6846 = vmatpush1.msra.mxu0 0.0
    %6847 = vmatprep.subr.mxu0 0.0
    %6848 = vmatpush1.msra.mxu0 0.0
    %6849 = vmatprep.subr.mxu0 0.0
    %6850 = vmatpush1.msra.mxu0 0.0
    %6851 = vmatprep.subr.mxu0 0.0
    %6852 = vmatpush1.msra.mxu0 0.0
    %6853 = vmatprep.subr.mxu0 0.0
    %6854 = vmatpush1.msra.mxu0 0.0
    %6855 = vmatprep.subr.mxu0 0.0
    %6856 = vmatpush1.msra.mxu0 0.0
    %6857 = vmatprep.subr.mxu0 0.0
    %6858 = vmatpush1.msra.mxu0 0.0
    %6859 = vmatprep.subr.mxu0 0.0
    %6860 = vmatpush1.msra.mxu0 0.0
    %6861 = vmatprep.subr.mxu0 0.0
    %6862 = vmatpush1.msra.mxu0 0.0
    %6863 = vmatprep.subr.mxu0 0.0
    %6864 = vmatpush1.msra.mxu0 0.0
    %6865 = vmatprep.subr.mxu0 0.0
    %6866 = vmatpush1.msra.mxu0 0.0
    %6867 = vmatprep.subr.mxu0 0.0
    %6868 = vmatpush1.msra.mxu0 0.0
    %6869 = vmatprep.mubr.f32.mxu0 0.0
    %6870 = vmatmul.mubr.f32.gmra.mrb[0].mxu0 %v6804
    %v6871 = vpop.f32.mrb[0].mxu0
    %v6872 = vadd.f32 %v414, %v6871
    %v6873 = vpop.f32.mrb[0].mxu0
    %6874 = vdwg.mxu0
    %v6875 = vmax.f32 %v6872, 0.0
    %6876 = vmatprep.subr.mxu0 %v147
    %6877 = vmatpush1.msra.mxu0 %v146
    %6878 = vmatprep.subr.mxu0 %v151
    %6879 = vmatpush1.msra.mxu0 %v150
    %6880 = vmatprep.subr.mxu0 %v155
    %6881 = vmatpush1.msra.mxu0 %v154
    %6882 = vmatprep.subr.mxu0 %v159
    %6883 = vmatpush1.msra.mxu0 %v158
    %6884 = vmatprep.subr.mxu0 %v163
    %6885 = vmatpush1.msra.mxu0 %v162
    %6886 = vmatprep.subr.mxu0 %v167
    %6887 = vmatpush1.msra.mxu0 %v166
    %6888 = vmatprep.subr.mxu0 %v171
    %6889 = vmatpush1.msra.mxu0 %v170
    %6890 = vmatprep.subr.mxu0 %v175
    %6891 = vmatpush1.msra.mxu0 %v174
    %6892 = vmatprep.subr.mxu0 %v179
    %6893 = vmatpush1.msra.mxu0 %v178
    %6894 = vmatprep.subr.mxu0 %v183
    %6895 = vmatpush1.msra.mxu0 %v182
    %6896 = vmatprep.subr.mxu0 %v187
    %6897 = vmatpush1.msra.mxu0 %v186
    %6898 = vmatprep.subr.mxu0 %v191
    %6899 = vmatpush1.msra.mxu0 %v190
    %6900 = vmatprep.subr.mxu0 %v195
    %6901 = vmatpush1.msra.mxu0 %v194
    %6902 = vmatprep.subr.mxu0 %v199
    %6903 = vmatpush1.msra.mxu0 %v198
    %6904 = vmatprep.subr.mxu0 %v203
    %6905 = vmatpush1.msra.mxu0 %v202
    %6906 = vmatprep.subr.mxu0 %v207
    %6907 = vmatpush1.msra.mxu0 %v206
    %6908 = vmatprep.subr.mxu0 %v211
    %6909 = vmatpush1.msra.mxu0 %v210
    %6910 = vmatprep.subr.mxu0 %v215
    %6911 = vmatpush1.msra.mxu0 %v214
    %6912 = vmatprep.subr.mxu0 %v219
    %6913 = vmatpush1.msra.mxu0 %v218
    %6914 = vmatprep.subr.mxu0 %v223
    %6915 = vmatpush1.msra.mxu0 %v222
    %6916 = vmatprep.subr.mxu0 %v227
    %6917 = vmatpush1.msra.mxu0 %v226
    %6918 = vmatprep.subr.mxu0 %v231
    %6919 = vmatpush1.msra.mxu0 %v230
    %6920 = vmatprep.subr.mxu0 %v235
    %6921 = vmatpush1.msra.mxu0 %v234
    %6922 = vmatprep.subr.mxu0 %v239
    %6923 = vmatpush1.msra.mxu0 %v238
    %6924 = vmatprep.subr.mxu0 %v243
    %6925 = vmatpush1.msra.mxu0 %v242
    %6926 = vmatprep.subr.mxu0 %v247
    %6927 = vmatpush1.msra.mxu0 %v246
    %6928 = vmatprep.subr.mxu0 %v251
    %6929 = vmatpush1.msra.mxu0 %v250
    %6930 = vmatprep.subr.mxu0 %v255
    %6931 = vmatpush1.msra.mxu0 %v254
    %6932 = vmatprep.subr.mxu0 %v259
    %6933 = vmatpush1.msra.mxu0 %v258
    %6934 = vmatprep.subr.mxu0 %v263
    %6935 = vmatpush1.msra.mxu0 %v262
    %6936 = vmatprep.subr.mxu0 %v267
    %6937 = vmatpush1.msra.mxu0 %v266
    %6938 = vmatprep.subr.mxu0 %v271
    %6939 = vmatpush1.msra.mxu0 %v270
    %6940 = vmatprep.mubr.f32.mxu0 %v5791
    %6941 = vmatmul.mubr.f32.gmra.mrb[0].mxu0 %v6875
    %v6942 = vpop.f32.mrb[0].mxu0
    %v6943 = vadd.f32 %v589, %v6942
    %v6944 = vpop.f32.mrb[0].mxu0
    %v6945 = vadd.f32 %v593, %v6944
    %6946 = vdwg.mxu0
    %6947 = vmatprep.subr.mxu0 %v149
    %6948 = vmatpush1.msra.mxu0 %v148
    %6949 = vmatprep.subr.mxu0 %v153
    %6950 = vmatpush1.msra.mxu0 %v152
    %6951 = vmatprep.subr.mxu0 %v157
    %6952 = vmatpush1.msra.mxu0 %v156
    %6953 = vmatprep.subr.mxu0 %v161
    %6954 = vmatpush1.msra.mxu0 %v160
    %6955 = vmatprep.subr.mxu0 %v165
    %6956 = vmatpush1.msra.mxu0 %v164
    %6957 = vmatprep.subr.mxu0 %v169
    %6958 = vmatpush1.msra.mxu0 %v168
    %6959 = vmatprep.subr.mxu0 %v173
    %6960 = vmatpush1.msra.mxu0 %v172
    %6961 = vmatprep.subr.mxu0 %v177
    %6962 = vmatpush1.msra.mxu0 %v176
    %6963 = vmatprep.subr.mxu0 %v181
    %6964 = vmatpush1.msra.mxu0 %v180
    %6965 = vmatprep.subr.mxu0 %v185
    %6966 = vmatpush1.msra.mxu0 %v184
    %6967 = vmatprep.subr.mxu0 %v189
    %6968 = vmatpush1.msra.mxu0 %v188
    %6969 = vmatprep.subr.mxu0 %v193
    %6970 = vmatpush1.msra.mxu0 %v192
    %6971 = vmatprep.subr.mxu0 %v197
    %6972 = vmatpush1.msra.mxu0 %v196
    %6973 = vmatprep.subr.mxu0 %v201
    %6974 = vmatpush1.msra.mxu0 %v200
    %6975 = vmatprep.subr.mxu0 %v205
    %6976 = vmatpush1.msra.mxu0 %v204
    %6977 = vmatprep.subr.mxu0 %v209
    %6978 = vmatpush1.msra.mxu0 %v208
    %6979 = vmatprep.subr.mxu0 %v213
    %6980 = vmatpush1.msra.mxu0 %v212
    %6981 = vmatprep.subr.mxu0 %v217
    %6982 = vmatpush1.msra.mxu0 %v216
    %6983 = vmatprep.subr.mxu0 %v221
    %6984 = vmatpush1.msra.mxu0 %v220
    %6985 = vmatprep.subr.mxu0 %v225
    %6986 = vmatpush1.msra.mxu0 %v224
    %6987 = vmatprep.subr.mxu0 %v229
    %6988 = vmatpush1.msra.mxu0 %v228
    %6989 = vmatprep.subr.mxu0 %v233
    %6990 = vmatpush1.msra.mxu0 %v232
    %6991 = vmatprep.subr.mxu0 %v237
    %6992 = vmatpush1.msra.mxu0 %v236
    %6993 = vmatprep.subr.mxu0 %v241
    %6994 = vmatpush1.msra.mxu0 %v240
    %6995 = vmatprep.subr.mxu0 %v245
    %6996 = vmatpush1.msra.mxu0 %v244
    %6997 = vmatprep.subr.mxu0 %v249
    %6998 = vmatpush1.msra.mxu0 %v248
    %6999 = vmatprep.subr.mxu0 %v253
    %7000 = vmatpush1.msra.mxu0 %v252
    %7001 = vmatprep.subr.mxu0 %v257
    %7002 = vmatpush1.msra.mxu0 %v256
    %7003 = vmatprep.subr.mxu0 %v261
    %7004 = vmatpush1.msra.mxu0 %v260
    %7005 = vmatprep.subr.mxu0 %v265
    %7006 = vmatpush1.msra.mxu0 %v264
    %7007 = vmatprep.subr.mxu0 %v269
    %7008 = vmatpush1.msra.mxu0 %v268
    %7009 = vmatprep.subr.mxu0 %v273
    %7010 = vmatpush1.msra.mxu0 %v272
    %7011 = vmatprep.mubr.f32.mxu0 %v5791
    %7012 = vmatmul.mubr.f32.gmra.mrb[0].mxu0 %v6875
    %v7013 = vpop.f32.mrb[0].mxu0
    %v7014 = vadd.f32 %v597, %v7013
    %v7015 = vpop.f32.mrb[0].mxu0
    %v7016 = vadd.f32 %v601, %v7015
    %7017 = vdwg.mxu0
    %v7018 = vxor.u32 %v6943, 2147483648
    %v7019 = vmul.f32 %v7018, 1.442695
    %v7020 = vpow.pop %v7019
    %v7021 = vadd.f32 %v7020, 1.0
    %v7022 = vrcp.pop %v7021
    %v7023 = vmul.f32 1.0, %v7022
    %v7024 = vxor.u32 %v6945, 2147483648
    %v7025 = vmul.f32 %v7024, 1.442695
    %v7026 = vpow.pop %v7025
    %v7027 = vadd.f32 %v7026, 1.0
    %v7028 = vrcp.pop %v7027
    %v7029 = vmul.f32 1.0, %v7028
    %v7030 = vtanh.pop %v7014
    %v7031 = vxor.u32 %v7016, 2147483648
    %v7032 = vmul.f32 %v7031, 1.442695
    %v7033 = vpow.pop %v7032
    %v7034 = vadd.f32 %v7033, 1.0
    %v7035 = vrcp.pop %v7034
    %v7036 = vmul.f32 1.0, %v7035
    %v7037 = vmul.f32 %v7029, %v5789
    %v7038 = vmul.f32 %v7023, %v7030
    %v7039 = vadd.f32 %v7037, %v7038
    %v7040 = vtanh.pop %v7039
    %v7041 = vmul.f32 %v7036, %v7040
    %7042 = vmatprep.subr.mxu0 %v275
    %7043 = vmatpush1.msra.mxu0 %v274
    %7044 = vmatprep.subr.mxu0 %v279
    %7045 = vmatpush1.msra.mxu0 %v278
    %7046 = vmatprep.subr.mxu0 %v283
    %7047 = vmatpush1.msra.mxu0 %v282
    %7048 = vmatprep.subr.mxu0 %v287
    %7049 = vmatpush1.msra.mxu0 %v286
    %7050 = vmatprep.subr.mxu0 %v291
    %7051 = vmatpush1.msra.mxu0 %v290
    %7052 = vmatprep.subr.mxu0 %v295
    %7053 = vmatpush1.msra.mxu0 %v294
    %7054 = vmatprep.subr.mxu0 %v299
    %7055 = vmatpush1.msra.mxu0 %v298
    %7056 = vmatprep.subr.mxu0 %v303
    %7057 = vmatpush1.msra.mxu0 %v302
    %7058 = vmatprep.subr.mxu0 %v307
    %7059 = vmatpush1.msra.mxu0 %v306
    %7060 = vmatprep.subr.mxu0 %v311
    %7061 = vmatpush1.msra.mxu0 %v310
    %7062 = vmatprep.subr.mxu0 %v315
    %7063 = vmatpush1.msra.mxu0 %v314
    %7064 = vmatprep.subr.mxu0 %v319
    %7065 = vmatpush1.msra.mxu0 %v318
    %7066 = vmatprep.subr.mxu0 %v323
    %7067 = vmatpush1.msra.mxu0 %v322
    %7068 = vmatprep.subr.mxu0 %v327
    %7069 = vmatpush1.msra.mxu0 %v326
    %7070 = vmatprep.subr.mxu0 %v331
    %7071 = vmatpush1.msra.mxu0 %v330
    %7072 = vmatprep.subr.mxu0 %v335
    %7073 = vmatpush1.msra.mxu0 %v334
    %7074 = vmatprep.subr.mxu0 %v339
    %7075 = vmatpush1.msra.mxu0 %v338
    %7076 = vmatprep.subr.mxu0 %v343
    %7077 = vmatpush1.msra.mxu0 %v342
    %7078 = vmatprep.subr.mxu0 %v347
    %7079 = vmatpush1.msra.mxu0 %v346
    %7080 = vmatprep.subr.mxu0 %v351
    %7081 = vmatpush1.msra.mxu0 %v350
    %7082 = vmatprep.subr.mxu0 %v355
    %7083 = vmatpush1.msra.mxu0 %v354
    %7084 = vmatprep.subr.mxu0 %v359
    %7085 = vmatpush1.msra.mxu0 %v358
    %7086 = vmatprep.subr.mxu0 %v363
    %7087 = vmatpush1.msra.mxu0 %v362
    %7088 = vmatprep.subr.mxu0 %v367
    %7089 = vmatpush1.msra.mxu0 %v366
    %7090 = vmatprep.subr.mxu0 %v371
    %7091 = vmatpush1.msra.mxu0 %v370
    %7092 = vmatprep.subr.mxu0 %v375
    %7093 = vmatpush1.msra.mxu0 %v374
    %7094 = vmatprep.subr.mxu0 %v379
    %7095 = vmatpush1.msra.mxu0 %v378
    %7096 = vmatprep.subr.mxu0 %v383
    %7097 = vmatpush1.msra.mxu0 %v382
    %7098 = vmatprep.subr.mxu0 %v387
    %7099 = vmatpush1.msra.mxu0 %v386
    %7100 = vmatprep.subr.mxu0 %v391
    %7101 = vmatpush1.msra.mxu0 %v390
    %7102 = vmatprep.subr.mxu0 %v395
    %7103 = vmatpush1.msra.mxu0 %v394
    %7104 = vmatprep.subr.mxu0 %v399
    %7105 = vmatpush1.msra.mxu0 %v398
    %7106 = vmatprep.mubr.f32.mxu0 %v5957
    %7107 = vmatmul.mubr.f32.gmra.mrb[0].mxu0 %v7041
    %v7108 = vpop.f32.mrb[0].mxu0
    %v7109 = vadd.f32 %v776, %v7108
    %v7110 = vpop.f32.mrb[0].mxu0
    %v7111 = vadd.f32 %v780, %v7110
    %7112 = vdwg.mxu0
    %7113 = vmatprep.subr.mxu0 %v277
    %7114 = vmatpush1.msra.mxu0 %v276
    %7115 = vmatprep.subr.mxu0 %v281
    %7116 = vmatpush1.msra.mxu0 %v280
    %7117 = vmatprep.subr.mxu0 %v285
    %7118 = vmatpush1.msra.mxu0 %v284
    %7119 = vmatprep.subr.mxu0 %v289
    %7120 = vmatpush1.msra.mxu0 %v288
    %7121 = vmatprep.subr.mxu0 %v293
    %7122 = vmatpush1.msra.mxu0 %v292
    %7123 = vmatprep.subr.mxu0 %v297
    %7124 = vmatpush1.msra.mxu0 %v296
    %7125 = vmatprep.subr.mxu0 %v301
    %7126 = vmatpush1.msra.mxu0 %v300
    %7127 = vmatprep.subr.mxu0 %v305
    %7128 = vmatpush1.msra.mxu0 %v304
    %7129 = vmatprep.subr.mxu0 %v309
    %7130 = vmatpush1.msra.mxu0 %v308
    %7131 = vmatprep.subr.mxu0 %v313
    %7132 = vmatpush1.msra.mxu0 %v312
    %7133 = vmatprep.subr.mxu0 %v317
    %7134 = vmatpush1.msra.mxu0 %v316
    %7135 = vmatprep.subr.mxu0 %v321
    %7136 = vmatpush1.msra.mxu0 %v320
    %7137 = vmatprep.subr.mxu0 %v325
    %7138 = vmatpush1.msra.mxu0 %v324
    %7139 = vmatprep.subr.mxu0 %v329
    %7140 = vmatpush1.msra.mxu0 %v328
    %7141 = vmatprep.subr.mxu0 %v333
    %7142 = vmatpush1.msra.mxu0 %v332
    %7143 = vmatprep.subr.mxu0 %v337
    %7144 = vmatpush1.msra.mxu0 %v336
    %7145 = vmatprep.subr.mxu0 %v341
    %7146 = vmatpush1.msra.mxu0 %v340
    %7147 = vmatprep.subr.mxu0 %v345
    %7148 = vmatpush1.msra.mxu0 %v344
    %7149 = vmatprep.subr.mxu0 %v349
    %7150 = vmatpush1.msra.mxu0 %v348
    %7151 = vmatprep.subr.mxu0 %v353
    %7152 = vmatpush1.msra.mxu0 %v352
    %7153 = vmatprep.subr.mxu0 %v357
    %7154 = vmatpush1.msra.mxu0 %v356
    %7155 = vmatprep.subr.mxu0 %v361
    %7156 = vmatpush1.msra.mxu0 %v360
    %7157 = vmatprep.subr.mxu0 %v365
    %7158 = vmatpush1.msra.mxu0 %v364
    %7159 = vmatprep.subr.mxu0 %v369
    %7160 = vmatpush1.msra.mxu0 %v368
    %7161 = vmatprep.subr.mxu0 %v373
    %7162 = vmatpush1.msra.mxu0 %v372
    %7163 = vmatprep.subr.mxu0 %v377
    %7164 = vmatpush1.msra.mxu0 %v376
    %7165 = vmatprep.subr.mxu0 %v381
    %7166 = vmatpush1.msra.mxu0 %v380
    %7167 = vmatprep.subr.mxu0 %v385
    %7168 = vmatpush1.msra.mxu0 %v384
    %7169 = vmatprep.subr.mxu0 %v389
    %7170 = vmatpush1.msra.mxu0 %v388
    %7171 = vmatprep.subr.mxu0 %v393
    %7172 = vmatpush1.msra.mxu0 %v392
    %7173 = vmatprep.subr.mxu0 %v397
    %7174 = vmatpush1.msra.mxu0 %v396
    %7175 = vmatprep.subr.mxu0 %v401
    %7176 = vmatpush1.msra.mxu0 %v400
    %7177 = vmatprep.mubr.f32.mxu0 %v5957
    %7178 = vmatmul.mubr.f32.gmra.mrb[0].mxu0 %v7041
    %v7179 = vpop.f32.mrb[0].mxu0
    %v7180 = vadd.f32 %v784, %v7179
    %v7181 = vpop.f32.mrb[0].mxu0
    %v7182 = vadd.f32 %v788, %v7181
    %7183 = vdwg.mxu0
    %v7184 = vxor.u32 %v7109, 2147483648
    %v7185 = vmul.f32 %v7184, 1.442695
    %v7186 = vpow.pop %v7185
    %v7187 = vadd.f32 %v7186, 1.0
    %v7188 = vrcp.pop %v7187
    %v7189 = vmul.f32 1.0, %v7188
    %v7190 = vxor.u32 %v7111, 2147483648
    %v7191 = vmul.f32 %v7190, 1.442695
    %v7192 = vpow.pop %v7191
    %v7193 = vadd.f32 %v7192, 1.0
    %v7194 = vrcp.pop %v7193
    %v7195 = vmul.f32 1.0, %v7194
    %v7196 = vtanh.pop %v7180
    %v7197 = vxor.u32 %v7182, 2147483648
    %v7198 = vmul.f32 %v7197, 1.442695
    %v7199 = vpow.pop %v7198
    %v7200 = vadd.f32 %v7199, 1.0
    %v7201 = vrcp.pop %v7200
    %v7202 = vmul.f32 1.0, %v7201
    %v7203 = vmul.f32 %v7195, %v5955
    %v7204 = vmul.f32 %v7189, %v7196
    %v7205 = vadd.f32 %v7203, %v7204
    %v7206 = vtanh.pop %v7205
    %v7207 = vmul.f32 %v7202, %v7206
    %7208 = vmatprep.subr.mxu0 0.0
    %7209 = vmatpush1.msra.mxu0 %v114
    %7210 = vmatprep.subr.mxu0 0.0
    %7211 = vmatpush1.msra.mxu0 %v115
    %7212 = vmatprep.subr.mxu0 0.0
    %7213 = vmatpush1.msra.mxu0 %v116
    %7214 = vmatprep.subr.mxu0 0.0
    %7215 = vmatpush1.msra.mxu0 %v117
    %7216 = vmatprep.subr.mxu0 0.0
    %7217 = vmatpush1.msra.mxu0 %v118
    %7218 = vmatprep.subr.mxu0 0.0
    %7219 = vmatpush1.msra.mxu0 %v119
    %7220 = vmatprep.subr.mxu0 0.0
    %7221 = vmatpush1.msra.mxu0 %v120
    %7222 = vmatprep.subr.mxu0 0.0
    %7223 = vmatpush1.msra.mxu0 %v121
    %7224 = vmatprep.subr.mxu0 0.0
    %7225 = vmatpush1.msra.mxu0 %v122
    %7226 = vmatprep.subr.mxu0 0.0
    %7227 = vmatpush1.msra.mxu0 %v123
    %7228 = vmatprep.subr.mxu0 0.0
    %7229 = vmatpush1.msra.mxu0 %v124
    %7230 = vmatprep.subr.mxu0 0.0
    %7231 = vmatpush1.msra.mxu0 %v125
    %7232 = vmatprep.subr.mxu0 0.0
    %7233 = vmatpush1.msra.mxu0 %v126
    %7234 = vmatprep.subr.mxu0 0.0
    %7235 = vmatpush1.msra.mxu0 %v127
    %7236 = vmatprep.subr.mxu0 0.0
    %7237 = vmatpush1.msra.mxu0 %v128
    %7238 = vmatprep.subr.mxu0 0.0
    %7239 = vmatpush1.msra.mxu0 %v129
    %7240 = vmatprep.subr.mxu0 0.0
    %7241 = vmatpush1.msra.mxu0 0.0
    %7242 = vmatprep.subr.mxu0 0.0
    %7243 = vmatpush1.msra.mxu0 0.0
    %7244 = vmatprep.subr.mxu0 0.0
    %7245 = vmatpush1.msra.mxu0 0.0
    %7246 = vmatprep.subr.mxu0 0.0
    %7247 = vmatpush1.msra.mxu0 0.0
    %7248 = vmatprep.subr.mxu0 0.0
    %7249 = vmatpush1.msra.mxu0 0.0
    %7250 = vmatprep.subr.mxu0 0.0
    %7251 = vmatpush1.msra.mxu0 0.0
    %7252 = vmatprep.subr.mxu0 0.0
    %7253 = vmatpush1.msra.mxu0 0.0
    %7254 = vmatprep.subr.mxu0 0.0
    %7255 = vmatpush1.msra.mxu0 0.0
    %7256 = vmatprep.subr.mxu0 0.0
    %7257 = vmatpush1.msra.mxu0 0.0
    %7258 = vmatprep.subr.mxu0 0.0
    %7259 = vmatpush1.msra.mxu0 0.0
    %7260 = vmatprep.subr.mxu0 0.0
    %7261 = vmatpush1.msra.mxu0 0.0
    %7262 = vmatprep.subr.mxu0 0.0
    %7263 = vmatpush1.msra.mxu0 0.0
    %7264 = vmatprep.subr.mxu0 0.0
    %7265 = vmatpush1.msra.mxu0 0.0
    %7266 = vmatprep.subr.mxu0 0.0
    %7267 = vmatpush1.msra.mxu0 0.0
    %7268 = vmatprep.subr.mxu0 0.0
    %7269 = vmatpush1.msra.mxu0 0.0
    %7270 = vmatprep.subr.mxu0 0.0
    %7271 = vmatpush1.msra.mxu0 0.0
    %7272 = vmatprep.mubr.f32.mxu0 0.0
    %7273 = vmatmul.mubr.f32.gmra.mrb[0].mxu0 %v7207
    %v7274 = vpop.f32.mrb[0].mxu0
    %v7275 = vadd.f32 %v421, %v7274
    %v7276 = vpop.f32.mrb[0].mxu0
    %7277 = vdwg.mxu0
    %v7278 = vmax.f32 %v7275, 0.0
    %7279 = vmatprep.subr.mxu0 0.0
    %7280 = vmatpush1.msra.mxu0 %v130
    %7281 = vmatprep.subr.mxu0 0.0
    %7282 = vmatpush1.msra.mxu0 %v131
    %7283 = vmatprep.subr.mxu0 0.0
    %7284 = vmatpush1.msra.mxu0 %v132
    %7285 = vmatprep.subr.mxu0 0.0
    %7286 = vmatpush1.msra.mxu0 %v133
    %7287 = vmatprep.subr.mxu0 0.0
    %7288 = vmatpush1.msra.mxu0 %v134
    %7289 = vmatprep.subr.mxu0 0.0
    %7290 = vmatpush1.msra.mxu0 %v135
    %7291 = vmatprep.subr.mxu0 0.0
    %7292 = vmatpush1.msra.mxu0 %v136
    %7293 = vmatprep.subr.mxu0 0.0
    %7294 = vmatpush1.msra.mxu0 %v137
    %7295 = vmatprep.subr.mxu0 0.0
    %7296 = vmatpush1.msra.mxu0 %v138
    %7297 = vmatprep.subr.mxu0 0.0
    %7298 = vmatpush1.msra.mxu0 %v139
    %7299 = vmatprep.subr.mxu0 0.0
    %7300 = vmatpush1.msra.mxu0 %v140
    %7301 = vmatprep.subr.mxu0 0.0
    %7302 = vmatpush1.msra.mxu0 %v141
    %7303 = vmatprep.subr.mxu0 0.0
    %7304 = vmatpush1.msra.mxu0 %v142
    %7305 = vmatprep.subr.mxu0 0.0
    %7306 = vmatpush1.msra.mxu0 %v143
    %7307 = vmatprep.subr.mxu0 0.0
    %7308 = vmatpush1.msra.mxu0 %v144
    %7309 = vmatprep.subr.mxu0 0.0
    %7310 = vmatpush1.msra.mxu0 %v145
    %7311 = vmatprep.subr.mxu0 0.0
    %7312 = vmatpush1.msra.mxu0 0.0
    %7313 = vmatprep.subr.mxu0 0.0
    %7314 = vmatpush1.msra.mxu0 0.0
    %7315 = vmatprep.subr.mxu0 0.0
    %7316 = vmatpush1.msra.mxu0 0.0
    %7317 = vmatprep.subr.mxu0 0.0
    %7318 = vmatpush1.msra.mxu0 0.0
    %7319 = vmatprep.subr.mxu0 0.0
    %7320 = vmatpush1.msra.mxu0 0.0
    %7321 = vmatprep.subr.mxu0 0.0
    %7322 = vmatpush1.msra.mxu0 0.0
    %7323 = vmatprep.subr.mxu0 0.0
    %7324 = vmatpush1.msra.mxu0 0.0
    %7325 = vmatprep.subr.mxu0 0.0
    %7326 = vmatpush1.msra.mxu0 0.0
    %7327 = vmatprep.subr.mxu0 0.0
    %7328 = vmatpush1.msra.mxu0 0.0
    %7329 = vmatprep.subr.mxu0 0.0
    %7330 = vmatpush1.msra.mxu0 0.0
    %7331 = vmatprep.subr.mxu0 0.0
    %7332 = vmatpush1.msra.mxu0 0.0
    %7333 = vmatprep.subr.mxu0 0.0
    %7334 = vmatpush1.msra.mxu0 0.0
    %7335 = vmatprep.subr.mxu0 0.0
    %7336 = vmatpush1.msra.mxu0 0.0
    %7337 = vmatprep.subr.mxu0 0.0
    %7338 = vmatpush1.msra.mxu0 0.0
    %7339 = vmatprep.subr.mxu0 0.0
    %7340 = vmatpush1.msra.mxu0 0.0
    %7341 = vmatprep.subr.mxu0 0.0
    %7342 = vmatpush1.msra.mxu0 0.0
    %7343 = vmatprep.mubr.f32.mxu0 0.0
    %7344 = vmatmul.mubr.f32.gmra.mrb[0].mxu0 %v7278
    %v7345 = vpop.f32.mrb[0].mxu0
    %v7346 = vadd.f32 %v428, %v7345
    %v7347 = vpop.f32.mrb[0].mxu0
    %7348 = vdwg.mxu0
    %v7349 = vadd.f32 %v7346, %v6730
    %s7350 = scalar_lea.vmem [#allocation10], 80
    %7351 = vst.msk [vmem:[%s7350] sm:$0xff] %vm439, %v7349
    %v7353 = vsel %vm439, %v7349, 0
    %7355 = vmatprep.subr.mxu0 0.0
    %7356 = vmatpush1.msra.mxu0 %v96
    %7357 = vmatprep.subr.mxu0 0.0
    %7358 = vmatpush1.msra.mxu0 %v97
    %7359 = vmatprep.subr.mxu0 0.0
    %7360 = vmatpush1.msra.mxu0 0.0
    %7361 = vmatprep.subr.mxu0 0.0
    %7362 = vmatpush1.msra.mxu0 0.0
    %7363 = vmatprep.subr.mxu0 0.0
    %7364 = vmatpush1.msra.mxu0 0.0
    %7365 = vmatprep.subr.mxu0 0.0
    %7366 = vmatpush1.msra.mxu0 0.0
    %7367 = vmatprep.subr.mxu0 0.0
    %7368 = vmatpush1.msra.mxu0 0.0
    %7369 = vmatprep.subr.mxu0 0.0
    %7370 = vmatpush1.msra.mxu0 0.0
    %7371 = vmatprep.subr.mxu0 0.0
    %7372 = vmatpush1.msra.mxu0 0.0
    %7373 = vmatprep.subr.mxu0 0.0
    %7374 = vmatpush1.msra.mxu0 0.0
    %7375 = vmatprep.subr.mxu0 0.0
    %7376 = vmatpush1.msra.mxu0 0.0
    %7377 = vmatprep.subr.mxu0 0.0
    %7378 = vmatpush1.msra.mxu0 0.0
    %7379 = vmatprep.subr.mxu0 0.0
    %7380 = vmatpush1.msra.mxu0 0.0
    %7381 = vmatprep.subr.mxu0 0.0
    %7382 = vmatpush1.msra.mxu0 0.0
    %7383 = vmatprep.subr.mxu0 0.0
    %7384 = vmatpush1.msra.mxu0 0.0
    %7385 = vmatprep.subr.mxu0 0.0
    %7386 = vmatpush1.msra.mxu0 0.0
    %7387 = vmatprep.subr.mxu0 0.0
    %7388 = vmatpush1.msra.mxu0 0.0
    %7389 = vmatprep.subr.mxu0 0.0
    %7390 = vmatpush1.msra.mxu0 0.0
    %7391 = vmatprep.subr.mxu0 0.0
    %7392 = vmatpush1.msra.mxu0 0.0
    %7393 = vmatprep.subr.mxu0 0.0
    %7394 = vmatpush1.msra.mxu0 0.0
    %7395 = vmatprep.subr.mxu0 0.0
    %7396 = vmatpush1.msra.mxu0 0.0
    %7397 = vmatprep.subr.mxu0 0.0
    %7398 = vmatpush1.msra.mxu0 0.0
    %7399 = vmatprep.subr.mxu0 0.0
    %7400 = vmatpush1.msra.mxu0 0.0
    %7401 = vmatprep.subr.mxu0 0.0
    %7402 = vmatpush1.msra.mxu0 0.0
    %7403 = vmatprep.subr.mxu0 0.0
    %7404 = vmatpush1.msra.mxu0 0.0
    %7405 = vmatprep.subr.mxu0 0.0
    %7406 = vmatpush1.msra.mxu0 0.0
    %7407 = vmatprep.subr.mxu0 0.0
    %7408 = vmatpush1.msra.mxu0 0.0
    %7409 = vmatprep.subr.mxu0 0.0
    %7410 = vmatpush1.msra.mxu0 0.0
    %7411 = vmatprep.subr.mxu0 0.0
    %7412 = vmatpush1.msra.mxu0 0.0
    %7413 = vmatprep.subr.mxu0 0.0
    %7414 = vmatpush1.msra.mxu0 0.0
    %7415 = vmatprep.subr.mxu0 0.0
    %7416 = vmatpush1.msra.mxu0 0.0
    %7417 = vmatprep.subr.mxu0 0.0
    %7418 = vmatpush1.msra.mxu0 0.0
    %7419 = vmatprep.mubr.f32.mxu0 0.0
    %7420 = vmatmul.mubr.f32.gmra.mrb[0].mxu0 %v7353
    %v7421 = vpop.f32.mrb[0].mxu0
    %v7422 = vadd.f32 %v407, %v7421
    %v7423 = vpop.f32.mrb[0].mxu0
    %7424 = vdwg.mxu0
    %v7425 = vmax.f32 %v7422, 0.0
    %7426 = vmatprep.subr.mxu0 0.0
    %7427 = vmatpush1.msra.mxu0 %v98
    %7428 = vmatprep.subr.mxu0 0.0
    %7429 = vmatpush1.msra.mxu0 %v99
    %7430 = vmatprep.subr.mxu0 0.0
    %7431 = vmatpush1.msra.mxu0 %v100
    %7432 = vmatprep.subr.mxu0 0.0
    %7433 = vmatpush1.msra.mxu0 %v101
    %7434 = vmatprep.subr.mxu0 0.0
    %7435 = vmatpush1.msra.mxu0 %v102
    %7436 = vmatprep.subr.mxu0 0.0
    %7437 = vmatpush1.msra.mxu0 %v103
    %7438 = vmatprep.subr.mxu0 0.0
    %7439 = vmatpush1.msra.mxu0 %v104
    %7440 = vmatprep.subr.mxu0 0.0
    %7441 = vmatpush1.msra.mxu0 %v105
    %7442 = vmatprep.subr.mxu0 0.0
    %7443 = vmatpush1.msra.mxu0 %v106
    %7444 = vmatprep.subr.mxu0 0.0
    %7445 = vmatpush1.msra.mxu0 %v107
    %7446 = vmatprep.subr.mxu0 0.0
    %7447 = vmatpush1.msra.mxu0 %v108
    %7448 = vmatprep.subr.mxu0 0.0
    %7449 = vmatpush1.msra.mxu0 %v109
    %7450 = vmatprep.subr.mxu0 0.0
    %7451 = vmatpush1.msra.mxu0 %v110
    %7452 = vmatprep.subr.mxu0 0.0
    %7453 = vmatpush1.msra.mxu0 %v111
    %7454 = vmatprep.subr.mxu0 0.0
    %7455 = vmatpush1.msra.mxu0 %v112
    %7456 = vmatprep.subr.mxu0 0.0
    %7457 = vmatpush1.msra.mxu0 %v113
    %7458 = vmatprep.subr.mxu0 0.0
    %7459 = vmatpush1.msra.mxu0 0.0
    %7460 = vmatprep.subr.mxu0 0.0
    %7461 = vmatpush1.msra.mxu0 0.0
    %7462 = vmatprep.subr.mxu0 0.0
    %7463 = vmatpush1.msra.mxu0 0.0
    %7464 = vmatprep.subr.mxu0 0.0
    %7465 = vmatpush1.msra.mxu0 0.0
    %7466 = vmatprep.subr.mxu0 0.0
    %7467 = vmatpush1.msra.mxu0 0.0
    %7468 = vmatprep.subr.mxu0 0.0
    %7469 = vmatpush1.msra.mxu0 0.0
    %7470 = vmatprep.subr.mxu0 0.0
    %7471 = vmatpush1.msra.mxu0 0.0
    %7472 = vmatprep.subr.mxu0 0.0
    %7473 = vmatpush1.msra.mxu0 0.0
    %7474 = vmatprep.subr.mxu0 0.0
    %7475 = vmatpush1.msra.mxu0 0.0
    %7476 = vmatprep.subr.mxu0 0.0
    %7477 = vmatpush1.msra.mxu0 0.0
    %7478 = vmatprep.subr.mxu0 0.0
    %7479 = vmatpush1.msra.mxu0 0.0
    %7480 = vmatprep.subr.mxu0 0.0
    %7481 = vmatpush1.msra.mxu0 0.0
    %7482 = vmatprep.subr.mxu0 0.0
    %7483 = vmatpush1.msra.mxu0 0.0
    %7484 = vmatprep.subr.mxu0 0.0
    %7485 = vmatpush1.msra.mxu0 0.0
    %7486 = vmatprep.subr.mxu0 0.0
    %7487 = vmatpush1.msra.mxu0 0.0
    %7488 = vmatprep.subr.mxu0 0.0
    %7489 = vmatpush1.msra.mxu0 0.0
    %7490 = vmatprep.mubr.f32.mxu0 0.0
    %7491 = vmatmul.mubr.f32.gmra.mrb[0].mxu0 %v7425
    %v7492 = vpop.f32.mrb[0].mxu0
    %v7493 = vadd.f32 %v414, %v7492
    %v7494 = vpop.f32.mrb[0].mxu0
    %7495 = vdwg.mxu0
    %v7496 = vmax.f32 %v7493, 0.0
    %7497 = vmatprep.subr.mxu0 %v147
    %7498 = vmatpush1.msra.mxu0 %v146
    %7499 = vmatprep.subr.mxu0 %v151
    %7500 = vmatpush1.msra.mxu0 %v150
    %7501 = vmatprep.subr.mxu0 %v155
    %7502 = vmatpush1.msra.mxu0 %v154
    %7503 = vmatprep.subr.mxu0 %v159
    %7504 = vmatpush1.msra.mxu0 %v158
    %7505 = vmatprep.subr.mxu0 %v163
    %7506 = vmatpush1.msra.mxu0 %v162
    %7507 = vmatprep.subr.mxu0 %v167
    %7508 = vmatpush1.msra.mxu0 %v166
    %7509 = vmatprep.subr.mxu0 %v171
    %7510 = vmatpush1.msra.mxu0 %v170
    %7511 = vmatprep.subr.mxu0 %v175
    %7512 = vmatpush1.msra.mxu0 %v174
    %7513 = vmatprep.subr.mxu0 %v179
    %7514 = vmatpush1.msra.mxu0 %v178
    %7515 = vmatprep.subr.mxu0 %v183
    %7516 = vmatpush1.msra.mxu0 %v182
    %7517 = vmatprep.subr.mxu0 %v187
    %7518 = vmatpush1.msra.mxu0 %v186
    %7519 = vmatprep.subr.mxu0 %v191
    %7520 = vmatpush1.msra.mxu0 %v190
    %7521 = vmatprep.subr.mxu0 %v195
    %7522 = vmatpush1.msra.mxu0 %v194
    %7523 = vmatprep.subr.mxu0 %v199
    %7524 = vmatpush1.msra.mxu0 %v198
    %7525 = vmatprep.subr.mxu0 %v203
    %7526 = vmatpush1.msra.mxu0 %v202
    %7527 = vmatprep.subr.mxu0 %v207
    %7528 = vmatpush1.msra.mxu0 %v206
    %7529 = vmatprep.subr.mxu0 %v211
    %7530 = vmatpush1.msra.mxu0 %v210
    %7531 = vmatprep.subr.mxu0 %v215
    %7532 = vmatpush1.msra.mxu0 %v214
    %7533 = vmatprep.subr.mxu0 %v219
    %7534 = vmatpush1.msra.mxu0 %v218
    %7535 = vmatprep.subr.mxu0 %v223
    %7536 = vmatpush1.msra.mxu0 %v222
    %7537 = vmatprep.subr.mxu0 %v227
    %7538 = vmatpush1.msra.mxu0 %v226
    %7539 = vmatprep.subr.mxu0 %v231
    %7540 = vmatpush1.msra.mxu0 %v230
    %7541 = vmatprep.subr.mxu0 %v235
    %7542 = vmatpush1.msra.mxu0 %v234
    %7543 = vmatprep.subr.mxu0 %v239
    %7544 = vmatpush1.msra.mxu0 %v238
    %7545 = vmatprep.subr.mxu0 %v243
    %7546 = vmatpush1.msra.mxu0 %v242
    %7547 = vmatprep.subr.mxu0 %v247
    %7548 = vmatpush1.msra.mxu0 %v246
    %7549 = vmatprep.subr.mxu0 %v251
    %7550 = vmatpush1.msra.mxu0 %v250
    %7551 = vmatprep.subr.mxu0 %v255
    %7552 = vmatpush1.msra.mxu0 %v254
    %7553 = vmatprep.subr.mxu0 %v259
    %7554 = vmatpush1.msra.mxu0 %v258
    %7555 = vmatprep.subr.mxu0 %v263
    %7556 = vmatpush1.msra.mxu0 %v262
    %7557 = vmatprep.subr.mxu0 %v267
    %7558 = vmatpush1.msra.mxu0 %v266
    %7559 = vmatprep.subr.mxu0 %v271
    %7560 = vmatpush1.msra.mxu0 %v270
    %7561 = vmatprep.mubr.f32.mxu0 %v7041
    %7562 = vmatmul.mubr.f32.gmra.mrb[0].mxu0 %v7496
    %v7563 = vpop.f32.mrb[0].mxu0
    %v7564 = vadd.f32 %v589, %v7563
    %v7565 = vpop.f32.mrb[0].mxu0
    %v7566 = vadd.f32 %v593, %v7565
    %7567 = vdwg.mxu0
    %7568 = vmatprep.subr.mxu0 %v149
    %7569 = vmatpush1.msra.mxu0 %v148
    %7570 = vmatprep.subr.mxu0 %v153
    %7571 = vmatpush1.msra.mxu0 %v152
    %7572 = vmatprep.subr.mxu0 %v157
    %7573 = vmatpush1.msra.mxu0 %v156
    %7574 = vmatprep.subr.mxu0 %v161
    %7575 = vmatpush1.msra.mxu0 %v160
    %7576 = vmatprep.subr.mxu0 %v165
    %7577 = vmatpush1.msra.mxu0 %v164
    %7578 = vmatprep.subr.mxu0 %v169
    %7579 = vmatpush1.msra.mxu0 %v168
    %7580 = vmatprep.subr.mxu0 %v173
    %7581 = vmatpush1.msra.mxu0 %v172
    %7582 = vmatprep.subr.mxu0 %v177
    %7583 = vmatpush1.msra.mxu0 %v176
    %7584 = vmatprep.subr.mxu0 %v181
    %7585 = vmatpush1.msra.mxu0 %v180
    %7586 = vmatprep.subr.mxu0 %v185
    %7587 = vmatpush1.msra.mxu0 %v184
    %7588 = vmatprep.subr.mxu0 %v189
    %7589 = vmatpush1.msra.mxu0 %v188
    %7590 = vmatprep.subr.mxu0 %v193
    %7591 = vmatpush1.msra.mxu0 %v192
    %7592 = vmatprep.subr.mxu0 %v197
    %7593 = vmatpush1.msra.mxu0 %v196
    %7594 = vmatprep.subr.mxu0 %v201
    %7595 = vmatpush1.msra.mxu0 %v200
    %7596 = vmatprep.subr.mxu0 %v205
    %7597 = vmatpush1.msra.mxu0 %v204
    %7598 = vmatprep.subr.mxu0 %v209
    %7599 = vmatpush1.msra.mxu0 %v208
    %7600 = vmatprep.subr.mxu0 %v213
    %7601 = vmatpush1.msra.mxu0 %v212
    %7602 = vmatprep.subr.mxu0 %v217
    %7603 = vmatpush1.msra.mxu0 %v216
    %7604 = vmatprep.subr.mxu0 %v221
    %7605 = vmatpush1.msra.mxu0 %v220
    %7606 = vmatprep.subr.mxu0 %v225
    %7607 = vmatpush1.msra.mxu0 %v224
    %7608 = vmatprep.subr.mxu0 %v229
    %7609 = vmatpush1.msra.mxu0 %v228
    %7610 = vmatprep.subr.mxu0 %v233
    %7611 = vmatpush1.msra.mxu0 %v232
    %7612 = vmatprep.subr.mxu0 %v237
    %7613 = vmatpush1.msra.mxu0 %v236
    %7614 = vmatprep.subr.mxu0 %v241
    %7615 = vmatpush1.msra.mxu0 %v240
    %7616 = vmatprep.subr.mxu0 %v245
    %7617 = vmatpush1.msra.mxu0 %v244
    %7618 = vmatprep.subr.mxu0 %v249
    %7619 = vmatpush1.msra.mxu0 %v248
    %7620 = vmatprep.subr.mxu0 %v253
    %7621 = vmatpush1.msra.mxu0 %v252
    %7622 = vmatprep.subr.mxu0 %v257
    %7623 = vmatpush1.msra.mxu0 %v256
    %7624 = vmatprep.subr.mxu0 %v261
    %7625 = vmatpush1.msra.mxu0 %v260
    %7626 = vmatprep.subr.mxu0 %v265
    %7627 = vmatpush1.msra.mxu0 %v264
    %7628 = vmatprep.subr.mxu0 %v269
    %7629 = vmatpush1.msra.mxu0 %v268
    %7630 = vmatprep.subr.mxu0 %v273
    %7631 = vmatpush1.msra.mxu0 %v272
    %7632 = vmatprep.mubr.f32.mxu0 %v7041
    %7633 = vmatmul.mubr.f32.gmra.mrb[0].mxu0 %v7496
    %v7634 = vpop.f32.mrb[0].mxu0
    %v7635 = vadd.f32 %v597, %v7634
    %v7636 = vpop.f32.mrb[0].mxu0
    %v7637 = vadd.f32 %v601, %v7636
    %7638 = vdwg.mxu0
    %v7639 = vxor.u32 %v7564, 2147483648
    %v7640 = vmul.f32 %v7639, 1.442695
    %v7641 = vpow.pop %v7640
    %v7642 = vadd.f32 %v7641, 1.0
    %v7643 = vrcp.pop %v7642
    %v7644 = vmul.f32 1.0, %v7643
    %v7645 = vxor.u32 %v7566, 2147483648
    %v7646 = vmul.f32 %v7645, 1.442695
    %v7647 = vpow.pop %v7646
    %v7648 = vadd.f32 %v7647, 1.0
    %v7649 = vrcp.pop %v7648
    %v7650 = vmul.f32 1.0, %v7649
    %v7651 = vtanh.pop %v7635
    %v7652 = vxor.u32 %v7637, 2147483648
    %v7653 = vmul.f32 %v7652, 1.442695
    %v7654 = vpow.pop %v7653
    %v7655 = vadd.f32 %v7654, 1.0
    %v7656 = vrcp.pop %v7655
    %v7657 = vmul.f32 1.0, %v7656
    %v7658 = vmul.f32 %v7650, %v7039
    %v7659 = vmul.f32 %v7644, %v7651
    %v7660 = vadd.f32 %v7658, %v7659
    %v7661 = vtanh.pop %v7660
    %v7662 = vmul.f32 %v7657, %v7661
    %7663 = vmatprep.subr.mxu0 %v275
    %7664 = vmatpush1.msra.mxu0 %v274
    %7665 = vmatprep.subr.mxu0 %v279
    %7666 = vmatpush1.msra.mxu0 %v278
    %7667 = vmatprep.subr.mxu0 %v283
    %7668 = vmatpush1.msra.mxu0 %v282
    %7669 = vmatprep.subr.mxu0 %v287
    %7670 = vmatpush1.msra.mxu0 %v286
    %7671 = vmatprep.subr.mxu0 %v291
    %7672 = vmatpush1.msra.mxu0 %v290
    %7673 = vmatprep.subr.mxu0 %v295
    %7674 = vmatpush1.msra.mxu0 %v294
    %7675 = vmatprep.subr.mxu0 %v299
    %7676 = vmatpush1.msra.mxu0 %v298
    %7677 = vmatprep.subr.mxu0 %v303
    %7678 = vmatpush1.msra.mxu0 %v302
    %7679 = vmatprep.subr.mxu0 %v307
    %7680 = vmatpush1.msra.mxu0 %v306
    %7681 = vmatprep.subr.mxu0 %v311
    %7682 = vmatpush1.msra.mxu0 %v310
    %7683 = vmatprep.subr.mxu0 %v315
    %7684 = vmatpush1.msra.mxu0 %v314
    %7685 = vmatprep.subr.mxu0 %v319
    %7686 = vmatpush1.msra.mxu0 %v318
    %7687 = vmatprep.subr.mxu0 %v323
    %7688 = vmatpush1.msra.mxu0 %v322
    %7689 = vmatprep.subr.mxu0 %v327
    %7690 = vmatpush1.msra.mxu0 %v326
    %7691 = vmatprep.subr.mxu0 %v331
    %7692 = vmatpush1.msra.mxu0 %v330
    %7693 = vmatprep.subr.mxu0 %v335
    %7694 = vmatpush1.msra.mxu0 %v334
    %7695 = vmatprep.subr.mxu0 %v339
    %7696 = vmatpush1.msra.mxu0 %v338
    %7697 = vmatprep.subr.mxu0 %v343
    %7698 = vmatpush1.msra.mxu0 %v342
    %7699 = vmatprep.subr.mxu0 %v347
    %7700 = vmatpush1.msra.mxu0 %v346
    %7701 = vmatprep.subr.mxu0 %v351
    %7702 = vmatpush1.msra.mxu0 %v350
    %7703 = vmatprep.subr.mxu0 %v355
    %7704 = vmatpush1.msra.mxu0 %v354
    %7705 = vmatprep.subr.mxu0 %v359
    %7706 = vmatpush1.msra.mxu0 %v358
    %7707 = vmatprep.subr.mxu0 %v363
    %7708 = vmatpush1.msra.mxu0 %v362
    %7709 = vmatprep.subr.mxu0 %v367
    %7710 = vmatpush1.msra.mxu0 %v366
    %7711 = vmatprep.subr.mxu0 %v371
    %7712 = vmatpush1.msra.mxu0 %v370
    %7713 = vmatprep.subr.mxu0 %v375
    %7714 = vmatpush1.msra.mxu0 %v374
    %7715 = vmatprep.subr.mxu0 %v379
    %7716 = vmatpush1.msra.mxu0 %v378
    %7717 = vmatprep.subr.mxu0 %v383
    %7718 = vmatpush1.msra.mxu0 %v382
    %7719 = vmatprep.subr.mxu0 %v387
    %7720 = vmatpush1.msra.mxu0 %v386
    %7721 = vmatprep.subr.mxu0 %v391
    %7722 = vmatpush1.msra.mxu0 %v390
    %7723 = vmatprep.subr.mxu0 %v395
    %7724 = vmatpush1.msra.mxu0 %v394
    %7725 = vmatprep.subr.mxu0 %v399
    %7726 = vmatpush1.msra.mxu0 %v398
    %7727 = vmatprep.mubr.f32.mxu0 %v7207
    %7728 = vmatmul.mubr.f32.gmra.mrb[0].mxu0 %v7662
    %v7729 = vpop.f32.mrb[0].mxu0
    %v7730 = vadd.f32 %v776, %v7729
    %v7731 = vpop.f32.mrb[0].mxu0
    %v7732 = vadd.f32 %v780, %v7731
    %7733 = vdwg.mxu0
    %7734 = vmatprep.subr.mxu0 %v277
    %7735 = vmatpush1.msra.mxu0 %v276
    %7736 = vmatprep.subr.mxu0 %v281
    %7737 = vmatpush1.msra.mxu0 %v280
    %7738 = vmatprep.subr.mxu0 %v285
    %7739 = vmatpush1.msra.mxu0 %v284
    %7740 = vmatprep.subr.mxu0 %v289
    %7741 = vmatpush1.msra.mxu0 %v288
    %7742 = vmatprep.subr.mxu0 %v293
    %7743 = vmatpush1.msra.mxu0 %v292
    %7744 = vmatprep.subr.mxu0 %v297
    %7745 = vmatpush1.msra.mxu0 %v296
    %7746 = vmatprep.subr.mxu0 %v301
    %7747 = vmatpush1.msra.mxu0 %v300
    %7748 = vmatprep.subr.mxu0 %v305
    %7749 = vmatpush1.msra.mxu0 %v304
    %7750 = vmatprep.subr.mxu0 %v309
    %7751 = vmatpush1.msra.mxu0 %v308
    %7752 = vmatprep.subr.mxu0 %v313
    %7753 = vmatpush1.msra.mxu0 %v312
    %7754 = vmatprep.subr.mxu0 %v317
    %7755 = vmatpush1.msra.mxu0 %v316
    %7756 = vmatprep.subr.mxu0 %v321
    %7757 = vmatpush1.msra.mxu0 %v320
    %7758 = vmatprep.subr.mxu0 %v325
    %7759 = vmatpush1.msra.mxu0 %v324
    %7760 = vmatprep.subr.mxu0 %v329
    %7761 = vmatpush1.msra.mxu0 %v328
    %7762 = vmatprep.subr.mxu0 %v333
    %7763 = vmatpush1.msra.mxu0 %v332
    %7764 = vmatprep.subr.mxu0 %v337
    %7765 = vmatpush1.msra.mxu0 %v336
    %7766 = vmatprep.subr.mxu0 %v341
    %7767 = vmatpush1.msra.mxu0 %v340
    %7768 = vmatprep.subr.mxu0 %v345
    %7769 = vmatpush1.msra.mxu0 %v344
    %7770 = vmatprep.subr.mxu0 %v349
    %7771 = vmatpush1.msra.mxu0 %v348
    %7772 = vmatprep.subr.mxu0 %v353
    %7773 = vmatpush1.msra.mxu0 %v352
    %7774 = vmatprep.subr.mxu0 %v357
    %7775 = vmatpush1.msra.mxu0 %v356
    %7776 = vmatprep.subr.mxu0 %v361
    %7777 = vmatpush1.msra.mxu0 %v360
    %7778 = vmatprep.subr.mxu0 %v365
    %7779 = vmatpush1.msra.mxu0 %v364
    %7780 = vmatprep.subr.mxu0 %v369
    %7781 = vmatpush1.msra.mxu0 %v368
    %7782 = vmatprep.subr.mxu0 %v373
    %7783 = vmatpush1.msra.mxu0 %v372
    %7784 = vmatprep.subr.mxu0 %v377
    %7785 = vmatpush1.msra.mxu0 %v376
    %7786 = vmatprep.subr.mxu0 %v381
    %7787 = vmatpush1.msra.mxu0 %v380
    %7788 = vmatprep.subr.mxu0 %v385
    %7789 = vmatpush1.msra.mxu0 %v384
    %7790 = vmatprep.subr.mxu0 %v389
    %7791 = vmatpush1.msra.mxu0 %v388
    %7792 = vmatprep.subr.mxu0 %v393
    %7793 = vmatpush1.msra.mxu0 %v392
    %7794 = vmatprep.subr.mxu0 %v397
    %7795 = vmatpush1.msra.mxu0 %v396
    %7796 = vmatprep.subr.mxu0 %v401
    %7797 = vmatpush1.msra.mxu0 %v400
    %7798 = vmatprep.mubr.f32.mxu0 %v7207
    %7799 = vmatmul.mubr.f32.gmra.mrb[0].mxu0 %v7662
    %v7800 = vpop.f32.mrb[0].mxu0
    %v7801 = vadd.f32 %v784, %v7800
    %v7802 = vpop.f32.mrb[0].mxu0
    %v7803 = vadd.f32 %v788, %v7802
    %7804 = vdwg.mxu0
    %v7805 = vxor.u32 %v7730, 2147483648
    %v7806 = vmul.f32 %v7805, 1.442695
    %v7807 = vpow.pop %v7806
    %v7808 = vadd.f32 %v7807, 1.0
    %v7809 = vrcp.pop %v7808
    %v7810 = vmul.f32 1.0, %v7809
    %v7811 = vxor.u32 %v7732, 2147483648
    %v7812 = vmul.f32 %v7811, 1.442695
    %v7813 = vpow.pop %v7812
    %v7814 = vadd.f32 %v7813, 1.0
    %v7815 = vrcp.pop %v7814
    %v7816 = vmul.f32 1.0, %v7815
    %v7817 = vtanh.pop %v7801
    %v7818 = vxor.u32 %v7803, 2147483648
    %v7819 = vmul.f32 %v7818, 1.442695
    %v7820 = vpow.pop %v7819
    %v7821 = vadd.f32 %v7820, 1.0
    %v7822 = vrcp.pop %v7821
    %v7823 = vmul.f32 1.0, %v7822
    %v7824 = vmul.f32 %v7816, %v7205
    %v7825 = vmul.f32 %v7810, %v7817
    %v7826 = vadd.f32 %v7824, %v7825
    %v7827 = vtanh.pop %v7826
    %v7828 = vmul.f32 %v7823, %v7827
    %7829 = vmatprep.subr.mxu0 0.0
    %7830 = vmatpush1.msra.mxu0 %v114
    %7831 = vmatprep.subr.mxu0 0.0
    %7832 = vmatpush1.msra.mxu0 %v115
    %7833 = vmatprep.subr.mxu0 0.0
    %7834 = vmatpush1.msra.mxu0 %v116
    %7835 = vmatprep.subr.mxu0 0.0
    %7836 = vmatpush1.msra.mxu0 %v117
    %7837 = vmatprep.subr.mxu0 0.0
    %7838 = vmatpush1.msra.mxu0 %v118
    %7839 = vmatprep.subr.mxu0 0.0
    %7840 = vmatpush1.msra.mxu0 %v119
    %7841 = vmatprep.subr.mxu0 0.0
    %7842 = vmatpush1.msra.mxu0 %v120
    %7843 = vmatprep.subr.mxu0 0.0
    %7844 = vmatpush1.msra.mxu0 %v121
    %7845 = vmatprep.subr.mxu0 0.0
    %7846 = vmatpush1.msra.mxu0 %v122
    %7847 = vmatprep.subr.mxu0 0.0
    %7848 = vmatpush1.msra.mxu0 %v123
    %7849 = vmatprep.subr.mxu0 0.0
    %7850 = vmatpush1.msra.mxu0 %v124
    %7851 = vmatprep.subr.mxu0 0.0
    %7852 = vmatpush1.msra.mxu0 %v125
    %7853 = vmatprep.subr.mxu0 0.0
    %7854 = vmatpush1.msra.mxu0 %v126
    %7855 = vmatprep.subr.mxu0 0.0
    %7856 = vmatpush1.msra.mxu0 %v127
    %7857 = vmatprep.subr.mxu0 0.0
    %7858 = vmatpush1.msra.mxu0 %v128
    %7859 = vmatprep.subr.mxu0 0.0
    %7860 = vmatpush1.msra.mxu0 %v129
    %7861 = vmatprep.subr.mxu0 0.0
    %7862 = vmatpush1.msra.mxu0 0.0
    %7863 = vmatprep.subr.mxu0 0.0
    %7864 = vmatpush1.msra.mxu0 0.0
    %7865 = vmatprep.subr.mxu0 0.0
    %7866 = vmatpush1.msra.mxu0 0.0
    %7867 = vmatprep.subr.mxu0 0.0
    %7868 = vmatpush1.msra.mxu0 0.0
    %7869 = vmatprep.subr.mxu0 0.0
    %7870 = vmatpush1.msra.mxu0 0.0
    %7871 = vmatprep.subr.mxu0 0.0
    %7872 = vmatpush1.msra.mxu0 0.0
    %7873 = vmatprep.subr.mxu0 0.0
    %7874 = vmatpush1.msra.mxu0 0.0
    %7875 = vmatprep.subr.mxu0 0.0
    %7876 = vmatpush1.msra.mxu0 0.0
    %7877 = vmatprep.subr.mxu0 0.0
    %7878 = vmatpush1.msra.mxu0 0.0
    %7879 = vmatprep.subr.mxu0 0.0
    %7880 = vmatpush1.msra.mxu0 0.0
    %7881 = vmatprep.subr.mxu0 0.0
    %7882 = vmatpush1.msra.mxu0 0.0
    %7883 = vmatprep.subr.mxu0 0.0
    %7884 = vmatpush1.msra.mxu0 0.0
    %7885 = vmatprep.subr.mxu0 0.0
    %7886 = vmatpush1.msra.mxu0 0.0
    %7887 = vmatprep.subr.mxu0 0.0
    %7888 = vmatpush1.msra.mxu0 0.0
    %7889 = vmatprep.subr.mxu0 0.0
    %7890 = vmatpush1.msra.mxu0 0.0
    %7891 = vmatprep.subr.mxu0 0.0
    %7892 = vmatpush1.msra.mxu0 0.0
    %7893 = vmatprep.mubr.f32.mxu0 0.0
    %7894 = vmatmul.mubr.f32.gmra.mrb[0].mxu0 %v7828
    %v7895 = vpop.f32.mrb[0].mxu0
    %v7896 = vadd.f32 %v421, %v7895
    %v7897 = vpop.f32.mrb[0].mxu0
    %7898 = vdwg.mxu0
    %v7899 = vmax.f32 %v7896, 0.0
    %7900 = vmatprep.subr.mxu0 0.0
    %7901 = vmatpush1.msra.mxu0 %v130
    %7902 = vmatprep.subr.mxu0 0.0
    %7903 = vmatpush1.msra.mxu0 %v131
    %7904 = vmatprep.subr.mxu0 0.0
    %7905 = vmatpush1.msra.mxu0 %v132
    %7906 = vmatprep.subr.mxu0 0.0
    %7907 = vmatpush1.msra.mxu0 %v133
    %7908 = vmatprep.subr.mxu0 0.0
    %7909 = vmatpush1.msra.mxu0 %v134
    %7910 = vmatprep.subr.mxu0 0.0
    %7911 = vmatpush1.msra.mxu0 %v135
    %7912 = vmatprep.subr.mxu0 0.0
    %7913 = vmatpush1.msra.mxu0 %v136
    %7914 = vmatprep.subr.mxu0 0.0
    %7915 = vmatpush1.msra.mxu0 %v137
    %7916 = vmatprep.subr.mxu0 0.0
    %7917 = vmatpush1.msra.mxu0 %v138
    %7918 = vmatprep.subr.mxu0 0.0
    %7919 = vmatpush1.msra.mxu0 %v139
    %7920 = vmatprep.subr.mxu0 0.0
    %7921 = vmatpush1.msra.mxu0 %v140
    %7922 = vmatprep.subr.mxu0 0.0
    %7923 = vmatpush1.msra.mxu0 %v141
    %7924 = vmatprep.subr.mxu0 0.0
    %7925 = vmatpush1.msra.mxu0 %v142
    %7926 = vmatprep.subr.mxu0 0.0
    %7927 = vmatpush1.msra.mxu0 %v143
    %7928 = vmatprep.subr.mxu0 0.0
    %7929 = vmatpush1.msra.mxu0 %v144
    %7930 = vmatprep.subr.mxu0 0.0
    %7931 = vmatpush1.msra.mxu0 %v145
    %7932 = vmatprep.subr.mxu0 0.0
    %7933 = vmatpush1.msra.mxu0 0.0
    %7934 = vmatprep.subr.mxu0 0.0
    %7935 = vmatpush1.msra.mxu0 0.0
    %7936 = vmatprep.subr.mxu0 0.0
    %7937 = vmatpush1.msra.mxu0 0.0
    %7938 = vmatprep.subr.mxu0 0.0
    %7939 = vmatpush1.msra.mxu0 0.0
    %7940 = vmatprep.subr.mxu0 0.0
    %7941 = vmatpush1.msra.mxu0 0.0
    %7942 = vmatprep.subr.mxu0 0.0
    %7943 = vmatpush1.msra.mxu0 0.0
    %7944 = vmatprep.subr.mxu0 0.0
    %7945 = vmatpush1.msra.mxu0 0.0
    %7946 = vmatprep.subr.mxu0 0.0
    %7947 = vmatpush1.msra.mxu0 0.0
    %7948 = vmatprep.subr.mxu0 0.0
    %7949 = vmatpush1.msra.mxu0 0.0
    %7950 = vmatprep.subr.mxu0 0.0
    %7951 = vmatpush1.msra.mxu0 0.0
    %7952 = vmatprep.subr.mxu0 0.0
    %7953 = vmatpush1.msra.mxu0 0.0
    %7954 = vmatprep.subr.mxu0 0.0
    %7955 = vmatpush1.msra.mxu0 0.0
    %7956 = vmatprep.subr.mxu0 0.0
    %7957 = vmatpush1.msra.mxu0 0.0
    %7958 = vmatprep.subr.mxu0 0.0
    %7959 = vmatpush1.msra.mxu0 0.0
    %7960 = vmatprep.subr.mxu0 0.0
    %7961 = vmatpush1.msra.mxu0 0.0
    %7962 = vmatprep.subr.mxu0 0.0
    %7963 = vmatpush1.msra.mxu0 0.0
    %7964 = vmatprep.mubr.f32.mxu0 0.0
    %7965 = vmatmul.mubr.f32.gmra.mrb[0].mxu0 %v7899
    %v7966 = vpop.f32.mrb[0].mxu0
    %v7967 = vadd.f32 %v428, %v7966
    %v7968 = vpop.f32.mrb[0].mxu0
    %7969 = vdwg.mxu0
    %v7970 = vadd.f32 %v7967, %v7349
    %s7971 = scalar_lea.vmem [#allocation10], 88
    %7972 = vst.msk [vmem:[%s7971] sm:$0xff] %vm439, %v7970
    %s7973 = sld [smem:[#allocation2 + $0x6]]
    %p7974 = scmp.gt.s32.totalorder %s7973, 0
    %s7975 = scalar_lea.vmem [#allocation6], 48
    %v7976 = vld [vmem:[%s7975] sm:$0xff]
    %s7977 = scalar_select %p7974, 1, 0
    %v7978 = vstv %s7977
    %vm7979 = vcmp.eq.s32.totalorder %v7978, 1
    %v7980 = vsel %vm7979, %v7976, %v7349
    %v7982 = vsel %vm439, %v7980, 0
    %7984 = vmatprep.subr.mxu0 0.0
    %7985 = vmatpush1.msra.mxu0 %v96
    %7986 = vmatprep.subr.mxu0 0.0
    %7987 = vmatpush1.msra.mxu0 %v97
    %7988 = vmatprep.subr.mxu0 0.0
    %7989 = vmatpush1.msra.mxu0 0.0
    %7990 = vmatprep.subr.mxu0 0.0
    %7991 = vmatpush1.msra.mxu0 0.0
    %7992 = vmatprep.subr.mxu0 0.0
    %7993 = vmatpush1.msra.mxu0 0.0
    %7994 = vmatprep.subr.mxu0 0.0
    %7995 = vmatpush1.msra.mxu0 0.0
    %7996 = vmatprep.subr.mxu0 0.0
    %7997 = vmatpush1.msra.mxu0 0.0
    %7998 = vmatprep.subr.mxu0 0.0
    %7999 = vmatpush1.msra.mxu0 0.0
    %8000 = vmatprep.subr.mxu0 0.0
    %8001 = vmatpush1.msra.mxu0 0.0
    %8002 = vmatprep.subr.mxu0 0.0
    %8003 = vmatpush1.msra.mxu0 0.0
    %8004 = vmatprep.subr.mxu0 0.0
    %8005 = vmatpush1.msra.mxu0 0.0
    %8006 = vmatprep.subr.mxu0 0.0
    %8007 = vmatpush1.msra.mxu0 0.0
    %8008 = vmatprep.subr.mxu0 0.0
    %8009 = vmatpush1.msra.mxu0 0.0
    %8010 = vmatprep.subr.mxu0 0.0
    %8011 = vmatpush1.msra.mxu0 0.0
    %8012 = vmatprep.subr.mxu0 0.0
    %8013 = vmatpush1.msra.mxu0 0.0
    %8014 = vmatprep.subr.mxu0 0.0
    %8015 = vmatpush1.msra.mxu0 0.0
    %8016 = vmatprep.subr.mxu0 0.0
    %8017 = vmatpush1.msra.mxu0 0.0
    %8018 = vmatprep.subr.mxu0 0.0
    %8019 = vmatpush1.msra.mxu0 0.0
    %8020 = vmatprep.subr.mxu0 0.0
    %8021 = vmatpush1.msra.mxu0 0.0
    %8022 = vmatprep.subr.mxu0 0.0
    %8023 = vmatpush1.msra.mxu0 0.0
    %8024 = vmatprep.subr.mxu0 0.0
    %8025 = vmatpush1.msra.mxu0 0.0
    %8026 = vmatprep.subr.mxu0 0.0
    %8027 = vmatpush1.msra.mxu0 0.0
    %8028 = vmatprep.subr.mxu0 0.0
    %8029 = vmatpush1.msra.mxu0 0.0
    %8030 = vmatprep.subr.mxu0 0.0
    %8031 = vmatpush1.msra.mxu0 0.0
    %8032 = vmatprep.subr.mxu0 0.0
    %8033 = vmatpush1.msra.mxu0 0.0
    %8034 = vmatprep.subr.mxu0 0.0
    %8035 = vmatpush1.msra.mxu0 0.0
    %8036 = vmatprep.subr.mxu0 0.0
    %8037 = vmatpush1.msra.mxu0 0.0
    %8038 = vmatprep.subr.mxu0 0.0
    %8039 = vmatpush1.msra.mxu0 0.0
    %8040 = vmatprep.subr.mxu0 0.0
    %8041 = vmatpush1.msra.mxu0 0.0
    %8042 = vmatprep.subr.mxu0 0.0
    %8043 = vmatpush1.msra.mxu0 0.0
    %8044 = vmatprep.subr.mxu0 0.0
    %8045 = vmatpush1.msra.mxu0 0.0
    %8046 = vmatprep.subr.mxu0 0.0
    %8047 = vmatpush1.msra.mxu0 0.0
    %8048 = vmatprep.mubr.f32.mxu0 0.0
    %8049 = vmatmul.mubr.f32.gmra.mrb[0].mxu0 %v7982
    %v8050 = vpop.f32.mrb[0].mxu0
    %v8051 = vadd.f32 %v407, %v8050
    %v8052 = vpop.f32.mrb[0].mxu0
    %8053 = vdwg.mxu0
    %v8054 = vmax.f32 %v8051, 0.0
    %8055 = vmatprep.subr.mxu0 0.0
    %8056 = vmatpush1.msra.mxu0 %v98
    %8057 = vmatprep.subr.mxu0 0.0
    %8058 = vmatpush1.msra.mxu0 %v99
    %8059 = vmatprep.subr.mxu0 0.0
    %8060 = vmatpush1.msra.mxu0 %v100
    %8061 = vmatprep.subr.mxu0 0.0
    %8062 = vmatpush1.msra.mxu0 %v101
    %8063 = vmatprep.subr.mxu0 0.0
    %8064 = vmatpush1.msra.mxu0 %v102
    %8065 = vmatprep.subr.mxu0 0.0
    %8066 = vmatpush1.msra.mxu0 %v103
    %8067 = vmatprep.subr.mxu0 0.0
    %8068 = vmatpush1.msra.mxu0 %v104
    %8069 = vmatprep.subr.mxu0 0.0
    %8070 = vmatpush1.msra.mxu0 %v105
    %8071 = vmatprep.subr.mxu0 0.0
    %8072 = vmatpush1.msra.mxu0 %v106
    %8073 = vmatprep.subr.mxu0 0.0
    %8074 = vmatpush1.msra.mxu0 %v107
    %8075 = vmatprep.subr.mxu0 0.0
    %8076 = vmatpush1.msra.mxu0 %v108
    %8077 = vmatprep.subr.mxu0 0.0
    %8078 = vmatpush1.msra.mxu0 %v109
    %8079 = vmatprep.subr.mxu0 0.0
    %8080 = vmatpush1.msra.mxu0 %v110
    %8081 = vmatprep.subr.mxu0 0.0
    %8082 = vmatpush1.msra.mxu0 %v111
    %8083 = vmatprep.subr.mxu0 0.0
    %8084 = vmatpush1.msra.mxu0 %v112
    %8085 = vmatprep.subr.mxu0 0.0
    %8086 = vmatpush1.msra.mxu0 %v113
    %8087 = vmatprep.subr.mxu0 0.0
    %8088 = vmatpush1.msra.mxu0 0.0
    %8089 = vmatprep.subr.mxu0 0.0
    %8090 = vmatpush1.msra.mxu0 0.0
    %8091 = vmatprep.subr.mxu0 0.0
    %8092 = vmatpush1.msra.mxu0 0.0
    %8093 = vmatprep.subr.mxu0 0.0
    %8094 = vmatpush1.msra.mxu0 0.0
    %8095 = vmatprep.subr.mxu0 0.0
    %8096 = vmatpush1.msra.mxu0 0.0
    %8097 = vmatprep.subr.mxu0 0.0
    %8098 = vmatpush1.msra.mxu0 0.0
    %8099 = vmatprep.subr.mxu0 0.0
    %8100 = vmatpush1.msra.mxu0 0.0
    %8101 = vmatprep.subr.mxu0 0.0
    %8102 = vmatpush1.msra.mxu0 0.0
    %8103 = vmatprep.subr.mxu0 0.0
    %8104 = vmatpush1.msra.mxu0 0.0
    %8105 = vmatprep.subr.mxu0 0.0
    %8106 = vmatpush1.msra.mxu0 0.0
    %8107 = vmatprep.subr.mxu0 0.0
    %8108 = vmatpush1.msra.mxu0 0.0
    %8109 = vmatprep.subr.mxu0 0.0
    %8110 = vmatpush1.msra.mxu0 0.0
    %8111 = vmatprep.subr.mxu0 0.0
    %8112 = vmatpush1.msra.mxu0 0.0
    %8113 = vmatprep.subr.mxu0 0.0
    %8114 = vmatpush1.msra.mxu0 0.0
    %8115 = vmatprep.subr.mxu0 0.0
    %8116 = vmatpush1.msra.mxu0 0.0
    %8117 = vmatprep.subr.mxu0 0.0
    %8118 = vmatpush1.msra.mxu0 0.0
    %8119 = vmatprep.mubr.f32.mxu0 0.0
    %8120 = vmatmul.mubr.f32.gmra.mrb[0].mxu0 %v8054
    %v8121 = vpop.f32.mrb[0].mxu0
    %v8122 = vadd.f32 %v414, %v8121
    %v8123 = vpop.f32.mrb[0].mxu0
    %8124 = vdwg.mxu0
    %v8125 = vmax.f32 %v8122, 0.0
    %8126 = vmatprep.subr.mxu0 %v147
    %8127 = vmatpush1.msra.mxu0 %v146
    %8128 = vmatprep.subr.mxu0 %v151
    %8129 = vmatpush1.msra.mxu0 %v150
    %8130 = vmatprep.subr.mxu0 %v155
    %8131 = vmatpush1.msra.mxu0 %v154
    %8132 = vmatprep.subr.mxu0 %v159
    %8133 = vmatpush1.msra.mxu0 %v158
    %8134 = vmatprep.subr.mxu0 %v163
    %8135 = vmatpush1.msra.mxu0 %v162
    %8136 = vmatprep.subr.mxu0 %v167
    %8137 = vmatpush1.msra.mxu0 %v166
    %8138 = vmatprep.subr.mxu0 %v171
    %8139 = vmatpush1.msra.mxu0 %v170
    %8140 = vmatprep.subr.mxu0 %v175
    %8141 = vmatpush1.msra.mxu0 %v174
    %8142 = vmatprep.subr.mxu0 %v179
    %8143 = vmatpush1.msra.mxu0 %v178
    %8144 = vmatprep.subr.mxu0 %v183
    %8145 = vmatpush1.msra.mxu0 %v182
    %8146 = vmatprep.subr.mxu0 %v187
    %8147 = vmatpush1.msra.mxu0 %v186
    %8148 = vmatprep.subr.mxu0 %v191
    %8149 = vmatpush1.msra.mxu0 %v190
    %8150 = vmatprep.subr.mxu0 %v195
    %8151 = vmatpush1.msra.mxu0 %v194
    %8152 = vmatprep.subr.mxu0 %v199
    %8153 = vmatpush1.msra.mxu0 %v198
    %8154 = vmatprep.subr.mxu0 %v203
    %8155 = vmatpush1.msra.mxu0 %v202
    %8156 = vmatprep.subr.mxu0 %v207
    %8157 = vmatpush1.msra.mxu0 %v206
    %8158 = vmatprep.subr.mxu0 %v211
    %8159 = vmatpush1.msra.mxu0 %v210
    %8160 = vmatprep.subr.mxu0 %v215
    %8161 = vmatpush1.msra.mxu0 %v214
    %8162 = vmatprep.subr.mxu0 %v219
    %8163 = vmatpush1.msra.mxu0 %v218
    %8164 = vmatprep.subr.mxu0 %v223
    %8165 = vmatpush1.msra.mxu0 %v222
    %8166 = vmatprep.subr.mxu0 %v227
    %8167 = vmatpush1.msra.mxu0 %v226
    %8168 = vmatprep.subr.mxu0 %v231
    %8169 = vmatpush1.msra.mxu0 %v230
    %8170 = vmatprep.subr.mxu0 %v235
    %8171 = vmatpush1.msra.mxu0 %v234
    %8172 = vmatprep.subr.mxu0 %v239
    %8173 = vmatpush1.msra.mxu0 %v238
    %8174 = vmatprep.subr.mxu0 %v243
    %8175 = vmatpush1.msra.mxu0 %v242
    %8176 = vmatprep.subr.mxu0 %v247
    %8177 = vmatpush1.msra.mxu0 %v246
    %8178 = vmatprep.subr.mxu0 %v251
    %8179 = vmatpush1.msra.mxu0 %v250
    %8180 = vmatprep.subr.mxu0 %v255
    %8181 = vmatpush1.msra.mxu0 %v254
    %8182 = vmatprep.subr.mxu0 %v259
    %8183 = vmatpush1.msra.mxu0 %v258
    %8184 = vmatprep.subr.mxu0 %v263
    %8185 = vmatpush1.msra.mxu0 %v262
    %8186 = vmatprep.subr.mxu0 %v267
    %8187 = vmatpush1.msra.mxu0 %v266
    %8188 = vmatprep.subr.mxu0 %v271
    %8189 = vmatpush1.msra.mxu0 %v270
    %8190 = vmatprep.mubr.f32.mxu0 %v7041
    %8191 = vmatmul.mubr.f32.gmra.mrb[0].mxu0 %v8125
    %v8192 = vpop.f32.mrb[0].mxu0
    %v8193 = vadd.f32 %v589, %v8192
    %v8194 = vpop.f32.mrb[0].mxu0
    %v8195 = vadd.f32 %v593, %v8194
    %8196 = vdwg.mxu0
    %8197 = vmatprep.subr.mxu0 %v149
    %8198 = vmatpush1.msra.mxu0 %v148
    %8199 = vmatprep.subr.mxu0 %v153
    %8200 = vmatpush1.msra.mxu0 %v152
    %8201 = vmatprep.subr.mxu0 %v157
    %8202 = vmatpush1.msra.mxu0 %v156
    %8203 = vmatprep.subr.mxu0 %v161
    %8204 = vmatpush1.msra.mxu0 %v160
    %8205 = vmatprep.subr.mxu0 %v165
    %8206 = vmatpush1.msra.mxu0 %v164
    %8207 = vmatprep.subr.mxu0 %v169
    %8208 = vmatpush1.msra.mxu0 %v168
    %8209 = vmatprep.subr.mxu0 %v173
    %8210 = vmatpush1.msra.mxu0 %v172
    %8211 = vmatprep.subr.mxu0 %v177
    %8212 = vmatpush1.msra.mxu0 %v176
    %8213 = vmatprep.subr.mxu0 %v181
    %8214 = vmatpush1.msra.mxu0 %v180
    %8215 = vmatprep.subr.mxu0 %v185
    %8216 = vmatpush1.msra.mxu0 %v184
    %8217 = vmatprep.subr.mxu0 %v189
    %8218 = vmatpush1.msra.mxu0 %v188
    %8219 = vmatprep.subr.mxu0 %v193
    %8220 = vmatpush1.msra.mxu0 %v192
    %8221 = vmatprep.subr.mxu0 %v197
    %8222 = vmatpush1.msra.mxu0 %v196
    %8223 = vmatprep.subr.mxu0 %v201
    %8224 = vmatpush1.msra.mxu0 %v200
    %8225 = vmatprep.subr.mxu0 %v205
    %8226 = vmatpush1.msra.mxu0 %v204
    %8227 = vmatprep.subr.mxu0 %v209
    %8228 = vmatpush1.msra.mxu0 %v208
    %8229 = vmatprep.subr.mxu0 %v213
    %8230 = vmatpush1.msra.mxu0 %v212
    %8231 = vmatprep.subr.mxu0 %v217
    %8232 = vmatpush1.msra.mxu0 %v216
    %8233 = vmatprep.subr.mxu0 %v221
    %8234 = vmatpush1.msra.mxu0 %v220
    %8235 = vmatprep.subr.mxu0 %v225
    %8236 = vmatpush1.msra.mxu0 %v224
    %8237 = vmatprep.subr.mxu0 %v229
    %8238 = vmatpush1.msra.mxu0 %v228
    %8239 = vmatprep.subr.mxu0 %v233
    %8240 = vmatpush1.msra.mxu0 %v232
    %8241 = vmatprep.subr.mxu0 %v237
    %8242 = vmatpush1.msra.mxu0 %v236
    %8243 = vmatprep.subr.mxu0 %v241
    %8244 = vmatpush1.msra.mxu0 %v240
    %8245 = vmatprep.subr.mxu0 %v245
    %8246 = vmatpush1.msra.mxu0 %v244
    %8247 = vmatprep.subr.mxu0 %v249
    %8248 = vmatpush1.msra.mxu0 %v248
    %8249 = vmatprep.subr.mxu0 %v253
    %8250 = vmatpush1.msra.mxu0 %v252
    %8251 = vmatprep.subr.mxu0 %v257
    %8252 = vmatpush1.msra.mxu0 %v256
    %8253 = vmatprep.subr.mxu0 %v261
    %8254 = vmatpush1.msra.mxu0 %v260
    %8255 = vmatprep.subr.mxu0 %v265
    %8256 = vmatpush1.msra.mxu0 %v264
    %8257 = vmatprep.subr.mxu0 %v269
    %8258 = vmatpush1.msra.mxu0 %v268
    %8259 = vmatprep.subr.mxu0 %v273
    %8260 = vmatpush1.msra.mxu0 %v272
    %8261 = vmatprep.mubr.f32.mxu0 %v7041
    %8262 = vmatmul.mubr.f32.gmra.mrb[0].mxu0 %v8125
    %v8263 = vpop.f32.mrb[0].mxu0
    %v8264 = vadd.f32 %v597, %v8263
    %v8265 = vpop.f32.mrb[0].mxu0
    %v8266 = vadd.f32 %v601, %v8265
    %8267 = vdwg.mxu0
    %v8268 = vxor.u32 %v8193, 2147483648
    %v8269 = vmul.f32 %v8268, 1.442695
    %v8270 = vpow.pop %v8269
    %v8271 = vadd.f32 %v8270, 1.0
    %v8272 = vrcp.pop %v8271
    %v8273 = vmul.f32 1.0, %v8272
    %v8274 = vxor.u32 %v8195, 2147483648
    %v8275 = vmul.f32 %v8274, 1.442695
    %v8276 = vpow.pop %v8275
    %v8277 = vadd.f32 %v8276, 1.0
    %v8278 = vrcp.pop %v8277
    %v8279 = vmul.f32 1.0, %v8278
    %v8280 = vtanh.pop %v8264
    %v8281 = vxor.u32 %v8266, 2147483648
    %v8282 = vmul.f32 %v8281, 1.442695
    %v8283 = vpow.pop %v8282
    %v8284 = vadd.f32 %v8283, 1.0
    %v8285 = vrcp.pop %v8284
    %v8286 = vmul.f32 1.0, %v8285
    %v8287 = vmul.f32 %v8279, %v7039
    %v8288 = vmul.f32 %v8273, %v8280
    %v8289 = vadd.f32 %v8287, %v8288
    %v8290 = vtanh.pop %v8289
    %v8291 = vmul.f32 %v8286, %v8290
    %8292 = vmatprep.subr.mxu0 %v275
    %8293 = vmatpush1.msra.mxu0 %v274
    %8294 = vmatprep.subr.mxu0 %v279
    %8295 = vmatpush1.msra.mxu0 %v278
    %8296 = vmatprep.subr.mxu0 %v283
    %8297 = vmatpush1.msra.mxu0 %v282
    %8298 = vmatprep.subr.mxu0 %v287
    %8299 = vmatpush1.msra.mxu0 %v286
    %8300 = vmatprep.subr.mxu0 %v291
    %8301 = vmatpush1.msra.mxu0 %v290
    %8302 = vmatprep.subr.mxu0 %v295
    %8303 = vmatpush1.msra.mxu0 %v294
    %8304 = vmatprep.subr.mxu0 %v299
    %8305 = vmatpush1.msra.mxu0 %v298
    %8306 = vmatprep.subr.mxu0 %v303
    %8307 = vmatpush1.msra.mxu0 %v302
    %8308 = vmatprep.subr.mxu0 %v307
    %8309 = vmatpush1.msra.mxu0 %v306
    %8310 = vmatprep.subr.mxu0 %v311
    %8311 = vmatpush1.msra.mxu0 %v310
    %8312 = vmatprep.subr.mxu0 %v315
    %8313 = vmatpush1.msra.mxu0 %v314
    %8314 = vmatprep.subr.mxu0 %v319
    %8315 = vmatpush1.msra.mxu0 %v318
    %8316 = vmatprep.subr.mxu0 %v323
    %8317 = vmatpush1.msra.mxu0 %v322
    %8318 = vmatprep.subr.mxu0 %v327
    %8319 = vmatpush1.msra.mxu0 %v326
    %8320 = vmatprep.subr.mxu0 %v331
    %8321 = vmatpush1.msra.mxu0 %v330
    %8322 = vmatprep.subr.mxu0 %v335
    %8323 = vmatpush1.msra.mxu0 %v334
    %8324 = vmatprep.subr.mxu0 %v339
    %8325 = vmatpush1.msra.mxu0 %v338
    %8326 = vmatprep.subr.mxu0 %v343
    %8327 = vmatpush1.msra.mxu0 %v342
    %8328 = vmatprep.subr.mxu0 %v347
    %8329 = vmatpush1.msra.mxu0 %v346
    %8330 = vmatprep.subr.mxu0 %v351
    %8331 = vmatpush1.msra.mxu0 %v350
    %8332 = vmatprep.subr.mxu0 %v355
    %8333 = vmatpush1.msra.mxu0 %v354
    %8334 = vmatprep.subr.mxu0 %v359
    %8335 = vmatpush1.msra.mxu0 %v358
    %8336 = vmatprep.subr.mxu0 %v363
    %8337 = vmatpush1.msra.mxu0 %v362
    %8338 = vmatprep.subr.mxu0 %v367
    %8339 = vmatpush1.msra.mxu0 %v366
    %8340 = vmatprep.subr.mxu0 %v371
    %8341 = vmatpush1.msra.mxu0 %v370
    %8342 = vmatprep.subr.mxu0 %v375
    %8343 = vmatpush1.msra.mxu0 %v374
    %8344 = vmatprep.subr.mxu0 %v379
    %8345 = vmatpush1.msra.mxu0 %v378
    %8346 = vmatprep.subr.mxu0 %v383
    %8347 = vmatpush1.msra.mxu0 %v382
    %8348 = vmatprep.subr.mxu0 %v387
    %8349 = vmatpush1.msra.mxu0 %v386
    %8350 = vmatprep.subr.mxu0 %v391
    %8351 = vmatpush1.msra.mxu0 %v390
    %8352 = vmatprep.subr.mxu0 %v395
    %8353 = vmatpush1.msra.mxu0 %v394
    %8354 = vmatprep.subr.mxu0 %v399
    %8355 = vmatpush1.msra.mxu0 %v398
    %8356 = vmatprep.mubr.f32.mxu0 %v7207
    %8357 = vmatmul.mubr.f32.gmra.mrb[0].mxu0 %v8291
    %v8358 = vpop.f32.mrb[0].mxu0
    %v8359 = vadd.f32 %v776, %v8358
    %v8360 = vpop.f32.mrb[0].mxu0
    %v8361 = vadd.f32 %v780, %v8360
    %8362 = vdwg.mxu0
    %8363 = vmatprep.subr.mxu0 %v277
    %8364 = vmatpush1.msra.mxu0 %v276
    %8365 = vmatprep.subr.mxu0 %v281
    %8366 = vmatpush1.msra.mxu0 %v280
    %8367 = vmatprep.subr.mxu0 %v285
    %8368 = vmatpush1.msra.mxu0 %v284
    %8369 = vmatprep.subr.mxu0 %v289
    %8370 = vmatpush1.msra.mxu0 %v288
    %8371 = vmatprep.subr.mxu0 %v293
    %8372 = vmatpush1.msra.mxu0 %v292
    %8373 = vmatprep.subr.mxu0 %v297
    %8374 = vmatpush1.msra.mxu0 %v296
    %8375 = vmatprep.subr.mxu0 %v301
    %8376 = vmatpush1.msra.mxu0 %v300
    %8377 = vmatprep.subr.mxu0 %v305
    %8378 = vmatpush1.msra.mxu0 %v304
    %8379 = vmatprep.subr.mxu0 %v309
    %8380 = vmatpush1.msra.mxu0 %v308
    %8381 = vmatprep.subr.mxu0 %v313
    %8382 = vmatpush1.msra.mxu0 %v312
    %8383 = vmatprep.subr.mxu0 %v317
    %8384 = vmatpush1.msra.mxu0 %v316
    %8385 = vmatprep.subr.mxu0 %v321
    %8386 = vmatpush1.msra.mxu0 %v320
    %8387 = vmatprep.subr.mxu0 %v325
    %8388 = vmatpush1.msra.mxu0 %v324
    %8389 = vmatprep.subr.mxu0 %v329
    %8390 = vmatpush1.msra.mxu0 %v328
    %8391 = vmatprep.subr.mxu0 %v333
    %8392 = vmatpush1.msra.mxu0 %v332
    %8393 = vmatprep.subr.mxu0 %v337
    %8394 = vmatpush1.msra.mxu0 %v336
    %8395 = vmatprep.subr.mxu0 %v341
    %8396 = vmatpush1.msra.mxu0 %v340
    %8397 = vmatprep.subr.mxu0 %v345
    %8398 = vmatpush1.msra.mxu0 %v344
    %8399 = vmatprep.subr.mxu0 %v349
    %8400 = vmatpush1.msra.mxu0 %v348
    %8401 = vmatprep.subr.mxu0 %v353
    %8402 = vmatpush1.msra.mxu0 %v352
    %8403 = vmatprep.subr.mxu0 %v357
    %8404 = vmatpush1.msra.mxu0 %v356
    %8405 = vmatprep.subr.mxu0 %v361
    %8406 = vmatpush1.msra.mxu0 %v360
    %8407 = vmatprep.subr.mxu0 %v365
    %8408 = vmatpush1.msra.mxu0 %v364
    %8409 = vmatprep.subr.mxu0 %v369
    %8410 = vmatpush1.msra.mxu0 %v368
    %8411 = vmatprep.subr.mxu0 %v373
    %8412 = vmatpush1.msra.mxu0 %v372
    %8413 = vmatprep.subr.mxu0 %v377
    %8414 = vmatpush1.msra.mxu0 %v376
    %8415 = vmatprep.subr.mxu0 %v381
    %8416 = vmatpush1.msra.mxu0 %v380
    %8417 = vmatprep.subr.mxu0 %v385
    %8418 = vmatpush1.msra.mxu0 %v384
    %8419 = vmatprep.subr.mxu0 %v389
    %8420 = vmatpush1.msra.mxu0 %v388
    %8421 = vmatprep.subr.mxu0 %v393
    %8422 = vmatpush1.msra.mxu0 %v392
    %8423 = vmatprep.subr.mxu0 %v397
    %8424 = vmatpush1.msra.mxu0 %v396
    %8425 = vmatprep.subr.mxu0 %v401
    %8426 = vmatpush1.msra.mxu0 %v400
    %8427 = vmatprep.mubr.f32.mxu0 %v7207
    %8428 = vmatmul.mubr.f32.gmra.mrb[0].mxu0 %v8291
    %v8429 = vpop.f32.mrb[0].mxu0
    %v8430 = vadd.f32 %v784, %v8429
    %v8431 = vpop.f32.mrb[0].mxu0
    %v8432 = vadd.f32 %v788, %v8431
    %8433 = vdwg.mxu0
    %v8434 = vxor.u32 %v8359, 2147483648
    %v8435 = vmul.f32 %v8434, 1.442695
    %v8436 = vpow.pop %v8435
    %v8437 = vadd.f32 %v8436, 1.0
    %v8438 = vrcp.pop %v8437
    %v8439 = vmul.f32 1.0, %v8438
    %v8440 = vxor.u32 %v8361, 2147483648
    %v8441 = vmul.f32 %v8440, 1.442695
    %v8442 = vpow.pop %v8441
    %v8443 = vadd.f32 %v8442, 1.0
    %v8444 = vrcp.pop %v8443
    %v8445 = vmul.f32 1.0, %v8444
    %v8446 = vtanh.pop %v8430
    %v8447 = vxor.u32 %v8432, 2147483648
    %v8448 = vmul.f32 %v8447, 1.442695
    %v8449 = vpow.pop %v8448
    %v8450 = vadd.f32 %v8449, 1.0
    %v8451 = vrcp.pop %v8450
    %v8452 = vmul.f32 1.0, %v8451
    %v8453 = vmul.f32 %v8445, %v7205
    %v8454 = vmul.f32 %v8439, %v8446
    %v8455 = vadd.f32 %v8453, %v8454
    %v8456 = vtanh.pop %v8455
    %v8457 = vmul.f32 %v8452, %v8456
    %8458 = vmatprep.subr.mxu0 0.0
    %8459 = vmatpush1.msra.mxu0 %v114
    %8460 = vmatprep.subr.mxu0 0.0
    %8461 = vmatpush1.msra.mxu0 %v115
    %8462 = vmatprep.subr.mxu0 0.0
    %8463 = vmatpush1.msra.mxu0 %v116
    %8464 = vmatprep.subr.mxu0 0.0
    %8465 = vmatpush1.msra.mxu0 %v117
    %8466 = vmatprep.subr.mxu0 0.0
    %8467 = vmatpush1.msra.mxu0 %v118
    %8468 = vmatprep.subr.mxu0 0.0
    %8469 = vmatpush1.msra.mxu0 %v119
    %8470 = vmatprep.subr.mxu0 0.0
    %8471 = vmatpush1.msra.mxu0 %v120
    %8472 = vmatprep.subr.mxu0 0.0
    %8473 = vmatpush1.msra.mxu0 %v121
    %8474 = vmatprep.subr.mxu0 0.0
    %8475 = vmatpush1.msra.mxu0 %v122
    %8476 = vmatprep.subr.mxu0 0.0
    %8477 = vmatpush1.msra.mxu0 %v123
    %8478 = vmatprep.subr.mxu0 0.0
    %8479 = vmatpush1.msra.mxu0 %v124
    %8480 = vmatprep.subr.mxu0 0.0
    %8481 = vmatpush1.msra.mxu0 %v125
    %8482 = vmatprep.subr.mxu0 0.0
    %8483 = vmatpush1.msra.mxu0 %v126
    %8484 = vmatprep.subr.mxu0 0.0
    %8485 = vmatpush1.msra.mxu0 %v127
    %8486 = vmatprep.subr.mxu0 0.0
    %8487 = vmatpush1.msra.mxu0 %v128
    %8488 = vmatprep.subr.mxu0 0.0
    %8489 = vmatpush1.msra.mxu0 %v129
    %8490 = vmatprep.subr.mxu0 0.0
    %8491 = vmatpush1.msra.mxu0 0.0
    %8492 = vmatprep.subr.mxu0 0.0
    %8493 = vmatpush1.msra.mxu0 0.0
    %8494 = vmatprep.subr.mxu0 0.0
    %8495 = vmatpush1.msra.mxu0 0.0
    %8496 = vmatprep.subr.mxu0 0.0
    %8497 = vmatpush1.msra.mxu0 0.0
    %8498 = vmatprep.subr.mxu0 0.0
    %8499 = vmatpush1.msra.mxu0 0.0
    %8500 = vmatprep.subr.mxu0 0.0
    %8501 = vmatpush1.msra.mxu0 0.0
    %8502 = vmatprep.subr.mxu0 0.0
    %8503 = vmatpush1.msra.mxu0 0.0
    %8504 = vmatprep.subr.mxu0 0.0
    %8505 = vmatpush1.msra.mxu0 0.0
    %8506 = vmatprep.subr.mxu0 0.0
    %8507 = vmatpush1.msra.mxu0 0.0
    %8508 = vmatprep.subr.mxu0 0.0
    %8509 = vmatpush1.msra.mxu0 0.0
    %8510 = vmatprep.subr.mxu0 0.0
    %8511 = vmatpush1.msra.mxu0 0.0
    %8512 = vmatprep.subr.mxu0 0.0
    %8513 = vmatpush1.msra.mxu0 0.0
    %8514 = vmatprep.subr.mxu0 0.0
    %8515 = vmatpush1.msra.mxu0 0.0
    %8516 = vmatprep.subr.mxu0 0.0
    %8517 = vmatpush1.msra.mxu0 0.0
    %8518 = vmatprep.subr.mxu0 0.0
    %8519 = vmatpush1.msra.mxu0 0.0
    %8520 = vmatprep.subr.mxu0 0.0
    %8521 = vmatpush1.msra.mxu0 0.0
    %8522 = vmatprep.mubr.f32.mxu0 0.0
    %8523 = vmatmul.mubr.f32.gmra.mrb[0].mxu0 %v8457
    %v8524 = vpop.f32.mrb[0].mxu0
    %v8525 = vadd.f32 %v421, %v8524
    %v8526 = vpop.f32.mrb[0].mxu0
    %8527 = vdwg.mxu0
    %v8528 = vmax.f32 %v8525, 0.0
    %8529 = vmatprep.subr.mxu0 0.0
    %8530 = vmatpush1.msra.mxu0 %v130
    %8531 = vmatprep.subr.mxu0 0.0
    %8532 = vmatpush1.msra.mxu0 %v131
    %8533 = vmatprep.subr.mxu0 0.0
    %8534 = vmatpush1.msra.mxu0 %v132
    %8535 = vmatprep.subr.mxu0 0.0
    %8536 = vmatpush1.msra.mxu0 %v133
    %8537 = vmatprep.subr.mxu0 0.0
    %8538 = vmatpush1.msra.mxu0 %v134
    %8539 = vmatprep.subr.mxu0 0.0
    %8540 = vmatpush1.msra.mxu0 %v135
    %8541 = vmatprep.subr.mxu0 0.0
    %8542 = vmatpush1.msra.mxu0 %v136
    %8543 = vmatprep.subr.mxu0 0.0
    %8544 = vmatpush1.msra.mxu0 %v137
    %8545 = vmatprep.subr.mxu0 0.0
    %8546 = vmatpush1.msra.mxu0 %v138
    %8547 = vmatprep.subr.mxu0 0.0
    %8548 = vmatpush1.msra.mxu0 %v139
    %8549 = vmatprep.subr.mxu0 0.0
    %8550 = vmatpush1.msra.mxu0 %v140
    %8551 = vmatprep.subr.mxu0 0.0
    %8552 = vmatpush1.msra.mxu0 %v141
    %8553 = vmatprep.subr.mxu0 0.0
    %8554 = vmatpush1.msra.mxu0 %v142
    %8555 = vmatprep.subr.mxu0 0.0
    %8556 = vmatpush1.msra.mxu0 %v143
    %8557 = vmatprep.subr.mxu0 0.0
    %8558 = vmatpush1.msra.mxu0 %v144
    %8559 = vmatprep.subr.mxu0 0.0
    %8560 = vmatpush1.msra.mxu0 %v145
    %8561 = vmatprep.subr.mxu0 0.0
    %8562 = vmatpush1.msra.mxu0 0.0
    %8563 = vmatprep.subr.mxu0 0.0
    %8564 = vmatpush1.msra.mxu0 0.0
    %8565 = vmatprep.subr.mxu0 0.0
    %8566 = vmatpush1.msra.mxu0 0.0
    %8567 = vmatprep.subr.mxu0 0.0
    %8568 = vmatpush1.msra.mxu0 0.0
    %8569 = vmatprep.subr.mxu0 0.0
    %8570 = vmatpush1.msra.mxu0 0.0
    %8571 = vmatprep.subr.mxu0 0.0
    %8572 = vmatpush1.msra.mxu0 0.0
    %8573 = vmatprep.subr.mxu0 0.0
    %8574 = vmatpush1.msra.mxu0 0.0
    %8575 = vmatprep.subr.mxu0 0.0
    %8576 = vmatpush1.msra.mxu0 0.0
    %8577 = vmatprep.subr.mxu0 0.0
    %8578 = vmatpush1.msra.mxu0 0.0
    %8579 = vmatprep.subr.mxu0 0.0
    %8580 = vmatpush1.msra.mxu0 0.0
    %8581 = vmatprep.subr.mxu0 0.0
    %8582 = vmatpush1.msra.mxu0 0.0
    %8583 = vmatprep.subr.mxu0 0.0
    %8584 = vmatpush1.msra.mxu0 0.0
    %8585 = vmatprep.subr.mxu0 0.0
    %8586 = vmatpush1.msra.mxu0 0.0
    %8587 = vmatprep.subr.mxu0 0.0
    %8588 = vmatpush1.msra.mxu0 0.0
    %8589 = vmatprep.subr.mxu0 0.0
    %8590 = vmatpush1.msra.mxu0 0.0
    %8591 = vmatprep.subr.mxu0 0.0
    %8592 = vmatpush1.msra.mxu0 0.0
    %8593 = vmatprep.mubr.f32.mxu0 0.0
    %8594 = vmatmul.mubr.f32.gmra.mrb[0].mxu0 %v8528
    %v8595 = vpop.f32.mrb[0].mxu0
    %v8596 = vadd.f32 %v428, %v8595
    %v8597 = vpop.f32.mrb[0].mxu0
    %8598 = vdwg.mxu0
    %v8599 = vadd.f32 %v8596, %v7980
    %s8600 = scalar_lea.vmem [#allocation10], 96
    %8601 = vst.msk [vmem:[%s8600] sm:$0xff] %vm439, %v8599
    %v8603 = vsel %vm439, %v8599, 0
    %8605 = vmatprep.subr.mxu0 0.0
    %8606 = vmatpush1.msra.mxu0 %v96
    %8607 = vmatprep.subr.mxu0 0.0
    %8608 = vmatpush1.msra.mxu0 %v97
    %8609 = vmatprep.subr.mxu0 0.0
    %8610 = vmatpush1.msra.mxu0 0.0
    %8611 = vmatprep.subr.mxu0 0.0
    %8612 = vmatpush1.msra.mxu0 0.0
    %8613 = vmatprep.subr.mxu0 0.0
    %8614 = vmatpush1.msra.mxu0 0.0
    %8615 = vmatprep.subr.mxu0 0.0
    %8616 = vmatpush1.msra.mxu0 0.0
    %8617 = vmatprep.subr.mxu0 0.0
    %8618 = vmatpush1.msra.mxu0 0.0
    %8619 = vmatprep.subr.mxu0 0.0
    %8620 = vmatpush1.msra.mxu0 0.0
    %8621 = vmatprep.subr.mxu0 0.0
    %8622 = vmatpush1.msra.mxu0 0.0
    %8623 = vmatprep.subr.mxu0 0.0
    %8624 = vmatpush1.msra.mxu0 0.0
    %8625 = vmatprep.subr.mxu0 0.0
    %8626 = vmatpush1.msra.mxu0 0.0
    %8627 = vmatprep.subr.mxu0 0.0
    %8628 = vmatpush1.msra.mxu0 0.0
    %8629 = vmatprep.subr.mxu0 0.0
    %8630 = vmatpush1.msra.mxu0 0.0
    %8631 = vmatprep.subr.mxu0 0.0
    %8632 = vmatpush1.msra.mxu0 0.0
    %8633 = vmatprep.subr.mxu0 0.0
    %8634 = vmatpush1.msra.mxu0 0.0
    %8635 = vmatprep.subr.mxu0 0.0
    %8636 = vmatpush1.msra.mxu0 0.0
    %8637 = vmatprep.subr.mxu0 0.0
    %8638 = vmatpush1.msra.mxu0 0.0
    %8639 = vmatprep.subr.mxu0 0.0
    %8640 = vmatpush1.msra.mxu0 0.0
    %8641 = vmatprep.subr.mxu0 0.0
    %8642 = vmatpush1.msra.mxu0 0.0
    %8643 = vmatprep.subr.mxu0 0.0
    %8644 = vmatpush1.msra.mxu0 0.0
    %8645 = vmatprep.subr.mxu0 0.0
    %8646 = vmatpush1.msra.mxu0 0.0
    %8647 = vmatprep.subr.mxu0 0.0
    %8648 = vmatpush1.msra.mxu0 0.0
    %8649 = vmatprep.subr.mxu0 0.0
    %8650 = vmatpush1.msra.mxu0 0.0
    %8651 = vmatprep.subr.mxu0 0.0
    %8652 = vmatpush1.msra.mxu0 0.0
    %8653 = vmatprep.subr.mxu0 0.0
    %8654 = vmatpush1.msra.mxu0 0.0
    %8655 = vmatprep.subr.mxu0 0.0
    %8656 = vmatpush1.msra.mxu0 0.0
    %8657 = vmatprep.subr.mxu0 0.0
    %8658 = vmatpush1.msra.mxu0 0.0
    %8659 = vmatprep.subr.mxu0 0.0
    %8660 = vmatpush1.msra.mxu0 0.0
    %8661 = vmatprep.subr.mxu0 0.0
    %8662 = vmatpush1.msra.mxu0 0.0
    %8663 = vmatprep.subr.mxu0 0.0
    %8664 = vmatpush1.msra.mxu0 0.0
    %8665 = vmatprep.subr.mxu0 0.0
    %8666 = vmatpush1.msra.mxu0 0.0
    %8667 = vmatprep.subr.mxu0 0.0
    %8668 = vmatpush1.msra.mxu0 0.0
    %8669 = vmatprep.mubr.f32.mxu0 0.0
    %8670 = vmatmul.mubr.f32.gmra.mrb[0].mxu0 %v8603
    %v8671 = vpop.f32.mrb[0].mxu0
    %v8672 = vadd.f32 %v407, %v8671
    %v8673 = vpop.f32.mrb[0].mxu0
    %8674 = vdwg.mxu0
    %v8675 = vmax.f32 %v8672, 0.0
    %8676 = vmatprep.subr.mxu0 0.0
    %8677 = vmatpush1.msra.mxu0 %v98
    %8678 = vmatprep.subr.mxu0 0.0
    %8679 = vmatpush1.msra.mxu0 %v99
    %8680 = vmatprep.subr.mxu0 0.0
    %8681 = vmatpush1.msra.mxu0 %v100
    %8682 = vmatprep.subr.mxu0 0.0
    %8683 = vmatpush1.msra.mxu0 %v101
    %8684 = vmatprep.subr.mxu0 0.0
    %8685 = vmatpush1.msra.mxu0 %v102
    %8686 = vmatprep.subr.mxu0 0.0
    %8687 = vmatpush1.msra.mxu0 %v103
    %8688 = vmatprep.subr.mxu0 0.0
    %8689 = vmatpush1.msra.mxu0 %v104
    %8690 = vmatprep.subr.mxu0 0.0
    %8691 = vmatpush1.msra.mxu0 %v105
    %8692 = vmatprep.subr.mxu0 0.0
    %8693 = vmatpush1.msra.mxu0 %v106
    %8694 = vmatprep.subr.mxu0 0.0
    %8695 = vmatpush1.msra.mxu0 %v107
    %8696 = vmatprep.subr.mxu0 0.0
    %8697 = vmatpush1.msra.mxu0 %v108
    %8698 = vmatprep.subr.mxu0 0.0
    %8699 = vmatpush1.msra.mxu0 %v109
    %8700 = vmatprep.subr.mxu0 0.0
    %8701 = vmatpush1.msra.mxu0 %v110
    %8702 = vmatprep.subr.mxu0 0.0
    %8703 = vmatpush1.msra.mxu0 %v111
    %8704 = vmatprep.subr.mxu0 0.0
    %8705 = vmatpush1.msra.mxu0 %v112
    %8706 = vmatprep.subr.mxu0 0.0
    %8707 = vmatpush1.msra.mxu0 %v113
    %8708 = vmatprep.subr.mxu0 0.0
    %8709 = vmatpush1.msra.mxu0 0.0
    %8710 = vmatprep.subr.mxu0 0.0
    %8711 = vmatpush1.msra.mxu0 0.0
    %8712 = vmatprep.subr.mxu0 0.0
    %8713 = vmatpush1.msra.mxu0 0.0
    %8714 = vmatprep.subr.mxu0 0.0
    %8715 = vmatpush1.msra.mxu0 0.0
    %8716 = vmatprep.subr.mxu0 0.0
    %8717 = vmatpush1.msra.mxu0 0.0
    %8718 = vmatprep.subr.mxu0 0.0
    %8719 = vmatpush1.msra.mxu0 0.0
    %8720 = vmatprep.subr.mxu0 0.0
    %8721 = vmatpush1.msra.mxu0 0.0
    %8722 = vmatprep.subr.mxu0 0.0
    %8723 = vmatpush1.msra.mxu0 0.0
    %8724 = vmatprep.subr.mxu0 0.0
    %8725 = vmatpush1.msra.mxu0 0.0
    %8726 = vmatprep.subr.mxu0 0.0
    %8727 = vmatpush1.msra.mxu0 0.0
    %8728 = vmatprep.subr.mxu0 0.0
    %8729 = vmatpush1.msra.mxu0 0.0
    %8730 = vmatprep.subr.mxu0 0.0
    %8731 = vmatpush1.msra.mxu0 0.0
    %8732 = vmatprep.subr.mxu0 0.0
    %8733 = vmatpush1.msra.mxu0 0.0
    %8734 = vmatprep.subr.mxu0 0.0
    %8735 = vmatpush1.msra.mxu0 0.0
    %8736 = vmatprep.subr.mxu0 0.0
    %8737 = vmatpush1.msra.mxu0 0.0
    %8738 = vmatprep.subr.mxu0 0.0
    %8739 = vmatpush1.msra.mxu0 0.0
    %8740 = vmatprep.mubr.f32.mxu0 0.0
    %8741 = vmatmul.mubr.f32.gmra.mrb[0].mxu0 %v8675
    %v8742 = vpop.f32.mrb[0].mxu0
    %v8743 = vadd.f32 %v414, %v8742
    %v8744 = vpop.f32.mrb[0].mxu0
    %8745 = vdwg.mxu0
    %v8746 = vmax.f32 %v8743, 0.0
    %8747 = vmatprep.subr.mxu0 %v147
    %8748 = vmatpush1.msra.mxu0 %v146
    %8749 = vmatprep.subr.mxu0 %v151
    %8750 = vmatpush1.msra.mxu0 %v150
    %8751 = vmatprep.subr.mxu0 %v155
    %8752 = vmatpush1.msra.mxu0 %v154
    %8753 = vmatprep.subr.mxu0 %v159
    %8754 = vmatpush1.msra.mxu0 %v158
    %8755 = vmatprep.subr.mxu0 %v163
    %8756 = vmatpush1.msra.mxu0 %v162
    %8757 = vmatprep.subr.mxu0 %v167
    %8758 = vmatpush1.msra.mxu0 %v166
    %8759 = vmatprep.subr.mxu0 %v171
    %8760 = vmatpush1.msra.mxu0 %v170
    %8761 = vmatprep.subr.mxu0 %v175
    %8762 = vmatpush1.msra.mxu0 %v174
    %8763 = vmatprep.subr.mxu0 %v179
    %8764 = vmatpush1.msra.mxu0 %v178
    %8765 = vmatprep.subr.mxu0 %v183
    %8766 = vmatpush1.msra.mxu0 %v182
    %8767 = vmatprep.subr.mxu0 %v187
    %8768 = vmatpush1.msra.mxu0 %v186
    %8769 = vmatprep.subr.mxu0 %v191
    %8770 = vmatpush1.msra.mxu0 %v190
    %8771 = vmatprep.subr.mxu0 %v195
    %8772 = vmatpush1.msra.mxu0 %v194
    %8773 = vmatprep.subr.mxu0 %v199
    %8774 = vmatpush1.msra.mxu0 %v198
    %8775 = vmatprep.subr.mxu0 %v203
    %8776 = vmatpush1.msra.mxu0 %v202
    %8777 = vmatprep.subr.mxu0 %v207
    %8778 = vmatpush1.msra.mxu0 %v206
    %8779 = vmatprep.subr.mxu0 %v211
    %8780 = vmatpush1.msra.mxu0 %v210
    %8781 = vmatprep.subr.mxu0 %v215
    %8782 = vmatpush1.msra.mxu0 %v214
    %8783 = vmatprep.subr.mxu0 %v219
    %8784 = vmatpush1.msra.mxu0 %v218
    %8785 = vmatprep.subr.mxu0 %v223
    %8786 = vmatpush1.msra.mxu0 %v222
    %8787 = vmatprep.subr.mxu0 %v227
    %8788 = vmatpush1.msra.mxu0 %v226
    %8789 = vmatprep.subr.mxu0 %v231
    %8790 = vmatpush1.msra.mxu0 %v230
    %8791 = vmatprep.subr.mxu0 %v235
    %8792 = vmatpush1.msra.mxu0 %v234
    %8793 = vmatprep.subr.mxu0 %v239
    %8794 = vmatpush1.msra.mxu0 %v238
    %8795 = vmatprep.subr.mxu0 %v243
    %8796 = vmatpush1.msra.mxu0 %v242
    %8797 = vmatprep.subr.mxu0 %v247
    %8798 = vmatpush1.msra.mxu0 %v246
    %8799 = vmatprep.subr.mxu0 %v251
    %8800 = vmatpush1.msra.mxu0 %v250
    %8801 = vmatprep.subr.mxu0 %v255
    %8802 = vmatpush1.msra.mxu0 %v254
    %8803 = vmatprep.subr.mxu0 %v259
    %8804 = vmatpush1.msra.mxu0 %v258
    %8805 = vmatprep.subr.mxu0 %v263
    %8806 = vmatpush1.msra.mxu0 %v262
    %8807 = vmatprep.subr.mxu0 %v267
    %8808 = vmatpush1.msra.mxu0 %v266
    %8809 = vmatprep.subr.mxu0 %v271
    %8810 = vmatpush1.msra.mxu0 %v270
    %8811 = vmatprep.mubr.f32.mxu0 %v8291
    %8812 = vmatmul.mubr.f32.gmra.mrb[0].mxu0 %v8746
    %v8813 = vpop.f32.mrb[0].mxu0
    %v8814 = vadd.f32 %v589, %v8813
    %v8815 = vpop.f32.mrb[0].mxu0
    %v8816 = vadd.f32 %v593, %v8815
    %8817 = vdwg.mxu0
    %8818 = vmatprep.subr.mxu0 %v149
    %8819 = vmatpush1.msra.mxu0 %v148
    %8820 = vmatprep.subr.mxu0 %v153
    %8821 = vmatpush1.msra.mxu0 %v152
    %8822 = vmatprep.subr.mxu0 %v157
    %8823 = vmatpush1.msra.mxu0 %v156
    %8824 = vmatprep.subr.mxu0 %v161
    %8825 = vmatpush1.msra.mxu0 %v160
    %8826 = vmatprep.subr.mxu0 %v165
    %8827 = vmatpush1.msra.mxu0 %v164
    %8828 = vmatprep.subr.mxu0 %v169
    %8829 = vmatpush1.msra.mxu0 %v168
    %8830 = vmatprep.subr.mxu0 %v173
    %8831 = vmatpush1.msra.mxu0 %v172
    %8832 = vmatprep.subr.mxu0 %v177
    %8833 = vmatpush1.msra.mxu0 %v176
    %8834 = vmatprep.subr.mxu0 %v181
    %8835 = vmatpush1.msra.mxu0 %v180
    %8836 = vmatprep.subr.mxu0 %v185
    %8837 = vmatpush1.msra.mxu0 %v184
    %8838 = vmatprep.subr.mxu0 %v189
    %8839 = vmatpush1.msra.mxu0 %v188
    %8840 = vmatprep.subr.mxu0 %v193
    %8841 = vmatpush1.msra.mxu0 %v192
    %8842 = vmatprep.subr.mxu0 %v197
    %8843 = vmatpush1.msra.mxu0 %v196
    %8844 = vmatprep.subr.mxu0 %v201
    %8845 = vmatpush1.msra.mxu0 %v200
    %8846 = vmatprep.subr.mxu0 %v205
    %8847 = vmatpush1.msra.mxu0 %v204
    %8848 = vmatprep.subr.mxu0 %v209
    %8849 = vmatpush1.msra.mxu0 %v208
    %8850 = vmatprep.subr.mxu0 %v213
    %8851 = vmatpush1.msra.mxu0 %v212
    %8852 = vmatprep.subr.mxu0 %v217
    %8853 = vmatpush1.msra.mxu0 %v216
    %8854 = vmatprep.subr.mxu0 %v221
    %8855 = vmatpush1.msra.mxu0 %v220
    %8856 = vmatprep.subr.mxu0 %v225
    %8857 = vmatpush1.msra.mxu0 %v224
    %8858 = vmatprep.subr.mxu0 %v229
    %8859 = vmatpush1.msra.mxu0 %v228
    %8860 = vmatprep.subr.mxu0 %v233
    %8861 = vmatpush1.msra.mxu0 %v232
    %8862 = vmatprep.subr.mxu0 %v237
    %8863 = vmatpush1.msra.mxu0 %v236
    %8864 = vmatprep.subr.mxu0 %v241
    %8865 = vmatpush1.msra.mxu0 %v240
    %8866 = vmatprep.subr.mxu0 %v245
    %8867 = vmatpush1.msra.mxu0 %v244
    %8868 = vmatprep.subr.mxu0 %v249
    %8869 = vmatpush1.msra.mxu0 %v248
    %8870 = vmatprep.subr.mxu0 %v253
    %8871 = vmatpush1.msra.mxu0 %v252
    %8872 = vmatprep.subr.mxu0 %v257
    %8873 = vmatpush1.msra.mxu0 %v256
    %8874 = vmatprep.subr.mxu0 %v261
    %8875 = vmatpush1.msra.mxu0 %v260
    %8876 = vmatprep.subr.mxu0 %v265
    %8877 = vmatpush1.msra.mxu0 %v264
    %8878 = vmatprep.subr.mxu0 %v269
    %8879 = vmatpush1.msra.mxu0 %v268
    %8880 = vmatprep.subr.mxu0 %v273
    %8881 = vmatpush1.msra.mxu0 %v272
    %8882 = vmatprep.mubr.f32.mxu0 %v8291
    %8883 = vmatmul.mubr.f32.gmra.mrb[0].mxu0 %v8746
    %v8884 = vpop.f32.mrb[0].mxu0
    %v8885 = vadd.f32 %v597, %v8884
    %v8886 = vpop.f32.mrb[0].mxu0
    %v8887 = vadd.f32 %v601, %v8886
    %8888 = vdwg.mxu0
    %v8889 = vxor.u32 %v8814, 2147483648
    %v8890 = vmul.f32 %v8889, 1.442695
    %v8891 = vpow.pop %v8890
    %v8892 = vadd.f32 %v8891, 1.0
    %v8893 = vrcp.pop %v8892
    %v8894 = vmul.f32 1.0, %v8893
    %v8895 = vxor.u32 %v8816, 2147483648
    %v8896 = vmul.f32 %v8895, 1.442695
    %v8897 = vpow.pop %v8896
    %v8898 = vadd.f32 %v8897, 1.0
    %v8899 = vrcp.pop %v8898
    %v8900 = vmul.f32 1.0, %v8899
    %v8901 = vtanh.pop %v8885
    %v8902 = vxor.u32 %v8887, 2147483648
    %v8903 = vmul.f32 %v8902, 1.442695
    %v8904 = vpow.pop %v8903
    %v8905 = vadd.f32 %v8904, 1.0
    %v8906 = vrcp.pop %v8905
    %v8907 = vmul.f32 1.0, %v8906
    %v8908 = vmul.f32 %v8900, %v8289
    %v8909 = vmul.f32 %v8894, %v8901
    %v8910 = vadd.f32 %v8908, %v8909
    %v8911 = vtanh.pop %v8910
    %v8912 = vmul.f32 %v8907, %v8911
    %8913 = vmatprep.subr.mxu0 %v275
    %8914 = vmatpush1.msra.mxu0 %v274
    %8915 = vmatprep.subr.mxu0 %v279
    %8916 = vmatpush1.msra.mxu0 %v278
    %8917 = vmatprep.subr.mxu0 %v283
    %8918 = vmatpush1.msra.mxu0 %v282
    %8919 = vmatprep.subr.mxu0 %v287
    %8920 = vmatpush1.msra.mxu0 %v286
    %8921 = vmatprep.subr.mxu0 %v291
    %8922 = vmatpush1.msra.mxu0 %v290
    %8923 = vmatprep.subr.mxu0 %v295
    %8924 = vmatpush1.msra.mxu0 %v294
    %8925 = vmatprep.subr.mxu0 %v299
    %8926 = vmatpush1.msra.mxu0 %v298
    %8927 = vmatprep.subr.mxu0 %v303
    %8928 = vmatpush1.msra.mxu0 %v302
    %8929 = vmatprep.subr.mxu0 %v307
    %8930 = vmatpush1.msra.mxu0 %v306
    %8931 = vmatprep.subr.mxu0 %v311
    %8932 = vmatpush1.msra.mxu0 %v310
    %8933 = vmatprep.subr.mxu0 %v315
    %8934 = vmatpush1.msra.mxu0 %v314
    %8935 = vmatprep.subr.mxu0 %v319
    %8936 = vmatpush1.msra.mxu0 %v318
    %8937 = vmatprep.subr.mxu0 %v323
    %8938 = vmatpush1.msra.mxu0 %v322
    %8939 = vmatprep.subr.mxu0 %v327
    %8940 = vmatpush1.msra.mxu0 %v326
    %8941 = vmatprep.subr.mxu0 %v331
    %8942 = vmatpush1.msra.mxu0 %v330
    %8943 = vmatprep.subr.mxu0 %v335
    %8944 = vmatpush1.msra.mxu0 %v334
    %8945 = vmatprep.subr.mxu0 %v339
    %8946 = vmatpush1.msra.mxu0 %v338
    %8947 = vmatprep.subr.mxu0 %v343
    %8948 = vmatpush1.msra.mxu0 %v342
    %8949 = vmatprep.subr.mxu0 %v347
    %8950 = vmatpush1.msra.mxu0 %v346
    %8951 = vmatprep.subr.mxu0 %v351
    %8952 = vmatpush1.msra.mxu0 %v350
    %8953 = vmatprep.subr.mxu0 %v355
    %8954 = vmatpush1.msra.mxu0 %v354
    %8955 = vmatprep.subr.mxu0 %v359
    %8956 = vmatpush1.msra.mxu0 %v358
    %8957 = vmatprep.subr.mxu0 %v363
    %8958 = vmatpush1.msra.mxu0 %v362
    %8959 = vmatprep.subr.mxu0 %v367
    %8960 = vmatpush1.msra.mxu0 %v366
    %8961 = vmatprep.subr.mxu0 %v371
    %8962 = vmatpush1.msra.mxu0 %v370
    %8963 = vmatprep.subr.mxu0 %v375
    %8964 = vmatpush1.msra.mxu0 %v374
    %8965 = vmatprep.subr.mxu0 %v379
    %8966 = vmatpush1.msra.mxu0 %v378
    %8967 = vmatprep.subr.mxu0 %v383
    %8968 = vmatpush1.msra.mxu0 %v382
    %8969 = vmatprep.subr.mxu0 %v387
    %8970 = vmatpush1.msra.mxu0 %v386
    %8971 = vmatprep.subr.mxu0 %v391
    %8972 = vmatpush1.msra.mxu0 %v390
    %8973 = vmatprep.subr.mxu0 %v395
    %8974 = vmatpush1.msra.mxu0 %v394
    %8975 = vmatprep.subr.mxu0 %v399
    %8976 = vmatpush1.msra.mxu0 %v398
    %8977 = vmatprep.mubr.f32.mxu0 %v8457
    %8978 = vmatmul.mubr.f32.gmra.mrb[0].mxu0 %v8912
    %v8979 = vpop.f32.mrb[0].mxu0
    %v8980 = vadd.f32 %v776, %v8979
    %v8981 = vpop.f32.mrb[0].mxu0
    %v8982 = vadd.f32 %v780, %v8981
    %8983 = vdwg.mxu0
    %8984 = vmatprep.subr.mxu0 %v277
    %8985 = vmatpush1.msra.mxu0 %v276
    %8986 = vmatprep.subr.mxu0 %v281
    %8987 = vmatpush1.msra.mxu0 %v280
    %8988 = vmatprep.subr.mxu0 %v285
    %8989 = vmatpush1.msra.mxu0 %v284
    %8990 = vmatprep.subr.mxu0 %v289
    %8991 = vmatpush1.msra.mxu0 %v288
    %8992 = vmatprep.subr.mxu0 %v293
    %8993 = vmatpush1.msra.mxu0 %v292
    %8994 = vmatprep.subr.mxu0 %v297
    %8995 = vmatpush1.msra.mxu0 %v296
    %8996 = vmatprep.subr.mxu0 %v301
    %8997 = vmatpush1.msra.mxu0 %v300
    %8998 = vmatprep.subr.mxu0 %v305
    %8999 = vmatpush1.msra.mxu0 %v304
    %9000 = vmatprep.subr.mxu0 %v309
    %9001 = vmatpush1.msra.mxu0 %v308
    %9002 = vmatprep.subr.mxu0 %v313
    %9003 = vmatpush1.msra.mxu0 %v312
    %9004 = vmatprep.subr.mxu0 %v317
    %9005 = vmatpush1.msra.mxu0 %v316
    %9006 = vmatprep.subr.mxu0 %v321
    %9007 = vmatpush1.msra.mxu0 %v320
    %9008 = vmatprep.subr.mxu0 %v325
    %9009 = vmatpush1.msra.mxu0 %v324
    %9010 = vmatprep.subr.mxu0 %v329
    %9011 = vmatpush1.msra.mxu0 %v328
    %9012 = vmatprep.subr.mxu0 %v333
    %9013 = vmatpush1.msra.mxu0 %v332
    %9014 = vmatprep.subr.mxu0 %v337
    %9015 = vmatpush1.msra.mxu0 %v336
    %9016 = vmatprep.subr.mxu0 %v341
    %9017 = vmatpush1.msra.mxu0 %v340
    %9018 = vmatprep.subr.mxu0 %v345
    %9019 = vmatpush1.msra.mxu0 %v344
    %9020 = vmatprep.subr.mxu0 %v349
    %9021 = vmatpush1.msra.mxu0 %v348
    %9022 = vmatprep.subr.mxu0 %v353
    %9023 = vmatpush1.msra.mxu0 %v352
    %9024 = vmatprep.subr.mxu0 %v357
    %9025 = vmatpush1.msra.mxu0 %v356
    %9026 = vmatprep.subr.mxu0 %v361
    %9027 = vmatpush1.msra.mxu0 %v360
    %9028 = vmatprep.subr.mxu0 %v365
    %9029 = vmatpush1.msra.mxu0 %v364
    %9030 = vmatprep.subr.mxu0 %v369
    %9031 = vmatpush1.msra.mxu0 %v368
    %9032 = vmatprep.subr.mxu0 %v373
    %9033 = vmatpush1.msra.mxu0 %v372
    %9034 = vmatprep.subr.mxu0 %v377
    %9035 = vmatpush1.msra.mxu0 %v376
    %9036 = vmatprep.subr.mxu0 %v381
    %9037 = vmatpush1.msra.mxu0 %v380
    %9038 = vmatprep.subr.mxu0 %v385
    %9039 = vmatpush1.msra.mxu0 %v384
    %9040 = vmatprep.subr.mxu0 %v389
    %9041 = vmatpush1.msra.mxu0 %v388
    %9042 = vmatprep.subr.mxu0 %v393
    %9043 = vmatpush1.msra.mxu0 %v392
    %9044 = vmatprep.subr.mxu0 %v397
    %9045 = vmatpush1.msra.mxu0 %v396
    %9046 = vmatprep.subr.mxu0 %v401
    %9047 = vmatpush1.msra.mxu0 %v400
    %9048 = vmatprep.mubr.f32.mxu0 %v8457
    %9049 = vmatmul.mubr.f32.gmra.mrb[0].mxu0 %v8912
    %v9050 = vpop.f32.mrb[0].mxu0
    %v9051 = vadd.f32 %v784, %v9050
    %v9052 = vpop.f32.mrb[0].mxu0
    %v9053 = vadd.f32 %v788, %v9052
    %9054 = vdwg.mxu0
    %v9055 = vxor.u32 %v8980, 2147483648
    %v9056 = vmul.f32 %v9055, 1.442695
    %v9057 = vpow.pop %v9056
    %v9058 = vadd.f32 %v9057, 1.0
    %v9059 = vrcp.pop %v9058
    %v9060 = vmul.f32 1.0, %v9059
    %v9061 = vxor.u32 %v8982, 2147483648
    %v9062 = vmul.f32 %v9061, 1.442695
    %v9063 = vpow.pop %v9062
    %v9064 = vadd.f32 %v9063, 1.0
    %v9065 = vrcp.pop %v9064
    %v9066 = vmul.f32 1.0, %v9065
    %v9067 = vtanh.pop %v9051
    %v9068 = vxor.u32 %v9053, 2147483648
    %v9069 = vmul.f32 %v9068, 1.442695
    %v9070 = vpow.pop %v9069
    %v9071 = vadd.f32 %v9070, 1.0
    %v9072 = vrcp.pop %v9071
    %v9073 = vmul.f32 1.0, %v9072
    %v9074 = vmul.f32 %v9066, %v8455
    %v9075 = vmul.f32 %v9060, %v9067
    %v9076 = vadd.f32 %v9074, %v9075
    %v9077 = vtanh.pop %v9076
    %v9078 = vmul.f32 %v9073, %v9077
    %9079 = vmatprep.subr.mxu0 0.0
    %9080 = vmatpush1.msra.mxu0 %v114
    %9081 = vmatprep.subr.mxu0 0.0
    %9082 = vmatpush1.msra.mxu0 %v115
    %9083 = vmatprep.subr.mxu0 0.0
    %9084 = vmatpush1.msra.mxu0 %v116
    %9085 = vmatprep.subr.mxu0 0.0
    %9086 = vmatpush1.msra.mxu0 %v117
    %9087 = vmatprep.subr.mxu0 0.0
    %9088 = vmatpush1.msra.mxu0 %v118
    %9089 = vmatprep.subr.mxu0 0.0
    %9090 = vmatpush1.msra.mxu0 %v119
    %9091 = vmatprep.subr.mxu0 0.0
    %9092 = vmatpush1.msra.mxu0 %v120
    %9093 = vmatprep.subr.mxu0 0.0
    %9094 = vmatpush1.msra.mxu0 %v121
    %9095 = vmatprep.subr.mxu0 0.0
    %9096 = vmatpush1.msra.mxu0 %v122
    %9097 = vmatprep.subr.mxu0 0.0
    %9098 = vmatpush1.msra.mxu0 %v123
    %9099 = vmatprep.subr.mxu0 0.0
    %9100 = vmatpush1.msra.mxu0 %v124
    %9101 = vmatprep.subr.mxu0 0.0
    %9102 = vmatpush1.msra.mxu0 %v125
    %9103 = vmatprep.subr.mxu0 0.0
    %9104 = vmatpush1.msra.mxu0 %v126
    %9105 = vmatprep.subr.mxu0 0.0
    %9106 = vmatpush1.msra.mxu0 %v127
    %9107 = vmatprep.subr.mxu0 0.0
    %9108 = vmatpush1.msra.mxu0 %v128
    %9109 = vmatprep.subr.mxu0 0.0
    %9110 = vmatpush1.msra.mxu0 %v129
    %9111 = vmatprep.subr.mxu0 0.0
    %9112 = vmatpush1.msra.mxu0 0.0
    %9113 = vmatprep.subr.mxu0 0.0
    %9114 = vmatpush1.msra.mxu0 0.0
    %9115 = vmatprep.subr.mxu0 0.0
    %9116 = vmatpush1.msra.mxu0 0.0
    %9117 = vmatprep.subr.mxu0 0.0
    %9118 = vmatpush1.msra.mxu0 0.0
    %9119 = vmatprep.subr.mxu0 0.0
    %9120 = vmatpush1.msra.mxu0 0.0
    %9121 = vmatprep.subr.mxu0 0.0
    %9122 = vmatpush1.msra.mxu0 0.0
    %9123 = vmatprep.subr.mxu0 0.0
    %9124 = vmatpush1.msra.mxu0 0.0
    %9125 = vmatprep.subr.mxu0 0.0
    %9126 = vmatpush1.msra.mxu0 0.0
    %9127 = vmatprep.subr.mxu0 0.0
    %9128 = vmatpush1.msra.mxu0 0.0
    %9129 = vmatprep.subr.mxu0 0.0
    %9130 = vmatpush1.msra.mxu0 0.0
    %9131 = vmatprep.subr.mxu0 0.0
    %9132 = vmatpush1.msra.mxu0 0.0
    %9133 = vmatprep.subr.mxu0 0.0
    %9134 = vmatpush1.msra.mxu0 0.0
    %9135 = vmatprep.subr.mxu0 0.0
    %9136 = vmatpush1.msra.mxu0 0.0
    %9137 = vmatprep.subr.mxu0 0.0
    %9138 = vmatpush1.msra.mxu0 0.0
    %9139 = vmatprep.subr.mxu0 0.0
    %9140 = vmatpush1.msra.mxu0 0.0
    %9141 = vmatprep.subr.mxu0 0.0
    %9142 = vmatpush1.msra.mxu0 0.0
    %9143 = vmatprep.mubr.f32.mxu0 0.0
    %9144 = vmatmul.mubr.f32.gmra.mrb[0].mxu0 %v9078
    %v9145 = vpop.f32.mrb[0].mxu0
    %v9146 = vadd.f32 %v421, %v9145
    %v9147 = vpop.f32.mrb[0].mxu0
    %9148 = vdwg.mxu0
    %v9149 = vmax.f32 %v9146, 0.0
    %9150 = vmatprep.subr.mxu0 0.0
    %9151 = vmatpush1.msra.mxu0 %v130
    %9152 = vmatprep.subr.mxu0 0.0
    %9153 = vmatpush1.msra.mxu0 %v131
    %9154 = vmatprep.subr.mxu0 0.0
    %9155 = vmatpush1.msra.mxu0 %v132
    %9156 = vmatprep.subr.mxu0 0.0
    %9157 = vmatpush1.msra.mxu0 %v133
    %9158 = vmatprep.subr.mxu0 0.0
    %9159 = vmatpush1.msra.mxu0 %v134
    %9160 = vmatprep.subr.mxu0 0.0
    %9161 = vmatpush1.msra.mxu0 %v135
    %9162 = vmatprep.subr.mxu0 0.0
    %9163 = vmatpush1.msra.mxu0 %v136
    %9164 = vmatprep.subr.mxu0 0.0
    %9165 = vmatpush1.msra.mxu0 %v137
    %9166 = vmatprep.subr.mxu0 0.0
    %9167 = vmatpush1.msra.mxu0 %v138
    %9168 = vmatprep.subr.mxu0 0.0
    %9169 = vmatpush1.msra.mxu0 %v139
    %9170 = vmatprep.subr.mxu0 0.0
    %9171 = vmatpush1.msra.mxu0 %v140
    %9172 = vmatprep.subr.mxu0 0.0
    %9173 = vmatpush1.msra.mxu0 %v141
    %9174 = vmatprep.subr.mxu0 0.0
    %9175 = vmatpush1.msra.mxu0 %v142
    %9176 = vmatprep.subr.mxu0 0.0
    %9177 = vmatpush1.msra.mxu0 %v143
    %9178 = vmatprep.subr.mxu0 0.0
    %9179 = vmatpush1.msra.mxu0 %v144
    %9180 = vmatprep.subr.mxu0 0.0
    %9181 = vmatpush1.msra.mxu0 %v145
    %9182 = vmatprep.subr.mxu0 0.0
    %9183 = vmatpush1.msra.mxu0 0.0
    %9184 = vmatprep.subr.mxu0 0.0
    %9185 = vmatpush1.msra.mxu0 0.0
    %9186 = vmatprep.subr.mxu0 0.0
    %9187 = vmatpush1.msra.mxu0 0.0
    %9188 = vmatprep.subr.mxu0 0.0
    %9189 = vmatpush1.msra.mxu0 0.0
    %9190 = vmatprep.subr.mxu0 0.0
    %9191 = vmatpush1.msra.mxu0 0.0
    %9192 = vmatprep.subr.mxu0 0.0
    %9193 = vmatpush1.msra.mxu0 0.0
    %9194 = vmatprep.subr.mxu0 0.0
    %9195 = vmatpush1.msra.mxu0 0.0
    %9196 = vmatprep.subr.mxu0 0.0
    %9197 = vmatpush1.msra.mxu0 0.0
    %9198 = vmatprep.subr.mxu0 0.0
    %9199 = vmatpush1.msra.mxu0 0.0
    %9200 = vmatprep.subr.mxu0 0.0
    %9201 = vmatpush1.msra.mxu0 0.0
    %9202 = vmatprep.subr.mxu0 0.0
    %9203 = vmatpush1.msra.mxu0 0.0
    %9204 = vmatprep.subr.mxu0 0.0
    %9205 = vmatpush1.msra.mxu0 0.0
    %9206 = vmatprep.subr.mxu0 0.0
    %9207 = vmatpush1.msra.mxu0 0.0
    %9208 = vmatprep.subr.mxu0 0.0
    %9209 = vmatpush1.msra.mxu0 0.0
    %9210 = vmatprep.subr.mxu0 0.0
    %9211 = vmatpush1.msra.mxu0 0.0
    %9212 = vmatprep.subr.mxu0 0.0
    %9213 = vmatpush1.msra.mxu0 0.0
    %9214 = vmatprep.mubr.f32.mxu0 0.0
    %9215 = vmatmul.mubr.f32.gmra.mrb[0].mxu0 %v9149
    %v9216 = vpop.f32.mrb[0].mxu0
    %v9217 = vadd.f32 %v428, %v9216
    %v9218 = vpop.f32.mrb[0].mxu0
    %9219 = vdwg.mxu0
    %v9220 = vadd.f32 %v9217, %v8599
    %s9221 = scalar_lea.vmem [#allocation10], 104
    %9222 = vst.msk [vmem:[%s9221] sm:$0xff] %vm439, %v9220
    // Predicated region
    $region66: #{tpu_custom_call.1} parent=1 // pred_check
      _
    $region67: #{tpu_custom_call.1} parent=1 // pred_check_branch
      %9224 = sbr.rel (0) target = $region69
    $region68: #{tpu_custom_call.1} parent=1 // pred_region
      %s9226 = ssub.s32 1792, 1792
      %9227 = vsyncadd [#allocation4], %s9226
      %s9228 = sshll.u32 [#allocation10], 4
      %s9229 = int_to_ptr.vmem [resolvable:$true] %s9228
      %9234 = dma.vmem_to_hbm [thread:$0]  %s9229, 1792, %s12, [#allocation4], 128, 128, 8
    $region69: #{tpu_custom_call.1} parent=1 // pred_fallthru
      _
    // Predicated region
    $region70: #{tpu_custom_call.1} parent=1 // pred_check
      _
    $region71: #{tpu_custom_call.1} parent=1 // pred_check_branch
      %9236 = sbr.rel (0) target = $region73
    $region72: #{tpu_custom_call.1} parent=1 // pred_region
      %9237 = dma.done [#allocation4], 1792
    $region73: #{tpu_custom_call.1} parent=1 // pred_fallthru
      _
    %9238 = vsyncpa [#allocation3], 1
    %9239 = vsyncpa [#allocation8], 1
    %9240 = vsyncpa [#allocation4], 1
    %9241 = vsyncpa [#allocation5], 1

</llo_original>
